<compile_context>
chip_gen: v6e
topology: v6e:2x2x1
jax: 0.10.0
libtpu: 0.0.40
codegen_flags: <defaults>
</compile_context>

<pallas_src>
import functools

import jax
import jax.numpy as jnp
from jax.experimental import pallas as pl
from jax.experimental.pallas import tpu as pltpu


# ----------------------------------------------------------------------------
# Capability probe / small helpers
# ----------------------------------------------------------------------------
def _probe_kernel(x_ref, o_ref):
    o_ref[...] = x_ref[...]


@functools.lru_cache(maxsize=None)
def _single_buffer_ok():
    """True if pl.Buffered(1) (single-buffered constant blocks) compiles here."""
    try:
        x = jnp.zeros((8, 128), jnp.float32)
        fn = pl.pallas_call(
            _probe_kernel,
            out_shape=jax.ShapeDtypeStruct((8, 128), jnp.float32),
            grid=(1,),
            in_specs=[pl.BlockSpec((8, 128), lambda i: (0, 0),
                                   pipeline_mode=pl.Buffered(1))],
            out_specs=pl.BlockSpec((8, 128), lambda i: (0, 0)),
        )
        jax.block_until_ready(fn(x))
        return True
    except Exception:
        return False


def _const_spec(shape):
    """Whole array, same block every grid step (weights / biases / LN params).

    Single-buffered when supported: a constant-index block never needs the
    second pipeline buffer, so this halves weight VMEM residency.
    """
    nd = len(shape)
    idx = lambda b, q, _nd=nd: (0,) * _nd
    if _single_buffer_ok():
        return pl.BlockSpec(shape, idx, pipeline_mode=pl.Buffered(1))
    return pl.BlockSpec(shape, idx)


def _q_tile(seq_len, max_tile=256):
    """Largest multiple-of-8 divisor of seq_len that is <= max_tile (else full seq)."""
    if seq_len <= max_tile:
        return seq_len
    for t in range(max_tile, 7, -8):
        if seq_len % t == 0:
            return t
    return seq_len


def _vmem_budget_bytes():
    """~75% of physical VMEM (v5e/v6e: 128 MiB, v7x: 64 MiB); conservative fallback."""
    cap = 64 * 1024 * 1024
    try:
        cap = int(getattr(pltpu.get_tpu_info(), "vmem_capacity_bytes", cap))
    except Exception:
        pass
    return max(32 * 1024 * 1024, (cap * 3) // 4)


def _compiler_params(est_bytes, dims):
    budget = _vmem_budget_bytes()
    vmem = int(min(max(2 * est_bytes, 32 * 1024 * 1024), budget))
    return pltpu.CompilerParams(dimension_semantics=dims, vmem_limit_bytes=vmem)


# ----------------------------------------------------------------------------
# Kernels
# ----------------------------------------------------------------------------
def _attn_ln_kernel(*refs, num_heads, head_dim, eps, mask_kind):
    """Fused MHA + residual + LayerNorm for one (batch, q-tile).

    mask_kind: "none" | "causal" (built in-kernel from iota) | "array" (DMA'd).
    The K/V projection for the current batch is computed once (q-tile 0) into a
    persistent, head-split VMEM scratch and reused by the remaining q-tiles.
    """
    if mask_kind == "array":
        (q_ref, kv_ref, mask_ref, wq_ref, bq_ref, wkv_ref, bkv_ref,
         wo_ref, bo_ref, g_ref, beta_ref, o_ref, k_sc, v_sc) = refs
    else:
        (q_ref, kv_ref, wq_ref, bq_ref, wkv_ref, bkv_ref,
         wo_ref, bo_ref, g_ref, beta_ref, o_ref, k_sc, v_sc) = refs
        mask_ref = None

    f32 = jnp.float32
    mm = wq_ref.dtype                       # matmul operand dtype (bf16 weights)
    H, Dh = num_heads, head_dim
    E = H * Dh
    TQ = q_ref.shape[1]
    Sk = kv_ref.shape[1]

    def split_heads(t):                     # (rows, E) -> (H, rows, Dh)
        # Lane-aligned slices + stack along a new leading axis (cheap when
        # head_dim is a multiple of 128, which the demo uses).
        return jnp.stack([t[:, h * Dh:(h + 1) * Dh] for h in range(H)], axis=0)

    # ---- K/V projection + head split: once per batch (q-tiles revisit the scratch)
    @pl.when(pl.program_id(1) == 0)
    def _():
        kv = kv_ref[0]                                               # (Sk, E)
        kvp = jnp.dot(kv.astype(mm), wkv_ref[...],
                      preferred_element_type=f32) + bkv_ref[...]     # (Sk, 2E) f32
        kvp = kvp.astype(mm)                                         # cast once
        k_sc[...] = split_heads(kvp[:, :E])                          # (H, Sk, Dh)
        v_sc[...] = split_heads(kvp[:, E:])                          # (H, Sk, Dh)

    x = q_ref[0]                                                     # (TQ, E) residual

    # Q projection (1/sqrt(head_dim) folded into wq/bq at init time); cast once.
    Q = jnp.dot(x.astype(mm), wq_ref[...], preferred_element_type=f32) + bq_ref[...]
    Qh = split_heads(Q.astype(mm))                                   # (H, TQ, Dh)

    # ---- head-batched scores / context (no per-head Python loop of matmuls)
    s = jnp.einsum('hqd,hkd->hqk', Qh, k_sc[...],
                   preferred_element_type=f32)                       # (H, TQ, Sk)

    if mask_kind == "causal":
        # In-kernel causal mask: no O(S^2) tensor is ever DMA'd.
        row = jax.lax.broadcasted_iota(jnp.int32, (TQ, Sk), 0) + pl.program_id(1) * TQ
        col = jax.lax.broadcasted_iota(jnp.int32, (TQ, Sk), 1)
        s = jnp.where((col <= row)[None], s, -1e9)
    elif mask_kind == "array":
        # Matches PyTorch masked_fill(mask == 0, -1e9); assumes a 0/1 mask.
        s = jnp.where(mask_ref[0] == 0, -1e9, s)

    # softmax over keys (numerically stable, exact normalization)
    s_max = jnp.max(s, axis=-1, keepdims=True)
    p = jnp.exp(s - s_max)
    p = p * (1.0 / jnp.sum(p, axis=-1, keepdims=True))

    ctx = jnp.einsum('hqk,hkd->hqd', p.astype(mm), v_sc[...],
                     preferred_element_type=f32)                     # (H, TQ, Dh)
    ctx = jnp.concatenate([ctx[h] for h in range(H)], axis=-1)       # (TQ, E)
    out = jnp.dot(ctx.astype(mm), wo_ref[...],
                  preferred_element_type=f32) + bo_ref[...]          # (TQ, E)

    # ---- fused residual + LayerNorm epilogue (no HBM round trip)
    z = x.astype(f32) + out
    mean = jnp.mean(z, axis=-1, keepdims=True)
    var = jnp.mean(jnp.square(z - mean), axis=-1, keepdims=True)
    zn = (z - mean) * jax.lax.rsqrt(var + eps)
    o_ref[0] = (zn * g_ref[...] + beta_ref[...]).astype(o_ref.dtype)


def _ffn_ln_kernel(x_ref, w1_ref, b1_ref, w2_ref, b2_ref, g_ref, beta_ref, o_ref,
                   *, eps):
    """Fused linear1 -> relu -> linear2 + residual add + LayerNorm for one (batch, q-tile)."""
    f32 = jnp.float32
    mm = w1_ref.dtype
    x = x_ref[0]                                                     # (TQ, E)
    # TODO(synk): for very large ff_dim, stream F-tiles of w1/w2 (fori_loop +
    #             accumulator) so weight residency stays bounded on v7x.
    h = jnp.dot(x.astype(mm), w1_ref[...], preferred_element_type=f32) + b1_ref[...]
    h = jnp.maximum(h, 0.0)
    y = jnp.dot(h.astype(mm), w2_ref[...], preferred_element_type=f32) + b2_ref[...]

    z = x.astype(f32) + y
    mean = jnp.mean(z, axis=-1, keepdims=True)
    var = jnp.mean(jnp.square(z - mean), axis=-1, keepdims=True)
    zn = (z - mean) * jax.lax.rsqrt(var + eps)
    o_ref[0] = (zn * g_ref[...] + beta_ref[...]).astype(o_ref.dtype)


# ----------------------------------------------------------------------------
# Wrappers (pallas_call plumbing)
# ----------------------------------------------------------------------------
def mha_add_layernorm(q, kv, mask, attn_params, gamma, beta, *, num_heads, eps=1e-5):
    """LayerNorm(q + MultiHeadAttention(q, kv, kv, mask)) — one fused pallas_call.

    mask: None | "causal" (built in-kernel) | array of shape (B, num_heads, Sq, Sk).
    """
    B, Sq, E = q.shape
    Sk = kv.shape[1]
    assert E % num_heads == 0
    head_dim = E // num_heads
    tq = _q_tile(Sq)
    grid = (B, Sq // tq)

    if mask is None:
        mask_kind = "none"
    elif isinstance(mask, str):
        assert mask == "causal"
        mask_kind = "causal"
    else:
        mask_kind = "array"

    kernel = functools.partial(_attn_ln_kernel, num_heads=num_heads,
                               head_dim=head_dim, eps=eps, mask_kind=mask_kind)

    in_specs = [
        pl.BlockSpec((1, tq, E), lambda b, qi: (b, qi, 0)),   # query / residual tile
        pl.BlockSpec((1, Sk, E), lambda b, qi: (b, 0, 0)),    # K/V source rows (per batch)
    ]
    inputs = [q, kv]
    if mask_kind == "array":
        in_specs.append(pl.BlockSpec((1, num_heads, tq, Sk),
                                     lambda b, qi: (b, 0, qi, 0)))
        inputs.append(mask)

    weights = (attn_params["wq"], attn_params["bq"],
               attn_params["wkv"], attn_params["bkv"],
               attn_params["wo"], attn_params["bo"], gamma, beta)
    for w in weights:
        in_specs.append(_const_spec(w.shape))
        inputs.append(w)

    mm_dtype = attn_params["wq"].dtype
    mm_item = mm_dtype.itemsize
    w_bytes = sum(w.size * w.dtype.itemsize for w in weights)

    # rough per-step VMEM estimate (activation blocks, weights, scratch, f32 temps)
    act_item = q.dtype.itemsize
    lane_dh = max(head_dim, 128)                      # sub-128 head_dim pads lanes
    blk = act_item * (2 * tq * E + Sk * E) + w_bytes
    if mask_kind == "array":
        blk += num_heads * tq * Sk * mask.dtype.itemsize
    scr = 2 * num_heads * Sk * lane_dh * mm_item
    interm = (4 * (2 * num_heads * tq * Sk + 4 * tq * E)
              + mm_item * (2 * num_heads * tq * lane_dh))
    est = 2 * blk + scr + interm

    # advisory cost estimate for the XLA scheduler
    flops = (2 * B * Sq * E * E                         # Q projection
             + 2 * B * Sk * E * 2 * E                   # K|V projection (once / batch)
             + 4 * B * num_heads * Sq * Sk * head_dim   # QK^T + PV
             + 2 * B * Sq * E * E)                      # output projection
    bytes_accessed = (2 * q.size * q.dtype.itemsize + kv.size * kv.dtype.itemsize
                      + B * w_bytes)
    if mask_kind == "array":
        bytes_accessed += mask.size * mask.dtype.itemsize
    cost = pl.CostEstimate(flops=int(flops),
                           transcendentals=int(B * num_heads * Sq * Sk),
                           bytes_accessed=int(bytes_accessed))

    return pl.pallas_call(
        kernel,
        out_shape=jax.ShapeDtypeStruct((B, Sq, E), q.dtype),
        grid=grid,
        in_specs=in_specs,
        out_specs=pl.BlockSpec((1, tq, E), lambda b, qi: (b, qi, 0)),
        scratch_shapes=[pltpu.VMEM((num_heads, Sk, head_dim), mm_dtype),   # K (head-split)
                        pltpu.VMEM((num_heads, Sk, head_dim), mm_dtype)],  # V (head-split)
        # q-tile axis sequentially revisits the per-batch K/V scratch -> "arbitrary";
        # batch axis stays "parallel" (megacore shardable, scratch is per-core).
        compiler_params=_compiler_params(est, ("parallel", "arbitrary")),
        cost_estimate=cost,
    )(*inputs)


def ffn_add_layernorm(x, ffn_params, gamma, beta, *, eps=1e-5):
    """LayerNorm(x + FeedForward(x)) — one fused pallas_call."""
    B, S, E = x.shape
    F = ffn_params["w1"].shape[1]
    tq = _q_tile(S)
    grid = (B, S // tq)

    kernel = functools.partial(_ffn_ln_kernel, eps=eps)
    weights = (ffn_params["w1"], ffn_params["b1"],
               ffn_params["w2"], ffn_params["b2"], gamma, beta)
    w_bytes = sum(w.size * w.dtype.itemsize for w in weights)

    blk = x.dtype.itemsize * (2 * tq * E) + w_bytes
    interm = 4 * (tq * F + 3 * tq * E)
    est = 2 * blk + interm

    cost = pl.CostEstimate(
        flops=int(4 * B * S * E * F),
        transcendentals=0,
        bytes_accessed=int(2 * x.size * x.dtype.itemsize + B * w_bytes))

    in_specs = [pl.BlockSpec((1, tq, E), lambda b, qi: (b, qi, 0))]
    in_specs += [_const_spec(w.shape) for w in weights]

    return pl.pallas_call(
        kernel,
        out_shape=jax.ShapeDtypeStruct((B, S, E), x.dtype),
        grid=grid,
        in_specs=in_specs,
        out_specs=pl.BlockSpec((1, tq, E), lambda b, qi: (b, qi, 0)),
        compiler_params=_compiler_params(est, ("parallel", "parallel")),
        cost_estimate=cost,
    )(x, *weights)


# ----------------------------------------------------------------------------
# DecoderLayer / Decoder forward
# ----------------------------------------------------------------------------
def decoder_layer(x, enc_output, p, *, num_heads, self_mask=None, enc_dec_mask=None):
    # self-attention + residual + LN (dropout == identity, eval mode)
    x = mha_add_layernorm(x, x, self_mask, p["self_attn"],
                          p["ln1_g"], p["ln1_b"], num_heads=num_heads)
    # encoder-decoder attention + residual + LN
    x = mha_add_layernorm(x, enc_output, enc_dec_mask, p["enc_dec_attn"],
                          p["ln2_g"], p["ln2_b"], num_heads=num_heads)
    # feed-forward + residual + LN
    x = ffn_add_layernorm(x, p["ffn"], p["ln3_g"], p["ln3_b"])
    return x


def decoder(x, enc_output, layer_params, *, num_heads, self_mask=None, enc_dec_mask=None):
    for p in layer_params:
        x = decoder_layer(x, enc_output, p, num_heads=num_heads,
                          self_mask=self_mask, enc_dec_mask=enc_dec_mask)
    return x


# ----------------------------------------------------------------------------
# Deterministic parameter init (synthetic, no checkpoints)
# ----------------------------------------------------------------------------
def init_layer_params(key, embed_dim, num_heads, ff_dim, param_dtype=jnp.bfloat16):
    """Weights stored pre-fused (wkv = [Wk | Wv]) with 1/sqrt(head_dim) folded into
    wq/bq (mathematically identical to the PyTorch module's forward). Weight
    matrices are bf16 (MXU operands); biases / LN params stay f32 (added to the
    f32 accumulators)."""
    head_dim = embed_dim // num_heads
    inv_scale = 1.0 / (head_dim ** 0.5)

    def lin(k, din, dout):
        kw, kb = jax.random.split(k)
        w = jax.random.normal(kw, (din, dout), jnp.float32) * (1.0 / din) ** 0.5
        b = jax.random.normal(kb, (1, dout), jnp.float32) * 0.01
        return w, b

    keys = jax.random.split(key, 10)

    def attn_params(k0, k1, k2, k3):
        wq, bq = lin(k0, embed_dim, embed_dim)
        wk, bk = lin(k1, embed_dim, embed_dim)
        wv, bv = lin(k2, embed_dim, embed_dim)
        wo, bo = lin(k3, embed_dim, embed_dim)
        return dict(
            wq=(wq * inv_scale).astype(param_dtype),
            bq=bq * inv_scale,
            wkv=jnp.concatenate([wk, wv], axis=1).astype(param_dtype),
            bkv=jnp.concatenate([bk, bv], axis=1),
            wo=wo.astype(param_dtype),
            bo=bo)

    self_attn = attn_params(*keys[0:4])
    enc_dec_attn = attn_params(*keys[4:8])

    w1, b1 = lin(keys[8], embed_dim, ff_dim)
    w2, b2 = lin(keys[9], ff_dim, embed_dim)
    ffn = dict(w1=w1.astype(param_dtype), b1=b1, w2=w2.astype(param_dtype), b2=b2)

    ones = jnp.ones((1, embed_dim), jnp.float32)
    zeros = jnp.zeros((1, embed_dim), jnp.float32)
    return dict(self_attn=self_attn, enc_dec_attn=enc_dec_attn, ffn=ffn,
                ln1_g=ones, ln1_b=zeros,
                ln2_g=ones, ln2_b=zeros,
                ln3_g=ones, ln3_b=zeros)


# ----------------------------------------------------------------------------
# Demo
# ----------------------------------------------------------------------------
if __name__ == "__main__":
    # head_dim = 128 -> head splits are clean 128-lane slices and every MXU
    # contraction is full depth; S = 512 with 256-row q-tiles exercises the
    # per-batch K/V scratch reuse across q-tiles.
    B, S, E, H, F = 2, 512, 256, 2, 512
    LAYERS = 2

    key = jax.random.PRNGKey(0)
    kx, ke, kp = jax.random.split(key, 3)
    act_dtype = jnp.bfloat16
    x = jax.random.normal(kx, (B, S, E), jnp.float32).astype(act_dtype)
    enc_output = jax.random.normal(ke, (B, S, E), jnp.float32).astype(act_dtype)
    layer_keys = jax.random.split(kp, LAYERS)
    params = [init_layer_params(k, E, H, F, param_dtype=jnp.bfloat16)
              for k in layer_keys]

    # Causal self-attention mask is generated in-kernel from iota (no (B,H,S,S)
    # tensor is ever materialized or DMA'd); enc-dec mask = None is elided.
    out = decoder(x, enc_output, params, num_heads=H,
                  self_mask="causal", enc_dec_mask=None)
    out = jax.block_until_ready(out)
    assert out.shape == (B, S, E)
    assert bool(jnp.all(jnp.isfinite(out.astype(jnp.float32))))
    print("KERNEL_OK")
</pallas_src>

<mosaic_0001>
module attributes {stable_mosaic.version = 11 : i64} {
  func.func @_probe_kernel(%arg0: i32, %arg1: memref<8x128xf32, #tpu.memory_space<vmem>>, %arg2: memref<8x128xf32, #tpu.memory_space<vmem>>) attributes {dimension_semantics = [#tpu.dimension_semantics<arbitrary>], iteration_bounds = array<i64: 1>, scalar_prefetch = 0 : i64, scratch_operands = 0 : i64, tpu.core_type = #tpu.core_type<tc>, window_params = [{pipeline_mode = #tpu.pipeline_mode<synchronous>, transform_indices = @transform_0, window_bounds = array<i64: 8, 128>}, {pipeline_mode = #tpu.pipeline_mode<synchronous>, transform_indices = @transform_1, window_bounds = array<i64: 8, 128>}]} {
    %c0 = arith.constant 0 : index
    %c0_0 = arith.constant 0 : index
    %0 = vector.load %arg1[%c0, %c0_0] : memref<8x128xf32, #tpu.memory_space<vmem>>, vector<8x128xf32>
    %c0_1 = arith.constant 0 : index
    %c0_2 = arith.constant 0 : index
    %1 = vector.load %arg2[%c0_1, %c0_2] : memref<8x128xf32, #tpu.memory_space<vmem>>, vector<8x128xf32>
    tpu.vector_store %arg2[%c0_1, %c0_2], %0 {strides = array<i32>} : memref<8x128xf32, #tpu.memory_space<vmem>>, vector<8x128xf32>,
    return
  }
  func.func @transform_0(%arg0: i32) -> (i32, i32) {
    %c0_i32 = arith.constant 0 : i32
    %c0_i32_0 = arith.constant 0 : i32
    %c0_i32_1 = arith.constant 0 : i32
    return %c0_i32, %c0_i32_0 : i32, i32
  }
  func.func @transform_1(%arg0: i32) -> (i32, i32) {
    %c0_i32 = arith.constant 0 : i32
    %c0_i32_0 = arith.constant 0 : i32
    %c0_i32_1 = arith.constant 0 : i32
    return %c0_i32, %c0_i32_0 : i32, i32
  }
}

module attributes {stable_mosaic.version = 11 : i64} {
  func.func @_attn_ln_kernel(%arg0: i32, %arg1: i32, %arg2: memref<1x256x256xbf16, #tpu.memory_space<vmem>>, %arg3: memref<1x512x256xbf16, #tpu.memory_space<vmem>>, %arg4: memref<256x256xbf16, #tpu.memory_space<vmem>>, %arg5: memref<1x256xf32, #tpu.memory_space<vmem>>, %arg6: memref<256x512xbf16, #tpu.memory_space<vmem>>, %arg7: memref<1x512xf32, #tpu.memory_space<vmem>>, %arg8: memref<256x256xbf16, #tpu.memory_space<vmem>>, %arg9: memref<1x256xf32, #tpu.memory_space<vmem>>, %arg10: memref<1x256xf32, #tpu.memory_space<vmem>>, %arg11: memref<1x256xf32, #tpu.memory_space<vmem>>, %arg12: memref<1x256x256xbf16, #tpu.memory_space<vmem>>, %arg13: memref<2x512x128xbf16, #tpu.memory_space<vmem>>, %arg14: memref<2x512x128xbf16, #tpu.memory_space<vmem>>) attributes {dimension_semantics = [#tpu.dimension_semantics<parallel>, #tpu.dimension_semantics<arbitrary>], iteration_bounds = array<i64: 2, 2>, scalar_prefetch = 0 : i64, scratch_operands = 2 : i64, tpu.core_type = #tpu.core_type<tc>, window_params = [{transform_indices = @transform_0, window_bounds = array<i64: 1, 256, 256>}, {transform_indices = @transform_1, window_bounds = array<i64: 1, 512, 256>}, {pipeline_mode = #tpu.pipeline_mode<synchronous>, transform_indices = @transform_2, window_bounds = array<i64: 256, 256>}, {pipeline_mode = #tpu.pipeline_mode<synchronous>, transform_indices = @transform_3, window_bounds = array<i64: 1, 256>}, {pipeline_mode = #tpu.pipeline_mode<synchronous>, transform_indices = @transform_4, window_bounds = array<i64: 256, 512>}, {pipeline_mode = #tpu.pipeline_mode<synchronous>, transform_indices = @transform_5, window_bounds = array<i64: 1, 512>}, {pipeline_mode = #tpu.pipeline_mode<synchronous>, transform_indices = @transform_6, window_bounds = array<i64: 256, 256>}, {pipeline_mode = #tpu.pipeline_mode<synchronous>, transform_indices = @transform_7, window_bounds = array<i64: 1, 256>}, {pipeline_mode = #tpu.pipeline_mode<synchronous>, transform_indices = @transform_8, window_bounds = array<i64: 1, 256>}, {pipeline_mode = #tpu.pipeline_mode<synchronous>, transform_indices = @transform_9, window_bounds = array<i64: 1, 256>}, {transform_indices = @transform_10, window_bounds = array<i64: 1, 256, 256>}]} {
    %c0_i32 = arith.constant 0 : i32
    %0 = arith.cmpi eq, %arg1, %c0_i32 : i32
    %1 = arith.extui %0 : i1 to i32
    %c0_i32_0 = arith.constant 0 : i32
    %2 = arith.cmpi ne, %1, %c0_i32_0 : i32
    scf.if %2 {
      %c0_36 = arith.constant 0 : index
      %c0_37 = arith.constant 0 : index
      %c0_38 = arith.constant 0 : index
      %84 = vector.load %arg3[%c0_36, %c0_37, %c0_38] : memref<1x512x256xbf16, #tpu.memory_space<vmem>>, vector<1x512x256xbf16>
      %85 = vector.shape_cast %84 : vector<1x512x256xbf16> to vector<512x256xbf16>
      %c0_39 = arith.constant 0 : index
      %c0_40 = arith.constant 0 : index
      %86 = vector.load %arg6[%c0_39, %c0_40] : memref<256x512xbf16, #tpu.memory_space<vmem>>, vector<256x512xbf16>
      %cst_41 = arith.constant dense<0.000000e+00> : vector<512x512xf32>
      %87 = tpu.matmul %85, %86, %cst_41 {dimension_numbers = #tpu.dot_dimension_numbers<[1], [0], [0], [1], [0, 0, 1, 1], [], []>} : vector<512x256xbf16>, vector<256x512xbf16>, vector<512x512xf32> -> vector<512x512xf32>
      %c0_42 = arith.constant 0 : index
      %c0_43 = arith.constant 0 : index
      %88 = vector.load %arg7[%c0_42, %c0_43] : memref<1x512xf32, #tpu.memory_space<vmem>>, vector<1x512xf32>
      %89 = vector.broadcast %88 : vector<1x512xf32> to vector<512x512xf32>
      %90 = arith.addf %87, %89 : vector<512x512xf32>
      %91 = arith.truncf %90 : vector<512x512xf32> to vector<512x512xbf16>
      %92 = vector.extract_strided_slice %91 {offsets = [0, 0], sizes = [512, 256], strides = [1, 1]} : vector<512x512xbf16> to vector<512x256xbf16>
      %93 = vector.extract_strided_slice %92 {offsets = [0, 0], sizes = [512, 128], strides = [1, 1]} : vector<512x256xbf16> to vector<512x128xbf16>
      %94 = vector.extract_strided_slice %92 {offsets = [0, 128], sizes = [512, 128], strides = [1, 1]} : vector<512x256xbf16> to vector<512x128xbf16>
      %95 = vector.shape_cast %93 : vector<512x128xbf16> to vector<1x512x128xbf16>
      %96 = vector.shape_cast %94 : vector<512x128xbf16> to vector<1x512x128xbf16>
      %97 = tpu.concatenate %95, %96 in 0 : vector<1x512x128xbf16>, vector<1x512x128xbf16> -> vector<2x512x128xbf16>
      %c0_44 = arith.constant 0 : index
      %c0_45 = arith.constant 0 : index
      %c0_46 = arith.constant 0 : index
      %98 = vector.load %arg13[%c0_44, %c0_45, %c0_46] : memref<2x512x128xbf16, #tpu.memory_space<vmem>>, vector<2x512x128xbf16>
      tpu.vector_store %arg13[%c0_44, %c0_45, %c0_46], %97 {strides = array<i32>} : memref<2x512x128xbf16, #tpu.memory_space<vmem>>, vector<2x512x128xbf16>,
      %99 = vector.extract_strided_slice %91 {offsets = [0, 256], sizes = [512, 256], strides = [1, 1]} : vector<512x512xbf16> to vector<512x256xbf16>
      %100 = vector.extract_strided_slice %99 {offsets = [0, 0], sizes = [512, 128], strides = [1, 1]} : vector<512x256xbf16> to vector<512x128xbf16>
      %101 = vector.extract_strided_slice %99 {offsets = [0, 128], sizes = [512, 128], strides = [1, 1]} : vector<512x256xbf16> to vector<512x128xbf16>
      %102 = vector.shape_cast %100 : vector<512x128xbf16> to vector<1x512x128xbf16>
      %103 = vector.shape_cast %101 : vector<512x128xbf16> to vector<1x512x128xbf16>
      %104 = tpu.concatenate %102, %103 in 0 : vector<1x512x128xbf16>, vector<1x512x128xbf16> -> vector<2x512x128xbf16>
      %c0_47 = arith.constant 0 : index
      %c0_48 = arith.constant 0 : index
      %c0_49 = arith.constant 0 : index
      %105 = vector.load %arg14[%c0_47, %c0_48, %c0_49] : memref<2x512x128xbf16, #tpu.memory_space<vmem>>, vector<2x512x128xbf16>
      tpu.vector_store %arg14[%c0_47, %c0_48, %c0_49], %104 {strides = array<i32>} : memref<2x512x128xbf16, #tpu.memory_space<vmem>>, vector<2x512x128xbf16>,
    } else {
    }
    %c0 = arith.constant 0 : index
    %c0_1 = arith.constant 0 : index
    %c0_2 = arith.constant 0 : index
    %3 = vector.load %arg2[%c0, %c0_1, %c0_2] : memref<1x256x256xbf16, #tpu.memory_space<vmem>>, vector<1x256x256xbf16>
    %4 = vector.shape_cast %3 : vector<1x256x256xbf16> to vector<256x256xbf16>
    %c0_3 = arith.constant 0 : index
    %c0_4 = arith.constant 0 : index
    %5 = vector.load %arg4[%c0_3, %c0_4] : memref<256x256xbf16, #tpu.memory_space<vmem>>, vector<256x256xbf16>
    %cst = arith.constant dense<0.000000e+00> : vector<256x256xf32>
    %6 = tpu.matmul %4, %5, %cst {dimension_numbers = #tpu.dot_dimension_numbers<[1], [0], [0], [1], [0, 0, 1, 1], [], []>} : vector<256x256xbf16>, vector<256x256xbf16>, vector<256x256xf32> -> vector<256x256xf32>
    %c0_5 = arith.constant 0 : index
    %c0_6 = arith.constant 0 : index
    %7 = vector.load %arg5[%c0_5, %c0_6] : memref<1x256xf32, #tpu.memory_space<vmem>>, vector<1x256xf32>
    %8 = vector.broadcast %7 : vector<1x256xf32> to vector<256x256xf32>
    %9 = arith.addf %6, %8 : vector<256x256xf32>
    %10 = arith.truncf %9 : vector<256x256xf32> to vector<256x256xbf16>
    %11 = vector.extract_strided_slice %10 {offsets = [0, 0], sizes = [256, 128], strides = [1, 1]} : vector<256x256xbf16> to vector<256x128xbf16>
    %12 = vector.extract_strided_slice %10 {offsets = [0, 128], sizes = [256, 128], strides = [1, 1]} : vector<256x256xbf16> to vector<256x128xbf16>
    %13 = vector.shape_cast %11 : vector<256x128xbf16> to vector<1x256x128xbf16>
    %14 = vector.shape_cast %12 : vector<256x128xbf16> to vector<1x256x128xbf16>
    %15 = tpu.concatenate %13, %14 in 0 : vector<1x256x128xbf16>, vector<1x256x128xbf16> -> vector<2x256x128xbf16>
    %c0_7 = arith.constant 0 : index
    %c0_8 = arith.constant 0 : index
    %c0_9 = arith.constant 0 : index
    %16 = vector.load %arg13[%c0_7, %c0_8, %c0_9] : memref<2x512x128xbf16, #tpu.memory_space<vmem>>, vector<2x512x128xbf16>
    "tpu.trace_start"() <{level = 10 : i32, message = "hqd,hkd->hqk"}> : () -> ()
    %cst_10 = arith.constant dense<0.000000e+00> : vector<2x256x512xf32>
    %17 = tpu.matmul %15, %16, %cst_10 {dimension_numbers = #tpu.dot_dimension_numbers<[2], [2], [1], [1], [0, 0, 0, 1, 1, 1], [0], [0]>} : vector<2x256x128xbf16>, vector<2x512x128xbf16>, vector<2x256x512xf32> -> vector<2x256x512xf32>
    "tpu.trace_stop"() : () -> ()
    %18 = tpu.iota {dimensions = array<i32: 0>} : vector<256x512xi32>
    %c256_i32 = arith.constant 256 : i32
    %19 = arith.muli %arg1, %c256_i32 : i32
    %20 = vector.broadcast %19 : i32 to vector<256x512xi32>
    %21 = arith.addi %18, %20 : vector<256x512xi32>
    %22 = tpu.iota {dimensions = array<i32: 1>} : vector<256x512xi32>
    %23 = arith.cmpi sle, %22, %21 : vector<256x512xi32>
    %24 = vector.shape_cast %23 : vector<256x512xi1> to vector<1x256x512xi1>
    %cst_11 = arith.constant -1.000000e+09 : f32
    %25 = vector.shape_cast %24 : vector<1x256x512xi1> to vector<1x256x512xi1>
    %26 = vector.broadcast %25 : vector<1x256x512xi1> to vector<2x256x512xi1>
    %27 = vector.broadcast %cst_11 : f32 to vector<2x256x512xf32>
    %28 = arith.select %26, %17, %27 : vector<2x256x512xi1>, vector<2x256x512xf32>
    %cst_12 = arith.constant dense<0xFF800000> : vector<2x256xf32>
    %29 = vector.multi_reduction <maximumf>, %28, %cst_12 [2] : vector<2x256x512xf32> to vector<2x256xf32>
    %30 = vector.shape_cast %29 : vector<2x256xf32> to vector<2x256x1xf32>
    %31 = vector.broadcast %30 : vector<2x256x1xf32> to vector<2x256x512xf32>
    %32 = arith.subf %28, %31 : vector<2x256x512xf32>
    %33 = math.exp %32 : vector<2x256x512xf32>
    %cst_13 = arith.constant dense<0.000000e+00> : vector<2x256xf32>
    %34 = vector.multi_reduction <add>, %33, %cst_13 [2] : vector<2x256x512xf32> to vector<2x256xf32>
    %35 = vector.shape_cast %34 : vector<2x256xf32> to vector<2x256x1xf32>
    %cst_14 = arith.constant 1.000000e+00 : f32
    %36 = vector.broadcast %cst_14 : f32 to vector<2x256x1xf32>
    %37 = arith.divf %36, %35 : vector<2x256x1xf32>
    %38 = vector.broadcast %37 : vector<2x256x1xf32> to vector<2x256x512xf32>
    %39 = arith.mulf %33, %38 : vector<2x256x512xf32>
    %40 = arith.truncf %39 : vector<2x256x512xf32> to vector<2x256x512xbf16>
    %c0_15 = arith.constant 0 : index
    %c0_16 = arith.constant 0 : index
    %c0_17 = arith.constant 0 : index
    %41 = vector.load %arg14[%c0_15, %c0_16, %c0_17] : memref<2x512x128xbf16, #tpu.memory_space<vmem>>, vector<2x512x128xbf16>
    "tpu.trace_start"() <{level = 10 : i32, message = "hqk,hkd->hqd"}> : () -> ()
    %cst_18 = arith.constant dense<0.000000e+00> : vector<2x256x128xf32>
    %42 = tpu.matmul %40, %41, %cst_18 {dimension_numbers = #tpu.dot_dimension_numbers<[2], [1], [1], [2], [0, 0, 0, 1, 1, 2], [0], [0]>} : vector<2x256x512xbf16>, vector<2x512x128xbf16>, vector<2x256x128xf32> -> vector<2x256x128xf32>
    "tpu.trace_stop"() : () -> ()
    %43 = vector.extract_strided_slice %42 {offsets = [0, 0, 0], sizes = [1, 256, 128], strides = [1, 1, 1]} : vector<2x256x128xf32> to vector<1x256x128xf32>
    %44 = vector.shape_cast %43 : vector<1x256x128xf32> to vector<256x128xf32>
    %45 = vector.extract_strided_slice %42 {offsets = [1, 0, 0], sizes = [1, 256, 128], strides = [1, 1, 1]} : vector<2x256x128xf32> to vector<1x256x128xf32>
    %46 = vector.shape_cast %45 : vector<1x256x128xf32> to vector<256x128xf32>
    %47 = tpu.concatenate %44, %46 in 1 : vector<256x128xf32>, vector<256x128xf32> -> vector<256x256xf32>
    %48 = arith.truncf %47 : vector<256x256xf32> to vector<256x256xbf16>
    %c0_19 = arith.constant 0 : index
    %c0_20 = arith.constant 0 : index
    %49 = vector.load %arg8[%c0_19, %c0_20] : memref<256x256xbf16, #tpu.memory_space<vmem>>, vector<256x256xbf16>
    %cst_21 = arith.constant dense<0.000000e+00> : vector<256x256xf32>
    %50 = tpu.matmul %48, %49, %cst_21 {dimension_numbers = #tpu.dot_dimension_numbers<[1], [0], [0], [1], [0, 0, 1, 1], [], []>} : vector<256x256xbf16>, vector<256x256xbf16>, vector<256x256xf32> -> vector<256x256xf32>
    %c0_22 = arith.constant 0 : index
    %c0_23 = arith.constant 0 : index
    %51 = vector.load %arg9[%c0_22, %c0_23] : memref<1x256xf32, #tpu.memory_space<vmem>>, vector<1x256xf32>
    %52 = vector.broadcast %51 : vector<1x256xf32> to vector<256x256xf32>
    %53 = arith.addf %50, %52 : vector<256x256xf32>
    %54 = arith.extf %4 : vector<256x256xbf16> to vector<256x256xf32>
    %55 = arith.addf %54, %53 : vector<256x256xf32>
    %cst_24 = arith.constant dense<0.000000e+00> : vector<256xf32>
    %56 = vector.multi_reduction <add>, %55, %cst_24 [1] : vector<256x256xf32> to vector<256xf32>
    %57 = vector.shape_cast %56 : vector<256xf32> to vector<256x1xf32>
    %cst_25 = arith.constant 2.560000e+02 : f32
    %58 = vector.broadcast %cst_25 : f32 to vector<256x1xf32>
    %59 = arith.divf %57, %58 : vector<256x1xf32>
    %60 = vector.broadcast %59 : vector<256x1xf32> to vector<256x256xf32>
    %61 = arith.subf %55, %60 : vector<256x256xf32>
    %62 = arith.mulf %61, %61 : vector<256x256xf32>
    %cst_26 = arith.constant dense<0.000000e+00> : vector<256xf32>
    %63 = vector.multi_reduction <add>, %62, %cst_26 [1] : vector<256x256xf32> to vector<256xf32>
    %64 = vector.shape_cast %63 : vector<256xf32> to vector<256x1xf32>
    %cst_27 = arith.constant 2.560000e+02 : f32
    %65 = vector.broadcast %cst_27 : f32 to vector<256x1xf32>
    %66 = arith.divf %64, %65 : vector<256x1xf32>
    %67 = vector.broadcast %59 : vector<256x1xf32> to vector<256x256xf32>
    %68 = arith.subf %55, %67 : vector<256x256xf32>
    %cst_28 = arith.constant 9.99999974E-6 : f32
    %69 = vector.broadcast %cst_28 : f32 to vector<256x1xf32>
    %70 = arith.addf %66, %69 : vector<256x1xf32>
    %71 = math.rsqrt %70 : vector<256x1xf32>
    %72 = vector.broadcast %71 : vector<256x1xf32> to vector<256x256xf32>
    %73 = arith.mulf %68, %72 : vector<256x256xf32>
    %c0_29 = arith.constant 0 : index
    %c0_30 = arith.constant 0 : index
    %74 = vector.load %arg10[%c0_29, %c0_30] : memref<1x256xf32, #tpu.memory_space<vmem>>, vector<1x256xf32>
    %75 = vector.broadcast %74 : vector<1x256xf32> to vector<256x256xf32>
    %76 = arith.mulf %73, %75 : vector<256x256xf32>
    %c0_31 = arith.constant 0 : index
    %c0_32 = arith.constant 0 : index
    %77 = vector.load %arg11[%c0_31, %c0_32] : memref<1x256xf32, #tpu.memory_space<vmem>>, vector<1x256xf32>
    %78 = vector.broadcast %77 : vector<1x256xf32> to vector<256x256xf32>
    %79 = arith.addf %76, %78 : vector<256x256xf32>
    %80 = arith.truncf %79 : vector<256x256xf32> to vector<256x256xbf16>
    %c0_33 = arith.constant 0 : index
    %c0_34 = arith.constant 0 : index
    %c0_35 = arith.constant 0 : index
    %81 = vector.load %arg12[%c0_33, %c0_34, %c0_35] : memref<1x256x256xbf16, #tpu.memory_space<vmem>>, vector<1x256x256xbf16>
    %82 = vector.shape_cast %81 : vector<1x256x256xbf16> to vector<256x256xbf16>
    %83 = vector.shape_cast %80 : vector<256x256xbf16> to vector<1x256x256xbf16>
    tpu.vector_store %arg12[%c0_33, %c0_34, %c0_35], %83 {strides = array<i32>} : memref<1x256x256xbf16, #tpu.memory_space<vmem>>, vector<1x256x256xbf16>,
    return
  }
  func.func @transform_0(%arg0: i32, %arg1: i32) -> (i32, i32, i32) {
    %c0_i32 = arith.constant 0 : i32
    %c0_i32_0 = arith.constant 0 : i32
    return %arg0, %arg1, %c0_i32 : i32, i32, i32
  }
  func.func @transform_1(%arg0: i32, %arg1: i32) -> (i32, i32, i32) {
    %c0_i32 = arith.constant 0 : i32
    %c0_i32_0 = arith.constant 0 : i32
    %c0_i32_1 = arith.constant 0 : i32
    return %arg0, %c0_i32, %c0_i32_0 : i32, i32, i32
  }
  func.func @transform_2(%arg0: i32, %arg1: i32) -> (i32, i32) {
    %c0_i32 = arith.constant 0 : i32
    %c0_i32_0 = arith.constant 0 : i32
    %c0_i32_1 = arith.constant 0 : i32
    return %c0_i32, %c0_i32_0 : i32, i32
  }
  func.func @transform_3(%arg0: i32, %arg1: i32) -> (i32, i32) {
    %c0_i32 = arith.constant 0 : i32
    %c0_i32_0 = arith.constant 0 : i32
    %c0_i32_1 = arith.constant 0 : i32
    return %c0_i32, %c0_i32_0 : i32, i32
  }
  func.func @transform_4(%arg0: i32, %arg1: i32) -> (i32, i32) {
    %c0_i32 = arith.constant 0 : i32
    %c0_i32_0 = arith.constant 0 : i32
    %c0_i32_1 = arith.constant 0 : i32
    return %c0_i32, %c0_i32_0 : i32, i32
  }
  func.func @transform_5(%arg0: i32, %arg1: i32) -> (i32, i32) {
    %c0_i32 = arith.constant 0 : i32
    %c0_i32_0 = arith.constant 0 : i32
    %c0_i32_1 = arith.constant 0 : i32
    return %c0_i32, %c0_i32_0 : i32, i32
  }
  func.func @transform_6(%arg0: i32, %arg1: i32) -> (i32, i32) {
    %c0_i32 = arith.constant 0 : i32
    %c0_i32_0 = arith.constant 0 : i32
    %c0_i32_1 = arith.constant 0 : i32
    return %c0_i32, %c0_i32_0 : i32, i32
  }
  func.func @transform_7(%arg0: i32, %arg1: i32) -> (i32, i32) {
    %c0_i32 = arith.constant 0 : i32
    %c0_i32_0 = arith.constant 0 : i32
    %c0_i32_1 = arith.constant 0 : i32
    return %c0_i32, %c0_i32_0 : i32, i32
  }
  func.func @transform_8(%arg0: i32, %arg1: i32) -> (i32, i32) {
    %c0_i32 = arith.constant 0 : i32
    %c0_i32_0 = arith.constant 0 : i32
    %c0_i32_1 = arith.constant 0 : i32
    return %c0_i32, %c0_i32_0 : i32, i32
  }
  func.func @transform_9(%arg0: i32, %arg1: i32) -> (i32, i32) {
    %c0_i32 = arith.constant 0 : i32
    %c0_i32_0 = arith.constant 0 : i32
    %c0_i32_1 = arith.constant 0 : i32
    return %c0_i32, %c0_i32_0 : i32, i32
  }
  func.func @transform_10(%arg0: i32, %arg1: i32) -> (i32, i32, i32) {
    %c0_i32 = arith.constant 0 : i32
    %c0_i32_0 = arith.constant 0 : i32
    return %arg0, %arg1, %c0_i32 : i32, i32, i32
  }
}

</mosaic_0001>

<llo_original>
// kernel: tpu_custom_call.1
$region0: #{tpu_custom_call.1}
  #allocation0 [shape = 'u32[]', space=smem, size = 0x4, offset = 0x4, fixed_abs, tag = 'smem constant byte address 0x4 - core index']
  #allocation1 [shape = 'u32[144,128]{1,0:T(1,128)}', space=vmem, size = 0x12000, scoped, tag = 'internal scratch']
  %s0 = inlined_call_operand.hbm [shape: f32[8,128], index: 0, kind: input, shape index: {}]
  %s1 = inlined_call_operand.hbm [shape: f32[8,128], index: 1, kind: output, shape index: {}]
  %s2 = sld [smem:[#allocation0]]
  $region18: #{tpu_custom_call.1} parent=0
    _
  %s4 = ssub.s32 1, %s2
  %s5 = scalar_select 0, %s4, %s2
  $region1: #{tpu_custom_call.1} parent=0
    #allocation2 [shape = 'u8[4096]{0}', space=vmem, size = 0x1000, scoped, tag = 'input window, operand 0, single buffered']
    #allocation3 [shape = 's32[1]{0}', space=sflag, size = 0x4, scoped, tag = 'scoped memory for tpu_custom_call.1']
    #allocation4 [shape = 's32[1]{0}', space=sflag, size = 0x4, scoped, tag = 'scoped memory for tpu_custom_call.1']
    #allocation5 [shape = 'u8[4096]{0}', space=vmem, size = 0x1000, scoped, tag = 'output window, operand 0, single buffered']
    %6 = vsyncpa [#allocation3], 0
    %7 = vsyncpa [#allocation4], 0
    // Predicated region
    $region2: #{tpu_custom_call.1} parent=1 // pred_check
      _
    $region3: #{tpu_custom_call.1} parent=1 // pred_check_branch
      %9 = sbr.rel (0) target = $region5
    $region4: #{tpu_custom_call.1} parent=1 // pred_region
      %s11 = ssub.s32 128, 128
      %12 = vsyncadd [#allocation3], %s11
      %s14 = sshll.u32 [#allocation2], 4
      %s15 = int_to_ptr.vmem [resolvable:$true] %s14
      %17 = dma.hbm_to_vmem [thread:$0]  %s0, 128, %s15, [#allocation3]
    $region5: #{tpu_custom_call.1} parent=1 // pred_fallthru
      _
    // Predicated region
    $region6: #{tpu_custom_call.1} parent=1 // pred_check
      _
    $region7: #{tpu_custom_call.1} parent=1 // pred_check_branch
      %19 = sbr.rel (0) target = $region9
    $region8: #{tpu_custom_call.1} parent=1 // pred_region
      %20 = dma.done [#allocation3], 128
    $region9: #{tpu_custom_call.1} parent=1 // pred_fallthru
      _
    %v21 = vld [vmem:[#allocation2] sm:$0xff]
    %22 = vst [vmem:[#allocation5] sm:$0xff] %v21
    // Predicated region
    $region10: #{tpu_custom_call.1} parent=1 // pred_check
      _
    $region11: #{tpu_custom_call.1} parent=1 // pred_check_branch
      %24 = sbr.rel (0) target = $region13
    $region12: #{tpu_custom_call.1} parent=1 // pred_region
      %s26 = ssub.s32 128, 128
      %27 = vsyncadd [#allocation4], %s26
      %s29 = sshll.u32 [#allocation5], 4
      %s30 = int_to_ptr.vmem [resolvable:$true] %s29
      %32 = dma.vmem_to_hbm [thread:$0]  %s30, 128, %s1, [#allocation4]
    $region13: #{tpu_custom_call.1} parent=1 // pred_fallthru
      _
    // Predicated region
    $region14: #{tpu_custom_call.1} parent=1 // pred_check
      _
    $region15: #{tpu_custom_call.1} parent=1 // pred_check_branch
      %34 = sbr.rel (0) target = $region17
    $region16: #{tpu_custom_call.1} parent=1 // pred_region
      %35 = dma.done [#allocation4], 128
    $region17: #{tpu_custom_call.1} parent=1 // pred_fallthru
      _
    %36 = vsyncpa [#allocation3], 1
    %37 = vsyncpa [#allocation4], 1

// kernel: tpu_custom_call.1
$region0: #{tpu_custom_call.1}
  #allocation0 [shape = 'u32[]', space=smem, size = 0x4, offset = 0x4, fixed_abs, tag = 'smem constant byte address 0x4 - core index']
  #allocation1 [shape = 'u32[144,128]{1,0:T(1,128)}', space=vmem, size = 0x12000, scoped, tag = 'internal scratch']
  #allocation2 [shape = 'bf16[2,512,128]{2,1,0:T(8,128)(2,1)}', space=vmem, size = 0x40000, scoped, tag = 'scratch operand']
  #allocation3 [shape = 'bf16[2,512,128]{2,1,0:T(8,128)(2,1)}', space=vmem, size = 0x40000, scoped, tag = 'scratch operand']
  %s0 = inlined_call_operand.hbm [shape: bf16[2,512,256], index: 0, kind: input, shape index: {}]
  %s1 = inlined_call_operand.hbm [shape: bf16[2,512,256], index: 1, kind: input, shape index: {}]
  %s2 = inlined_call_operand.hbm [shape: bf16[256,256], index: 2, kind: input, shape index: {}]
  %s3 = inlined_call_operand.vmem [shape: f32[1,256], index: 3, kind: input, shape index: {}]
  %s4 = inlined_call_operand.hbm [shape: bf16[256,512], index: 4, kind: input, shape index: {}]
  %s5 = inlined_call_operand.vmem [shape: f32[1,512], index: 5, kind: input, shape index: {}]
  %s6 = inlined_call_operand.hbm [shape: bf16[256,256], index: 6, kind: input, shape index: {}]
  %s7 = inlined_call_operand.vmem [shape: f32[1,256], index: 7, kind: input, shape index: {}]
  %s8 = inlined_call_operand.vmem [shape: f32[1,256], index: 8, kind: input, shape index: {}]
  %s9 = inlined_call_operand.vmem [shape: f32[1,256], index: 9, kind: input, shape index: {}]
  %s10 = inlined_call_operand.hbm [shape: bf16[2,512,256], index: 10, kind: output, shape index: {}]
  %s11 = sld [smem:[#allocation0]]
  $region97: #{tpu_custom_call.1} parent=0
    _
  %s13 = ssub.s32 1, %s11
  %s14 = scalar_select 0, %s13, %s11
  $region1: #{tpu_custom_call.1} parent=0
    #allocation4 [shape = 'u8[262144]{0}', space=vmem, size = 0x40000, scoped, tag = 'input window, operand 0']
    #allocation5 [shape = 's32[2]{0}', space=sflag, size = 0x8, scoped, tag = 'scoped memory for tpu_custom_call.1']
    #allocation6 [shape = 's32[2]{0}', space=sflag, size = 0x8, scoped, tag = 'scoped memory for tpu_custom_call.1']
    #allocation7 [shape = 'u8[524288]{0}', space=vmem, size = 0x80000, scoped, tag = 'input window, operand 1']
    #allocation8 [shape = 's32[2]{0}', space=sflag, size = 0x8, scoped, tag = 'scoped memory for tpu_custom_call.1']
    #allocation9 [shape = 'u8[131072]{0}', space=vmem, size = 0x20000, scoped, tag = 'input window, operand 2, single buffered']
    #allocation10 [shape = 'u8[262144]{0}', space=vmem, size = 0x40000, scoped, tag = 'input window, operand 4, single buffered']
    #allocation11 [shape = 's32[1]{0}', space=sflag, size = 0x4, scoped, tag = 'scoped memory for tpu_custom_call.1']
    #allocation12 [shape = 'u8[131072]{0}', space=vmem, size = 0x20000, scoped, tag = 'input window, operand 6, single buffered']
    #allocation13 [shape = 'u8[262144]{0}', space=vmem, size = 0x40000, scoped, tag = 'output window, operand 0']
    %15 = vsyncpa [#allocation5], 0
    %s16 = scalar_lea.sflag [#allocation5], 1
    %17 = vsyncpa %s16, 0
    %18 = vsyncpa [#allocation8], 0
    %s19 = scalar_lea.sflag [#allocation8], 1
    %20 = vsyncpa %s19, 0
    %21 = vsyncpa [#allocation11], 0
    %22 = vsyncpa [#allocation6], 0
    %s23 = scalar_lea.sflag [#allocation6], 1
    %24 = vsyncpa %s23, 0
    loop: start=0, step=1, limit=6
    $region2: #{tpu_custom_call.1} parent=1 // loop_pre_header
      _
    $region3: #{tpu_custom_call.1} parent=1 // loop_header
      %s26 = sphi 0, %s30
      %p27 = scmp.ge.s32.totalorder %s26, 6
      %s33 = sphi 0, %s45
      %s34 = sphi 0, %s41
      %s35 = sphi 0, %s33
      %s36 = sphi 0, %s34
      %s37 = sphi 0, %s35
      %s38 = sphi 0, %s36
      %s50 = sphi 0, %s52
      %s53 = sphi 0, %s50
      %s54 = sphi 0, %s53
      %s70 = sphi 0, %s54
      %s76 = sphi 0, %s78
      %s79 = sphi 0, %s76
      %s80 = sphi 0, %s79
      %s96 = sphi 0, %s80
      %s100 = sphi 0, %s100
      %s102 = sphi 0, %s100
      %s103 = sphi 0, %s102
      %s117 = sphi 0, %s103
      %s121 = sphi 0, %s121
      %s123 = sphi 0, %s121
      %s124 = sphi 0, %s123
      %s138 = sphi 0, %s124
      %s142 = sphi 0, %s142
      %s144 = sphi 0, %s142
      %s145 = sphi 0, %s144
      %s159 = sphi 0, %s145
      %s163 = sphi 0, %s163
      %s165 = sphi 0, %s163
      %s166 = sphi 0, %s165
      %s180 = sphi 0, %s166
      %s184 = sphi 0, %s184
      %s186 = sphi 0, %s184
      %s187 = sphi 0, %s186
      %s201 = sphi 0, %s187
      %s205 = sphi 0, %s205
      %s207 = sphi 0, %s205
      %s208 = sphi 0, %s207
      %s222 = sphi 0, %s208
      %s226 = sphi 0, %s226
      %s228 = sphi 0, %s226
      %s229 = sphi 0, %s228
      %s243 = sphi 0, %s229
      %s247 = sphi 0, %s247
      %s249 = sphi 0, %s247
      %s250 = sphi 0, %s249
      %s264 = sphi 0, %s250
      %s272 = sphi 0, %s274
      %s275 = sphi 0, %s272
      %s276 = sphi 0, %s275
      %s292 = sphi 0, %s276
    $region4: #{tpu_custom_call.1} parent=1 // loop_header_branch
      %29 = sbr.rel (%p27) target = $region8
    $region5: #{tpu_custom_call.1} parent=1 // loop_body
      %s31 = ssub.s32 %s26, 1
      %s32 = ssub.s32 %s26, 2
      %s39 = sadd.s32 1, %s34
      %p40 = scmp.ge.s32.totalorder %s39, 2
      %s41 = scalar_select %p40, 0, %s39
      %s42 = sadd.s32 1, %s33
      %s43 = scalar_select %p40, %s42, %s33
      %p44 = scmp.ge.s32.totalorder %s43, 2
      %s45 = scalar_select %p44, 0, %s43
      %s46 = ssub.s32 %s33, %s45
      %s47 = ssub.s32 %s34, %s41
      %s48 = sor.u32 %s46, %s47
      %p49 = scmp.eq.s32.totalorder %s48, 0
      %s51 = sadd.s32 %s50, 1
      %s52 = scalar_select %p49, %s50, %s51
      %p55 = pneg %p49
      %p56 = scmp.eq.s32.totalorder %s26, 3
      %p57 = por %p55, %p56
      %p58 = scmp.ne.s32.totalorder %s50, %s53
      %p59 = scmp.eq.s32.totalorder %s26, 0
      %p60 = por %p58, %p59
      %p61 = scmp.ne.s32.totalorder %s50, %s53
      %p62 = scmp.eq.s32.totalorder %s31, 3
      %p63 = por %p61, %p62
      %p64 = scmp.ne.s32.totalorder %s53, %s54
      %p65 = scmp.eq.s32.totalorder %s31, 0
      %p66 = por %p64, %p65
      %p67 = scmp.ne.s32.totalorder %s53, %s54
      %p68 = scmp.eq.s32.totalorder %s32, 3
      %p69 = por %p67, %p68
      %p71 = scmp.ne.s32.totalorder %s54, %s70
      %p72 = scmp.eq.s32.totalorder %s32, 0
      %p73 = por %p71, %p72
      %s74 = ssub.s32 %s33, %s45
      %p75 = scmp.eq.s32.totalorder %s74, 0
      %s77 = sadd.s32 %s76, 1
      %s78 = scalar_select %p75, %s76, %s77
      %p81 = pneg %p75
      %p82 = scmp.eq.s32.totalorder %s26, 3
      %p83 = por %p81, %p82
      %p84 = scmp.ne.s32.totalorder %s76, %s79
      %p85 = scmp.eq.s32.totalorder %s26, 0
      %p86 = por %p84, %p85
      %p87 = scmp.ne.s32.totalorder %s76, %s79
      %p88 = scmp.eq.s32.totalorder %s31, 3
      %p89 = por %p87, %p88
      %p90 = scmp.ne.s32.totalorder %s79, %s80
      %p91 = scmp.eq.s32.totalorder %s31, 0
      %p92 = por %p90, %p91
      %p93 = scmp.ne.s32.totalorder %s79, %s80
      %p94 = scmp.eq.s32.totalorder %s32, 3
      %p95 = por %p93, %p94
      %p97 = scmp.ne.s32.totalorder %s80, %s96
      %p98 = scmp.eq.s32.totalorder %s32, 0
      %p99 = por %p97, %p98
      %s101 = sadd.s32 %s100, 1
      %p104 = scmp.eq.s32.totalorder %s26, 3
      %p105 = scmp.ne.s32.totalorder %s100, %s102
      %p106 = scmp.eq.s32.totalorder %s26, 0
      %p107 = por %p105, %p106
      %p108 = scmp.ne.s32.totalorder %s100, %s102
      %p109 = scmp.eq.s32.totalorder %s31, 3
      %p110 = por %p108, %p109
      %p111 = scmp.ne.s32.totalorder %s102, %s103
      %p112 = scmp.eq.s32.totalorder %s31, 0
      %p113 = por %p111, %p112
      %p114 = scmp.ne.s32.totalorder %s102, %s103
      %p115 = scmp.eq.s32.totalorder %s32, 3
      %p116 = por %p114, %p115
      %p118 = scmp.ne.s32.totalorder %s103, %s117
      %p119 = scmp.eq.s32.totalorder %s32, 0
      %p120 = por %p118, %p119
      %s122 = sadd.s32 %s121, 1
      %p125 = scmp.eq.s32.totalorder %s26, 3
      %p126 = scmp.ne.s32.totalorder %s121, %s123
      %p127 = scmp.eq.s32.totalorder %s26, 0
      %p128 = por %p126, %p127
      %p129 = scmp.ne.s32.totalorder %s121, %s123
      %p130 = scmp.eq.s32.totalorder %s31, 3
      %p131 = por %p129, %p130
      %p132 = scmp.ne.s32.totalorder %s123, %s124
      %p133 = scmp.eq.s32.totalorder %s31, 0
      %p134 = por %p132, %p133
      %p135 = scmp.ne.s32.totalorder %s123, %s124
      %p136 = scmp.eq.s32.totalorder %s32, 3
      %p137 = por %p135, %p136
      %p139 = scmp.ne.s32.totalorder %s124, %s138
      %p140 = scmp.eq.s32.totalorder %s32, 0
      %p141 = por %p139, %p140
      %s143 = sadd.s32 %s142, 1
      %p146 = scmp.eq.s32.totalorder %s26, 3
      %p147 = scmp.ne.s32.totalorder %s142, %s144
      %p148 = scmp.eq.s32.totalorder %s26, 0
      %p149 = por %p147, %p148
      %p150 = scmp.ne.s32.totalorder %s142, %s144
      %p151 = scmp.eq.s32.totalorder %s31, 3
      %p152 = por %p150, %p151
      %p153 = scmp.ne.s32.totalorder %s144, %s145
      %p154 = scmp.eq.s32.totalorder %s31, 0
      %p155 = por %p153, %p154
      %p156 = scmp.ne.s32.totalorder %s144, %s145
      %p157 = scmp.eq.s32.totalorder %s32, 3
      %p158 = por %p156, %p157
      %p160 = scmp.ne.s32.totalorder %s145, %s159
      %p161 = scmp.eq.s32.totalorder %s32, 0
      %p162 = por %p160, %p161
      %s164 = sadd.s32 %s163, 1
      %p167 = scmp.eq.s32.totalorder %s26, 3
      %p168 = scmp.ne.s32.totalorder %s163, %s165
      %p169 = scmp.eq.s32.totalorder %s26, 0
      %p170 = por %p168, %p169
      %p171 = scmp.ne.s32.totalorder %s163, %s165
      %p172 = scmp.eq.s32.totalorder %s31, 3
      %p173 = por %p171, %p172
      %p174 = scmp.ne.s32.totalorder %s165, %s166
      %p175 = scmp.eq.s32.totalorder %s31, 0
      %p176 = por %p174, %p175
      %p177 = scmp.ne.s32.totalorder %s165, %s166
      %p178 = scmp.eq.s32.totalorder %s32, 3
      %p179 = por %p177, %p178
      %p181 = scmp.ne.s32.totalorder %s166, %s180
      %p182 = scmp.eq.s32.totalorder %s32, 0
      %p183 = por %p181, %p182
      %s185 = sadd.s32 %s184, 1
      %p188 = scmp.eq.s32.totalorder %s26, 3
      %p189 = scmp.ne.s32.totalorder %s184, %s186
      %p190 = scmp.eq.s32.totalorder %s26, 0
      %p191 = por %p189, %p190
      %p192 = scmp.ne.s32.totalorder %s184, %s186
      %p193 = scmp.eq.s32.totalorder %s31, 3
      %p194 = por %p192, %p193
      %p195 = scmp.ne.s32.totalorder %s186, %s187
      %p196 = scmp.eq.s32.totalorder %s31, 0
      %p197 = por %p195, %p196
      %p198 = scmp.ne.s32.totalorder %s186, %s187
      %p199 = scmp.eq.s32.totalorder %s32, 3
      %p200 = por %p198, %p199
      %p202 = scmp.ne.s32.totalorder %s187, %s201
      %p203 = scmp.eq.s32.totalorder %s32, 0
      %p204 = por %p202, %p203
      %s206 = sadd.s32 %s205, 1
      %p209 = scmp.eq.s32.totalorder %s26, 3
      %p210 = scmp.ne.s32.totalorder %s205, %s207
      %p211 = scmp.eq.s32.totalorder %s26, 0
      %p212 = por %p210, %p211
      %p213 = scmp.ne.s32.totalorder %s205, %s207
      %p214 = scmp.eq.s32.totalorder %s31, 3
      %p215 = por %p213, %p214
      %p216 = scmp.ne.s32.totalorder %s207, %s208
      %p217 = scmp.eq.s32.totalorder %s31, 0
      %p218 = por %p216, %p217
      %p219 = scmp.ne.s32.totalorder %s207, %s208
      %p220 = scmp.eq.s32.totalorder %s32, 3
      %p221 = por %p219, %p220
      %p223 = scmp.ne.s32.totalorder %s208, %s222
      %p224 = scmp.eq.s32.totalorder %s32, 0
      %p225 = por %p223, %p224
      %s227 = sadd.s32 %s226, 1
      %p230 = scmp.eq.s32.totalorder %s26, 3
      %p231 = scmp.ne.s32.totalorder %s226, %s228
      %p232 = scmp.eq.s32.totalorder %s26, 0
      %p233 = por %p231, %p232
      %p234 = scmp.ne.s32.totalorder %s226, %s228
      %p235 = scmp.eq.s32.totalorder %s31, 3
      %p236 = por %p234, %p235
      %p237 = scmp.ne.s32.totalorder %s228, %s229
      %p238 = scmp.eq.s32.totalorder %s31, 0
      %p239 = por %p237, %p238
      %p240 = scmp.ne.s32.totalorder %s228, %s229
      %p241 = scmp.eq.s32.totalorder %s32, 3
      %p242 = por %p240, %p241
      %p244 = scmp.ne.s32.totalorder %s229, %s243
      %p245 = scmp.eq.s32.totalorder %s32, 0
      %p246 = por %p244, %p245
      %s248 = sadd.s32 %s247, 1
      %p251 = scmp.eq.s32.totalorder %s26, 3
      %p252 = scmp.ne.s32.totalorder %s247, %s249
      %p253 = scmp.eq.s32.totalorder %s26, 0
      %p254 = por %p252, %p253
      %p255 = scmp.ne.s32.totalorder %s247, %s249
      %p256 = scmp.eq.s32.totalorder %s31, 3
      %p257 = por %p255, %p256
      %p258 = scmp.ne.s32.totalorder %s249, %s250
      %p259 = scmp.eq.s32.totalorder %s31, 0
      %p260 = por %p258, %p259
      %p261 = scmp.ne.s32.totalorder %s249, %s250
      %p262 = scmp.eq.s32.totalorder %s32, 3
      %p263 = por %p261, %p262
      %p265 = scmp.ne.s32.totalorder %s250, %s264
      %p266 = scmp.eq.s32.totalorder %s32, 0
      %p267 = por %p265, %p266
      %s268 = ssub.s32 %s33, %s45
      %s269 = ssub.s32 %s34, %s41
      %s270 = sor.u32 %s268, %s269
      %p271 = scmp.eq.s32.totalorder %s270, 0
      %s273 = sadd.s32 %s272, 1
      %s274 = scalar_select %p271, %s272, %s273
      %p277 = pneg %p271
      %p278 = scmp.eq.s32.totalorder %s26, 3
      %p279 = por %p277, %p278
      %p280 = scmp.ne.s32.totalorder %s272, %s275
      %p281 = scmp.eq.s32.totalorder %s26, 0
      %p282 = por %p280, %p281
      %p283 = scmp.ne.s32.totalorder %s272, %s275
      %p284 = scmp.eq.s32.totalorder %s31, 3
      %p285 = por %p283, %p284
      %p286 = scmp.ne.s32.totalorder %s275, %s276
      %p287 = scmp.eq.s32.totalorder %s31, 0
      %p288 = por %p286, %p287
      %p289 = scmp.ne.s32.totalorder %s275, %s276
      %p290 = scmp.eq.s32.totalorder %s32, 3
      %p291 = por %p289, %p290
      %p293 = scmp.ne.s32.totalorder %s276, %s292
      %p294 = scmp.eq.s32.totalorder %s32, 0
      %p295 = por %p293, %p294
      %p296 = scmp.le.s32.totalorder 1, %s26
      %p297 = scmp.lt.s32.totalorder %s26, 5
      %p298 = pnand %p296, %p297
      %p299 = pneg %p298
      // Predicated region
      $region9: #{tpu_custom_call.1} parent=5 // pred_check
        _
      $region10: #{tpu_custom_call.1} parent=5 // pred_check_branch
        %301 = sbr.rel (%p298) target = $region12
      $region11: #{tpu_custom_call.1} parent=5 // pred_region
        %s302 = ssub.s32 %s26, 1
        // Predicated region
        $region13: #{tpu_custom_call.1} parent=11 // pred_check
          %p303 = pneg %p113
        $region14: #{tpu_custom_call.1} parent=11 // pred_check_branch
          %305 = sbr.rel (%p303) target = $region16
        $region15: #{tpu_custom_call.1} parent=11 // pred_region
          %s307 = ssub.s32 4096, 4096
          %308 = vsyncadd [#allocation8], %s307
          %s309 = sshll.u32 [#allocation9], 4
          %s310 = int_to_ptr.vmem [resolvable:$true] %s309
          %315 = dma.hbm_to_vmem [thread:$0]  %s2, 4096, %s310, [#allocation8], 128, 128, 8
        $region16: #{tpu_custom_call.1} parent=11 // pred_fallthru
          _
        // Predicated region
        $region17: #{tpu_custom_call.1} parent=11 // pred_check
          %p316 = pneg %p134
        $region18: #{tpu_custom_call.1} parent=11 // pred_check_branch
          %318 = sbr.rel (%p316) target = $region20
        $region19: #{tpu_custom_call.1} parent=11 // pred_region
          _
        $region20: #{tpu_custom_call.1} parent=11 // pred_fallthru
          _
        // Predicated region
        $region21: #{tpu_custom_call.1} parent=11 // pred_check
          %p319 = pneg %p155
        $region22: #{tpu_custom_call.1} parent=11 // pred_check_branch
          %321 = sbr.rel (%p319) target = $region24
        $region23: #{tpu_custom_call.1} parent=11 // pred_region
          %s323 = ssub.s32 8192, 8192
          %324 = vsyncadd [#allocation11], %s323
          %s325 = sshll.u32 [#allocation10], 4
          %s326 = int_to_ptr.vmem [resolvable:$true] %s325
          %331 = dma.hbm_to_vmem [thread:$0]  %s4, 8192, %s326, [#allocation11], 256, 256, 16
        $region24: #{tpu_custom_call.1} parent=11 // pred_fallthru
          _
        // Predicated region
        $region25: #{tpu_custom_call.1} parent=11 // pred_check
          %p332 = pneg %p176
        $region26: #{tpu_custom_call.1} parent=11 // pred_check_branch
          %334 = sbr.rel (%p332) target = $region28
        $region27: #{tpu_custom_call.1} parent=11 // pred_region
          _
        $region28: #{tpu_custom_call.1} parent=11 // pred_fallthru
          _
        // Predicated region
        $region29: #{tpu_custom_call.1} parent=11 // pred_check
          %p335 = pneg %p197
        $region30: #{tpu_custom_call.1} parent=11 // pred_check_branch
          %337 = sbr.rel (%p335) target = $region32
        $region31: #{tpu_custom_call.1} parent=11 // pred_region
          %s339 = ssub.s32 4096, 4096
          %340 = vsyncadd [#allocation11], %s339
          %s341 = sshll.u32 [#allocation12], 4
          %s342 = int_to_ptr.vmem [resolvable:$true] %s341
          %347 = dma.hbm_to_vmem [thread:$0]  %s6, 4096, %s342, [#allocation11], 128, 128, 8
        $region32: #{tpu_custom_call.1} parent=11 // pred_fallthru
          _
        // Predicated region
        $region33: #{tpu_custom_call.1} parent=11 // pred_check
          %p348 = pneg %p218
        $region34: #{tpu_custom_call.1} parent=11 // pred_check_branch
          %350 = sbr.rel (%p348) target = $region36
        $region35: #{tpu_custom_call.1} parent=11 // pred_region
          _
        $region36: #{tpu_custom_call.1} parent=11 // pred_fallthru
          _
        // Predicated region
        $region37: #{tpu_custom_call.1} parent=11 // pred_check
          %p351 = pneg %p239
        $region38: #{tpu_custom_call.1} parent=11 // pred_check_branch
          %353 = sbr.rel (%p351) target = $region40
        $region39: #{tpu_custom_call.1} parent=11 // pred_region
          _
        $region40: #{tpu_custom_call.1} parent=11 // pred_fallthru
          _
        // Predicated region
        $region41: #{tpu_custom_call.1} parent=11 // pred_check
          %p354 = pneg %p260
        $region42: #{tpu_custom_call.1} parent=11 // pred_check_branch
          %356 = sbr.rel (%p354) target = $region44
        $region43: #{tpu_custom_call.1} parent=11 // pred_region
          _
        $region44: #{tpu_custom_call.1} parent=11 // pred_fallthru
          _
      $region12: #{tpu_custom_call.1} parent=5 // pred_fallthru
        _
      %p357 = scmp.lt.s32.totalorder %s26, 4
      // Predicated region
      $region45: #{tpu_custom_call.1} parent=5 // pred_check
        %p358 = pneg %p357
      $region46: #{tpu_custom_call.1} parent=5 // pred_check_branch
        %360 = sbr.rel (%p358) target = $region48
      $region47: #{tpu_custom_call.1} parent=5 // pred_region
        // Predicated region
        $region49: #{tpu_custom_call.1} parent=47 // pred_check
          %p361 = pneg %p60
        $region50: #{tpu_custom_call.1} parent=47 // pred_check_branch
          %363 = sbr.rel (%p361) target = $region52
        $region51: #{tpu_custom_call.1} parent=47 // pred_region
          %s364 = sand.u32 %s50, 1
          %s365 = scalar_lea.sflag [#allocation5], %s364
          %s366 = sand.u32 %s50, 1
          %s367 = smul.addr %s366, 256
          %s368 = scalar_lea.vmem [#allocation4], %s367
          %s369 = smul.u32 32, %s34
          %s371 = ssub.s32 4096, 4096
          %372 = vsyncadd %s365, %s371
          %s373 = smul.addr %s369, 2
          %s374 = smul.addr %s33, 128
          %s375 = sadd.s32 %s373, %s374
          %s376 = smul.addr %s375, 64
          %s377 = scalar_lea.hbm %s0, %s376
          %s378 = sshll.u32 %s368, 4
          %s379 = int_to_ptr.vmem [resolvable:$true] %s378
          %384 = dma.hbm_to_vmem [thread:$0]  %s377, 4096, %s379, %s365, 128, 128, 8
        $region52: #{tpu_custom_call.1} parent=47 // pred_fallthru
          _
        // Predicated region
        $region53: #{tpu_custom_call.1} parent=47 // pred_check
          %p385 = pneg %p86
        $region54: #{tpu_custom_call.1} parent=47 // pred_check_branch
          %387 = sbr.rel (%p385) target = $region56
        $region55: #{tpu_custom_call.1} parent=47 // pred_region
          %s388 = sand.u32 %s26, 1
          %s389 = scalar_lea.sflag [#allocation8], %s388
          %s390 = sand.u32 %s76, 1
          %s391 = smul.addr %s390, 512
          %s392 = scalar_lea.vmem [#allocation7], %s391
          %s394 = ssub.s32 8192, 8192
          %395 = vsyncadd %s389, %s394
          %s396 = smul.addr %s33, 128
          %s397 = smul.addr %s396, 64
          %s398 = scalar_lea.hbm %s1, %s397
          %s399 = sshll.u32 %s392, 4
          %s400 = int_to_ptr.vmem [resolvable:$true] %s399
          %405 = dma.hbm_to_vmem [thread:$0]  %s398, 8192, %s400, %s389, 128, 128, 8
        $region56: #{tpu_custom_call.1} parent=47 // pred_fallthru
          _
      $region48: #{tpu_custom_call.1} parent=5 // pred_fallthru
        _
      %p406 = scmp.le.s32.totalorder 1, %s26
      %p407 = scmp.lt.s32.totalorder %s26, 5
      %p408 = pnand %p406, %p407
      %p409 = pneg %p408
      // Predicated region
      $region57: #{tpu_custom_call.1} parent=5 // pred_check
        _
      $region58: #{tpu_custom_call.1} parent=5 // pred_check_branch
        %411 = sbr.rel (%p408) target = $region60
      $region59: #{tpu_custom_call.1} parent=5 // pred_region
        %s412 = ssub.s32 %s26, 1
        %s413 = sand.u32 %s53, 1
        %s414 = scalar_lea.sflag [#allocation5], %s413
        %s415 = sand.u32 %s53, 1
        %s416 = smul.addr %s415, 256
        %s417 = scalar_lea.vmem [#allocation4], %s416
        // Predicated region
        $region61: #{tpu_custom_call.1} parent=59 // pred_check
          %p418 = pneg %p66
        $region62: #{tpu_custom_call.1} parent=59 // pred_check_branch
          %420 = sbr.rel (%p418) target = $region64
        $region63: #{tpu_custom_call.1} parent=59 // pred_region
          %421 = dma.done %s414, 4096
        $region64: #{tpu_custom_call.1} parent=59 // pred_fallthru
          _
        %s422 = sand.u32 %s31, 1
        %s423 = scalar_lea.sflag [#allocation8], %s422
        %s424 = sand.u32 %s79, 1
        %s425 = smul.addr %s424, 512
        %s426 = scalar_lea.vmem [#allocation7], %s425
        // Predicated region
        $region65: #{tpu_custom_call.1} parent=59 // pred_check
          %p427 = pneg %p92
        $region66: #{tpu_custom_call.1} parent=59 // pred_check_branch
          %429 = sbr.rel (%p427) target = $region68
        $region67: #{tpu_custom_call.1} parent=59 // pred_region
          %430 = dma.done %s423, 8192
        $region68: #{tpu_custom_call.1} parent=59 // pred_fallthru
          _
        // Predicated region
        $region69: #{tpu_custom_call.1} parent=59 // pred_check
          %p431 = pneg %p113
        $region70: #{tpu_custom_call.1} parent=59 // pred_check_branch
          %433 = sbr.rel (%p431) target = $region72
        $region71: #{tpu_custom_call.1} parent=59 // pred_region
          %434 = dma.done [#allocation8], 4096
        $region72: #{tpu_custom_call.1} parent=59 // pred_fallthru
          _
        // Predicated region
        $region73: #{tpu_custom_call.1} parent=59 // pred_check
          %p435 = pneg %p155
        $region74: #{tpu_custom_call.1} parent=59 // pred_check_branch
          %437 = sbr.rel (%p435) target = $region76
        $region75: #{tpu_custom_call.1} parent=59 // pred_region
          %438 = dma.done [#allocation11], 8192
        $region76: #{tpu_custom_call.1} parent=59 // pred_fallthru
          _
        // Predicated region
        $region77: #{tpu_custom_call.1} parent=59 // pred_check
          %p439 = pneg %p197
        $region78: #{tpu_custom_call.1} parent=59 // pred_check_branch
          %441 = sbr.rel (%p439) target = $region80
        $region79: #{tpu_custom_call.1} parent=59 // pred_region
          %442 = dma.done [#allocation11], 4096
        $region80: #{tpu_custom_call.1} parent=59 // pred_fallthru
          _
        %s443 = sand.u32 %s53, 1
        %s444 = scalar_lea.sflag [#allocation5], %s443
        %s445 = sand.u32 %s53, 1
        %s446 = smul.addr %s445, 256
        %s447 = scalar_lea.vmem [#allocation4], %s446
        %p448 = pneg %p66
        %p449 = pneg %p63
        %s450 = sand.u32 %s31, 1
        %s451 = scalar_lea.sflag [#allocation8], %s450
        %s452 = sand.u32 %s79, 1
        %s453 = smul.addr %s452, 512
        %s454 = scalar_lea.vmem [#allocation7], %s453
        %p455 = pneg %p92
        %p456 = pneg %p89
        %p457 = pneg %p113
        %p458 = pneg %p110
        %p459 = pneg %p134
        %p460 = pneg %p131
        %p461 = pneg %p155
        %p462 = pneg %p152
        %p463 = pneg %p176
        %p464 = pneg %p173
        %p465 = pneg %p197
        %p466 = pneg %p194
        %p467 = pneg %p218
        %p468 = pneg %p215
        %p469 = pneg %p239
        %p470 = pneg %p236
        %p471 = pneg %p260
        %p472 = pneg %p257
        %p473 = pneg %p288
        %p474 = pneg %p285
        %s475 = sand.u32 %s275, 1
        %s476 = scalar_lea.sflag [#allocation6], %s475
        %s477 = sand.u32 %s275, 1
        %s478 = smul.addr %s477, 256
        %s479 = scalar_lea.vmem [#allocation13], %s478
        %s480 = smul.u32 32, %s36
        %s481 = smul.u32 32, %s36
        %p483 = scmp.eq.s32.totalorder %s36, 0
        // Predicated region
        $region81: #{tpu_custom_call.1} parent=59 // pred_check
          %p484 = pneg %p483
        $region82: #{tpu_custom_call.1} parent=59 // pred_check_branch
          %486 = sbr.rel (%p484) target = $region84
        $region83: #{tpu_custom_call.1} parent=59 // pred_region
          %v487 = vld [vmem:[%s426] sm:$0xff]
          %v488 = vld [vmem:[%s426 + $0x8] sm:$0xff]
          %v489 = vld [vmem:[%s426 + $0x10] sm:$0xff]
          %v490 = vld [vmem:[%s426 + $0x18] sm:$0xff]
          %v491 = vld [vmem:[%s426 + $0x20] sm:$0xff]
          %v492 = vld [vmem:[%s426 + $0x28] sm:$0xff]
          %v493 = vld [vmem:[%s426 + $0x30] sm:$0xff]
          %v494 = vld [vmem:[%s426 + $0x38] sm:$0xff]
          %v495 = vld [vmem:[%s426 + $0x40] sm:$0xff]
          %v496 = vld [vmem:[%s426 + $0x48] sm:$0xff]
          %v497 = vld [vmem:[%s426 + $0x50] sm:$0xff]
          %v498 = vld [vmem:[%s426 + $0x58] sm:$0xff]
          %v499 = vld [vmem:[%s426 + $0x60] sm:$0xff]
          %v500 = vld [vmem:[%s426 + $0x68] sm:$0xff]
          %v501 = vld [vmem:[%s426 + $0x70] sm:$0xff]
          %v502 = vld [vmem:[%s426 + $0x78] sm:$0xff]
          %v503 = vld [vmem:[%s426 + $0x80] sm:$0xff]
          %v504 = vld [vmem:[%s426 + $0x88] sm:$0xff]
          %v505 = vld [vmem:[%s426 + $0x90] sm:$0xff]
          %v506 = vld [vmem:[%s426 + $0x98] sm:$0xff]
          %v507 = vld [vmem:[%s426 + $0xa0] sm:$0xff]
          %v508 = vld [vmem:[%s426 + $0xa8] sm:$0xff]
          %v509 = vld [vmem:[%s426 + $0xb0] sm:$0xff]
          %v510 = vld [vmem:[%s426 + $0xb8] sm:$0xff]
          %v511 = vld [vmem:[%s426 + $0xc0] sm:$0xff]
          %v512 = vld [vmem:[%s426 + $0xc8] sm:$0xff]
          %v513 = vld [vmem:[%s426 + $0xd0] sm:$0xff]
          %v514 = vld [vmem:[%s426 + $0xd8] sm:$0xff]
          %v515 = vld [vmem:[%s426 + $0xe0] sm:$0xff]
          %v516 = vld [vmem:[%s426 + $0xe8] sm:$0xff]
          %v517 = vld [vmem:[%s426 + $0xf0] sm:$0xff]
          %v518 = vld [vmem:[%s426 + $0xf8] sm:$0xff]
          %v519 = vld [vmem:[%s426 + $0x100] sm:$0xff]
          %v520 = vld [vmem:[%s426 + $0x108] sm:$0xff]
          %v521 = vld [vmem:[%s426 + $0x110] sm:$0xff]
          %v522 = vld [vmem:[%s426 + $0x118] sm:$0xff]
          %v523 = vld [vmem:[%s426 + $0x120] sm:$0xff]
          %v524 = vld [vmem:[%s426 + $0x128] sm:$0xff]
          %v525 = vld [vmem:[%s426 + $0x130] sm:$0xff]
          %v526 = vld [vmem:[%s426 + $0x138] sm:$0xff]
          %v527 = vld [vmem:[%s426 + $0x140] sm:$0xff]
          %v528 = vld [vmem:[%s426 + $0x148] sm:$0xff]
          %v529 = vld [vmem:[%s426 + $0x150] sm:$0xff]
          %v530 = vld [vmem:[%s426 + $0x158] sm:$0xff]
          %v531 = vld [vmem:[%s426 + $0x160] sm:$0xff]
          %v532 = vld [vmem:[%s426 + $0x168] sm:$0xff]
          %v533 = vld [vmem:[%s426 + $0x170] sm:$0xff]
          %v534 = vld [vmem:[%s426 + $0x178] sm:$0xff]
          %v535 = vld [vmem:[%s426 + $0x180] sm:$0xff]
          %v536 = vld [vmem:[%s426 + $0x188] sm:$0xff]
          %v537 = vld [vmem:[%s426 + $0x190] sm:$0xff]
          %v538 = vld [vmem:[%s426 + $0x198] sm:$0xff]
          %v539 = vld [vmem:[%s426 + $0x1a0] sm:$0xff]
          %v540 = vld [vmem:[%s426 + $0x1a8] sm:$0xff]
          %v541 = vld [vmem:[%s426 + $0x1b0] sm:$0xff]
          %v542 = vld [vmem:[%s426 + $0x1b8] sm:$0xff]
          %v543 = vld [vmem:[%s426 + $0x1c0] sm:$0xff]
          %v544 = vld [vmem:[%s426 + $0x1c8] sm:$0xff]
          %v545 = vld [vmem:[%s426 + $0x1d0] sm:$0xff]
          %v546 = vld [vmem:[%s426 + $0x1d8] sm:$0xff]
          %v547 = vld [vmem:[%s426 + $0x1e0] sm:$0xff]
          %v548 = vld [vmem:[%s426 + $0x1e8] sm:$0xff]
          %v549 = vld [vmem:[%s426 + $0x1f0] sm:$0xff]
          %v550 = vld [vmem:[%s426 + $0x1f8] sm:$0xff]
          %v551 = vld [vmem:[#allocation10] sm:$0xff]
          %v552 = vld [vmem:[#allocation10 + $0x8] sm:$0xff]
          %v553 = vld [vmem:[#allocation10 + $0x10] sm:$0xff]
          %v554 = vld [vmem:[#allocation10 + $0x18] sm:$0xff]
          %v555 = vld [vmem:[#allocation10 + $0x20] sm:$0xff]
          %v556 = vld [vmem:[#allocation10 + $0x28] sm:$0xff]
          %v557 = vld [vmem:[#allocation10 + $0x30] sm:$0xff]
          %v558 = vld [vmem:[#allocation10 + $0x38] sm:$0xff]
          %v559 = vld [vmem:[#allocation10 + $0x40] sm:$0xff]
          %v560 = vld [vmem:[#allocation10 + $0x48] sm:$0xff]
          %v561 = vld [vmem:[#allocation10 + $0x50] sm:$0xff]
          %v562 = vld [vmem:[#allocation10 + $0x58] sm:$0xff]
          %v563 = vld [vmem:[#allocation10 + $0x60] sm:$0xff]
          %v564 = vld [vmem:[#allocation10 + $0x68] sm:$0xff]
          %v565 = vld [vmem:[#allocation10 + $0x70] sm:$0xff]
          %v566 = vld [vmem:[#allocation10 + $0x78] sm:$0xff]
          %v567 = vld [vmem:[#allocation10 + $0x80] sm:$0xff]
          %v568 = vld [vmem:[#allocation10 + $0x88] sm:$0xff]
          %v569 = vld [vmem:[#allocation10 + $0x90] sm:$0xff]
          %v570 = vld [vmem:[#allocation10 + $0x98] sm:$0xff]
          %v571 = vld [vmem:[#allocation10 + $0xa0] sm:$0xff]
          %v572 = vld [vmem:[#allocation10 + $0xa8] sm:$0xff]
          %v573 = vld [vmem:[#allocation10 + $0xb0] sm:$0xff]
          %v574 = vld [vmem:[#allocation10 + $0xb8] sm:$0xff]
          %v575 = vld [vmem:[#allocation10 + $0xc0] sm:$0xff]
          %v576 = vld [vmem:[#allocation10 + $0xc8] sm:$0xff]
          %v577 = vld [vmem:[#allocation10 + $0xd0] sm:$0xff]
          %v578 = vld [vmem:[#allocation10 + $0xd8] sm:$0xff]
          %v579 = vld [vmem:[#allocation10 + $0xe0] sm:$0xff]
          %v580 = vld [vmem:[#allocation10 + $0xe8] sm:$0xff]
          %v581 = vld [vmem:[#allocation10 + $0xf0] sm:$0xff]
          %v582 = vld [vmem:[#allocation10 + $0xf8] sm:$0xff]
          %v583 = vld [vmem:[#allocation10 + $0x100] sm:$0xff]
          %v584 = vld [vmem:[#allocation10 + $0x108] sm:$0xff]
          %v585 = vld [vmem:[#allocation10 + $0x110] sm:$0xff]
          %v586 = vld [vmem:[#allocation10 + $0x118] sm:$0xff]
          %v587 = vld [vmem:[#allocation10 + $0x120] sm:$0xff]
          %v588 = vld [vmem:[#allocation10 + $0x128] sm:$0xff]
          %v589 = vld [vmem:[#allocation10 + $0x130] sm:$0xff]
          %v590 = vld [vmem:[#allocation10 + $0x138] sm:$0xff]
          %v591 = vld [vmem:[#allocation10 + $0x140] sm:$0xff]
          %v592 = vld [vmem:[#allocation10 + $0x148] sm:$0xff]
          %v593 = vld [vmem:[#allocation10 + $0x150] sm:$0xff]
          %v594 = vld [vmem:[#allocation10 + $0x158] sm:$0xff]
          %v595 = vld [vmem:[#allocation10 + $0x160] sm:$0xff]
          %v596 = vld [vmem:[#allocation10 + $0x168] sm:$0xff]
          %v597 = vld [vmem:[#allocation10 + $0x170] sm:$0xff]
          %v598 = vld [vmem:[#allocation10 + $0x178] sm:$0xff]
          %v599 = vld [vmem:[#allocation10 + $0x180] sm:$0xff]
          %v600 = vld [vmem:[#allocation10 + $0x188] sm:$0xff]
          %v601 = vld [vmem:[#allocation10 + $0x190] sm:$0xff]
          %v602 = vld [vmem:[#allocation10 + $0x198] sm:$0xff]
          %v603 = vld [vmem:[#allocation10 + $0x1a0] sm:$0xff]
          %v604 = vld [vmem:[#allocation10 + $0x1a8] sm:$0xff]
          %v605 = vld [vmem:[#allocation10 + $0x1b0] sm:$0xff]
          %v606 = vld [vmem:[#allocation10 + $0x1b8] sm:$0xff]
          %v607 = vld [vmem:[#allocation10 + $0x1c0] sm:$0xff]
          %v608 = vld [vmem:[#allocation10 + $0x1c8] sm:$0xff]
          %v609 = vld [vmem:[#allocation10 + $0x1d0] sm:$0xff]
          %v610 = vld [vmem:[#allocation10 + $0x1d8] sm:$0xff]
          %v611 = vld [vmem:[#allocation10 + $0x1e0] sm:$0xff]
          %v612 = vld [vmem:[#allocation10 + $0x1e8] sm:$0xff]
          %v613 = vld [vmem:[#allocation10 + $0x1f0] sm:$0xff]
          %v614 = vld [vmem:[#allocation10 + $0x1f8] sm:$0xff]
          %v615 = vld [vmem:[%s5] sm:$0xf]
          %v617 = vlaneseq
          %v618 = vshrl.u32 %v617, 7
          %v619 = vsub.s32 0, %v618
          %v620 = vrot.slane %v615, %v619
          %v621 = vlaneseq
          %v622 = vshrl.u32 %v621, 7
          %v623 = vsub.s32 1, %v622
          %v624 = vrot.slane %v615, %v623
          %v625 = vlaneseq
          %v626 = vshrl.u32 %v625, 7
          %v627 = vsub.s32 2, %v626
          %v628 = vrot.slane %v615, %v627
          %v629 = vlaneseq
          %v630 = vshrl.u32 %v629, 7
          %v631 = vsub.s32 3, %v630
          %v632 = vrot.slane %v615, %v631
          %v701 = vunpack.c.l.b16 %v487
          %v702 = vunpack.c.h.b16 %v487
          %v703 = vunpack.c.l.b16 %v488
          %v704 = vunpack.c.h.b16 %v488
          %v705 = vunpack.c.l.b16 %v489
          %v706 = vunpack.c.h.b16 %v489
          %v707 = vunpack.c.l.b16 %v490
          %v708 = vunpack.c.h.b16 %v490
          %v709 = vunpack.c.l.b16 %v491
          %v710 = vunpack.c.h.b16 %v491
          %v711 = vunpack.c.l.b16 %v492
          %v712 = vunpack.c.h.b16 %v492
          %v713 = vunpack.c.l.b16 %v493
          %v714 = vunpack.c.h.b16 %v493
          %v715 = vunpack.c.l.b16 %v494
          %v716 = vunpack.c.h.b16 %v494
          %v717 = vunpack.c.l.b16 %v495
          %v718 = vunpack.c.h.b16 %v495
          %v719 = vunpack.c.l.b16 %v496
          %v720 = vunpack.c.h.b16 %v496
          %v721 = vunpack.c.l.b16 %v497
          %v722 = vunpack.c.h.b16 %v497
          %v723 = vunpack.c.l.b16 %v498
          %v724 = vunpack.c.h.b16 %v498
          %v725 = vunpack.c.l.b16 %v499
          %v726 = vunpack.c.h.b16 %v499
          %v727 = vunpack.c.l.b16 %v500
          %v728 = vunpack.c.h.b16 %v500
          %v729 = vunpack.c.l.b16 %v501
          %v730 = vunpack.c.h.b16 %v501
          %v731 = vunpack.c.l.b16 %v502
          %v732 = vunpack.c.h.b16 %v502
          %v733 = vunpack.c.l.b16 %v503
          %v734 = vunpack.c.h.b16 %v503
          %v735 = vunpack.c.l.b16 %v504
          %v736 = vunpack.c.h.b16 %v504
          %v737 = vunpack.c.l.b16 %v505
          %v738 = vunpack.c.h.b16 %v505
          %v739 = vunpack.c.l.b16 %v506
          %v740 = vunpack.c.h.b16 %v506
          %v741 = vunpack.c.l.b16 %v507
          %v742 = vunpack.c.h.b16 %v507
          %v743 = vunpack.c.l.b16 %v508
          %v744 = vunpack.c.h.b16 %v508
          %v745 = vunpack.c.l.b16 %v509
          %v746 = vunpack.c.h.b16 %v509
          %v747 = vunpack.c.l.b16 %v510
          %v748 = vunpack.c.h.b16 %v510
          %v749 = vunpack.c.l.b16 %v511
          %v750 = vunpack.c.h.b16 %v511
          %v751 = vunpack.c.l.b16 %v512
          %v752 = vunpack.c.h.b16 %v512
          %v753 = vunpack.c.l.b16 %v513
          %v754 = vunpack.c.h.b16 %v513
          %v755 = vunpack.c.l.b16 %v514
          %v756 = vunpack.c.h.b16 %v514
          %v757 = vunpack.c.l.b16 %v515
          %v758 = vunpack.c.h.b16 %v515
          %v759 = vunpack.c.l.b16 %v516
          %v760 = vunpack.c.h.b16 %v516
          %v761 = vunpack.c.l.b16 %v517
          %v762 = vunpack.c.h.b16 %v517
          %v763 = vunpack.c.l.b16 %v518
          %v764 = vunpack.c.h.b16 %v518
          %v765 = vunpack.c.l.b16 %v519
          %v766 = vunpack.c.h.b16 %v519
          %v767 = vunpack.c.l.b16 %v520
          %v768 = vunpack.c.h.b16 %v520
          %v769 = vunpack.c.l.b16 %v521
          %v770 = vunpack.c.h.b16 %v521
          %v771 = vunpack.c.l.b16 %v522
          %v772 = vunpack.c.h.b16 %v522
          %v773 = vunpack.c.l.b16 %v523
          %v774 = vunpack.c.h.b16 %v523
          %v775 = vunpack.c.l.b16 %v524
          %v776 = vunpack.c.h.b16 %v524
          %v777 = vunpack.c.l.b16 %v525
          %v778 = vunpack.c.h.b16 %v525
          %v779 = vunpack.c.l.b16 %v526
          %v780 = vunpack.c.h.b16 %v526
          %v781 = vunpack.c.l.b16 %v527
          %v782 = vunpack.c.h.b16 %v527
          %v783 = vunpack.c.l.b16 %v528
          %v784 = vunpack.c.h.b16 %v528
          %v785 = vunpack.c.l.b16 %v529
          %v786 = vunpack.c.h.b16 %v529
          %v787 = vunpack.c.l.b16 %v530
          %v788 = vunpack.c.h.b16 %v530
          %v789 = vunpack.c.l.b16 %v531
          %v790 = vunpack.c.h.b16 %v531
          %v791 = vunpack.c.l.b16 %v532
          %v792 = vunpack.c.h.b16 %v532
          %v793 = vunpack.c.l.b16 %v533
          %v794 = vunpack.c.h.b16 %v533
          %v795 = vunpack.c.l.b16 %v534
          %v796 = vunpack.c.h.b16 %v534
          %v797 = vunpack.c.l.b16 %v535
          %v798 = vunpack.c.h.b16 %v535
          %v799 = vunpack.c.l.b16 %v536
          %v800 = vunpack.c.h.b16 %v536
          %v801 = vunpack.c.l.b16 %v537
          %v802 = vunpack.c.h.b16 %v537
          %v803 = vunpack.c.l.b16 %v538
          %v804 = vunpack.c.h.b16 %v538
          %v805 = vunpack.c.l.b16 %v539
          %v806 = vunpack.c.h.b16 %v539
          %v807 = vunpack.c.l.b16 %v540
          %v808 = vunpack.c.h.b16 %v540
          %v809 = vunpack.c.l.b16 %v541
          %v810 = vunpack.c.h.b16 %v541
          %v811 = vunpack.c.l.b16 %v542
          %v812 = vunpack.c.h.b16 %v542
          %v813 = vunpack.c.l.b16 %v543
          %v814 = vunpack.c.h.b16 %v543
          %v815 = vunpack.c.l.b16 %v544
          %v816 = vunpack.c.h.b16 %v544
          %v817 = vunpack.c.l.b16 %v545
          %v818 = vunpack.c.h.b16 %v545
          %v819 = vunpack.c.l.b16 %v546
          %v820 = vunpack.c.h.b16 %v546
          %v821 = vunpack.c.l.b16 %v547
          %v822 = vunpack.c.h.b16 %v547
          %v823 = vunpack.c.l.b16 %v548
          %v824 = vunpack.c.h.b16 %v548
          %v825 = vunpack.c.l.b16 %v549
          %v826 = vunpack.c.h.b16 %v549
          %v827 = vunpack.c.l.b16 %v550
          %v828 = vunpack.c.h.b16 %v550
          %v829 = vpack.c.b16 %v703, %v701
          %v830 = vpack.c.b16 %v704, %v702
          %v831 = vpack.c.b16 %v707, %v705
          %v832 = vpack.c.b16 %v708, %v706
          %v833 = vpack.c.b16 %v711, %v709
          %v834 = vpack.c.b16 %v712, %v710
          %v835 = vpack.c.b16 %v715, %v713
          %v836 = vpack.c.b16 %v716, %v714
          %v837 = vpack.c.b16 %v719, %v717
          %v838 = vpack.c.b16 %v720, %v718
          %v839 = vpack.c.b16 %v723, %v721
          %v840 = vpack.c.b16 %v724, %v722
          %v841 = vpack.c.b16 %v727, %v725
          %v842 = vpack.c.b16 %v728, %v726
          %v843 = vpack.c.b16 %v731, %v729
          %v844 = vpack.c.b16 %v732, %v730
          %v845 = vpack.c.b16 %v735, %v733
          %v846 = vpack.c.b16 %v736, %v734
          %v847 = vpack.c.b16 %v739, %v737
          %v848 = vpack.c.b16 %v740, %v738
          %v849 = vpack.c.b16 %v743, %v741
          %v850 = vpack.c.b16 %v744, %v742
          %v851 = vpack.c.b16 %v747, %v745
          %v852 = vpack.c.b16 %v748, %v746
          %v853 = vpack.c.b16 %v751, %v749
          %v854 = vpack.c.b16 %v752, %v750
          %v855 = vpack.c.b16 %v755, %v753
          %v856 = vpack.c.b16 %v756, %v754
          %v857 = vpack.c.b16 %v759, %v757
          %v858 = vpack.c.b16 %v760, %v758
          %v859 = vpack.c.b16 %v763, %v761
          %v860 = vpack.c.b16 %v764, %v762
          %v861 = vpack.c.b16 %v767, %v765
          %v862 = vpack.c.b16 %v768, %v766
          %v863 = vpack.c.b16 %v771, %v769
          %v864 = vpack.c.b16 %v772, %v770
          %v865 = vpack.c.b16 %v775, %v773
          %v866 = vpack.c.b16 %v776, %v774
          %v867 = vpack.c.b16 %v779, %v777
          %v868 = vpack.c.b16 %v780, %v778
          %v869 = vpack.c.b16 %v783, %v781
          %v870 = vpack.c.b16 %v784, %v782
          %v871 = vpack.c.b16 %v787, %v785
          %v872 = vpack.c.b16 %v788, %v786
          %v873 = vpack.c.b16 %v791, %v789
          %v874 = vpack.c.b16 %v792, %v790
          %v875 = vpack.c.b16 %v795, %v793
          %v876 = vpack.c.b16 %v796, %v794
          %v877 = vpack.c.b16 %v799, %v797
          %v878 = vpack.c.b16 %v800, %v798
          %v879 = vpack.c.b16 %v803, %v801
          %v880 = vpack.c.b16 %v804, %v802
          %v881 = vpack.c.b16 %v807, %v805
          %v882 = vpack.c.b16 %v808, %v806
          %v883 = vpack.c.b16 %v811, %v809
          %v884 = vpack.c.b16 %v812, %v810
          %v885 = vpack.c.b16 %v815, %v813
          %v886 = vpack.c.b16 %v816, %v814
          %v887 = vpack.c.b16 %v819, %v817
          %v888 = vpack.c.b16 %v820, %v818
          %v889 = vpack.c.b16 %v823, %v821
          %v890 = vpack.c.b16 %v824, %v822
          %v891 = vpack.c.b16 %v827, %v825
          %v892 = vpack.c.b16 %v828, %v826
          %v1021 = vunpack.c.l.b16 %v551
          %v1022 = vunpack.c.h.b16 %v551
          %v1023 = vunpack.c.l.b16 %v552
          %v1024 = vunpack.c.h.b16 %v552
          %v1025 = vunpack.c.l.b16 %v553
          %v1026 = vunpack.c.h.b16 %v553
          %v1027 = vunpack.c.l.b16 %v554
          %v1028 = vunpack.c.h.b16 %v554
          %v1029 = vunpack.c.l.b16 %v555
          %v1030 = vunpack.c.h.b16 %v555
          %v1031 = vunpack.c.l.b16 %v556
          %v1032 = vunpack.c.h.b16 %v556
          %v1033 = vunpack.c.l.b16 %v557
          %v1034 = vunpack.c.h.b16 %v557
          %v1035 = vunpack.c.l.b16 %v558
          %v1036 = vunpack.c.h.b16 %v558
          %v1037 = vunpack.c.l.b16 %v559
          %v1038 = vunpack.c.h.b16 %v559
          %v1039 = vunpack.c.l.b16 %v560
          %v1040 = vunpack.c.h.b16 %v560
          %v1041 = vunpack.c.l.b16 %v561
          %v1042 = vunpack.c.h.b16 %v561
          %v1043 = vunpack.c.l.b16 %v562
          %v1044 = vunpack.c.h.b16 %v562
          %v1045 = vunpack.c.l.b16 %v563
          %v1046 = vunpack.c.h.b16 %v563
          %v1047 = vunpack.c.l.b16 %v564
          %v1048 = vunpack.c.h.b16 %v564
          %v1049 = vunpack.c.l.b16 %v565
          %v1050 = vunpack.c.h.b16 %v565
          %v1051 = vunpack.c.l.b16 %v566
          %v1052 = vunpack.c.h.b16 %v566
          %v1053 = vunpack.c.l.b16 %v567
          %v1054 = vunpack.c.h.b16 %v567
          %v1055 = vunpack.c.l.b16 %v568
          %v1056 = vunpack.c.h.b16 %v568
          %v1057 = vunpack.c.l.b16 %v569
          %v1058 = vunpack.c.h.b16 %v569
          %v1059 = vunpack.c.l.b16 %v570
          %v1060 = vunpack.c.h.b16 %v570
          %v1061 = vunpack.c.l.b16 %v571
          %v1062 = vunpack.c.h.b16 %v571
          %v1063 = vunpack.c.l.b16 %v572
          %v1064 = vunpack.c.h.b16 %v572
          %v1065 = vunpack.c.l.b16 %v573
          %v1066 = vunpack.c.h.b16 %v573
          %v1067 = vunpack.c.l.b16 %v574
          %v1068 = vunpack.c.h.b16 %v574
          %v1069 = vunpack.c.l.b16 %v575
          %v1070 = vunpack.c.h.b16 %v575
          %v1071 = vunpack.c.l.b16 %v576
          %v1072 = vunpack.c.h.b16 %v576
          %v1073 = vunpack.c.l.b16 %v577
          %v1074 = vunpack.c.h.b16 %v577
          %v1075 = vunpack.c.l.b16 %v578
          %v1076 = vunpack.c.h.b16 %v578
          %v1077 = vunpack.c.l.b16 %v579
          %v1078 = vunpack.c.h.b16 %v579
          %v1079 = vunpack.c.l.b16 %v580
          %v1080 = vunpack.c.h.b16 %v580
          %v1081 = vunpack.c.l.b16 %v581
          %v1082 = vunpack.c.h.b16 %v581
          %v1083 = vunpack.c.l.b16 %v582
          %v1084 = vunpack.c.h.b16 %v582
          %v1085 = vunpack.c.l.b16 %v583
          %v1086 = vunpack.c.h.b16 %v583
          %v1087 = vunpack.c.l.b16 %v584
          %v1088 = vunpack.c.h.b16 %v584
          %v1089 = vunpack.c.l.b16 %v585
          %v1090 = vunpack.c.h.b16 %v585
          %v1091 = vunpack.c.l.b16 %v586
          %v1092 = vunpack.c.h.b16 %v586
          %v1093 = vunpack.c.l.b16 %v587
          %v1094 = vunpack.c.h.b16 %v587
          %v1095 = vunpack.c.l.b16 %v588
          %v1096 = vunpack.c.h.b16 %v588
          %v1097 = vunpack.c.l.b16 %v589
          %v1098 = vunpack.c.h.b16 %v589
          %v1099 = vunpack.c.l.b16 %v590
          %v1100 = vunpack.c.h.b16 %v590
          %v1101 = vunpack.c.l.b16 %v591
          %v1102 = vunpack.c.h.b16 %v591
          %v1103 = vunpack.c.l.b16 %v592
          %v1104 = vunpack.c.h.b16 %v592
          %v1105 = vunpack.c.l.b16 %v593
          %v1106 = vunpack.c.h.b16 %v593
          %v1107 = vunpack.c.l.b16 %v594
          %v1108 = vunpack.c.h.b16 %v594
          %v1109 = vunpack.c.l.b16 %v595
          %v1110 = vunpack.c.h.b16 %v595
          %v1111 = vunpack.c.l.b16 %v596
          %v1112 = vunpack.c.h.b16 %v596
          %v1113 = vunpack.c.l.b16 %v597
          %v1114 = vunpack.c.h.b16 %v597
          %v1115 = vunpack.c.l.b16 %v598
          %v1116 = vunpack.c.h.b16 %v598
          %v1117 = vunpack.c.l.b16 %v599
          %v1118 = vunpack.c.h.b16 %v599
          %v1119 = vunpack.c.l.b16 %v600
          %v1120 = vunpack.c.h.b16 %v600
          %v1121 = vunpack.c.l.b16 %v601
          %v1122 = vunpack.c.h.b16 %v601
          %v1123 = vunpack.c.l.b16 %v602
          %v1124 = vunpack.c.h.b16 %v602
          %v1125 = vunpack.c.l.b16 %v603
          %v1126 = vunpack.c.h.b16 %v603
          %v1127 = vunpack.c.l.b16 %v604
          %v1128 = vunpack.c.h.b16 %v604
          %v1129 = vunpack.c.l.b16 %v605
          %v1130 = vunpack.c.h.b16 %v605
          %v1131 = vunpack.c.l.b16 %v606
          %v1132 = vunpack.c.h.b16 %v606
          %v1133 = vunpack.c.l.b16 %v607
          %v1134 = vunpack.c.h.b16 %v607
          %v1135 = vunpack.c.l.b16 %v608
          %v1136 = vunpack.c.h.b16 %v608
          %v1137 = vunpack.c.l.b16 %v609
          %v1138 = vunpack.c.h.b16 %v609
          %v1139 = vunpack.c.l.b16 %v610
          %v1140 = vunpack.c.h.b16 %v610
          %v1141 = vunpack.c.l.b16 %v611
          %v1142 = vunpack.c.h.b16 %v611
          %v1143 = vunpack.c.l.b16 %v612
          %v1144 = vunpack.c.h.b16 %v612
          %v1145 = vunpack.c.l.b16 %v613
          %v1146 = vunpack.c.h.b16 %v613
          %v1147 = vunpack.c.l.b16 %v614
          %v1148 = vunpack.c.h.b16 %v614
          %v1149 = vpack.c.b16 %v1025, %v1021
          %v1150 = vpack.c.b16 %v1026, %v1022
          %v1151 = vpack.c.b16 %v1027, %v1023
          %v1152 = vpack.c.b16 %v1028, %v1024
          %v1153 = vpack.c.b16 %v1033, %v1029
          %v1154 = vpack.c.b16 %v1034, %v1030
          %v1155 = vpack.c.b16 %v1035, %v1031
          %v1156 = vpack.c.b16 %v1036, %v1032
          %v1157 = vpack.c.b16 %v1041, %v1037
          %v1158 = vpack.c.b16 %v1042, %v1038
          %v1159 = vpack.c.b16 %v1043, %v1039
          %v1160 = vpack.c.b16 %v1044, %v1040
          %v1161 = vpack.c.b16 %v1049, %v1045
          %v1162 = vpack.c.b16 %v1050, %v1046
          %v1163 = vpack.c.b16 %v1051, %v1047
          %v1164 = vpack.c.b16 %v1052, %v1048
          %v1165 = vpack.c.b16 %v1057, %v1053
          %v1166 = vpack.c.b16 %v1058, %v1054
          %v1167 = vpack.c.b16 %v1059, %v1055
          %v1168 = vpack.c.b16 %v1060, %v1056
          %v1169 = vpack.c.b16 %v1065, %v1061
          %v1170 = vpack.c.b16 %v1066, %v1062
          %v1171 = vpack.c.b16 %v1067, %v1063
          %v1172 = vpack.c.b16 %v1068, %v1064
          %v1173 = vpack.c.b16 %v1073, %v1069
          %v1174 = vpack.c.b16 %v1074, %v1070
          %v1175 = vpack.c.b16 %v1075, %v1071
          %v1176 = vpack.c.b16 %v1076, %v1072
          %v1177 = vpack.c.b16 %v1081, %v1077
          %v1178 = vpack.c.b16 %v1082, %v1078
          %v1179 = vpack.c.b16 %v1083, %v1079
          %v1180 = vpack.c.b16 %v1084, %v1080
          %v1181 = vpack.c.b16 %v1089, %v1085
          %v1182 = vpack.c.b16 %v1090, %v1086
          %v1183 = vpack.c.b16 %v1091, %v1087
          %v1184 = vpack.c.b16 %v1092, %v1088
          %v1185 = vpack.c.b16 %v1097, %v1093
          %v1186 = vpack.c.b16 %v1098, %v1094
          %v1187 = vpack.c.b16 %v1099, %v1095
          %v1188 = vpack.c.b16 %v1100, %v1096
          %v1189 = vpack.c.b16 %v1105, %v1101
          %v1190 = vpack.c.b16 %v1106, %v1102
          %v1191 = vpack.c.b16 %v1107, %v1103
          %v1192 = vpack.c.b16 %v1108, %v1104
          %v1193 = vpack.c.b16 %v1113, %v1109
          %v1194 = vpack.c.b16 %v1114, %v1110
          %v1195 = vpack.c.b16 %v1115, %v1111
          %v1196 = vpack.c.b16 %v1116, %v1112
          %v1197 = vpack.c.b16 %v1121, %v1117
          %v1198 = vpack.c.b16 %v1122, %v1118
          %v1199 = vpack.c.b16 %v1123, %v1119
          %v1200 = vpack.c.b16 %v1124, %v1120
          %v1201 = vpack.c.b16 %v1129, %v1125
          %v1202 = vpack.c.b16 %v1130, %v1126
          %v1203 = vpack.c.b16 %v1131, %v1127
          %v1204 = vpack.c.b16 %v1132, %v1128
          %v1205 = vpack.c.b16 %v1137, %v1133
          %v1206 = vpack.c.b16 %v1138, %v1134
          %v1207 = vpack.c.b16 %v1139, %v1135
          %v1208 = vpack.c.b16 %v1140, %v1136
          %v1209 = vpack.c.b16 %v1145, %v1141
          %v1210 = vpack.c.b16 %v1146, %v1142
          %v1211 = vpack.c.b16 %v1147, %v1143
          %v1212 = vpack.c.b16 %v1148, %v1144
          %1277 = vmatprep.subr.bf16.mxu0 %v1178
          %1278 = vmatpush1.bf16.msra.mxu0 %v1177
          %1279 = vmatprep.subr.bf16.mxu0 %v1174
          %1280 = vmatpush1.bf16.msra.mxu0 %v1173
          %1281 = vmatprep.subr.bf16.mxu0 %v1170
          %1282 = vmatpush1.bf16.msra.mxu0 %v1169
          %1283 = vmatprep.subr.bf16.mxu0 %v1166
          %1284 = vmatpush1.bf16.msra.mxu0 %v1165
          %1285 = vmatprep.subr.bf16.mxu0 %v1162
          %1286 = vmatpush1.bf16.msra.mxu0 %v1161
          %1287 = vmatprep.subr.bf16.mxu0 %v1158
          %1288 = vmatpush1.bf16.msra.mxu0 %v1157
          %1289 = vmatprep.subr.bf16.mxu0 %v1154
          %1290 = vmatpush1.bf16.msra.mxu0 %v1153
          %1291 = vmatprep.subr.bf16.mxu0 %v1150
          %1292 = vmatpush1.bf16.msra.mxu0 %v1149
          %1293 = vmatprep.subr.bf16.mxu0 %v1210
          %1294 = vmatpush2.bf16.msra.mxu0 %v1209
          %1295 = vmatprep.subr.bf16.mxu0 %v1206
          %1296 = vmatpush2.bf16.msra.mxu0 %v1205
          %1297 = vmatprep.subr.bf16.mxu0 %v1202
          %1298 = vmatpush2.bf16.msra.mxu0 %v1201
          %1299 = vmatprep.subr.bf16.mxu0 %v1198
          %1300 = vmatpush2.bf16.msra.mxu0 %v1197
          %1301 = vmatprep.subr.bf16.mxu0 %v1194
          %1302 = vmatpush2.bf16.msra.mxu0 %v1193
          %1303 = vmatprep.subr.bf16.mxu0 %v1190
          %1304 = vmatpush2.bf16.msra.mxu0 %v1189
          %1305 = vmatprep.subr.bf16.mxu0 %v1186
          %1306 = vmatpush2.bf16.msra.mxu0 %v1185
          %1307 = vmatprep.subr.bf16.mxu0 %v1182
          %1308 = vmatpush2.bf16.msra.mxu0 %v1181
          %1309 = vmatprep.mubr.bf16.mxu0 %v830
          %1310 = vmatmul.mubr.bf16.gmra.mxu0 %v829
          %v1311 = vpop.f32.mrf.mxu0
          %v1312 = vadd.f32 %v620, %v1311
          %v1313 = vpop.f32.mrf.mxu0
          %v1314 = vadd.f32 %v624, %v1313
          %v1315 = vpop.f32.mrf.mxu0
          %v1316 = vadd.f32 %v620, %v1315
          %v1317 = vpop.f32.mrf.mxu0
          %v1318 = vadd.f32 %v624, %v1317
          %1319 = vmatprep.mubr.bf16.mxu0 %v832
          %1320 = vmatmul.mubr.bf16.gmra.mxu0 %v831
          %v1321 = vpop.f32.mrf.mxu0
          %v1322 = vadd.f32 %v620, %v1321
          %v1323 = vpop.f32.mrf.mxu0
          %v1324 = vadd.f32 %v624, %v1323
          %v1325 = vpop.f32.mrf.mxu0
          %v1326 = vadd.f32 %v620, %v1325
          %v1327 = vpop.f32.mrf.mxu0
          %v1328 = vadd.f32 %v624, %v1327
          %1329 = vmatprep.mubr.bf16.mxu0 %v834
          %1330 = vmatmul.mubr.bf16.gmra.mxu0 %v833
          %v1331 = vpop.f32.mrf.mxu0
          %v1332 = vadd.f32 %v620, %v1331
          %v1333 = vpop.f32.mrf.mxu0
          %v1334 = vadd.f32 %v624, %v1333
          %v1335 = vpop.f32.mrf.mxu0
          %v1336 = vadd.f32 %v620, %v1335
          %v1337 = vpop.f32.mrf.mxu0
          %v1338 = vadd.f32 %v624, %v1337
          %1339 = vmatprep.mubr.bf16.mxu0 %v836
          %1340 = vmatmul.mubr.bf16.gmra.mxu0 %v835
          %v1341 = vpop.f32.mrf.mxu0
          %v1342 = vadd.f32 %v620, %v1341
          %v1343 = vpop.f32.mrf.mxu0
          %v1344 = vadd.f32 %v624, %v1343
          %v1345 = vpop.f32.mrf.mxu0
          %v1346 = vadd.f32 %v620, %v1345
          %v1347 = vpop.f32.mrf.mxu0
          %v1348 = vadd.f32 %v624, %v1347
          %1349 = vmatprep.mubr.bf16.mxu0 %v838
          %1350 = vmatmul.mubr.bf16.gmra.mxu0 %v837
          %v1351 = vpop.f32.mrf.mxu0
          %v1352 = vadd.f32 %v620, %v1351
          %v1353 = vpop.f32.mrf.mxu0
          %v1354 = vadd.f32 %v624, %v1353
          %v1355 = vpop.f32.mrf.mxu0
          %v1356 = vadd.f32 %v620, %v1355
          %v1357 = vpop.f32.mrf.mxu0
          %v1358 = vadd.f32 %v624, %v1357
          %1359 = vmatprep.mubr.bf16.mxu0 %v840
          %1360 = vmatmul.mubr.bf16.gmra.mxu0 %v839
          %v1361 = vpop.f32.mrf.mxu0
          %v1362 = vadd.f32 %v620, %v1361
          %v1363 = vpop.f32.mrf.mxu0
          %v1364 = vadd.f32 %v624, %v1363
          %v1365 = vpop.f32.mrf.mxu0
          %v1366 = vadd.f32 %v620, %v1365
          %v1367 = vpop.f32.mrf.mxu0
          %v1368 = vadd.f32 %v624, %v1367
          %1369 = vmatprep.mubr.bf16.mxu0 %v842
          %1370 = vmatmul.mubr.bf16.gmra.mxu0 %v841
          %v1371 = vpop.f32.mrf.mxu0
          %v1372 = vadd.f32 %v620, %v1371
          %v1373 = vpop.f32.mrf.mxu0
          %v1374 = vadd.f32 %v624, %v1373
          %v1375 = vpop.f32.mrf.mxu0
          %v1376 = vadd.f32 %v620, %v1375
          %v1377 = vpop.f32.mrf.mxu0
          %v1378 = vadd.f32 %v624, %v1377
          %1379 = vmatprep.mubr.bf16.mxu0 %v844
          %1380 = vmatmul.mubr.bf16.gmra.mxu0 %v843
          %v1381 = vpop.f32.mrf.mxu0
          %v1382 = vadd.f32 %v620, %v1381
          %v1383 = vpop.f32.mrf.mxu0
          %v1384 = vadd.f32 %v624, %v1383
          %v1385 = vpop.f32.mrf.mxu0
          %v1386 = vadd.f32 %v620, %v1385
          %v1387 = vpop.f32.mrf.mxu0
          %v1388 = vadd.f32 %v624, %v1387
          %1389 = vmatprep.mubr.bf16.mxu0 %v846
          %1390 = vmatmul.mubr.bf16.gmra.mxu0 %v845
          %v1391 = vpop.f32.mrf.mxu0
          %v1392 = vadd.f32 %v620, %v1391
          %v1393 = vpop.f32.mrf.mxu0
          %v1394 = vadd.f32 %v624, %v1393
          %v1395 = vpop.f32.mrf.mxu0
          %v1396 = vadd.f32 %v620, %v1395
          %v1397 = vpop.f32.mrf.mxu0
          %v1398 = vadd.f32 %v624, %v1397
          %1399 = vmatprep.mubr.bf16.mxu0 %v848
          %1400 = vmatmul.mubr.bf16.gmra.mxu0 %v847
          %v1401 = vpop.f32.mrf.mxu0
          %v1402 = vadd.f32 %v620, %v1401
          %v1403 = vpop.f32.mrf.mxu0
          %v1404 = vadd.f32 %v624, %v1403
          %v1405 = vpop.f32.mrf.mxu0
          %v1406 = vadd.f32 %v620, %v1405
          %v1407 = vpop.f32.mrf.mxu0
          %v1408 = vadd.f32 %v624, %v1407
          %1409 = vmatprep.mubr.bf16.mxu0 %v850
          %1410 = vmatmul.mubr.bf16.gmra.mxu0 %v849
          %v1411 = vpop.f32.mrf.mxu0
          %v1412 = vadd.f32 %v620, %v1411
          %v1413 = vpop.f32.mrf.mxu0
          %v1414 = vadd.f32 %v624, %v1413
          %v1415 = vpop.f32.mrf.mxu0
          %v1416 = vadd.f32 %v620, %v1415
          %v1417 = vpop.f32.mrf.mxu0
          %v1418 = vadd.f32 %v624, %v1417
          %1419 = vmatprep.mubr.bf16.mxu0 %v852
          %1420 = vmatmul.mubr.bf16.gmra.mxu0 %v851
          %v1421 = vpop.f32.mrf.mxu0
          %v1422 = vadd.f32 %v620, %v1421
          %v1423 = vpop.f32.mrf.mxu0
          %v1424 = vadd.f32 %v624, %v1423
          %v1425 = vpop.f32.mrf.mxu0
          %v1426 = vadd.f32 %v620, %v1425
          %v1427 = vpop.f32.mrf.mxu0
          %v1428 = vadd.f32 %v624, %v1427
          %1429 = vmatprep.mubr.bf16.mxu0 %v854
          %1430 = vmatmul.mubr.bf16.gmra.mxu0 %v853
          %v1431 = vpop.f32.mrf.mxu0
          %v1432 = vadd.f32 %v620, %v1431
          %v1433 = vpop.f32.mrf.mxu0
          %v1434 = vadd.f32 %v624, %v1433
          %v1435 = vpop.f32.mrf.mxu0
          %v1436 = vadd.f32 %v620, %v1435
          %v1437 = vpop.f32.mrf.mxu0
          %v1438 = vadd.f32 %v624, %v1437
          %1439 = vmatprep.mubr.bf16.mxu0 %v856
          %1440 = vmatmul.mubr.bf16.gmra.mxu0 %v855
          %v1441 = vpop.f32.mrf.mxu0
          %v1442 = vadd.f32 %v620, %v1441
          %v1443 = vpop.f32.mrf.mxu0
          %v1444 = vadd.f32 %v624, %v1443
          %v1445 = vpop.f32.mrf.mxu0
          %v1446 = vadd.f32 %v620, %v1445
          %v1447 = vpop.f32.mrf.mxu0
          %v1448 = vadd.f32 %v624, %v1447
          %1449 = vmatprep.mubr.bf16.mxu0 %v858
          %1450 = vmatmul.mubr.bf16.gmra.mxu0 %v857
          %v1451 = vpop.f32.mrf.mxu0
          %v1452 = vadd.f32 %v620, %v1451
          %v1453 = vpop.f32.mrf.mxu0
          %v1454 = vadd.f32 %v624, %v1453
          %v1455 = vpop.f32.mrf.mxu0
          %v1456 = vadd.f32 %v620, %v1455
          %v1457 = vpop.f32.mrf.mxu0
          %v1458 = vadd.f32 %v624, %v1457
          %1459 = vmatprep.mubr.bf16.mxu0 %v860
          %1460 = vmatmul.mubr.bf16.gmra.mxu0 %v859
          %v1461 = vpop.f32.mrf.mxu0
          %v1462 = vadd.f32 %v620, %v1461
          %v1463 = vpop.f32.mrf.mxu0
          %v1464 = vadd.f32 %v624, %v1463
          %v1465 = vpop.f32.mrf.mxu0
          %v1466 = vadd.f32 %v620, %v1465
          %v1467 = vpop.f32.mrf.mxu0
          %v1468 = vadd.f32 %v624, %v1467
          %1469 = vmatprep.mubr.bf16.mxu0 %v862
          %1470 = vmatmul.mubr.bf16.gmra.mxu0 %v861
          %v1471 = vpop.f32.mrf.mxu0
          %v1472 = vadd.f32 %v620, %v1471
          %v1473 = vpop.f32.mrf.mxu0
          %v1474 = vadd.f32 %v624, %v1473
          %v1475 = vpop.f32.mrf.mxu0
          %v1476 = vadd.f32 %v620, %v1475
          %v1477 = vpop.f32.mrf.mxu0
          %v1478 = vadd.f32 %v624, %v1477
          %1479 = vmatprep.mubr.bf16.mxu0 %v864
          %1480 = vmatmul.mubr.bf16.gmra.mxu0 %v863
          %v1481 = vpop.f32.mrf.mxu0
          %v1482 = vadd.f32 %v620, %v1481
          %v1483 = vpop.f32.mrf.mxu0
          %v1484 = vadd.f32 %v624, %v1483
          %v1485 = vpop.f32.mrf.mxu0
          %v1486 = vadd.f32 %v620, %v1485
          %v1487 = vpop.f32.mrf.mxu0
          %v1488 = vadd.f32 %v624, %v1487
          %1489 = vmatprep.mubr.bf16.mxu0 %v866
          %1490 = vmatmul.mubr.bf16.gmra.mxu0 %v865
          %v1491 = vpop.f32.mrf.mxu0
          %v1492 = vadd.f32 %v620, %v1491
          %v1493 = vpop.f32.mrf.mxu0
          %v1494 = vadd.f32 %v624, %v1493
          %v1495 = vpop.f32.mrf.mxu0
          %v1496 = vadd.f32 %v620, %v1495
          %v1497 = vpop.f32.mrf.mxu0
          %v1498 = vadd.f32 %v624, %v1497
          %1499 = vmatprep.mubr.bf16.mxu0 %v868
          %1500 = vmatmul.mubr.bf16.gmra.mxu0 %v867
          %v1501 = vpop.f32.mrf.mxu0
          %v1502 = vadd.f32 %v620, %v1501
          %v1503 = vpop.f32.mrf.mxu0
          %v1504 = vadd.f32 %v624, %v1503
          %v1505 = vpop.f32.mrf.mxu0
          %v1506 = vadd.f32 %v620, %v1505
          %v1507 = vpop.f32.mrf.mxu0
          %v1508 = vadd.f32 %v624, %v1507
          %1509 = vmatprep.mubr.bf16.mxu0 %v870
          %1510 = vmatmul.mubr.bf16.gmra.mxu0 %v869
          %v1511 = vpop.f32.mrf.mxu0
          %v1512 = vadd.f32 %v620, %v1511
          %v1513 = vpop.f32.mrf.mxu0
          %v1514 = vadd.f32 %v624, %v1513
          %v1515 = vpop.f32.mrf.mxu0
          %v1516 = vadd.f32 %v620, %v1515
          %v1517 = vpop.f32.mrf.mxu0
          %v1518 = vadd.f32 %v624, %v1517
          %1519 = vmatprep.mubr.bf16.mxu0 %v872
          %1520 = vmatmul.mubr.bf16.gmra.mxu0 %v871
          %v1521 = vpop.f32.mrf.mxu0
          %v1522 = vadd.f32 %v620, %v1521
          %v1523 = vpop.f32.mrf.mxu0
          %v1524 = vadd.f32 %v624, %v1523
          %v1525 = vpop.f32.mrf.mxu0
          %v1526 = vadd.f32 %v620, %v1525
          %v1527 = vpop.f32.mrf.mxu0
          %v1528 = vadd.f32 %v624, %v1527
          %1529 = vmatprep.mubr.bf16.mxu0 %v874
          %1530 = vmatmul.mubr.bf16.gmra.mxu0 %v873
          %v1531 = vpop.f32.mrf.mxu0
          %v1532 = vadd.f32 %v620, %v1531
          %v1533 = vpop.f32.mrf.mxu0
          %v1534 = vadd.f32 %v624, %v1533
          %v1535 = vpop.f32.mrf.mxu0
          %v1536 = vadd.f32 %v620, %v1535
          %v1537 = vpop.f32.mrf.mxu0
          %v1538 = vadd.f32 %v624, %v1537
          %1539 = vmatprep.mubr.bf16.mxu0 %v876
          %1540 = vmatmul.mubr.bf16.gmra.mxu0 %v875
          %v1541 = vpop.f32.mrf.mxu0
          %v1542 = vadd.f32 %v620, %v1541
          %v1543 = vpop.f32.mrf.mxu0
          %v1544 = vadd.f32 %v624, %v1543
          %v1545 = vpop.f32.mrf.mxu0
          %v1546 = vadd.f32 %v620, %v1545
          %v1547 = vpop.f32.mrf.mxu0
          %v1548 = vadd.f32 %v624, %v1547
          %1549 = vmatprep.mubr.bf16.mxu0 %v878
          %1550 = vmatmul.mubr.bf16.gmra.mxu0 %v877
          %v1551 = vpop.f32.mrf.mxu0
          %v1552 = vadd.f32 %v620, %v1551
          %v1553 = vpop.f32.mrf.mxu0
          %v1554 = vadd.f32 %v624, %v1553
          %v1555 = vpop.f32.mrf.mxu0
          %v1556 = vadd.f32 %v620, %v1555
          %v1557 = vpop.f32.mrf.mxu0
          %v1558 = vadd.f32 %v624, %v1557
          %1559 = vmatprep.mubr.bf16.mxu0 %v880
          %1560 = vmatmul.mubr.bf16.gmra.mxu0 %v879
          %v1561 = vpop.f32.mrf.mxu0
          %v1562 = vadd.f32 %v620, %v1561
          %v1563 = vpop.f32.mrf.mxu0
          %v1564 = vadd.f32 %v624, %v1563
          %v1565 = vpop.f32.mrf.mxu0
          %v1566 = vadd.f32 %v620, %v1565
          %v1567 = vpop.f32.mrf.mxu0
          %v1568 = vadd.f32 %v624, %v1567
          %1569 = vmatprep.mubr.bf16.mxu0 %v882
          %1570 = vmatmul.mubr.bf16.gmra.mxu0 %v881
          %v1571 = vpop.f32.mrf.mxu0
          %v1572 = vadd.f32 %v620, %v1571
          %v1573 = vpop.f32.mrf.mxu0
          %v1574 = vadd.f32 %v624, %v1573
          %v1575 = vpop.f32.mrf.mxu0
          %v1576 = vadd.f32 %v620, %v1575
          %v1577 = vpop.f32.mrf.mxu0
          %v1578 = vadd.f32 %v624, %v1577
          %1579 = vmatprep.mubr.bf16.mxu0 %v884
          %1580 = vmatmul.mubr.bf16.gmra.mxu0 %v883
          %v1581 = vpop.f32.mrf.mxu0
          %v1582 = vadd.f32 %v620, %v1581
          %v1583 = vpop.f32.mrf.mxu0
          %v1584 = vadd.f32 %v624, %v1583
          %v1585 = vpop.f32.mrf.mxu0
          %v1586 = vadd.f32 %v620, %v1585
          %v1587 = vpop.f32.mrf.mxu0
          %v1588 = vadd.f32 %v624, %v1587
          %1589 = vmatprep.mubr.bf16.mxu0 %v886
          %1590 = vmatmul.mubr.bf16.gmra.mxu0 %v885
          %v1591 = vpop.f32.mrf.mxu0
          %v1592 = vadd.f32 %v620, %v1591
          %v1593 = vpop.f32.mrf.mxu0
          %v1594 = vadd.f32 %v624, %v1593
          %v1595 = vpop.f32.mrf.mxu0
          %v1596 = vadd.f32 %v620, %v1595
          %v1597 = vpop.f32.mrf.mxu0
          %v1598 = vadd.f32 %v624, %v1597
          %1599 = vmatprep.mubr.bf16.mxu0 %v888
          %1600 = vmatmul.mubr.bf16.gmra.mxu0 %v887
          %v1601 = vpop.f32.mrf.mxu0
          %v1602 = vadd.f32 %v620, %v1601
          %v1603 = vpop.f32.mrf.mxu0
          %v1604 = vadd.f32 %v624, %v1603
          %v1605 = vpop.f32.mrf.mxu0
          %v1606 = vadd.f32 %v620, %v1605
          %v1607 = vpop.f32.mrf.mxu0
          %v1608 = vadd.f32 %v624, %v1607
          %1609 = vmatprep.mubr.bf16.mxu0 %v890
          %1610 = vmatmul.mubr.bf16.gmra.mxu0 %v889
          %v1611 = vpop.f32.mrf.mxu0
          %v1612 = vadd.f32 %v620, %v1611
          %v1613 = vpop.f32.mrf.mxu0
          %v1614 = vadd.f32 %v624, %v1613
          %v1615 = vpop.f32.mrf.mxu0
          %v1616 = vadd.f32 %v620, %v1615
          %v1617 = vpop.f32.mrf.mxu0
          %v1618 = vadd.f32 %v624, %v1617
          %1619 = vmatprep.mubr.bf16.mxu0 %v892
          %1620 = vmatmul.mubr.bf16.gmra.mxu0 %v891
          %v1621 = vpop.f32.mrf.mxu0
          %v1622 = vadd.f32 %v620, %v1621
          %v1623 = vpop.f32.mrf.mxu0
          %v1624 = vadd.f32 %v624, %v1623
          %v1625 = vpop.f32.mrf.mxu0
          %v1626 = vadd.f32 %v620, %v1625
          %v1627 = vpop.f32.mrf.mxu0
          %v1628 = vadd.f32 %v624, %v1627
          %1629 = vdwg.mxu0
          %1630 = vmatprep.subr.bf16.mxu0 %v1180
          %1631 = vmatpush1.bf16.msra.mxu0 %v1179
          %1632 = vmatprep.subr.bf16.mxu0 %v1176
          %1633 = vmatpush1.bf16.msra.mxu0 %v1175
          %1634 = vmatprep.subr.bf16.mxu0 %v1172
          %1635 = vmatpush1.bf16.msra.mxu0 %v1171
          %1636 = vmatprep.subr.bf16.mxu0 %v1168
          %1637 = vmatpush1.bf16.msra.mxu0 %v1167
          %1638 = vmatprep.subr.bf16.mxu0 %v1164
          %1639 = vmatpush1.bf16.msra.mxu0 %v1163
          %1640 = vmatprep.subr.bf16.mxu0 %v1160
          %1641 = vmatpush1.bf16.msra.mxu0 %v1159
          %1642 = vmatprep.subr.bf16.mxu0 %v1156
          %1643 = vmatpush1.bf16.msra.mxu0 %v1155
          %1644 = vmatprep.subr.bf16.mxu0 %v1152
          %1645 = vmatpush1.bf16.msra.mxu0 %v1151
          %1646 = vmatprep.subr.bf16.mxu0 %v1212
          %1647 = vmatpush2.bf16.msra.mxu0 %v1211
          %1648 = vmatprep.subr.bf16.mxu0 %v1208
          %1649 = vmatpush2.bf16.msra.mxu0 %v1207
          %1650 = vmatprep.subr.bf16.mxu0 %v1204
          %1651 = vmatpush2.bf16.msra.mxu0 %v1203
          %1652 = vmatprep.subr.bf16.mxu0 %v1200
          %1653 = vmatpush2.bf16.msra.mxu0 %v1199
          %1654 = vmatprep.subr.bf16.mxu0 %v1196
          %1655 = vmatpush2.bf16.msra.mxu0 %v1195
          %1656 = vmatprep.subr.bf16.mxu0 %v1192
          %1657 = vmatpush2.bf16.msra.mxu0 %v1191
          %1658 = vmatprep.subr.bf16.mxu0 %v1188
          %1659 = vmatpush2.bf16.msra.mxu0 %v1187
          %1660 = vmatprep.subr.bf16.mxu0 %v1184
          %1661 = vmatpush2.bf16.msra.mxu0 %v1183
          %1662 = vmatprep.mubr.bf16.mxu0 %v830
          %1663 = vmatmul.mubr.bf16.gmra.mxu0 %v829
          %v1664 = vpop.f32.mrf.mxu0
          %v1665 = vadd.f32 %v628, %v1664
          %v1666 = vpop.f32.mrf.mxu0
          %v1667 = vadd.f32 %v632, %v1666
          %v1668 = vpop.f32.mrf.mxu0
          %v1669 = vadd.f32 %v628, %v1668
          %v1670 = vpop.f32.mrf.mxu0
          %v1671 = vadd.f32 %v632, %v1670
          %1672 = vmatprep.mubr.bf16.mxu0 %v832
          %1673 = vmatmul.mubr.bf16.gmra.mxu0 %v831
          %v1674 = vpop.f32.mrf.mxu0
          %v1675 = vadd.f32 %v628, %v1674
          %v1676 = vpop.f32.mrf.mxu0
          %v1677 = vadd.f32 %v632, %v1676
          %v1678 = vpop.f32.mrf.mxu0
          %v1679 = vadd.f32 %v628, %v1678
          %v1680 = vpop.f32.mrf.mxu0
          %v1681 = vadd.f32 %v632, %v1680
          %1682 = vmatprep.mubr.bf16.mxu0 %v834
          %1683 = vmatmul.mubr.bf16.gmra.mxu0 %v833
          %v1684 = vpop.f32.mrf.mxu0
          %v1685 = vadd.f32 %v628, %v1684
          %v1686 = vpop.f32.mrf.mxu0
          %v1687 = vadd.f32 %v632, %v1686
          %v1688 = vpop.f32.mrf.mxu0
          %v1689 = vadd.f32 %v628, %v1688
          %v1690 = vpop.f32.mrf.mxu0
          %v1691 = vadd.f32 %v632, %v1690
          %1692 = vmatprep.mubr.bf16.mxu0 %v836
          %1693 = vmatmul.mubr.bf16.gmra.mxu0 %v835
          %v1694 = vpop.f32.mrf.mxu0
          %v1695 = vadd.f32 %v628, %v1694
          %v1696 = vpop.f32.mrf.mxu0
          %v1697 = vadd.f32 %v632, %v1696
          %v1698 = vpop.f32.mrf.mxu0
          %v1699 = vadd.f32 %v628, %v1698
          %v1700 = vpop.f32.mrf.mxu0
          %v1701 = vadd.f32 %v632, %v1700
          %1702 = vmatprep.mubr.bf16.mxu0 %v838
          %1703 = vmatmul.mubr.bf16.gmra.mxu0 %v837
          %v1704 = vpop.f32.mrf.mxu0
          %v1705 = vadd.f32 %v628, %v1704
          %v1706 = vpop.f32.mrf.mxu0
          %v1707 = vadd.f32 %v632, %v1706
          %v1708 = vpop.f32.mrf.mxu0
          %v1709 = vadd.f32 %v628, %v1708
          %v1710 = vpop.f32.mrf.mxu0
          %v1711 = vadd.f32 %v632, %v1710
          %1712 = vmatprep.mubr.bf16.mxu0 %v840
          %1713 = vmatmul.mubr.bf16.gmra.mxu0 %v839
          %v1714 = vpop.f32.mrf.mxu0
          %v1715 = vadd.f32 %v628, %v1714
          %v1716 = vpop.f32.mrf.mxu0
          %v1717 = vadd.f32 %v632, %v1716
          %v1718 = vpop.f32.mrf.mxu0
          %v1719 = vadd.f32 %v628, %v1718
          %v1720 = vpop.f32.mrf.mxu0
          %v1721 = vadd.f32 %v632, %v1720
          %1722 = vmatprep.mubr.bf16.mxu0 %v842
          %1723 = vmatmul.mubr.bf16.gmra.mxu0 %v841
          %v1724 = vpop.f32.mrf.mxu0
          %v1725 = vadd.f32 %v628, %v1724
          %v1726 = vpop.f32.mrf.mxu0
          %v1727 = vadd.f32 %v632, %v1726
          %v1728 = vpop.f32.mrf.mxu0
          %v1729 = vadd.f32 %v628, %v1728
          %v1730 = vpop.f32.mrf.mxu0
          %v1731 = vadd.f32 %v632, %v1730
          %1732 = vmatprep.mubr.bf16.mxu0 %v844
          %1733 = vmatmul.mubr.bf16.gmra.mxu0 %v843
          %v1734 = vpop.f32.mrf.mxu0
          %v1735 = vadd.f32 %v628, %v1734
          %v1736 = vpop.f32.mrf.mxu0
          %v1737 = vadd.f32 %v632, %v1736
          %v1738 = vpop.f32.mrf.mxu0
          %v1739 = vadd.f32 %v628, %v1738
          %v1740 = vpop.f32.mrf.mxu0
          %v1741 = vadd.f32 %v632, %v1740
          %1742 = vmatprep.mubr.bf16.mxu0 %v846
          %1743 = vmatmul.mubr.bf16.gmra.mxu0 %v845
          %v1744 = vpop.f32.mrf.mxu0
          %v1745 = vadd.f32 %v628, %v1744
          %v1746 = vpop.f32.mrf.mxu0
          %v1747 = vadd.f32 %v632, %v1746
          %v1748 = vpop.f32.mrf.mxu0
          %v1749 = vadd.f32 %v628, %v1748
          %v1750 = vpop.f32.mrf.mxu0
          %v1751 = vadd.f32 %v632, %v1750
          %1752 = vmatprep.mubr.bf16.mxu0 %v848
          %1753 = vmatmul.mubr.bf16.gmra.mxu0 %v847
          %v1754 = vpop.f32.mrf.mxu0
          %v1755 = vadd.f32 %v628, %v1754
          %v1756 = vpop.f32.mrf.mxu0
          %v1757 = vadd.f32 %v632, %v1756
          %v1758 = vpop.f32.mrf.mxu0
          %v1759 = vadd.f32 %v628, %v1758
          %v1760 = vpop.f32.mrf.mxu0
          %v1761 = vadd.f32 %v632, %v1760
          %1762 = vmatprep.mubr.bf16.mxu0 %v850
          %1763 = vmatmul.mubr.bf16.gmra.mxu0 %v849
          %v1764 = vpop.f32.mrf.mxu0
          %v1765 = vadd.f32 %v628, %v1764
          %v1766 = vpop.f32.mrf.mxu0
          %v1767 = vadd.f32 %v632, %v1766
          %v1768 = vpop.f32.mrf.mxu0
          %v1769 = vadd.f32 %v628, %v1768
          %v1770 = vpop.f32.mrf.mxu0
          %v1771 = vadd.f32 %v632, %v1770
          %1772 = vmatprep.mubr.bf16.mxu0 %v852
          %1773 = vmatmul.mubr.bf16.gmra.mxu0 %v851
          %v1774 = vpop.f32.mrf.mxu0
          %v1775 = vadd.f32 %v628, %v1774
          %v1776 = vpop.f32.mrf.mxu0
          %v1777 = vadd.f32 %v632, %v1776
          %v1778 = vpop.f32.mrf.mxu0
          %v1779 = vadd.f32 %v628, %v1778
          %v1780 = vpop.f32.mrf.mxu0
          %v1781 = vadd.f32 %v632, %v1780
          %1782 = vmatprep.mubr.bf16.mxu0 %v854
          %1783 = vmatmul.mubr.bf16.gmra.mxu0 %v853
          %v1784 = vpop.f32.mrf.mxu0
          %v1785 = vadd.f32 %v628, %v1784
          %v1786 = vpop.f32.mrf.mxu0
          %v1787 = vadd.f32 %v632, %v1786
          %v1788 = vpop.f32.mrf.mxu0
          %v1789 = vadd.f32 %v628, %v1788
          %v1790 = vpop.f32.mrf.mxu0
          %v1791 = vadd.f32 %v632, %v1790
          %1792 = vmatprep.mubr.bf16.mxu0 %v856
          %1793 = vmatmul.mubr.bf16.gmra.mxu0 %v855
          %v1794 = vpop.f32.mrf.mxu0
          %v1795 = vadd.f32 %v628, %v1794
          %v1796 = vpop.f32.mrf.mxu0
          %v1797 = vadd.f32 %v632, %v1796
          %v1798 = vpop.f32.mrf.mxu0
          %v1799 = vadd.f32 %v628, %v1798
          %v1800 = vpop.f32.mrf.mxu0
          %v1801 = vadd.f32 %v632, %v1800
          %1802 = vmatprep.mubr.bf16.mxu0 %v858
          %1803 = vmatmul.mubr.bf16.gmra.mxu0 %v857
          %v1804 = vpop.f32.mrf.mxu0
          %v1805 = vadd.f32 %v628, %v1804
          %v1806 = vpop.f32.mrf.mxu0
          %v1807 = vadd.f32 %v632, %v1806
          %v1808 = vpop.f32.mrf.mxu0
          %v1809 = vadd.f32 %v628, %v1808
          %v1810 = vpop.f32.mrf.mxu0
          %v1811 = vadd.f32 %v632, %v1810
          %1812 = vmatprep.mubr.bf16.mxu0 %v860
          %1813 = vmatmul.mubr.bf16.gmra.mxu0 %v859
          %v1814 = vpop.f32.mrf.mxu0
          %v1815 = vadd.f32 %v628, %v1814
          %v1816 = vpop.f32.mrf.mxu0
          %v1817 = vadd.f32 %v632, %v1816
          %v1818 = vpop.f32.mrf.mxu0
          %v1819 = vadd.f32 %v628, %v1818
          %v1820 = vpop.f32.mrf.mxu0
          %v1821 = vadd.f32 %v632, %v1820
          %1822 = vmatprep.mubr.bf16.mxu0 %v862
          %1823 = vmatmul.mubr.bf16.gmra.mxu0 %v861
          %v1824 = vpop.f32.mrf.mxu0
          %v1825 = vadd.f32 %v628, %v1824
          %v1826 = vpop.f32.mrf.mxu0
          %v1827 = vadd.f32 %v632, %v1826
          %v1828 = vpop.f32.mrf.mxu0
          %v1829 = vadd.f32 %v628, %v1828
          %v1830 = vpop.f32.mrf.mxu0
          %v1831 = vadd.f32 %v632, %v1830
          %1832 = vmatprep.mubr.bf16.mxu0 %v864
          %1833 = vmatmul.mubr.bf16.gmra.mxu0 %v863
          %v1834 = vpop.f32.mrf.mxu0
          %v1835 = vadd.f32 %v628, %v1834
          %v1836 = vpop.f32.mrf.mxu0
          %v1837 = vadd.f32 %v632, %v1836
          %v1838 = vpop.f32.mrf.mxu0
          %v1839 = vadd.f32 %v628, %v1838
          %v1840 = vpop.f32.mrf.mxu0
          %v1841 = vadd.f32 %v632, %v1840
          %1842 = vmatprep.mubr.bf16.mxu0 %v866
          %1843 = vmatmul.mubr.bf16.gmra.mxu0 %v865
          %v1844 = vpop.f32.mrf.mxu0
          %v1845 = vadd.f32 %v628, %v1844
          %v1846 = vpop.f32.mrf.mxu0
          %v1847 = vadd.f32 %v632, %v1846
          %v1848 = vpop.f32.mrf.mxu0
          %v1849 = vadd.f32 %v628, %v1848
          %v1850 = vpop.f32.mrf.mxu0
          %v1851 = vadd.f32 %v632, %v1850
          %1852 = vmatprep.mubr.bf16.mxu0 %v868
          %1853 = vmatmul.mubr.bf16.gmra.mxu0 %v867
          %v1854 = vpop.f32.mrf.mxu0
          %v1855 = vadd.f32 %v628, %v1854
          %v1856 = vpop.f32.mrf.mxu0
          %v1857 = vadd.f32 %v632, %v1856
          %v1858 = vpop.f32.mrf.mxu0
          %v1859 = vadd.f32 %v628, %v1858
          %v1860 = vpop.f32.mrf.mxu0
          %v1861 = vadd.f32 %v632, %v1860
          %1862 = vmatprep.mubr.bf16.mxu0 %v870
          %1863 = vmatmul.mubr.bf16.gmra.mxu0 %v869
          %v1864 = vpop.f32.mrf.mxu0
          %v1865 = vadd.f32 %v628, %v1864
          %v1866 = vpop.f32.mrf.mxu0
          %v1867 = vadd.f32 %v632, %v1866
          %v1868 = vpop.f32.mrf.mxu0
          %v1869 = vadd.f32 %v628, %v1868
          %v1870 = vpop.f32.mrf.mxu0
          %v1871 = vadd.f32 %v632, %v1870
          %1872 = vmatprep.mubr.bf16.mxu0 %v872
          %1873 = vmatmul.mubr.bf16.gmra.mxu0 %v871
          %v1874 = vpop.f32.mrf.mxu0
          %v1875 = vadd.f32 %v628, %v1874
          %v1876 = vpop.f32.mrf.mxu0
          %v1877 = vadd.f32 %v632, %v1876
          %v1878 = vpop.f32.mrf.mxu0
          %v1879 = vadd.f32 %v628, %v1878
          %v1880 = vpop.f32.mrf.mxu0
          %v1881 = vadd.f32 %v632, %v1880
          %1882 = vmatprep.mubr.bf16.mxu0 %v874
          %1883 = vmatmul.mubr.bf16.gmra.mxu0 %v873
          %v1884 = vpop.f32.mrf.mxu0
          %v1885 = vadd.f32 %v628, %v1884
          %v1886 = vpop.f32.mrf.mxu0
          %v1887 = vadd.f32 %v632, %v1886
          %v1888 = vpop.f32.mrf.mxu0
          %v1889 = vadd.f32 %v628, %v1888
          %v1890 = vpop.f32.mrf.mxu0
          %v1891 = vadd.f32 %v632, %v1890
          %1892 = vmatprep.mubr.bf16.mxu0 %v876
          %1893 = vmatmul.mubr.bf16.gmra.mxu0 %v875
          %v1894 = vpop.f32.mrf.mxu0
          %v1895 = vadd.f32 %v628, %v1894
          %v1896 = vpop.f32.mrf.mxu0
          %v1897 = vadd.f32 %v632, %v1896
          %v1898 = vpop.f32.mrf.mxu0
          %v1899 = vadd.f32 %v628, %v1898
          %v1900 = vpop.f32.mrf.mxu0
          %v1901 = vadd.f32 %v632, %v1900
          %1902 = vmatprep.mubr.bf16.mxu0 %v878
          %1903 = vmatmul.mubr.bf16.gmra.mxu0 %v877
          %v1904 = vpop.f32.mrf.mxu0
          %v1905 = vadd.f32 %v628, %v1904
          %v1906 = vpop.f32.mrf.mxu0
          %v1907 = vadd.f32 %v632, %v1906
          %v1908 = vpop.f32.mrf.mxu0
          %v1909 = vadd.f32 %v628, %v1908
          %v1910 = vpop.f32.mrf.mxu0
          %v1911 = vadd.f32 %v632, %v1910
          %1912 = vmatprep.mubr.bf16.mxu0 %v880
          %1913 = vmatmul.mubr.bf16.gmra.mxu0 %v879
          %v1914 = vpop.f32.mrf.mxu0
          %v1915 = vadd.f32 %v628, %v1914
          %v1916 = vpop.f32.mrf.mxu0
          %v1917 = vadd.f32 %v632, %v1916
          %v1918 = vpop.f32.mrf.mxu0
          %v1919 = vadd.f32 %v628, %v1918
          %v1920 = vpop.f32.mrf.mxu0
          %v1921 = vadd.f32 %v632, %v1920
          %1922 = vmatprep.mubr.bf16.mxu0 %v882
          %1923 = vmatmul.mubr.bf16.gmra.mxu0 %v881
          %v1924 = vpop.f32.mrf.mxu0
          %v1925 = vadd.f32 %v628, %v1924
          %v1926 = vpop.f32.mrf.mxu0
          %v1927 = vadd.f32 %v632, %v1926
          %v1928 = vpop.f32.mrf.mxu0
          %v1929 = vadd.f32 %v628, %v1928
          %v1930 = vpop.f32.mrf.mxu0
          %v1931 = vadd.f32 %v632, %v1930
          %1932 = vmatprep.mubr.bf16.mxu0 %v884
          %1933 = vmatmul.mubr.bf16.gmra.mxu0 %v883
          %v1934 = vpop.f32.mrf.mxu0
          %v1935 = vadd.f32 %v628, %v1934
          %v1936 = vpop.f32.mrf.mxu0
          %v1937 = vadd.f32 %v632, %v1936
          %v1938 = vpop.f32.mrf.mxu0
          %v1939 = vadd.f32 %v628, %v1938
          %v1940 = vpop.f32.mrf.mxu0
          %v1941 = vadd.f32 %v632, %v1940
          %1942 = vmatprep.mubr.bf16.mxu0 %v886
          %1943 = vmatmul.mubr.bf16.gmra.mxu0 %v885
          %v1944 = vpop.f32.mrf.mxu0
          %v1945 = vadd.f32 %v628, %v1944
          %v1946 = vpop.f32.mrf.mxu0
          %v1947 = vadd.f32 %v632, %v1946
          %v1948 = vpop.f32.mrf.mxu0
          %v1949 = vadd.f32 %v628, %v1948
          %v1950 = vpop.f32.mrf.mxu0
          %v1951 = vadd.f32 %v632, %v1950
          %1952 = vmatprep.mubr.bf16.mxu0 %v888
          %1953 = vmatmul.mubr.bf16.gmra.mxu0 %v887
          %v1954 = vpop.f32.mrf.mxu0
          %v1955 = vadd.f32 %v628, %v1954
          %v1956 = vpop.f32.mrf.mxu0
          %v1957 = vadd.f32 %v632, %v1956
          %v1958 = vpop.f32.mrf.mxu0
          %v1959 = vadd.f32 %v628, %v1958
          %v1960 = vpop.f32.mrf.mxu0
          %v1961 = vadd.f32 %v632, %v1960
          %1962 = vmatprep.mubr.bf16.mxu0 %v890
          %1963 = vmatmul.mubr.bf16.gmra.mxu0 %v889
          %v1964 = vpop.f32.mrf.mxu0
          %v1965 = vadd.f32 %v628, %v1964
          %v1966 = vpop.f32.mrf.mxu0
          %v1967 = vadd.f32 %v632, %v1966
          %v1968 = vpop.f32.mrf.mxu0
          %v1969 = vadd.f32 %v628, %v1968
          %v1970 = vpop.f32.mrf.mxu0
          %v1971 = vadd.f32 %v632, %v1970
          %1972 = vmatprep.mubr.bf16.mxu0 %v892
          %1973 = vmatmul.mubr.bf16.gmra.mxu0 %v891
          %v1974 = vpop.f32.mrf.mxu0
          %v1975 = vadd.f32 %v628, %v1974
          %v1976 = vpop.f32.mrf.mxu0
          %v1977 = vadd.f32 %v632, %v1976
          %v1978 = vpop.f32.mrf.mxu0
          %v1979 = vadd.f32 %v628, %v1978
          %v1980 = vpop.f32.mrf.mxu0
          %v1981 = vadd.f32 %v632, %v1980
          %1982 = vdwg.mxu0
          %v1983 = vpack.c.bf16 %v1316, %v1312
          %v1984 = vpack.c.bf16 %v1318, %v1314
          %v1985 = vpack.c.bf16 %v1669, %v1665
          %v1986 = vpack.c.bf16 %v1671, %v1667
          %v1987 = vpack.c.bf16 %v1326, %v1322
          %v1988 = vpack.c.bf16 %v1328, %v1324
          %v1989 = vpack.c.bf16 %v1679, %v1675
          %v1990 = vpack.c.bf16 %v1681, %v1677
          %v1991 = vpack.c.bf16 %v1336, %v1332
          %v1992 = vpack.c.bf16 %v1338, %v1334
          %v1993 = vpack.c.bf16 %v1689, %v1685
          %v1994 = vpack.c.bf16 %v1691, %v1687
          %v1995 = vpack.c.bf16 %v1346, %v1342
          %v1996 = vpack.c.bf16 %v1348, %v1344
          %v1997 = vpack.c.bf16 %v1699, %v1695
          %v1998 = vpack.c.bf16 %v1701, %v1697
          %v1999 = vpack.c.bf16 %v1356, %v1352
          %v2000 = vpack.c.bf16 %v1358, %v1354
          %v2001 = vpack.c.bf16 %v1709, %v1705
          %v2002 = vpack.c.bf16 %v1711, %v1707
          %v2003 = vpack.c.bf16 %v1366, %v1362
          %v2004 = vpack.c.bf16 %v1368, %v1364
          %v2005 = vpack.c.bf16 %v1719, %v1715
          %v2006 = vpack.c.bf16 %v1721, %v1717
          %v2007 = vpack.c.bf16 %v1376, %v1372
          %v2008 = vpack.c.bf16 %v1378, %v1374
          %v2009 = vpack.c.bf16 %v1729, %v1725
          %v2010 = vpack.c.bf16 %v1731, %v1727
          %v2011 = vpack.c.bf16 %v1386, %v1382
          %v2012 = vpack.c.bf16 %v1388, %v1384
          %v2013 = vpack.c.bf16 %v1739, %v1735
          %v2014 = vpack.c.bf16 %v1741, %v1737
          %v2015 = vpack.c.bf16 %v1396, %v1392
          %v2016 = vpack.c.bf16 %v1398, %v1394
          %v2017 = vpack.c.bf16 %v1749, %v1745
          %v2018 = vpack.c.bf16 %v1751, %v1747
          %v2019 = vpack.c.bf16 %v1406, %v1402
          %v2020 = vpack.c.bf16 %v1408, %v1404
          %v2021 = vpack.c.bf16 %v1759, %v1755
          %v2022 = vpack.c.bf16 %v1761, %v1757
          %v2023 = vpack.c.bf16 %v1416, %v1412
          %v2024 = vpack.c.bf16 %v1418, %v1414
          %v2025 = vpack.c.bf16 %v1769, %v1765
          %v2026 = vpack.c.bf16 %v1771, %v1767
          %v2027 = vpack.c.bf16 %v1426, %v1422
          %v2028 = vpack.c.bf16 %v1428, %v1424
          %v2029 = vpack.c.bf16 %v1779, %v1775
          %v2030 = vpack.c.bf16 %v1781, %v1777
          %v2031 = vpack.c.bf16 %v1436, %v1432
          %v2032 = vpack.c.bf16 %v1438, %v1434
          %v2033 = vpack.c.bf16 %v1789, %v1785
          %v2034 = vpack.c.bf16 %v1791, %v1787
          %v2035 = vpack.c.bf16 %v1446, %v1442
          %v2036 = vpack.c.bf16 %v1448, %v1444
          %v2037 = vpack.c.bf16 %v1799, %v1795
          %v2038 = vpack.c.bf16 %v1801, %v1797
          %v2039 = vpack.c.bf16 %v1456, %v1452
          %v2040 = vpack.c.bf16 %v1458, %v1454
          %v2041 = vpack.c.bf16 %v1809, %v1805
          %v2042 = vpack.c.bf16 %v1811, %v1807
          %v2043 = vpack.c.bf16 %v1466, %v1462
          %v2044 = vpack.c.bf16 %v1468, %v1464
          %v2045 = vpack.c.bf16 %v1819, %v1815
          %v2046 = vpack.c.bf16 %v1821, %v1817
          %v2047 = vpack.c.bf16 %v1476, %v1472
          %v2048 = vpack.c.bf16 %v1478, %v1474
          %v2049 = vpack.c.bf16 %v1829, %v1825
          %v2050 = vpack.c.bf16 %v1831, %v1827
          %v2051 = vpack.c.bf16 %v1486, %v1482
          %v2052 = vpack.c.bf16 %v1488, %v1484
          %v2053 = vpack.c.bf16 %v1839, %v1835
          %v2054 = vpack.c.bf16 %v1841, %v1837
          %v2055 = vpack.c.bf16 %v1496, %v1492
          %v2056 = vpack.c.bf16 %v1498, %v1494
          %v2057 = vpack.c.bf16 %v1849, %v1845
          %v2058 = vpack.c.bf16 %v1851, %v1847
          %v2059 = vpack.c.bf16 %v1506, %v1502
          %v2060 = vpack.c.bf16 %v1508, %v1504
          %v2061 = vpack.c.bf16 %v1859, %v1855
          %v2062 = vpack.c.bf16 %v1861, %v1857
          %v2063 = vpack.c.bf16 %v1516, %v1512
          %v2064 = vpack.c.bf16 %v1518, %v1514
          %v2065 = vpack.c.bf16 %v1869, %v1865
          %v2066 = vpack.c.bf16 %v1871, %v1867
          %v2067 = vpack.c.bf16 %v1526, %v1522
          %v2068 = vpack.c.bf16 %v1528, %v1524
          %v2069 = vpack.c.bf16 %v1879, %v1875
          %v2070 = vpack.c.bf16 %v1881, %v1877
          %v2071 = vpack.c.bf16 %v1536, %v1532
          %v2072 = vpack.c.bf16 %v1538, %v1534
          %v2073 = vpack.c.bf16 %v1889, %v1885
          %v2074 = vpack.c.bf16 %v1891, %v1887
          %v2075 = vpack.c.bf16 %v1546, %v1542
          %v2076 = vpack.c.bf16 %v1548, %v1544
          %v2077 = vpack.c.bf16 %v1899, %v1895
          %v2078 = vpack.c.bf16 %v1901, %v1897
          %v2079 = vpack.c.bf16 %v1556, %v1552
          %v2080 = vpack.c.bf16 %v1558, %v1554
          %v2081 = vpack.c.bf16 %v1909, %v1905
          %v2082 = vpack.c.bf16 %v1911, %v1907
          %v2083 = vpack.c.bf16 %v1566, %v1562
          %v2084 = vpack.c.bf16 %v1568, %v1564
          %v2085 = vpack.c.bf16 %v1919, %v1915
          %v2086 = vpack.c.bf16 %v1921, %v1917
          %v2087 = vpack.c.bf16 %v1576, %v1572
          %v2088 = vpack.c.bf16 %v1578, %v1574
          %v2089 = vpack.c.bf16 %v1929, %v1925
          %v2090 = vpack.c.bf16 %v1931, %v1927
          %v2091 = vpack.c.bf16 %v1586, %v1582
          %v2092 = vpack.c.bf16 %v1588, %v1584
          %v2093 = vpack.c.bf16 %v1939, %v1935
          %v2094 = vpack.c.bf16 %v1941, %v1937
          %v2095 = vpack.c.bf16 %v1596, %v1592
          %v2096 = vpack.c.bf16 %v1598, %v1594
          %v2097 = vpack.c.bf16 %v1949, %v1945
          %v2098 = vpack.c.bf16 %v1951, %v1947
          %v2099 = vpack.c.bf16 %v1606, %v1602
          %v2100 = vpack.c.bf16 %v1608, %v1604
          %v2101 = vpack.c.bf16 %v1959, %v1955
          %v2102 = vpack.c.bf16 %v1961, %v1957
          %v2103 = vpack.c.bf16 %v1616, %v1612
          %v2104 = vpack.c.bf16 %v1618, %v1614
          %v2105 = vpack.c.bf16 %v1969, %v1965
          %v2106 = vpack.c.bf16 %v1971, %v1967
          %v2107 = vpack.c.bf16 %v1626, %v1622
          %v2108 = vpack.c.bf16 %v1628, %v1624
          %v2109 = vpack.c.bf16 %v1979, %v1975
          %v2110 = vpack.c.bf16 %v1981, %v1977
          %v2175 = vunpack.c.l.b16 %v1983
          %v2176 = vunpack.c.h.b16 %v1983
          %v2177 = vunpack.c.l.b16 %v1987
          %v2178 = vunpack.c.h.b16 %v1987
          %v2179 = vunpack.c.l.b16 %v1991
          %v2180 = vunpack.c.h.b16 %v1991
          %v2181 = vunpack.c.l.b16 %v1995
          %v2182 = vunpack.c.h.b16 %v1995
          %v2183 = vunpack.c.l.b16 %v1999
          %v2184 = vunpack.c.h.b16 %v1999
          %v2185 = vunpack.c.l.b16 %v2003
          %v2186 = vunpack.c.h.b16 %v2003
          %v2187 = vunpack.c.l.b16 %v2007
          %v2188 = vunpack.c.h.b16 %v2007
          %v2189 = vunpack.c.l.b16 %v2011
          %v2190 = vunpack.c.h.b16 %v2011
          %v2191 = vunpack.c.l.b16 %v2015
          %v2192 = vunpack.c.h.b16 %v2015
          %v2193 = vunpack.c.l.b16 %v2019
          %v2194 = vunpack.c.h.b16 %v2019
          %v2195 = vunpack.c.l.b16 %v2023
          %v2196 = vunpack.c.h.b16 %v2023
          %v2197 = vunpack.c.l.b16 %v2027
          %v2198 = vunpack.c.h.b16 %v2027
          %v2199 = vunpack.c.l.b16 %v2031
          %v2200 = vunpack.c.h.b16 %v2031
          %v2201 = vunpack.c.l.b16 %v2035
          %v2202 = vunpack.c.h.b16 %v2035
          %v2203 = vunpack.c.l.b16 %v2039
          %v2204 = vunpack.c.h.b16 %v2039
          %v2205 = vunpack.c.l.b16 %v2043
          %v2206 = vunpack.c.h.b16 %v2043
          %v2207 = vunpack.c.l.b16 %v2047
          %v2208 = vunpack.c.h.b16 %v2047
          %v2209 = vunpack.c.l.b16 %v2051
          %v2210 = vunpack.c.h.b16 %v2051
          %v2211 = vunpack.c.l.b16 %v2055
          %v2212 = vunpack.c.h.b16 %v2055
          %v2213 = vunpack.c.l.b16 %v2059
          %v2214 = vunpack.c.h.b16 %v2059
          %v2215 = vunpack.c.l.b16 %v2063
          %v2216 = vunpack.c.h.b16 %v2063
          %v2217 = vunpack.c.l.b16 %v2067
          %v2218 = vunpack.c.h.b16 %v2067
          %v2219 = vunpack.c.l.b16 %v2071
          %v2220 = vunpack.c.h.b16 %v2071
          %v2221 = vunpack.c.l.b16 %v2075
          %v2222 = vunpack.c.h.b16 %v2075
          %v2223 = vunpack.c.l.b16 %v2079
          %v2224 = vunpack.c.h.b16 %v2079
          %v2225 = vunpack.c.l.b16 %v2083
          %v2226 = vunpack.c.h.b16 %v2083
          %v2227 = vunpack.c.l.b16 %v2087
          %v2228 = vunpack.c.h.b16 %v2087
          %v2229 = vunpack.c.l.b16 %v2091
          %v2230 = vunpack.c.h.b16 %v2091
          %v2231 = vunpack.c.l.b16 %v2095
          %v2232 = vunpack.c.h.b16 %v2095
          %v2233 = vunpack.c.l.b16 %v2099
          %v2234 = vunpack.c.h.b16 %v2099
          %v2235 = vunpack.c.l.b16 %v2103
          %v2236 = vunpack.c.h.b16 %v2103
          %v2237 = vunpack.c.l.b16 %v2107
          %v2238 = vunpack.c.h.b16 %v2107
          %v2239 = vunpack.c.l.b16 %v1984
          %v2240 = vunpack.c.h.b16 %v1984
          %v2241 = vunpack.c.l.b16 %v1988
          %v2242 = vunpack.c.h.b16 %v1988
          %v2243 = vunpack.c.l.b16 %v1992
          %v2244 = vunpack.c.h.b16 %v1992
          %v2245 = vunpack.c.l.b16 %v1996
          %v2246 = vunpack.c.h.b16 %v1996
          %v2247 = vunpack.c.l.b16 %v2000
          %v2248 = vunpack.c.h.b16 %v2000
          %v2249 = vunpack.c.l.b16 %v2004
          %v2250 = vunpack.c.h.b16 %v2004
          %v2251 = vunpack.c.l.b16 %v2008
          %v2252 = vunpack.c.h.b16 %v2008
          %v2253 = vunpack.c.l.b16 %v2012
          %v2254 = vunpack.c.h.b16 %v2012
          %v2255 = vunpack.c.l.b16 %v2016
          %v2256 = vunpack.c.h.b16 %v2016
          %v2257 = vunpack.c.l.b16 %v2020
          %v2258 = vunpack.c.h.b16 %v2020
          %v2259 = vunpack.c.l.b16 %v2024
          %v2260 = vunpack.c.h.b16 %v2024
          %v2261 = vunpack.c.l.b16 %v2028
          %v2262 = vunpack.c.h.b16 %v2028
          %v2263 = vunpack.c.l.b16 %v2032
          %v2264 = vunpack.c.h.b16 %v2032
          %v2265 = vunpack.c.l.b16 %v2036
          %v2266 = vunpack.c.h.b16 %v2036
          %v2267 = vunpack.c.l.b16 %v2040
          %v2268 = vunpack.c.h.b16 %v2040
          %v2269 = vunpack.c.l.b16 %v2044
          %v2270 = vunpack.c.h.b16 %v2044
          %v2271 = vunpack.c.l.b16 %v2048
          %v2272 = vunpack.c.h.b16 %v2048
          %v2273 = vunpack.c.l.b16 %v2052
          %v2274 = vunpack.c.h.b16 %v2052
          %v2275 = vunpack.c.l.b16 %v2056
          %v2276 = vunpack.c.h.b16 %v2056
          %v2277 = vunpack.c.l.b16 %v2060
          %v2278 = vunpack.c.h.b16 %v2060
          %v2279 = vunpack.c.l.b16 %v2064
          %v2280 = vunpack.c.h.b16 %v2064
          %v2281 = vunpack.c.l.b16 %v2068
          %v2282 = vunpack.c.h.b16 %v2068
          %v2283 = vunpack.c.l.b16 %v2072
          %v2284 = vunpack.c.h.b16 %v2072
          %v2285 = vunpack.c.l.b16 %v2076
          %v2286 = vunpack.c.h.b16 %v2076
          %v2287 = vunpack.c.l.b16 %v2080
          %v2288 = vunpack.c.h.b16 %v2080
          %v2289 = vunpack.c.l.b16 %v2084
          %v2290 = vunpack.c.h.b16 %v2084
          %v2291 = vunpack.c.l.b16 %v2088
          %v2292 = vunpack.c.h.b16 %v2088
          %v2293 = vunpack.c.l.b16 %v2092
          %v2294 = vunpack.c.h.b16 %v2092
          %v2295 = vunpack.c.l.b16 %v2096
          %v2296 = vunpack.c.h.b16 %v2096
          %v2297 = vunpack.c.l.b16 %v2100
          %v2298 = vunpack.c.h.b16 %v2100
          %v2299 = vunpack.c.l.b16 %v2104
          %v2300 = vunpack.c.h.b16 %v2104
          %v2301 = vunpack.c.l.b16 %v2108
          %v2302 = vunpack.c.h.b16 %v2108
          %v2303 = vpack.c.b16 %v2175, %v2175
          %v2304 = vpack.c.b16 %v2176, %v2176
          %v2305 = vpack.c.b16 %v2177, %v2177
          %v2306 = vpack.c.b16 %v2178, %v2178
          %v2307 = vpack.c.b16 %v2179, %v2179
          %v2308 = vpack.c.b16 %v2180, %v2180
          %v2309 = vpack.c.b16 %v2181, %v2181
          %v2310 = vpack.c.b16 %v2182, %v2182
          %v2311 = vpack.c.b16 %v2183, %v2183
          %v2312 = vpack.c.b16 %v2184, %v2184
          %v2313 = vpack.c.b16 %v2185, %v2185
          %v2314 = vpack.c.b16 %v2186, %v2186
          %v2315 = vpack.c.b16 %v2187, %v2187
          %v2316 = vpack.c.b16 %v2188, %v2188
          %v2317 = vpack.c.b16 %v2189, %v2189
          %v2318 = vpack.c.b16 %v2190, %v2190
          %v2319 = vpack.c.b16 %v2191, %v2191
          %v2320 = vpack.c.b16 %v2192, %v2192
          %v2321 = vpack.c.b16 %v2193, %v2193
          %v2322 = vpack.c.b16 %v2194, %v2194
          %v2323 = vpack.c.b16 %v2195, %v2195
          %v2324 = vpack.c.b16 %v2196, %v2196
          %v2325 = vpack.c.b16 %v2197, %v2197
          %v2326 = vpack.c.b16 %v2198, %v2198
          %v2327 = vpack.c.b16 %v2199, %v2199
          %v2328 = vpack.c.b16 %v2200, %v2200
          %v2329 = vpack.c.b16 %v2201, %v2201
          %v2330 = vpack.c.b16 %v2202, %v2202
          %v2331 = vpack.c.b16 %v2203, %v2203
          %v2332 = vpack.c.b16 %v2204, %v2204
          %v2333 = vpack.c.b16 %v2205, %v2205
          %v2334 = vpack.c.b16 %v2206, %v2206
          %v2335 = vpack.c.b16 %v2207, %v2207
          %v2336 = vpack.c.b16 %v2208, %v2208
          %v2337 = vpack.c.b16 %v2209, %v2209
          %v2338 = vpack.c.b16 %v2210, %v2210
          %v2339 = vpack.c.b16 %v2211, %v2211
          %v2340 = vpack.c.b16 %v2212, %v2212
          %v2341 = vpack.c.b16 %v2213, %v2213
          %v2342 = vpack.c.b16 %v2214, %v2214
          %v2343 = vpack.c.b16 %v2215, %v2215
          %v2344 = vpack.c.b16 %v2216, %v2216
          %v2345 = vpack.c.b16 %v2217, %v2217
          %v2346 = vpack.c.b16 %v2218, %v2218
          %v2347 = vpack.c.b16 %v2219, %v2219
          %v2348 = vpack.c.b16 %v2220, %v2220
          %v2349 = vpack.c.b16 %v2221, %v2221
          %v2350 = vpack.c.b16 %v2222, %v2222
          %v2351 = vpack.c.b16 %v2223, %v2223
          %v2352 = vpack.c.b16 %v2224, %v2224
          %v2353 = vpack.c.b16 %v2225, %v2225
          %v2354 = vpack.c.b16 %v2226, %v2226
          %v2355 = vpack.c.b16 %v2227, %v2227
          %v2356 = vpack.c.b16 %v2228, %v2228
          %v2357 = vpack.c.b16 %v2229, %v2229
          %v2358 = vpack.c.b16 %v2230, %v2230
          %v2359 = vpack.c.b16 %v2231, %v2231
          %v2360 = vpack.c.b16 %v2232, %v2232
          %v2361 = vpack.c.b16 %v2233, %v2233
          %v2362 = vpack.c.b16 %v2234, %v2234
          %v2363 = vpack.c.b16 %v2235, %v2235
          %v2364 = vpack.c.b16 %v2236, %v2236
          %v2365 = vpack.c.b16 %v2237, %v2237
          %v2366 = vpack.c.b16 %v2238, %v2238
          %v2367 = vpack.c.b16 %v2239, %v2239
          %v2368 = vpack.c.b16 %v2240, %v2240
          %v2369 = vpack.c.b16 %v2241, %v2241
          %v2370 = vpack.c.b16 %v2242, %v2242
          %v2371 = vpack.c.b16 %v2243, %v2243
          %v2372 = vpack.c.b16 %v2244, %v2244
          %v2373 = vpack.c.b16 %v2245, %v2245
          %v2374 = vpack.c.b16 %v2246, %v2246
          %v2375 = vpack.c.b16 %v2247, %v2247
          %v2376 = vpack.c.b16 %v2248, %v2248
          %v2377 = vpack.c.b16 %v2249, %v2249
          %v2378 = vpack.c.b16 %v2250, %v2250
          %v2379 = vpack.c.b16 %v2251, %v2251
          %v2380 = vpack.c.b16 %v2252, %v2252
          %v2381 = vpack.c.b16 %v2253, %v2253
          %v2382 = vpack.c.b16 %v2254, %v2254
          %v2383 = vpack.c.b16 %v2255, %v2255
          %v2384 = vpack.c.b16 %v2256, %v2256
          %v2385 = vpack.c.b16 %v2257, %v2257
          %v2386 = vpack.c.b16 %v2258, %v2258
          %v2387 = vpack.c.b16 %v2259, %v2259
          %v2388 = vpack.c.b16 %v2260, %v2260
          %v2389 = vpack.c.b16 %v2261, %v2261
          %v2390 = vpack.c.b16 %v2262, %v2262
          %v2391 = vpack.c.b16 %v2263, %v2263
          %v2392 = vpack.c.b16 %v2264, %v2264
          %v2393 = vpack.c.b16 %v2265, %v2265
          %v2394 = vpack.c.b16 %v2266, %v2266
          %v2395 = vpack.c.b16 %v2267, %v2267
          %v2396 = vpack.c.b16 %v2268, %v2268
          %v2397 = vpack.c.b16 %v2269, %v2269
          %v2398 = vpack.c.b16 %v2270, %v2270
          %v2399 = vpack.c.b16 %v2271, %v2271
          %v2400 = vpack.c.b16 %v2272, %v2272
          %v2401 = vpack.c.b16 %v2273, %v2273
          %v2402 = vpack.c.b16 %v2274, %v2274
          %v2403 = vpack.c.b16 %v2275, %v2275
          %v2404 = vpack.c.b16 %v2276, %v2276
          %v2405 = vpack.c.b16 %v2277, %v2277
          %v2406 = vpack.c.b16 %v2278, %v2278
          %v2407 = vpack.c.b16 %v2279, %v2279
          %v2408 = vpack.c.b16 %v2280, %v2280
          %v2409 = vpack.c.b16 %v2281, %v2281
          %v2410 = vpack.c.b16 %v2282, %v2282
          %v2411 = vpack.c.b16 %v2283, %v2283
          %v2412 = vpack.c.b16 %v2284, %v2284
          %v2413 = vpack.c.b16 %v2285, %v2285
          %v2414 = vpack.c.b16 %v2286, %v2286
          %v2415 = vpack.c.b16 %v2287, %v2287
          %v2416 = vpack.c.b16 %v2288, %v2288
          %v2417 = vpack.c.b16 %v2289, %v2289
          %v2418 = vpack.c.b16 %v2290, %v2290
          %v2419 = vpack.c.b16 %v2291, %v2291
          %v2420 = vpack.c.b16 %v2292, %v2292
          %v2421 = vpack.c.b16 %v2293, %v2293
          %v2422 = vpack.c.b16 %v2294, %v2294
          %v2423 = vpack.c.b16 %v2295, %v2295
          %v2424 = vpack.c.b16 %v2296, %v2296
          %v2425 = vpack.c.b16 %v2297, %v2297
          %v2426 = vpack.c.b16 %v2298, %v2298
          %v2427 = vpack.c.b16 %v2299, %v2299
          %v2428 = vpack.c.b16 %v2300, %v2300
          %v2429 = vpack.c.b16 %v2301, %v2301
          %v2430 = vpack.c.b16 %v2302, %v2302
          %2559 = vst [vmem:[#allocation2] sm:$0xf] %v2303
          %2560 = vst [vmem:[#allocation2 + $0x4] sm:$0xf] %v2304
          %2561 = vst [vmem:[#allocation2 + $0x8] sm:$0xf] %v2305
          %2562 = vst [vmem:[#allocation2 + $0xc] sm:$0xf] %v2306
          %2563 = vst [vmem:[#allocation2 + $0x10] sm:$0xf] %v2307
          %2564 = vst [vmem:[#allocation2 + $0x14] sm:$0xf] %v2308
          %2565 = vst [vmem:[#allocation2 + $0x18] sm:$0xf] %v2309
          %2566 = vst [vmem:[#allocation2 + $0x1c] sm:$0xf] %v2310
          %2567 = vst [vmem:[#allocation2 + $0x20] sm:$0xf] %v2311
          %2568 = vst [vmem:[#allocation2 + $0x24] sm:$0xf] %v2312
          %2569 = vst [vmem:[#allocation2 + $0x28] sm:$0xf] %v2313
          %2570 = vst [vmem:[#allocation2 + $0x2c] sm:$0xf] %v2314
          %2571 = vst [vmem:[#allocation2 + $0x30] sm:$0xf] %v2315
          %2572 = vst [vmem:[#allocation2 + $0x34] sm:$0xf] %v2316
          %2573 = vst [vmem:[#allocation2 + $0x38] sm:$0xf] %v2317
          %2574 = vst [vmem:[#allocation2 + $0x3c] sm:$0xf] %v2318
          %2575 = vst [vmem:[#allocation2 + $0x40] sm:$0xf] %v2319
          %2576 = vst [vmem:[#allocation2 + $0x44] sm:$0xf] %v2320
          %2577 = vst [vmem:[#allocation2 + $0x48] sm:$0xf] %v2321
          %2578 = vst [vmem:[#allocation2 + $0x4c] sm:$0xf] %v2322
          %2579 = vst [vmem:[#allocation2 + $0x50] sm:$0xf] %v2323
          %2580 = vst [vmem:[#allocation2 + $0x54] sm:$0xf] %v2324
          %2581 = vst [vmem:[#allocation2 + $0x58] sm:$0xf] %v2325
          %2582 = vst [vmem:[#allocation2 + $0x5c] sm:$0xf] %v2326
          %2583 = vst [vmem:[#allocation2 + $0x60] sm:$0xf] %v2327
          %2584 = vst [vmem:[#allocation2 + $0x64] sm:$0xf] %v2328
          %2585 = vst [vmem:[#allocation2 + $0x68] sm:$0xf] %v2329
          %2586 = vst [vmem:[#allocation2 + $0x6c] sm:$0xf] %v2330
          %2587 = vst [vmem:[#allocation2 + $0x70] sm:$0xf] %v2331
          %2588 = vst [vmem:[#allocation2 + $0x74] sm:$0xf] %v2332
          %2589 = vst [vmem:[#allocation2 + $0x78] sm:$0xf] %v2333
          %2590 = vst [vmem:[#allocation2 + $0x7c] sm:$0xf] %v2334
          %2591 = vst [vmem:[#allocation2 + $0x80] sm:$0xf] %v2335
          %2592 = vst [vmem:[#allocation2 + $0x84] sm:$0xf] %v2336
          %2593 = vst [vmem:[#allocation2 + $0x88] sm:$0xf] %v2337
          %2594 = vst [vmem:[#allocation2 + $0x8c] sm:$0xf] %v2338
          %2595 = vst [vmem:[#allocation2 + $0x90] sm:$0xf] %v2339
          %2596 = vst [vmem:[#allocation2 + $0x94] sm:$0xf] %v2340
          %2597 = vst [vmem:[#allocation2 + $0x98] sm:$0xf] %v2341
          %2598 = vst [vmem:[#allocation2 + $0x9c] sm:$0xf] %v2342
          %2599 = vst [vmem:[#allocation2 + $0xa0] sm:$0xf] %v2343
          %2600 = vst [vmem:[#allocation2 + $0xa4] sm:$0xf] %v2344
          %2601 = vst [vmem:[#allocation2 + $0xa8] sm:$0xf] %v2345
          %2602 = vst [vmem:[#allocation2 + $0xac] sm:$0xf] %v2346
          %2603 = vst [vmem:[#allocation2 + $0xb0] sm:$0xf] %v2347
          %2604 = vst [vmem:[#allocation2 + $0xb4] sm:$0xf] %v2348
          %2605 = vst [vmem:[#allocation2 + $0xb8] sm:$0xf] %v2349
          %2606 = vst [vmem:[#allocation2 + $0xbc] sm:$0xf] %v2350
          %2607 = vst [vmem:[#allocation2 + $0xc0] sm:$0xf] %v2351
          %2608 = vst [vmem:[#allocation2 + $0xc4] sm:$0xf] %v2352
          %2609 = vst [vmem:[#allocation2 + $0xc8] sm:$0xf] %v2353
          %2610 = vst [vmem:[#allocation2 + $0xcc] sm:$0xf] %v2354
          %2611 = vst [vmem:[#allocation2 + $0xd0] sm:$0xf] %v2355
          %2612 = vst [vmem:[#allocation2 + $0xd4] sm:$0xf] %v2356
          %2613 = vst [vmem:[#allocation2 + $0xd8] sm:$0xf] %v2357
          %2614 = vst [vmem:[#allocation2 + $0xdc] sm:$0xf] %v2358
          %2615 = vst [vmem:[#allocation2 + $0xe0] sm:$0xf] %v2359
          %2616 = vst [vmem:[#allocation2 + $0xe4] sm:$0xf] %v2360
          %2617 = vst [vmem:[#allocation2 + $0xe8] sm:$0xf] %v2361
          %2618 = vst [vmem:[#allocation2 + $0xec] sm:$0xf] %v2362
          %2619 = vst [vmem:[#allocation2 + $0xf0] sm:$0xf] %v2363
          %2620 = vst [vmem:[#allocation2 + $0xf4] sm:$0xf] %v2364
          %2621 = vst [vmem:[#allocation2 + $0xf8] sm:$0xf] %v2365
          %2622 = vst [vmem:[#allocation2 + $0xfc] sm:$0xf] %v2366
          %2623 = vst [vmem:[#allocation2 + $0x100] sm:$0xf] %v2367
          %2624 = vst [vmem:[#allocation2 + $0x104] sm:$0xf] %v2368
          %2625 = vst [vmem:[#allocation2 + $0x108] sm:$0xf] %v2369
          %2626 = vst [vmem:[#allocation2 + $0x10c] sm:$0xf] %v2370
          %2627 = vst [vmem:[#allocation2 + $0x110] sm:$0xf] %v2371
          %2628 = vst [vmem:[#allocation2 + $0x114] sm:$0xf] %v2372
          %2629 = vst [vmem:[#allocation2 + $0x118] sm:$0xf] %v2373
          %2630 = vst [vmem:[#allocation2 + $0x11c] sm:$0xf] %v2374
          %2631 = vst [vmem:[#allocation2 + $0x120] sm:$0xf] %v2375
          %2632 = vst [vmem:[#allocation2 + $0x124] sm:$0xf] %v2376
          %2633 = vst [vmem:[#allocation2 + $0x128] sm:$0xf] %v2377
          %2634 = vst [vmem:[#allocation2 + $0x12c] sm:$0xf] %v2378
          %2635 = vst [vmem:[#allocation2 + $0x130] sm:$0xf] %v2379
          %2636 = vst [vmem:[#allocation2 + $0x134] sm:$0xf] %v2380
          %2637 = vst [vmem:[#allocation2 + $0x138] sm:$0xf] %v2381
          %2638 = vst [vmem:[#allocation2 + $0x13c] sm:$0xf] %v2382
          %2639 = vst [vmem:[#allocation2 + $0x140] sm:$0xf] %v2383
          %2640 = vst [vmem:[#allocation2 + $0x144] sm:$0xf] %v2384
          %2641 = vst [vmem:[#allocation2 + $0x148] sm:$0xf] %v2385
          %2642 = vst [vmem:[#allocation2 + $0x14c] sm:$0xf] %v2386
          %2643 = vst [vmem:[#allocation2 + $0x150] sm:$0xf] %v2387
          %2644 = vst [vmem:[#allocation2 + $0x154] sm:$0xf] %v2388
          %2645 = vst [vmem:[#allocation2 + $0x158] sm:$0xf] %v2389
          %2646 = vst [vmem:[#allocation2 + $0x15c] sm:$0xf] %v2390
          %2647 = vst [vmem:[#allocation2 + $0x160] sm:$0xf] %v2391
          %2648 = vst [vmem:[#allocation2 + $0x164] sm:$0xf] %v2392
          %2649 = vst [vmem:[#allocation2 + $0x168] sm:$0xf] %v2393
          %2650 = vst [vmem:[#allocation2 + $0x16c] sm:$0xf] %v2394
          %2651 = vst [vmem:[#allocation2 + $0x170] sm:$0xf] %v2395
          %2652 = vst [vmem:[#allocation2 + $0x174] sm:$0xf] %v2396
          %2653 = vst [vmem:[#allocation2 + $0x178] sm:$0xf] %v2397
          %2654 = vst [vmem:[#allocation2 + $0x17c] sm:$0xf] %v2398
          %2655 = vst [vmem:[#allocation2 + $0x180] sm:$0xf] %v2399
          %2656 = vst [vmem:[#allocation2 + $0x184] sm:$0xf] %v2400
          %2657 = vst [vmem:[#allocation2 + $0x188] sm:$0xf] %v2401
          %2658 = vst [vmem:[#allocation2 + $0x18c] sm:$0xf] %v2402
          %2659 = vst [vmem:[#allocation2 + $0x190] sm:$0xf] %v2403
          %2660 = vst [vmem:[#allocation2 + $0x194] sm:$0xf] %v2404
          %2661 = vst [vmem:[#allocation2 + $0x198] sm:$0xf] %v2405
          %2662 = vst [vmem:[#allocation2 + $0x19c] sm:$0xf] %v2406
          %2663 = vst [vmem:[#allocation2 + $0x1a0] sm:$0xf] %v2407
          %2664 = vst [vmem:[#allocation2 + $0x1a4] sm:$0xf] %v2408
          %2665 = vst [vmem:[#allocation2 + $0x1a8] sm:$0xf] %v2409
          %2666 = vst [vmem:[#allocation2 + $0x1ac] sm:$0xf] %v2410
          %2667 = vst [vmem:[#allocation2 + $0x1b0] sm:$0xf] %v2411
          %2668 = vst [vmem:[#allocation2 + $0x1b4] sm:$0xf] %v2412
          %2669 = vst [vmem:[#allocation2 + $0x1b8] sm:$0xf] %v2413
          %2670 = vst [vmem:[#allocation2 + $0x1bc] sm:$0xf] %v2414
          %2671 = vst [vmem:[#allocation2 + $0x1c0] sm:$0xf] %v2415
          %2672 = vst [vmem:[#allocation2 + $0x1c4] sm:$0xf] %v2416
          %2673 = vst [vmem:[#allocation2 + $0x1c8] sm:$0xf] %v2417
          %2674 = vst [vmem:[#allocation2 + $0x1cc] sm:$0xf] %v2418
          %2675 = vst [vmem:[#allocation2 + $0x1d0] sm:$0xf] %v2419
          %2676 = vst [vmem:[#allocation2 + $0x1d4] sm:$0xf] %v2420
          %2677 = vst [vmem:[#allocation2 + $0x1d8] sm:$0xf] %v2421
          %2678 = vst [vmem:[#allocation2 + $0x1dc] sm:$0xf] %v2422
          %2679 = vst [vmem:[#allocation2 + $0x1e0] sm:$0xf] %v2423
          %2680 = vst [vmem:[#allocation2 + $0x1e4] sm:$0xf] %v2424
          %2681 = vst [vmem:[#allocation2 + $0x1e8] sm:$0xf] %v2425
          %2682 = vst [vmem:[#allocation2 + $0x1ec] sm:$0xf] %v2426
          %2683 = vst [vmem:[#allocation2 + $0x1f0] sm:$0xf] %v2427
          %2684 = vst [vmem:[#allocation2 + $0x1f4] sm:$0xf] %v2428
          %2685 = vst [vmem:[#allocation2 + $0x1f8] sm:$0xf] %v2429
          %2686 = vst [vmem:[#allocation2 + $0x1fc] sm:$0xf] %v2430
          %v2751 = vunpack.c.l.b16 %v1985
          %v2752 = vunpack.c.h.b16 %v1985
          %v2753 = vunpack.c.l.b16 %v1989
          %v2754 = vunpack.c.h.b16 %v1989
          %v2755 = vunpack.c.l.b16 %v1993
          %v2756 = vunpack.c.h.b16 %v1993
          %v2757 = vunpack.c.l.b16 %v1997
          %v2758 = vunpack.c.h.b16 %v1997
          %v2759 = vunpack.c.l.b16 %v2001
          %v2760 = vunpack.c.h.b16 %v2001
          %v2761 = vunpack.c.l.b16 %v2005
          %v2762 = vunpack.c.h.b16 %v2005
          %v2763 = vunpack.c.l.b16 %v2009
          %v2764 = vunpack.c.h.b16 %v2009
          %v2765 = vunpack.c.l.b16 %v2013
          %v2766 = vunpack.c.h.b16 %v2013
          %v2767 = vunpack.c.l.b16 %v2017
          %v2768 = vunpack.c.h.b16 %v2017
          %v2769 = vunpack.c.l.b16 %v2021
          %v2770 = vunpack.c.h.b16 %v2021
          %v2771 = vunpack.c.l.b16 %v2025
          %v2772 = vunpack.c.h.b16 %v2025
          %v2773 = vunpack.c.l.b16 %v2029
          %v2774 = vunpack.c.h.b16 %v2029
          %v2775 = vunpack.c.l.b16 %v2033
          %v2776 = vunpack.c.h.b16 %v2033
          %v2777 = vunpack.c.l.b16 %v2037
          %v2778 = vunpack.c.h.b16 %v2037
          %v2779 = vunpack.c.l.b16 %v2041
          %v2780 = vunpack.c.h.b16 %v2041
          %v2781 = vunpack.c.l.b16 %v2045
          %v2782 = vunpack.c.h.b16 %v2045
          %v2783 = vunpack.c.l.b16 %v2049
          %v2784 = vunpack.c.h.b16 %v2049
          %v2785 = vunpack.c.l.b16 %v2053
          %v2786 = vunpack.c.h.b16 %v2053
          %v2787 = vunpack.c.l.b16 %v2057
          %v2788 = vunpack.c.h.b16 %v2057
          %v2789 = vunpack.c.l.b16 %v2061
          %v2790 = vunpack.c.h.b16 %v2061
          %v2791 = vunpack.c.l.b16 %v2065
          %v2792 = vunpack.c.h.b16 %v2065
          %v2793 = vunpack.c.l.b16 %v2069
          %v2794 = vunpack.c.h.b16 %v2069
          %v2795 = vunpack.c.l.b16 %v2073
          %v2796 = vunpack.c.h.b16 %v2073
          %v2797 = vunpack.c.l.b16 %v2077
          %v2798 = vunpack.c.h.b16 %v2077
          %v2799 = vunpack.c.l.b16 %v2081
          %v2800 = vunpack.c.h.b16 %v2081
          %v2801 = vunpack.c.l.b16 %v2085
          %v2802 = vunpack.c.h.b16 %v2085
          %v2803 = vunpack.c.l.b16 %v2089
          %v2804 = vunpack.c.h.b16 %v2089
          %v2805 = vunpack.c.l.b16 %v2093
          %v2806 = vunpack.c.h.b16 %v2093
          %v2807 = vunpack.c.l.b16 %v2097
          %v2808 = vunpack.c.h.b16 %v2097
          %v2809 = vunpack.c.l.b16 %v2101
          %v2810 = vunpack.c.h.b16 %v2101
          %v2811 = vunpack.c.l.b16 %v2105
          %v2812 = vunpack.c.h.b16 %v2105
          %v2813 = vunpack.c.l.b16 %v2109
          %v2814 = vunpack.c.h.b16 %v2109
          %v2815 = vunpack.c.l.b16 %v1986
          %v2816 = vunpack.c.h.b16 %v1986
          %v2817 = vunpack.c.l.b16 %v1990
          %v2818 = vunpack.c.h.b16 %v1990
          %v2819 = vunpack.c.l.b16 %v1994
          %v2820 = vunpack.c.h.b16 %v1994
          %v2821 = vunpack.c.l.b16 %v1998
          %v2822 = vunpack.c.h.b16 %v1998
          %v2823 = vunpack.c.l.b16 %v2002
          %v2824 = vunpack.c.h.b16 %v2002
          %v2825 = vunpack.c.l.b16 %v2006
          %v2826 = vunpack.c.h.b16 %v2006
          %v2827 = vunpack.c.l.b16 %v2010
          %v2828 = vunpack.c.h.b16 %v2010
          %v2829 = vunpack.c.l.b16 %v2014
          %v2830 = vunpack.c.h.b16 %v2014
          %v2831 = vunpack.c.l.b16 %v2018
          %v2832 = vunpack.c.h.b16 %v2018
          %v2833 = vunpack.c.l.b16 %v2022
          %v2834 = vunpack.c.h.b16 %v2022
          %v2835 = vunpack.c.l.b16 %v2026
          %v2836 = vunpack.c.h.b16 %v2026
          %v2837 = vunpack.c.l.b16 %v2030
          %v2838 = vunpack.c.h.b16 %v2030
          %v2839 = vunpack.c.l.b16 %v2034
          %v2840 = vunpack.c.h.b16 %v2034
          %v2841 = vunpack.c.l.b16 %v2038
          %v2842 = vunpack.c.h.b16 %v2038
          %v2843 = vunpack.c.l.b16 %v2042
          %v2844 = vunpack.c.h.b16 %v2042
          %v2845 = vunpack.c.l.b16 %v2046
          %v2846 = vunpack.c.h.b16 %v2046
          %v2847 = vunpack.c.l.b16 %v2050
          %v2848 = vunpack.c.h.b16 %v2050
          %v2849 = vunpack.c.l.b16 %v2054
          %v2850 = vunpack.c.h.b16 %v2054
          %v2851 = vunpack.c.l.b16 %v2058
          %v2852 = vunpack.c.h.b16 %v2058
          %v2853 = vunpack.c.l.b16 %v2062
          %v2854 = vunpack.c.h.b16 %v2062
          %v2855 = vunpack.c.l.b16 %v2066
          %v2856 = vunpack.c.h.b16 %v2066
          %v2857 = vunpack.c.l.b16 %v2070
          %v2858 = vunpack.c.h.b16 %v2070
          %v2859 = vunpack.c.l.b16 %v2074
          %v2860 = vunpack.c.h.b16 %v2074
          %v2861 = vunpack.c.l.b16 %v2078
          %v2862 = vunpack.c.h.b16 %v2078
          %v2863 = vunpack.c.l.b16 %v2082
          %v2864 = vunpack.c.h.b16 %v2082
          %v2865 = vunpack.c.l.b16 %v2086
          %v2866 = vunpack.c.h.b16 %v2086
          %v2867 = vunpack.c.l.b16 %v2090
          %v2868 = vunpack.c.h.b16 %v2090
          %v2869 = vunpack.c.l.b16 %v2094
          %v2870 = vunpack.c.h.b16 %v2094
          %v2871 = vunpack.c.l.b16 %v2098
          %v2872 = vunpack.c.h.b16 %v2098
          %v2873 = vunpack.c.l.b16 %v2102
          %v2874 = vunpack.c.h.b16 %v2102
          %v2875 = vunpack.c.l.b16 %v2106
          %v2876 = vunpack.c.h.b16 %v2106
          %v2877 = vunpack.c.l.b16 %v2110
          %v2878 = vunpack.c.h.b16 %v2110
          %v2879 = vpack.c.b16 %v2751, %v2751
          %v2880 = vpack.c.b16 %v2752, %v2752
          %v2881 = vpack.c.b16 %v2753, %v2753
          %v2882 = vpack.c.b16 %v2754, %v2754
          %v2883 = vpack.c.b16 %v2755, %v2755
          %v2884 = vpack.c.b16 %v2756, %v2756
          %v2885 = vpack.c.b16 %v2757, %v2757
          %v2886 = vpack.c.b16 %v2758, %v2758
          %v2887 = vpack.c.b16 %v2759, %v2759
          %v2888 = vpack.c.b16 %v2760, %v2760
          %v2889 = vpack.c.b16 %v2761, %v2761
          %v2890 = vpack.c.b16 %v2762, %v2762
          %v2891 = vpack.c.b16 %v2763, %v2763
          %v2892 = vpack.c.b16 %v2764, %v2764
          %v2893 = vpack.c.b16 %v2765, %v2765
          %v2894 = vpack.c.b16 %v2766, %v2766
          %v2895 = vpack.c.b16 %v2767, %v2767
          %v2896 = vpack.c.b16 %v2768, %v2768
          %v2897 = vpack.c.b16 %v2769, %v2769
          %v2898 = vpack.c.b16 %v2770, %v2770
          %v2899 = vpack.c.b16 %v2771, %v2771
          %v2900 = vpack.c.b16 %v2772, %v2772
          %v2901 = vpack.c.b16 %v2773, %v2773
          %v2902 = vpack.c.b16 %v2774, %v2774
          %v2903 = vpack.c.b16 %v2775, %v2775
          %v2904 = vpack.c.b16 %v2776, %v2776
          %v2905 = vpack.c.b16 %v2777, %v2777
          %v2906 = vpack.c.b16 %v2778, %v2778
          %v2907 = vpack.c.b16 %v2779, %v2779
          %v2908 = vpack.c.b16 %v2780, %v2780
          %v2909 = vpack.c.b16 %v2781, %v2781
          %v2910 = vpack.c.b16 %v2782, %v2782
          %v2911 = vpack.c.b16 %v2783, %v2783
          %v2912 = vpack.c.b16 %v2784, %v2784
          %v2913 = vpack.c.b16 %v2785, %v2785
          %v2914 = vpack.c.b16 %v2786, %v2786
          %v2915 = vpack.c.b16 %v2787, %v2787
          %v2916 = vpack.c.b16 %v2788, %v2788
          %v2917 = vpack.c.b16 %v2789, %v2789
          %v2918 = vpack.c.b16 %v2790, %v2790
          %v2919 = vpack.c.b16 %v2791, %v2791
          %v2920 = vpack.c.b16 %v2792, %v2792
          %v2921 = vpack.c.b16 %v2793, %v2793
          %v2922 = vpack.c.b16 %v2794, %v2794
          %v2923 = vpack.c.b16 %v2795, %v2795
          %v2924 = vpack.c.b16 %v2796, %v2796
          %v2925 = vpack.c.b16 %v2797, %v2797
          %v2926 = vpack.c.b16 %v2798, %v2798
          %v2927 = vpack.c.b16 %v2799, %v2799
          %v2928 = vpack.c.b16 %v2800, %v2800
          %v2929 = vpack.c.b16 %v2801, %v2801
          %v2930 = vpack.c.b16 %v2802, %v2802
          %v2931 = vpack.c.b16 %v2803, %v2803
          %v2932 = vpack.c.b16 %v2804, %v2804
          %v2933 = vpack.c.b16 %v2805, %v2805
          %v2934 = vpack.c.b16 %v2806, %v2806
          %v2935 = vpack.c.b16 %v2807, %v2807
          %v2936 = vpack.c.b16 %v2808, %v2808
          %v2937 = vpack.c.b16 %v2809, %v2809
          %v2938 = vpack.c.b16 %v2810, %v2810
          %v2939 = vpack.c.b16 %v2811, %v2811
          %v2940 = vpack.c.b16 %v2812, %v2812
          %v2941 = vpack.c.b16 %v2813, %v2813
          %v2942 = vpack.c.b16 %v2814, %v2814
          %v2943 = vpack.c.b16 %v2815, %v2815
          %v2944 = vpack.c.b16 %v2816, %v2816
          %v2945 = vpack.c.b16 %v2817, %v2817
          %v2946 = vpack.c.b16 %v2818, %v2818
          %v2947 = vpack.c.b16 %v2819, %v2819
          %v2948 = vpack.c.b16 %v2820, %v2820
          %v2949 = vpack.c.b16 %v2821, %v2821
          %v2950 = vpack.c.b16 %v2822, %v2822
          %v2951 = vpack.c.b16 %v2823, %v2823
          %v2952 = vpack.c.b16 %v2824, %v2824
          %v2953 = vpack.c.b16 %v2825, %v2825
          %v2954 = vpack.c.b16 %v2826, %v2826
          %v2955 = vpack.c.b16 %v2827, %v2827
          %v2956 = vpack.c.b16 %v2828, %v2828
          %v2957 = vpack.c.b16 %v2829, %v2829
          %v2958 = vpack.c.b16 %v2830, %v2830
          %v2959 = vpack.c.b16 %v2831, %v2831
          %v2960 = vpack.c.b16 %v2832, %v2832
          %v2961 = vpack.c.b16 %v2833, %v2833
          %v2962 = vpack.c.b16 %v2834, %v2834
          %v2963 = vpack.c.b16 %v2835, %v2835
          %v2964 = vpack.c.b16 %v2836, %v2836
          %v2965 = vpack.c.b16 %v2837, %v2837
          %v2966 = vpack.c.b16 %v2838, %v2838
          %v2967 = vpack.c.b16 %v2839, %v2839
          %v2968 = vpack.c.b16 %v2840, %v2840
          %v2969 = vpack.c.b16 %v2841, %v2841
          %v2970 = vpack.c.b16 %v2842, %v2842
          %v2971 = vpack.c.b16 %v2843, %v2843
          %v2972 = vpack.c.b16 %v2844, %v2844
          %v2973 = vpack.c.b16 %v2845, %v2845
          %v2974 = vpack.c.b16 %v2846, %v2846
          %v2975 = vpack.c.b16 %v2847, %v2847
          %v2976 = vpack.c.b16 %v2848, %v2848
          %v2977 = vpack.c.b16 %v2849, %v2849
          %v2978 = vpack.c.b16 %v2850, %v2850
          %v2979 = vpack.c.b16 %v2851, %v2851
          %v2980 = vpack.c.b16 %v2852, %v2852
          %v2981 = vpack.c.b16 %v2853, %v2853
          %v2982 = vpack.c.b16 %v2854, %v2854
          %v2983 = vpack.c.b16 %v2855, %v2855
          %v2984 = vpack.c.b16 %v2856, %v2856
          %v2985 = vpack.c.b16 %v2857, %v2857
          %v2986 = vpack.c.b16 %v2858, %v2858
          %v2987 = vpack.c.b16 %v2859, %v2859
          %v2988 = vpack.c.b16 %v2860, %v2860
          %v2989 = vpack.c.b16 %v2861, %v2861
          %v2990 = vpack.c.b16 %v2862, %v2862
          %v2991 = vpack.c.b16 %v2863, %v2863
          %v2992 = vpack.c.b16 %v2864, %v2864
          %v2993 = vpack.c.b16 %v2865, %v2865
          %v2994 = vpack.c.b16 %v2866, %v2866
          %v2995 = vpack.c.b16 %v2867, %v2867
          %v2996 = vpack.c.b16 %v2868, %v2868
          %v2997 = vpack.c.b16 %v2869, %v2869
          %v2998 = vpack.c.b16 %v2870, %v2870
          %v2999 = vpack.c.b16 %v2871, %v2871
          %v3000 = vpack.c.b16 %v2872, %v2872
          %v3001 = vpack.c.b16 %v2873, %v2873
          %v3002 = vpack.c.b16 %v2874, %v2874
          %v3003 = vpack.c.b16 %v2875, %v2875
          %v3004 = vpack.c.b16 %v2876, %v2876
          %v3005 = vpack.c.b16 %v2877, %v2877
          %v3006 = vpack.c.b16 %v2878, %v2878
          %3135 = vst [vmem:[#allocation3] sm:$0xf] %v2879
          %3136 = vst [vmem:[#allocation3 + $0x4] sm:$0xf] %v2880
          %3137 = vst [vmem:[#allocation3 + $0x8] sm:$0xf] %v2881
          %3138 = vst [vmem:[#allocation3 + $0xc] sm:$0xf] %v2882
          %3139 = vst [vmem:[#allocation3 + $0x10] sm:$0xf] %v2883
          %3140 = vst [vmem:[#allocation3 + $0x14] sm:$0xf] %v2884
          %3141 = vst [vmem:[#allocation3 + $0x18] sm:$0xf] %v2885
          %3142 = vst [vmem:[#allocation3 + $0x1c] sm:$0xf] %v2886
          %3143 = vst [vmem:[#allocation3 + $0x20] sm:$0xf] %v2887
          %3144 = vst [vmem:[#allocation3 + $0x24] sm:$0xf] %v2888
          %3145 = vst [vmem:[#allocation3 + $0x28] sm:$0xf] %v2889
          %3146 = vst [vmem:[#allocation3 + $0x2c] sm:$0xf] %v2890
          %3147 = vst [vmem:[#allocation3 + $0x30] sm:$0xf] %v2891
          %3148 = vst [vmem:[#allocation3 + $0x34] sm:$0xf] %v2892
          %3149 = vst [vmem:[#allocation3 + $0x38] sm:$0xf] %v2893
          %3150 = vst [vmem:[#allocation3 + $0x3c] sm:$0xf] %v2894
          %3151 = vst [vmem:[#allocation3 + $0x40] sm:$0xf] %v2895
          %3152 = vst [vmem:[#allocation3 + $0x44] sm:$0xf] %v2896
          %3153 = vst [vmem:[#allocation3 + $0x48] sm:$0xf] %v2897
          %3154 = vst [vmem:[#allocation3 + $0x4c] sm:$0xf] %v2898
          %3155 = vst [vmem:[#allocation3 + $0x50] sm:$0xf] %v2899
          %3156 = vst [vmem:[#allocation3 + $0x54] sm:$0xf] %v2900
          %3157 = vst [vmem:[#allocation3 + $0x58] sm:$0xf] %v2901
          %3158 = vst [vmem:[#allocation3 + $0x5c] sm:$0xf] %v2902
          %3159 = vst [vmem:[#allocation3 + $0x60] sm:$0xf] %v2903
          %3160 = vst [vmem:[#allocation3 + $0x64] sm:$0xf] %v2904
          %3161 = vst [vmem:[#allocation3 + $0x68] sm:$0xf] %v2905
          %3162 = vst [vmem:[#allocation3 + $0x6c] sm:$0xf] %v2906
          %3163 = vst [vmem:[#allocation3 + $0x70] sm:$0xf] %v2907
          %3164 = vst [vmem:[#allocation3 + $0x74] sm:$0xf] %v2908
          %3165 = vst [vmem:[#allocation3 + $0x78] sm:$0xf] %v2909
          %3166 = vst [vmem:[#allocation3 + $0x7c] sm:$0xf] %v2910
          %3167 = vst [vmem:[#allocation3 + $0x80] sm:$0xf] %v2911
          %3168 = vst [vmem:[#allocation3 + $0x84] sm:$0xf] %v2912
          %3169 = vst [vmem:[#allocation3 + $0x88] sm:$0xf] %v2913
          %3170 = vst [vmem:[#allocation3 + $0x8c] sm:$0xf] %v2914
          %3171 = vst [vmem:[#allocation3 + $0x90] sm:$0xf] %v2915
          %3172 = vst [vmem:[#allocation3 + $0x94] sm:$0xf] %v2916
          %3173 = vst [vmem:[#allocation3 + $0x98] sm:$0xf] %v2917
          %3174 = vst [vmem:[#allocation3 + $0x9c] sm:$0xf] %v2918
          %3175 = vst [vmem:[#allocation3 + $0xa0] sm:$0xf] %v2919
          %3176 = vst [vmem:[#allocation3 + $0xa4] sm:$0xf] %v2920
          %3177 = vst [vmem:[#allocation3 + $0xa8] sm:$0xf] %v2921
          %3178 = vst [vmem:[#allocation3 + $0xac] sm:$0xf] %v2922
          %3179 = vst [vmem:[#allocation3 + $0xb0] sm:$0xf] %v2923
          %3180 = vst [vmem:[#allocation3 + $0xb4] sm:$0xf] %v2924
          %3181 = vst [vmem:[#allocation3 + $0xb8] sm:$0xf] %v2925
          %3182 = vst [vmem:[#allocation3 + $0xbc] sm:$0xf] %v2926
          %3183 = vst [vmem:[#allocation3 + $0xc0] sm:$0xf] %v2927
          %3184 = vst [vmem:[#allocation3 + $0xc4] sm:$0xf] %v2928
          %3185 = vst [vmem:[#allocation3 + $0xc8] sm:$0xf] %v2929
          %3186 = vst [vmem:[#allocation3 + $0xcc] sm:$0xf] %v2930
          %3187 = vst [vmem:[#allocation3 + $0xd0] sm:$0xf] %v2931
          %3188 = vst [vmem:[#allocation3 + $0xd4] sm:$0xf] %v2932
          %3189 = vst [vmem:[#allocation3 + $0xd8] sm:$0xf] %v2933
          %3190 = vst [vmem:[#allocation3 + $0xdc] sm:$0xf] %v2934
          %3191 = vst [vmem:[#allocation3 + $0xe0] sm:$0xf] %v2935
          %3192 = vst [vmem:[#allocation3 + $0xe4] sm:$0xf] %v2936
          %3193 = vst [vmem:[#allocation3 + $0xe8] sm:$0xf] %v2937
          %3194 = vst [vmem:[#allocation3 + $0xec] sm:$0xf] %v2938
          %3195 = vst [vmem:[#allocation3 + $0xf0] sm:$0xf] %v2939
          %3196 = vst [vmem:[#allocation3 + $0xf4] sm:$0xf] %v2940
          %3197 = vst [vmem:[#allocation3 + $0xf8] sm:$0xf] %v2941
          %3198 = vst [vmem:[#allocation3 + $0xfc] sm:$0xf] %v2942
          %3199 = vst [vmem:[#allocation3 + $0x100] sm:$0xf] %v2943
          %3200 = vst [vmem:[#allocation3 + $0x104] sm:$0xf] %v2944
          %3201 = vst [vmem:[#allocation3 + $0x108] sm:$0xf] %v2945
          %3202 = vst [vmem:[#allocation3 + $0x10c] sm:$0xf] %v2946
          %3203 = vst [vmem:[#allocation3 + $0x110] sm:$0xf] %v2947
          %3204 = vst [vmem:[#allocation3 + $0x114] sm:$0xf] %v2948
          %3205 = vst [vmem:[#allocation3 + $0x118] sm:$0xf] %v2949
          %3206 = vst [vmem:[#allocation3 + $0x11c] sm:$0xf] %v2950
          %3207 = vst [vmem:[#allocation3 + $0x120] sm:$0xf] %v2951
          %3208 = vst [vmem:[#allocation3 + $0x124] sm:$0xf] %v2952
          %3209 = vst [vmem:[#allocation3 + $0x128] sm:$0xf] %v2953
          %3210 = vst [vmem:[#allocation3 + $0x12c] sm:$0xf] %v2954
          %3211 = vst [vmem:[#allocation3 + $0x130] sm:$0xf] %v2955
          %3212 = vst [vmem:[#allocation3 + $0x134] sm:$0xf] %v2956
          %3213 = vst [vmem:[#allocation3 + $0x138] sm:$0xf] %v2957
          %3214 = vst [vmem:[#allocation3 + $0x13c] sm:$0xf] %v2958
          %3215 = vst [vmem:[#allocation3 + $0x140] sm:$0xf] %v2959
          %3216 = vst [vmem:[#allocation3 + $0x144] sm:$0xf] %v2960
          %3217 = vst [vmem:[#allocation3 + $0x148] sm:$0xf] %v2961
          %3218 = vst [vmem:[#allocation3 + $0x14c] sm:$0xf] %v2962
          %3219 = vst [vmem:[#allocation3 + $0x150] sm:$0xf] %v2963
          %3220 = vst [vmem:[#allocation3 + $0x154] sm:$0xf] %v2964
          %3221 = vst [vmem:[#allocation3 + $0x158] sm:$0xf] %v2965
          %3222 = vst [vmem:[#allocation3 + $0x15c] sm:$0xf] %v2966
          %3223 = vst [vmem:[#allocation3 + $0x160] sm:$0xf] %v2967
          %3224 = vst [vmem:[#allocation3 + $0x164] sm:$0xf] %v2968
          %3225 = vst [vmem:[#allocation3 + $0x168] sm:$0xf] %v2969
          %3226 = vst [vmem:[#allocation3 + $0x16c] sm:$0xf] %v2970
          %3227 = vst [vmem:[#allocation3 + $0x170] sm:$0xf] %v2971
          %3228 = vst [vmem:[#allocation3 + $0x174] sm:$0xf] %v2972
          %3229 = vst [vmem:[#allocation3 + $0x178] sm:$0xf] %v2973
          %3230 = vst [vmem:[#allocation3 + $0x17c] sm:$0xf] %v2974
          %3231 = vst [vmem:[#allocation3 + $0x180] sm:$0xf] %v2975
          %3232 = vst [vmem:[#allocation3 + $0x184] sm:$0xf] %v2976
          %3233 = vst [vmem:[#allocation3 + $0x188] sm:$0xf] %v2977
          %3234 = vst [vmem:[#allocation3 + $0x18c] sm:$0xf] %v2978
          %3235 = vst [vmem:[#allocation3 + $0x190] sm:$0xf] %v2979
          %3236 = vst [vmem:[#allocation3 + $0x194] sm:$0xf] %v2980
          %3237 = vst [vmem:[#allocation3 + $0x198] sm:$0xf] %v2981
          %3238 = vst [vmem:[#allocation3 + $0x19c] sm:$0xf] %v2982
          %3239 = vst [vmem:[#allocation3 + $0x1a0] sm:$0xf] %v2983
          %3240 = vst [vmem:[#allocation3 + $0x1a4] sm:$0xf] %v2984
          %3241 = vst [vmem:[#allocation3 + $0x1a8] sm:$0xf] %v2985
          %3242 = vst [vmem:[#allocation3 + $0x1ac] sm:$0xf] %v2986
          %3243 = vst [vmem:[#allocation3 + $0x1b0] sm:$0xf] %v2987
          %3244 = vst [vmem:[#allocation3 + $0x1b4] sm:$0xf] %v2988
          %3245 = vst [vmem:[#allocation3 + $0x1b8] sm:$0xf] %v2989
          %3246 = vst [vmem:[#allocation3 + $0x1bc] sm:$0xf] %v2990
          %3247 = vst [vmem:[#allocation3 + $0x1c0] sm:$0xf] %v2991
          %3248 = vst [vmem:[#allocation3 + $0x1c4] sm:$0xf] %v2992
          %3249 = vst [vmem:[#allocation3 + $0x1c8] sm:$0xf] %v2993
          %3250 = vst [vmem:[#allocation3 + $0x1cc] sm:$0xf] %v2994
          %3251 = vst [vmem:[#allocation3 + $0x1d0] sm:$0xf] %v2995
          %3252 = vst [vmem:[#allocation3 + $0x1d4] sm:$0xf] %v2996
          %3253 = vst [vmem:[#allocation3 + $0x1d8] sm:$0xf] %v2997
          %3254 = vst [vmem:[#allocation3 + $0x1dc] sm:$0xf] %v2998
          %3255 = vst [vmem:[#allocation3 + $0x1e0] sm:$0xf] %v2999
          %3256 = vst [vmem:[#allocation3 + $0x1e4] sm:$0xf] %v3000
          %3257 = vst [vmem:[#allocation3 + $0x1e8] sm:$0xf] %v3001
          %3258 = vst [vmem:[#allocation3 + $0x1ec] sm:$0xf] %v3002
          %3259 = vst [vmem:[#allocation3 + $0x1f0] sm:$0xf] %v3003
          %3260 = vst [vmem:[#allocation3 + $0x1f4] sm:$0xf] %v3004
          %3261 = vst [vmem:[#allocation3 + $0x1f8] sm:$0xf] %v3005
          %3262 = vst [vmem:[#allocation3 + $0x1fc] sm:$0xf] %v3006
        $region84: #{tpu_custom_call.1} parent=59 // pred_fallthru
          _
        %v3263 = vld [vmem:[%s417] sm:$0xff]
        %v3264 = vld [vmem:[%s417 + $0x8] sm:$0xff]
        %v3265 = vld [vmem:[%s417 + $0x10] sm:$0xff]
        %v3266 = vld [vmem:[%s417 + $0x18] sm:$0xff]
        %v3267 = vld [vmem:[%s417 + $0x20] sm:$0xff]
        %v3268 = vld [vmem:[%s417 + $0x28] sm:$0xff]
        %v3269 = vld [vmem:[%s417 + $0x30] sm:$0xff]
        %v3270 = vld [vmem:[%s417 + $0x38] sm:$0xff]
        %v3271 = vld [vmem:[%s417 + $0x40] sm:$0xff]
        %v3272 = vld [vmem:[%s417 + $0x48] sm:$0xff]
        %v3273 = vld [vmem:[%s417 + $0x50] sm:$0xff]
        %v3274 = vld [vmem:[%s417 + $0x58] sm:$0xff]
        %v3275 = vld [vmem:[%s417 + $0x60] sm:$0xff]
        %v3276 = vld [vmem:[%s417 + $0x68] sm:$0xff]
        %v3277 = vld [vmem:[%s417 + $0x70] sm:$0xff]
        %v3278 = vld [vmem:[%s417 + $0x78] sm:$0xff]
        %v3279 = vld [vmem:[%s417 + $0x80] sm:$0xff]
        %v3280 = vld [vmem:[%s417 + $0x88] sm:$0xff]
        %v3281 = vld [vmem:[%s417 + $0x90] sm:$0xff]
        %v3282 = vld [vmem:[%s417 + $0x98] sm:$0xff]
        %v3283 = vld [vmem:[%s417 + $0xa0] sm:$0xff]
        %v3284 = vld [vmem:[%s417 + $0xa8] sm:$0xff]
        %v3285 = vld [vmem:[%s417 + $0xb0] sm:$0xff]
        %v3286 = vld [vmem:[%s417 + $0xb8] sm:$0xff]
        %v3287 = vld [vmem:[%s417 + $0xc0] sm:$0xff]
        %v3288 = vld [vmem:[%s417 + $0xc8] sm:$0xff]
        %v3289 = vld [vmem:[%s417 + $0xd0] sm:$0xff]
        %v3290 = vld [vmem:[%s417 + $0xd8] sm:$0xff]
        %v3291 = vld [vmem:[%s417 + $0xe0] sm:$0xff]
        %v3292 = vld [vmem:[%s417 + $0xe8] sm:$0xff]
        %v3293 = vld [vmem:[%s417 + $0xf0] sm:$0xff]
        %v3294 = vld [vmem:[%s417 + $0xf8] sm:$0xff]
        %v3295 = vld [vmem:[#allocation9] sm:$0xff]
        %v3296 = vld [vmem:[#allocation9 + $0x8] sm:$0xff]
        %v3297 = vld [vmem:[#allocation9 + $0x10] sm:$0xff]
        %v3298 = vld [vmem:[#allocation9 + $0x18] sm:$0xff]
        %v3299 = vld [vmem:[#allocation9 + $0x20] sm:$0xff]
        %v3300 = vld [vmem:[#allocation9 + $0x28] sm:$0xff]
        %v3301 = vld [vmem:[#allocation9 + $0x30] sm:$0xff]
        %v3302 = vld [vmem:[#allocation9 + $0x38] sm:$0xff]
        %v3303 = vld [vmem:[#allocation9 + $0x40] sm:$0xff]
        %v3304 = vld [vmem:[#allocation9 + $0x48] sm:$0xff]
        %v3305 = vld [vmem:[#allocation9 + $0x50] sm:$0xff]
        %v3306 = vld [vmem:[#allocation9 + $0x58] sm:$0xff]
        %v3307 = vld [vmem:[#allocation9 + $0x60] sm:$0xff]
        %v3308 = vld [vmem:[#allocation9 + $0x68] sm:$0xff]
        %v3309 = vld [vmem:[#allocation9 + $0x70] sm:$0xff]
        %v3310 = vld [vmem:[#allocation9 + $0x78] sm:$0xff]
        %v3311 = vld [vmem:[#allocation9 + $0x80] sm:$0xff]
        %v3312 = vld [vmem:[#allocation9 + $0x88] sm:$0xff]
        %v3313 = vld [vmem:[#allocation9 + $0x90] sm:$0xff]
        %v3314 = vld [vmem:[#allocation9 + $0x98] sm:$0xff]
        %v3315 = vld [vmem:[#allocation9 + $0xa0] sm:$0xff]
        %v3316 = vld [vmem:[#allocation9 + $0xa8] sm:$0xff]
        %v3317 = vld [vmem:[#allocation9 + $0xb0] sm:$0xff]
        %v3318 = vld [vmem:[#allocation9 + $0xb8] sm:$0xff]
        %v3319 = vld [vmem:[#allocation9 + $0xc0] sm:$0xff]
        %v3320 = vld [vmem:[#allocation9 + $0xc8] sm:$0xff]
        %v3321 = vld [vmem:[#allocation9 + $0xd0] sm:$0xff]
        %v3322 = vld [vmem:[#allocation9 + $0xd8] sm:$0xff]
        %v3323 = vld [vmem:[#allocation9 + $0xe0] sm:$0xff]
        %v3324 = vld [vmem:[#allocation9 + $0xe8] sm:$0xff]
        %v3325 = vld [vmem:[#allocation9 + $0xf0] sm:$0xff]
        %v3326 = vld [vmem:[#allocation9 + $0xf8] sm:$0xff]
        %v3327 = vld [vmem:[%s3] sm:$0x3]
        %v3329 = vlaneseq
        %v3330 = vshrl.u32 %v3329, 7
        %v3331 = vsub.s32 0, %v3330
        %v3332 = vrot.slane %v3327, %v3331
        %v3333 = vlaneseq
        %v3334 = vshrl.u32 %v3333, 7
        %v3335 = vsub.s32 1, %v3334
        %v3336 = vrot.slane %v3327, %v3335
        %v3371 = vunpack.c.l.b16 %v3263
        %v3372 = vunpack.c.h.b16 %v3263
        %v3373 = vunpack.c.l.b16 %v3264
        %v3374 = vunpack.c.h.b16 %v3264
        %v3375 = vunpack.c.l.b16 %v3265
        %v3376 = vunpack.c.h.b16 %v3265
        %v3377 = vunpack.c.l.b16 %v3266
        %v3378 = vunpack.c.h.b16 %v3266
        %v3379 = vunpack.c.l.b16 %v3267
        %v3380 = vunpack.c.h.b16 %v3267
        %v3381 = vunpack.c.l.b16 %v3268
        %v3382 = vunpack.c.h.b16 %v3268
        %v3383 = vunpack.c.l.b16 %v3269
        %v3384 = vunpack.c.h.b16 %v3269
        %v3385 = vunpack.c.l.b16 %v3270
        %v3386 = vunpack.c.h.b16 %v3270
        %v3387 = vunpack.c.l.b16 %v3271
        %v3388 = vunpack.c.h.b16 %v3271
        %v3389 = vunpack.c.l.b16 %v3272
        %v3390 = vunpack.c.h.b16 %v3272
        %v3391 = vunpack.c.l.b16 %v3273
        %v3392 = vunpack.c.h.b16 %v3273
        %v3393 = vunpack.c.l.b16 %v3274
        %v3394 = vunpack.c.h.b16 %v3274
        %v3395 = vunpack.c.l.b16 %v3275
        %v3396 = vunpack.c.h.b16 %v3275
        %v3397 = vunpack.c.l.b16 %v3276
        %v3398 = vunpack.c.h.b16 %v3276
        %v3399 = vunpack.c.l.b16 %v3277
        %v3400 = vunpack.c.h.b16 %v3277
        %v3401 = vunpack.c.l.b16 %v3278
        %v3402 = vunpack.c.h.b16 %v3278
        %v3403 = vunpack.c.l.b16 %v3279
        %v3404 = vunpack.c.h.b16 %v3279
        %v3405 = vunpack.c.l.b16 %v3280
        %v3406 = vunpack.c.h.b16 %v3280
        %v3407 = vunpack.c.l.b16 %v3281
        %v3408 = vunpack.c.h.b16 %v3281
        %v3409 = vunpack.c.l.b16 %v3282
        %v3410 = vunpack.c.h.b16 %v3282
        %v3411 = vunpack.c.l.b16 %v3283
        %v3412 = vunpack.c.h.b16 %v3283
        %v3413 = vunpack.c.l.b16 %v3284
        %v3414 = vunpack.c.h.b16 %v3284
        %v3415 = vunpack.c.l.b16 %v3285
        %v3416 = vunpack.c.h.b16 %v3285
        %v3417 = vunpack.c.l.b16 %v3286
        %v3418 = vunpack.c.h.b16 %v3286
        %v3419 = vunpack.c.l.b16 %v3287
        %v3420 = vunpack.c.h.b16 %v3287
        %v3421 = vunpack.c.l.b16 %v3288
        %v3422 = vunpack.c.h.b16 %v3288
        %v3423 = vunpack.c.l.b16 %v3289
        %v3424 = vunpack.c.h.b16 %v3289
        %v3425 = vunpack.c.l.b16 %v3290
        %v3426 = vunpack.c.h.b16 %v3290
        %v3427 = vunpack.c.l.b16 %v3291
        %v3428 = vunpack.c.h.b16 %v3291
        %v3429 = vunpack.c.l.b16 %v3292
        %v3430 = vunpack.c.h.b16 %v3292
        %v3431 = vunpack.c.l.b16 %v3293
        %v3432 = vunpack.c.h.b16 %v3293
        %v3433 = vunpack.c.l.b16 %v3294
        %v3434 = vunpack.c.h.b16 %v3294
        %v3435 = vpack.c.b16 %v3373, %v3371
        %v3436 = vpack.c.b16 %v3374, %v3372
        %v3437 = vpack.c.b16 %v3377, %v3375
        %v3438 = vpack.c.b16 %v3378, %v3376
        %v3439 = vpack.c.b16 %v3381, %v3379
        %v3440 = vpack.c.b16 %v3382, %v3380
        %v3441 = vpack.c.b16 %v3385, %v3383
        %v3442 = vpack.c.b16 %v3386, %v3384
        %v3443 = vpack.c.b16 %v3389, %v3387
        %v3444 = vpack.c.b16 %v3390, %v3388
        %v3445 = vpack.c.b16 %v3393, %v3391
        %v3446 = vpack.c.b16 %v3394, %v3392
        %v3447 = vpack.c.b16 %v3397, %v3395
        %v3448 = vpack.c.b16 %v3398, %v3396
        %v3449 = vpack.c.b16 %v3401, %v3399
        %v3450 = vpack.c.b16 %v3402, %v3400
        %v3451 = vpack.c.b16 %v3405, %v3403
        %v3452 = vpack.c.b16 %v3406, %v3404
        %v3453 = vpack.c.b16 %v3409, %v3407
        %v3454 = vpack.c.b16 %v3410, %v3408
        %v3455 = vpack.c.b16 %v3413, %v3411
        %v3456 = vpack.c.b16 %v3414, %v3412
        %v3457 = vpack.c.b16 %v3417, %v3415
        %v3458 = vpack.c.b16 %v3418, %v3416
        %v3459 = vpack.c.b16 %v3421, %v3419
        %v3460 = vpack.c.b16 %v3422, %v3420
        %v3461 = vpack.c.b16 %v3425, %v3423
        %v3462 = vpack.c.b16 %v3426, %v3424
        %v3463 = vpack.c.b16 %v3429, %v3427
        %v3464 = vpack.c.b16 %v3430, %v3428
        %v3465 = vpack.c.b16 %v3433, %v3431
        %v3466 = vpack.c.b16 %v3434, %v3432
        %v3531 = vunpack.c.l.b16 %v3295
        %v3532 = vunpack.c.h.b16 %v3295
        %v3533 = vunpack.c.l.b16 %v3296
        %v3534 = vunpack.c.h.b16 %v3296
        %v3535 = vunpack.c.l.b16 %v3297
        %v3536 = vunpack.c.h.b16 %v3297
        %v3537 = vunpack.c.l.b16 %v3298
        %v3538 = vunpack.c.h.b16 %v3298
        %v3539 = vunpack.c.l.b16 %v3299
        %v3540 = vunpack.c.h.b16 %v3299
        %v3541 = vunpack.c.l.b16 %v3300
        %v3542 = vunpack.c.h.b16 %v3300
        %v3543 = vunpack.c.l.b16 %v3301
        %v3544 = vunpack.c.h.b16 %v3301
        %v3545 = vunpack.c.l.b16 %v3302
        %v3546 = vunpack.c.h.b16 %v3302
        %v3547 = vunpack.c.l.b16 %v3303
        %v3548 = vunpack.c.h.b16 %v3303
        %v3549 = vunpack.c.l.b16 %v3304
        %v3550 = vunpack.c.h.b16 %v3304
        %v3551 = vunpack.c.l.b16 %v3305
        %v3552 = vunpack.c.h.b16 %v3305
        %v3553 = vunpack.c.l.b16 %v3306
        %v3554 = vunpack.c.h.b16 %v3306
        %v3555 = vunpack.c.l.b16 %v3307
        %v3556 = vunpack.c.h.b16 %v3307
        %v3557 = vunpack.c.l.b16 %v3308
        %v3558 = vunpack.c.h.b16 %v3308
        %v3559 = vunpack.c.l.b16 %v3309
        %v3560 = vunpack.c.h.b16 %v3309
        %v3561 = vunpack.c.l.b16 %v3310
        %v3562 = vunpack.c.h.b16 %v3310
        %v3563 = vunpack.c.l.b16 %v3311
        %v3564 = vunpack.c.h.b16 %v3311
        %v3565 = vunpack.c.l.b16 %v3312
        %v3566 = vunpack.c.h.b16 %v3312
        %v3567 = vunpack.c.l.b16 %v3313
        %v3568 = vunpack.c.h.b16 %v3313
        %v3569 = vunpack.c.l.b16 %v3314
        %v3570 = vunpack.c.h.b16 %v3314
        %v3571 = vunpack.c.l.b16 %v3315
        %v3572 = vunpack.c.h.b16 %v3315
        %v3573 = vunpack.c.l.b16 %v3316
        %v3574 = vunpack.c.h.b16 %v3316
        %v3575 = vunpack.c.l.b16 %v3317
        %v3576 = vunpack.c.h.b16 %v3317
        %v3577 = vunpack.c.l.b16 %v3318
        %v3578 = vunpack.c.h.b16 %v3318
        %v3579 = vunpack.c.l.b16 %v3319
        %v3580 = vunpack.c.h.b16 %v3319
        %v3581 = vunpack.c.l.b16 %v3320
        %v3582 = vunpack.c.h.b16 %v3320
        %v3583 = vunpack.c.l.b16 %v3321
        %v3584 = vunpack.c.h.b16 %v3321
        %v3585 = vunpack.c.l.b16 %v3322
        %v3586 = vunpack.c.h.b16 %v3322
        %v3587 = vunpack.c.l.b16 %v3323
        %v3588 = vunpack.c.h.b16 %v3323
        %v3589 = vunpack.c.l.b16 %v3324
        %v3590 = vunpack.c.h.b16 %v3324
        %v3591 = vunpack.c.l.b16 %v3325
        %v3592 = vunpack.c.h.b16 %v3325
        %v3593 = vunpack.c.l.b16 %v3326
        %v3594 = vunpack.c.h.b16 %v3326
        %v3595 = vpack.c.b16 %v3533, %v3531
        %v3596 = vpack.c.b16 %v3534, %v3532
        %v3597 = vpack.c.b16 %v3537, %v3535
        %v3598 = vpack.c.b16 %v3538, %v3536
        %v3599 = vpack.c.b16 %v3541, %v3539
        %v3600 = vpack.c.b16 %v3542, %v3540
        %v3601 = vpack.c.b16 %v3545, %v3543
        %v3602 = vpack.c.b16 %v3546, %v3544
        %v3603 = vpack.c.b16 %v3549, %v3547
        %v3604 = vpack.c.b16 %v3550, %v3548
        %v3605 = vpack.c.b16 %v3553, %v3551
        %v3606 = vpack.c.b16 %v3554, %v3552
        %v3607 = vpack.c.b16 %v3557, %v3555
        %v3608 = vpack.c.b16 %v3558, %v3556
        %v3609 = vpack.c.b16 %v3561, %v3559
        %v3610 = vpack.c.b16 %v3562, %v3560
        %v3611 = vpack.c.b16 %v3565, %v3563
        %v3612 = vpack.c.b16 %v3566, %v3564
        %v3613 = vpack.c.b16 %v3569, %v3567
        %v3614 = vpack.c.b16 %v3570, %v3568
        %v3615 = vpack.c.b16 %v3573, %v3571
        %v3616 = vpack.c.b16 %v3574, %v3572
        %v3617 = vpack.c.b16 %v3577, %v3575
        %v3618 = vpack.c.b16 %v3578, %v3576
        %v3619 = vpack.c.b16 %v3581, %v3579
        %v3620 = vpack.c.b16 %v3582, %v3580
        %v3621 = vpack.c.b16 %v3585, %v3583
        %v3622 = vpack.c.b16 %v3586, %v3584
        %v3623 = vpack.c.b16 %v3589, %v3587
        %v3624 = vpack.c.b16 %v3590, %v3588
        %v3625 = vpack.c.b16 %v3593, %v3591
        %v3626 = vpack.c.b16 %v3594, %v3592
        %3659 = vmatprep.subr.bf16.mxu0 %v3610
        %3660 = vmatpush1.bf16.msra.mxu0 %v3609
        %3661 = vmatprep.subr.bf16.mxu0 %v3608
        %3662 = vmatpush1.bf16.msra.mxu0 %v3607
        %3663 = vmatprep.subr.bf16.mxu0 %v3606
        %3664 = vmatpush1.bf16.msra.mxu0 %v3605
        %3665 = vmatprep.subr.bf16.mxu0 %v3604
        %3666 = vmatpush1.bf16.msra.mxu0 %v3603
        %3667 = vmatprep.subr.bf16.mxu0 %v3602
        %3668 = vmatpush1.bf16.msra.mxu0 %v3601
        %3669 = vmatprep.subr.bf16.mxu0 %v3600
        %3670 = vmatpush1.bf16.msra.mxu0 %v3599
        %3671 = vmatprep.subr.bf16.mxu0 %v3598
        %3672 = vmatpush1.bf16.msra.mxu0 %v3597
        %3673 = vmatprep.subr.bf16.mxu0 %v3596
        %3674 = vmatpush1.bf16.msra.mxu0 %v3595
        %3675 = vmatprep.subr.bf16.mxu0 %v3626
        %3676 = vmatpush2.bf16.msra.mxu0 %v3625
        %3677 = vmatprep.subr.bf16.mxu0 %v3624
        %3678 = vmatpush2.bf16.msra.mxu0 %v3623
        %3679 = vmatprep.subr.bf16.mxu0 %v3622
        %3680 = vmatpush2.bf16.msra.mxu0 %v3621
        %3681 = vmatprep.subr.bf16.mxu0 %v3620
        %3682 = vmatpush2.bf16.msra.mxu0 %v3619
        %3683 = vmatprep.subr.bf16.mxu0 %v3618
        %3684 = vmatpush2.bf16.msra.mxu0 %v3617
        %3685 = vmatprep.subr.bf16.mxu0 %v3616
        %3686 = vmatpush2.bf16.msra.mxu0 %v3615
        %3687 = vmatprep.subr.bf16.mxu0 %v3614
        %3688 = vmatpush2.bf16.msra.mxu0 %v3613
        %3689 = vmatprep.subr.bf16.mxu0 %v3612
        %3690 = vmatpush2.bf16.msra.mxu0 %v3611
        %3691 = vmatprep.mubr.bf16.mxu0 %v3436
        %3692 = vmatmul.mubr.bf16.gmra.mxu0 %v3435
        %v3693 = vpop.f32.mrf.mxu0
        %v3694 = vadd.f32 %v3332, %v3693
        %v3695 = vpop.f32.mrf.mxu0
        %v3696 = vadd.f32 %v3336, %v3695
        %v3697 = vpop.f32.mrf.mxu0
        %v3698 = vadd.f32 %v3332, %v3697
        %v3699 = vpop.f32.mrf.mxu0
        %v3700 = vadd.f32 %v3336, %v3699
        %3701 = vmatprep.mubr.bf16.mxu0 %v3438
        %3702 = vmatmul.mubr.bf16.gmra.mxu0 %v3437
        %v3703 = vpop.f32.mrf.mxu0
        %v3704 = vadd.f32 %v3332, %v3703
        %v3705 = vpop.f32.mrf.mxu0
        %v3706 = vadd.f32 %v3336, %v3705
        %v3707 = vpop.f32.mrf.mxu0
        %v3708 = vadd.f32 %v3332, %v3707
        %v3709 = vpop.f32.mrf.mxu0
        %v3710 = vadd.f32 %v3336, %v3709
        %3711 = vmatprep.mubr.bf16.mxu0 %v3440
        %3712 = vmatmul.mubr.bf16.gmra.mxu0 %v3439
        %v3713 = vpop.f32.mrf.mxu0
        %v3714 = vadd.f32 %v3332, %v3713
        %v3715 = vpop.f32.mrf.mxu0
        %v3716 = vadd.f32 %v3336, %v3715
        %v3717 = vpop.f32.mrf.mxu0
        %v3718 = vadd.f32 %v3332, %v3717
        %v3719 = vpop.f32.mrf.mxu0
        %v3720 = vadd.f32 %v3336, %v3719
        %3721 = vmatprep.mubr.bf16.mxu0 %v3442
        %3722 = vmatmul.mubr.bf16.gmra.mxu0 %v3441
        %v3723 = vpop.f32.mrf.mxu0
        %v3724 = vadd.f32 %v3332, %v3723
        %v3725 = vpop.f32.mrf.mxu0
        %v3726 = vadd.f32 %v3336, %v3725
        %v3727 = vpop.f32.mrf.mxu0
        %v3728 = vadd.f32 %v3332, %v3727
        %v3729 = vpop.f32.mrf.mxu0
        %v3730 = vadd.f32 %v3336, %v3729
        %3731 = vmatprep.mubr.bf16.mxu0 %v3444
        %3732 = vmatmul.mubr.bf16.gmra.mxu0 %v3443
        %v3733 = vpop.f32.mrf.mxu0
        %v3734 = vadd.f32 %v3332, %v3733
        %v3735 = vpop.f32.mrf.mxu0
        %v3736 = vadd.f32 %v3336, %v3735
        %v3737 = vpop.f32.mrf.mxu0
        %v3738 = vadd.f32 %v3332, %v3737
        %v3739 = vpop.f32.mrf.mxu0
        %v3740 = vadd.f32 %v3336, %v3739
        %3741 = vmatprep.mubr.bf16.mxu0 %v3446
        %3742 = vmatmul.mubr.bf16.gmra.mxu0 %v3445
        %v3743 = vpop.f32.mrf.mxu0
        %v3744 = vadd.f32 %v3332, %v3743
        %v3745 = vpop.f32.mrf.mxu0
        %v3746 = vadd.f32 %v3336, %v3745
        %v3747 = vpop.f32.mrf.mxu0
        %v3748 = vadd.f32 %v3332, %v3747
        %v3749 = vpop.f32.mrf.mxu0
        %v3750 = vadd.f32 %v3336, %v3749
        %3751 = vmatprep.mubr.bf16.mxu0 %v3448
        %3752 = vmatmul.mubr.bf16.gmra.mxu0 %v3447
        %v3753 = vpop.f32.mrf.mxu0
        %v3754 = vadd.f32 %v3332, %v3753
        %v3755 = vpop.f32.mrf.mxu0
        %v3756 = vadd.f32 %v3336, %v3755
        %v3757 = vpop.f32.mrf.mxu0
        %v3758 = vadd.f32 %v3332, %v3757
        %v3759 = vpop.f32.mrf.mxu0
        %v3760 = vadd.f32 %v3336, %v3759
        %3761 = vmatprep.mubr.bf16.mxu0 %v3450
        %3762 = vmatmul.mubr.bf16.gmra.mxu0 %v3449
        %v3763 = vpop.f32.mrf.mxu0
        %v3764 = vadd.f32 %v3332, %v3763
        %v3765 = vpop.f32.mrf.mxu0
        %v3766 = vadd.f32 %v3336, %v3765
        %v3767 = vpop.f32.mrf.mxu0
        %v3768 = vadd.f32 %v3332, %v3767
        %v3769 = vpop.f32.mrf.mxu0
        %v3770 = vadd.f32 %v3336, %v3769
        %3771 = vmatprep.mubr.bf16.mxu0 %v3452
        %3772 = vmatmul.mubr.bf16.gmra.mxu0 %v3451
        %v3773 = vpop.f32.mrf.mxu0
        %v3774 = vadd.f32 %v3332, %v3773
        %v3775 = vpop.f32.mrf.mxu0
        %v3776 = vadd.f32 %v3336, %v3775
        %v3777 = vpop.f32.mrf.mxu0
        %v3778 = vadd.f32 %v3332, %v3777
        %v3779 = vpop.f32.mrf.mxu0
        %v3780 = vadd.f32 %v3336, %v3779
        %3781 = vmatprep.mubr.bf16.mxu0 %v3454
        %3782 = vmatmul.mubr.bf16.gmra.mxu0 %v3453
        %v3783 = vpop.f32.mrf.mxu0
        %v3784 = vadd.f32 %v3332, %v3783
        %v3785 = vpop.f32.mrf.mxu0
        %v3786 = vadd.f32 %v3336, %v3785
        %v3787 = vpop.f32.mrf.mxu0
        %v3788 = vadd.f32 %v3332, %v3787
        %v3789 = vpop.f32.mrf.mxu0
        %v3790 = vadd.f32 %v3336, %v3789
        %3791 = vmatprep.mubr.bf16.mxu0 %v3456
        %3792 = vmatmul.mubr.bf16.gmra.mxu0 %v3455
        %v3793 = vpop.f32.mrf.mxu0
        %v3794 = vadd.f32 %v3332, %v3793
        %v3795 = vpop.f32.mrf.mxu0
        %v3796 = vadd.f32 %v3336, %v3795
        %v3797 = vpop.f32.mrf.mxu0
        %v3798 = vadd.f32 %v3332, %v3797
        %v3799 = vpop.f32.mrf.mxu0
        %v3800 = vadd.f32 %v3336, %v3799
        %3801 = vmatprep.mubr.bf16.mxu0 %v3458
        %3802 = vmatmul.mubr.bf16.gmra.mxu0 %v3457
        %v3803 = vpop.f32.mrf.mxu0
        %v3804 = vadd.f32 %v3332, %v3803
        %v3805 = vpop.f32.mrf.mxu0
        %v3806 = vadd.f32 %v3336, %v3805
        %v3807 = vpop.f32.mrf.mxu0
        %v3808 = vadd.f32 %v3332, %v3807
        %v3809 = vpop.f32.mrf.mxu0
        %v3810 = vadd.f32 %v3336, %v3809
        %3811 = vmatprep.mubr.bf16.mxu0 %v3460
        %3812 = vmatmul.mubr.bf16.gmra.mxu0 %v3459
        %v3813 = vpop.f32.mrf.mxu0
        %v3814 = vadd.f32 %v3332, %v3813
        %v3815 = vpop.f32.mrf.mxu0
        %v3816 = vadd.f32 %v3336, %v3815
        %v3817 = vpop.f32.mrf.mxu0
        %v3818 = vadd.f32 %v3332, %v3817
        %v3819 = vpop.f32.mrf.mxu0
        %v3820 = vadd.f32 %v3336, %v3819
        %3821 = vmatprep.mubr.bf16.mxu0 %v3462
        %3822 = vmatmul.mubr.bf16.gmra.mxu0 %v3461
        %v3823 = vpop.f32.mrf.mxu0
        %v3824 = vadd.f32 %v3332, %v3823
        %v3825 = vpop.f32.mrf.mxu0
        %v3826 = vadd.f32 %v3336, %v3825
        %v3827 = vpop.f32.mrf.mxu0
        %v3828 = vadd.f32 %v3332, %v3827
        %v3829 = vpop.f32.mrf.mxu0
        %v3830 = vadd.f32 %v3336, %v3829
        %3831 = vmatprep.mubr.bf16.mxu0 %v3464
        %3832 = vmatmul.mubr.bf16.gmra.mxu0 %v3463
        %v3833 = vpop.f32.mrf.mxu0
        %v3834 = vadd.f32 %v3332, %v3833
        %v3835 = vpop.f32.mrf.mxu0
        %v3836 = vadd.f32 %v3336, %v3835
        %v3837 = vpop.f32.mrf.mxu0
        %v3838 = vadd.f32 %v3332, %v3837
        %v3839 = vpop.f32.mrf.mxu0
        %v3840 = vadd.f32 %v3336, %v3839
        %3841 = vmatprep.mubr.bf16.mxu0 %v3466
        %3842 = vmatmul.mubr.bf16.gmra.mxu0 %v3465
        %v3843 = vpop.f32.mrf.mxu0
        %v3844 = vadd.f32 %v3332, %v3843
        %v3845 = vpop.f32.mrf.mxu0
        %v3846 = vadd.f32 %v3336, %v3845
        %v3847 = vpop.f32.mrf.mxu0
        %v3848 = vadd.f32 %v3332, %v3847
        %v3849 = vpop.f32.mrf.mxu0
        %v3850 = vadd.f32 %v3336, %v3849
        %3851 = vdwg.mxu0
        %v3852 = vpack.c.bf16 %v3698, %v3694
        %v3853 = vpack.c.bf16 %v3700, %v3696
        %v3854 = vpack.c.bf16 %v3708, %v3704
        %v3855 = vpack.c.bf16 %v3710, %v3706
        %v3856 = vpack.c.bf16 %v3718, %v3714
        %v3857 = vpack.c.bf16 %v3720, %v3716
        %v3858 = vpack.c.bf16 %v3728, %v3724
        %v3859 = vpack.c.bf16 %v3730, %v3726
        %v3860 = vpack.c.bf16 %v3738, %v3734
        %v3861 = vpack.c.bf16 %v3740, %v3736
        %v3862 = vpack.c.bf16 %v3748, %v3744
        %v3863 = vpack.c.bf16 %v3750, %v3746
        %v3864 = vpack.c.bf16 %v3758, %v3754
        %v3865 = vpack.c.bf16 %v3760, %v3756
        %v3866 = vpack.c.bf16 %v3768, %v3764
        %v3867 = vpack.c.bf16 %v3770, %v3766
        %v3868 = vpack.c.bf16 %v3778, %v3774
        %v3869 = vpack.c.bf16 %v3780, %v3776
        %v3870 = vpack.c.bf16 %v3788, %v3784
        %v3871 = vpack.c.bf16 %v3790, %v3786
        %v3872 = vpack.c.bf16 %v3798, %v3794
        %v3873 = vpack.c.bf16 %v3800, %v3796
        %v3874 = vpack.c.bf16 %v3808, %v3804
        %v3875 = vpack.c.bf16 %v3810, %v3806
        %v3876 = vpack.c.bf16 %v3818, %v3814
        %v3877 = vpack.c.bf16 %v3820, %v3816
        %v3878 = vpack.c.bf16 %v3828, %v3824
        %v3879 = vpack.c.bf16 %v3830, %v3826
        %v3880 = vpack.c.bf16 %v3838, %v3834
        %v3881 = vpack.c.bf16 %v3840, %v3836
        %v3882 = vpack.c.bf16 %v3848, %v3844
        %v3883 = vpack.c.bf16 %v3850, %v3846
        %v3884 = vld [vmem:[#allocation2] sm:$0xf]
        %v3885 = vld [vmem:[#allocation2 + $0x4] sm:$0xf]
        %v3886 = vld [vmem:[#allocation2 + $0x8] sm:$0xf]
        %v3887 = vld [vmem:[#allocation2 + $0xc] sm:$0xf]
        %v3888 = vld [vmem:[#allocation2 + $0x10] sm:$0xf]
        %v3889 = vld [vmem:[#allocation2 + $0x14] sm:$0xf]
        %v3890 = vld [vmem:[#allocation2 + $0x18] sm:$0xf]
        %v3891 = vld [vmem:[#allocation2 + $0x1c] sm:$0xf]
        %v3892 = vld [vmem:[#allocation2 + $0x20] sm:$0xf]
        %v3893 = vld [vmem:[#allocation2 + $0x24] sm:$0xf]
        %v3894 = vld [vmem:[#allocation2 + $0x28] sm:$0xf]
        %v3895 = vld [vmem:[#allocation2 + $0x2c] sm:$0xf]
        %v3896 = vld [vmem:[#allocation2 + $0x30] sm:$0xf]
        %v3897 = vld [vmem:[#allocation2 + $0x34] sm:$0xf]
        %v3898 = vld [vmem:[#allocation2 + $0x38] sm:$0xf]
        %v3899 = vld [vmem:[#allocation2 + $0x3c] sm:$0xf]
        %v3900 = vld [vmem:[#allocation2 + $0x40] sm:$0xf]
        %v3901 = vld [vmem:[#allocation2 + $0x44] sm:$0xf]
        %v3902 = vld [vmem:[#allocation2 + $0x48] sm:$0xf]
        %v3903 = vld [vmem:[#allocation2 + $0x4c] sm:$0xf]
        %v3904 = vld [vmem:[#allocation2 + $0x50] sm:$0xf]
        %v3905 = vld [vmem:[#allocation2 + $0x54] sm:$0xf]
        %v3906 = vld [vmem:[#allocation2 + $0x58] sm:$0xf]
        %v3907 = vld [vmem:[#allocation2 + $0x5c] sm:$0xf]
        %v3908 = vld [vmem:[#allocation2 + $0x60] sm:$0xf]
        %v3909 = vld [vmem:[#allocation2 + $0x64] sm:$0xf]
        %v3910 = vld [vmem:[#allocation2 + $0x68] sm:$0xf]
        %v3911 = vld [vmem:[#allocation2 + $0x6c] sm:$0xf]
        %v3912 = vld [vmem:[#allocation2 + $0x70] sm:$0xf]
        %v3913 = vld [vmem:[#allocation2 + $0x74] sm:$0xf]
        %v3914 = vld [vmem:[#allocation2 + $0x78] sm:$0xf]
        %v3915 = vld [vmem:[#allocation2 + $0x7c] sm:$0xf]
        %v3916 = vld [vmem:[#allocation2 + $0x80] sm:$0xf]
        %v3917 = vld [vmem:[#allocation2 + $0x84] sm:$0xf]
        %v3918 = vld [vmem:[#allocation2 + $0x88] sm:$0xf]
        %v3919 = vld [vmem:[#allocation2 + $0x8c] sm:$0xf]
        %v3920 = vld [vmem:[#allocation2 + $0x90] sm:$0xf]
        %v3921 = vld [vmem:[#allocation2 + $0x94] sm:$0xf]
        %v3922 = vld [vmem:[#allocation2 + $0x98] sm:$0xf]
        %v3923 = vld [vmem:[#allocation2 + $0x9c] sm:$0xf]
        %v3924 = vld [vmem:[#allocation2 + $0xa0] sm:$0xf]
        %v3925 = vld [vmem:[#allocation2 + $0xa4] sm:$0xf]
        %v3926 = vld [vmem:[#allocation2 + $0xa8] sm:$0xf]
        %v3927 = vld [vmem:[#allocation2 + $0xac] sm:$0xf]
        %v3928 = vld [vmem:[#allocation2 + $0xb0] sm:$0xf]
        %v3929 = vld [vmem:[#allocation2 + $0xb4] sm:$0xf]
        %v3930 = vld [vmem:[#allocation2 + $0xb8] sm:$0xf]
        %v3931 = vld [vmem:[#allocation2 + $0xbc] sm:$0xf]
        %v3932 = vld [vmem:[#allocation2 + $0xc0] sm:$0xf]
        %v3933 = vld [vmem:[#allocation2 + $0xc4] sm:$0xf]
        %v3934 = vld [vmem:[#allocation2 + $0xc8] sm:$0xf]
        %v3935 = vld [vmem:[#allocation2 + $0xcc] sm:$0xf]
        %v3936 = vld [vmem:[#allocation2 + $0xd0] sm:$0xf]
        %v3937 = vld [vmem:[#allocation2 + $0xd4] sm:$0xf]
        %v3938 = vld [vmem:[#allocation2 + $0xd8] sm:$0xf]
        %v3939 = vld [vmem:[#allocation2 + $0xdc] sm:$0xf]
        %v3940 = vld [vmem:[#allocation2 + $0xe0] sm:$0xf]
        %v3941 = vld [vmem:[#allocation2 + $0xe4] sm:$0xf]
        %v3942 = vld [vmem:[#allocation2 + $0xe8] sm:$0xf]
        %v3943 = vld [vmem:[#allocation2 + $0xec] sm:$0xf]
        %v3944 = vld [vmem:[#allocation2 + $0xf0] sm:$0xf]
        %v3945 = vld [vmem:[#allocation2 + $0xf4] sm:$0xf]
        %v3946 = vld [vmem:[#allocation2 + $0xf8] sm:$0xf]
        %v3947 = vld [vmem:[#allocation2 + $0xfc] sm:$0xf]
        %v3948 = vld [vmem:[#allocation2 + $0x100] sm:$0xf]
        %v3949 = vld [vmem:[#allocation2 + $0x104] sm:$0xf]
        %v3950 = vld [vmem:[#allocation2 + $0x108] sm:$0xf]
        %v3951 = vld [vmem:[#allocation2 + $0x10c] sm:$0xf]
        %v3952 = vld [vmem:[#allocation2 + $0x110] sm:$0xf]
        %v3953 = vld [vmem:[#allocation2 + $0x114] sm:$0xf]
        %v3954 = vld [vmem:[#allocation2 + $0x118] sm:$0xf]
        %v3955 = vld [vmem:[#allocation2 + $0x11c] sm:$0xf]
        %v3956 = vld [vmem:[#allocation2 + $0x120] sm:$0xf]
        %v3957 = vld [vmem:[#allocation2 + $0x124] sm:$0xf]
        %v3958 = vld [vmem:[#allocation2 + $0x128] sm:$0xf]
        %v3959 = vld [vmem:[#allocation2 + $0x12c] sm:$0xf]
        %v3960 = vld [vmem:[#allocation2 + $0x130] sm:$0xf]
        %v3961 = vld [vmem:[#allocation2 + $0x134] sm:$0xf]
        %v3962 = vld [vmem:[#allocation2 + $0x138] sm:$0xf]
        %v3963 = vld [vmem:[#allocation2 + $0x13c] sm:$0xf]
        %v3964 = vld [vmem:[#allocation2 + $0x140] sm:$0xf]
        %v3965 = vld [vmem:[#allocation2 + $0x144] sm:$0xf]
        %v3966 = vld [vmem:[#allocation2 + $0x148] sm:$0xf]
        %v3967 = vld [vmem:[#allocation2 + $0x14c] sm:$0xf]
        %v3968 = vld [vmem:[#allocation2 + $0x150] sm:$0xf]
        %v3969 = vld [vmem:[#allocation2 + $0x154] sm:$0xf]
        %v3970 = vld [vmem:[#allocation2 + $0x158] sm:$0xf]
        %v3971 = vld [vmem:[#allocation2 + $0x15c] sm:$0xf]
        %v3972 = vld [vmem:[#allocation2 + $0x160] sm:$0xf]
        %v3973 = vld [vmem:[#allocation2 + $0x164] sm:$0xf]
        %v3974 = vld [vmem:[#allocation2 + $0x168] sm:$0xf]
        %v3975 = vld [vmem:[#allocation2 + $0x16c] sm:$0xf]
        %v3976 = vld [vmem:[#allocation2 + $0x170] sm:$0xf]
        %v3977 = vld [vmem:[#allocation2 + $0x174] sm:$0xf]
        %v3978 = vld [vmem:[#allocation2 + $0x178] sm:$0xf]
        %v3979 = vld [vmem:[#allocation2 + $0x17c] sm:$0xf]
        %v3980 = vld [vmem:[#allocation2 + $0x180] sm:$0xf]
        %v3981 = vld [vmem:[#allocation2 + $0x184] sm:$0xf]
        %v3982 = vld [vmem:[#allocation2 + $0x188] sm:$0xf]
        %v3983 = vld [vmem:[#allocation2 + $0x18c] sm:$0xf]
        %v3984 = vld [vmem:[#allocation2 + $0x190] sm:$0xf]
        %v3985 = vld [vmem:[#allocation2 + $0x194] sm:$0xf]
        %v3986 = vld [vmem:[#allocation2 + $0x198] sm:$0xf]
        %v3987 = vld [vmem:[#allocation2 + $0x19c] sm:$0xf]
        %v3988 = vld [vmem:[#allocation2 + $0x1a0] sm:$0xf]
        %v3989 = vld [vmem:[#allocation2 + $0x1a4] sm:$0xf]
        %v3990 = vld [vmem:[#allocation2 + $0x1a8] sm:$0xf]
        %v3991 = vld [vmem:[#allocation2 + $0x1ac] sm:$0xf]
        %v3992 = vld [vmem:[#allocation2 + $0x1b0] sm:$0xf]
        %v3993 = vld [vmem:[#allocation2 + $0x1b4] sm:$0xf]
        %v3994 = vld [vmem:[#allocation2 + $0x1b8] sm:$0xf]
        %v3995 = vld [vmem:[#allocation2 + $0x1bc] sm:$0xf]
        %v3996 = vld [vmem:[#allocation2 + $0x1c0] sm:$0xf]
        %v3997 = vld [vmem:[#allocation2 + $0x1c4] sm:$0xf]
        %v3998 = vld [vmem:[#allocation2 + $0x1c8] sm:$0xf]
        %v3999 = vld [vmem:[#allocation2 + $0x1cc] sm:$0xf]
        %v4000 = vld [vmem:[#allocation2 + $0x1d0] sm:$0xf]
        %v4001 = vld [vmem:[#allocation2 + $0x1d4] sm:$0xf]
        %v4002 = vld [vmem:[#allocation2 + $0x1d8] sm:$0xf]
        %v4003 = vld [vmem:[#allocation2 + $0x1dc] sm:$0xf]
        %v4004 = vld [vmem:[#allocation2 + $0x1e0] sm:$0xf]
        %v4005 = vld [vmem:[#allocation2 + $0x1e4] sm:$0xf]
        %v4006 = vld [vmem:[#allocation2 + $0x1e8] sm:$0xf]
        %v4007 = vld [vmem:[#allocation2 + $0x1ec] sm:$0xf]
        %v4008 = vld [vmem:[#allocation2 + $0x1f0] sm:$0xf]
        %v4009 = vld [vmem:[#allocation2 + $0x1f4] sm:$0xf]
        %v4010 = vld [vmem:[#allocation2 + $0x1f8] sm:$0xf]
        %v4011 = vld [vmem:[#allocation2 + $0x1fc] sm:$0xf]
        %v4076 = vunpack.c.l.b16 %v3884
        %v4077 = vunpack.c.l.b16 %v3885
        %v4078 = vunpack.c.l.b16 %v3886
        %v4079 = vunpack.c.l.b16 %v3887
        %v4080 = vunpack.c.l.b16 %v3888
        %v4081 = vunpack.c.l.b16 %v3889
        %v4082 = vunpack.c.l.b16 %v3890
        %v4083 = vunpack.c.l.b16 %v3891
        %v4084 = vunpack.c.l.b16 %v3892
        %v4085 = vunpack.c.l.b16 %v3893
        %v4086 = vunpack.c.l.b16 %v3894
        %v4087 = vunpack.c.l.b16 %v3895
        %v4088 = vunpack.c.l.b16 %v3896
        %v4089 = vunpack.c.l.b16 %v3897
        %v4090 = vunpack.c.l.b16 %v3898
        %v4091 = vunpack.c.l.b16 %v3899
        %v4092 = vunpack.c.l.b16 %v3900
        %v4093 = vunpack.c.l.b16 %v3901
        %v4094 = vunpack.c.l.b16 %v3902
        %v4095 = vunpack.c.l.b16 %v3903
        %v4096 = vunpack.c.l.b16 %v3904
        %v4097 = vunpack.c.l.b16 %v3905
        %v4098 = vunpack.c.l.b16 %v3906
        %v4099 = vunpack.c.l.b16 %v3907
        %v4100 = vunpack.c.l.b16 %v3908
        %v4101 = vunpack.c.l.b16 %v3909
        %v4102 = vunpack.c.l.b16 %v3910
        %v4103 = vunpack.c.l.b16 %v3911
        %v4104 = vunpack.c.l.b16 %v3912
        %v4105 = vunpack.c.l.b16 %v3913
        %v4106 = vunpack.c.l.b16 %v3914
        %v4107 = vunpack.c.l.b16 %v3915
        %v4108 = vunpack.c.l.b16 %v3916
        %v4109 = vunpack.c.l.b16 %v3917
        %v4110 = vunpack.c.l.b16 %v3918
        %v4111 = vunpack.c.l.b16 %v3919
        %v4112 = vunpack.c.l.b16 %v3920
        %v4113 = vunpack.c.l.b16 %v3921
        %v4114 = vunpack.c.l.b16 %v3922
        %v4115 = vunpack.c.l.b16 %v3923
        %v4116 = vunpack.c.l.b16 %v3924
        %v4117 = vunpack.c.l.b16 %v3925
        %v4118 = vunpack.c.l.b16 %v3926
        %v4119 = vunpack.c.l.b16 %v3927
        %v4120 = vunpack.c.l.b16 %v3928
        %v4121 = vunpack.c.l.b16 %v3929
        %v4122 = vunpack.c.l.b16 %v3930
        %v4123 = vunpack.c.l.b16 %v3931
        %v4124 = vunpack.c.l.b16 %v3932
        %v4125 = vunpack.c.l.b16 %v3933
        %v4126 = vunpack.c.l.b16 %v3934
        %v4127 = vunpack.c.l.b16 %v3935
        %v4128 = vunpack.c.l.b16 %v3936
        %v4129 = vunpack.c.l.b16 %v3937
        %v4130 = vunpack.c.l.b16 %v3938
        %v4131 = vunpack.c.l.b16 %v3939
        %v4132 = vunpack.c.l.b16 %v3940
        %v4133 = vunpack.c.l.b16 %v3941
        %v4134 = vunpack.c.l.b16 %v3942
        %v4135 = vunpack.c.l.b16 %v3943
        %v4136 = vunpack.c.l.b16 %v3944
        %v4137 = vunpack.c.l.b16 %v3945
        %v4138 = vunpack.c.l.b16 %v3946
        %v4139 = vunpack.c.l.b16 %v3947
        %v4140 = vpack.c.b16 %v4077, %v4076
        %v4141 = vpack.c.b16 %v4079, %v4078
        %v4142 = vpack.c.b16 %v4081, %v4080
        %v4143 = vpack.c.b16 %v4083, %v4082
        %v4144 = vpack.c.b16 %v4085, %v4084
        %v4145 = vpack.c.b16 %v4087, %v4086
        %v4146 = vpack.c.b16 %v4089, %v4088
        %v4147 = vpack.c.b16 %v4091, %v4090
        %v4148 = vpack.c.b16 %v4093, %v4092
        %v4149 = vpack.c.b16 %v4095, %v4094
        %v4150 = vpack.c.b16 %v4097, %v4096
        %v4151 = vpack.c.b16 %v4099, %v4098
        %v4152 = vpack.c.b16 %v4101, %v4100
        %v4153 = vpack.c.b16 %v4103, %v4102
        %v4154 = vpack.c.b16 %v4105, %v4104
        %v4155 = vpack.c.b16 %v4107, %v4106
        %v4156 = vpack.c.b16 %v4109, %v4108
        %v4157 = vpack.c.b16 %v4111, %v4110
        %v4158 = vpack.c.b16 %v4113, %v4112
        %v4159 = vpack.c.b16 %v4115, %v4114
        %v4160 = vpack.c.b16 %v4117, %v4116
        %v4161 = vpack.c.b16 %v4119, %v4118
        %v4162 = vpack.c.b16 %v4121, %v4120
        %v4163 = vpack.c.b16 %v4123, %v4122
        %v4164 = vpack.c.b16 %v4125, %v4124
        %v4165 = vpack.c.b16 %v4127, %v4126
        %v4166 = vpack.c.b16 %v4129, %v4128
        %v4167 = vpack.c.b16 %v4131, %v4130
        %v4168 = vpack.c.b16 %v4133, %v4132
        %v4169 = vpack.c.b16 %v4135, %v4134
        %v4170 = vpack.c.b16 %v4137, %v4136
        %v4171 = vpack.c.b16 %v4139, %v4138
        %4204 = vmatprep.subr.bf16.mxu0 0
        %4205 = vmatpush1.bf16.xpose.msra.mxu0 %v4147
        %4206 = vmatprep.subr.bf16.mxu0 0
        %4207 = vmatpush1.bf16.xpose.msra.mxu0 %v4146
        %4208 = vmatprep.subr.bf16.mxu0 0
        %4209 = vmatpush1.bf16.xpose.msra.mxu0 %v4145
        %4210 = vmatprep.subr.bf16.mxu0 0
        %4211 = vmatpush1.bf16.xpose.msra.mxu0 %v4144
        %4212 = vmatprep.subr.bf16.mxu0 0
        %4213 = vmatpush1.bf16.xpose.msra.mxu0 %v4143
        %4214 = vmatprep.subr.bf16.mxu0 0
        %4215 = vmatpush1.bf16.xpose.msra.mxu0 %v4142
        %4216 = vmatprep.subr.bf16.mxu0 0
        %4217 = vmatpush1.bf16.xpose.msra.mxu0 %v4141
        %4218 = vmatprep.subr.bf16.mxu0 0
        %4219 = vmatpush1.bf16.xpose.msra.mxu0 %v4140
        %4220 = vmatprep.subr.bf16.mxu0 0
        %4221 = vmatpush2.bf16.xpose.msra.mxu0 %v4155
        %4222 = vmatprep.subr.bf16.mxu0 0
        %4223 = vmatpush2.bf16.xpose.msra.mxu0 %v4154
        %4224 = vmatprep.subr.bf16.mxu0 0
        %4225 = vmatpush2.bf16.xpose.msra.mxu0 %v4153
        %4226 = vmatprep.subr.bf16.mxu0 0
        %4227 = vmatpush2.bf16.xpose.msra.mxu0 %v4152
        %4228 = vmatprep.subr.bf16.mxu0 0
        %4229 = vmatpush2.bf16.xpose.msra.mxu0 %v4151
        %4230 = vmatprep.subr.bf16.mxu0 0
        %4231 = vmatpush2.bf16.xpose.msra.mxu0 %v4150
        %4232 = vmatprep.subr.bf16.mxu0 0
        %4233 = vmatpush2.bf16.xpose.msra.mxu0 %v4149
        %4234 = vmatprep.subr.bf16.mxu0 0
        %4235 = vmatpush2.bf16.xpose.msra.mxu0 %v4148
        %4236 = vmatprep.mubr.bf16.mxu0 0
        %4237 = vmatmul.mubr.bf16.gmra.mxu0 %v3852
        %v4238 = vpop.f32.mrf.mxu0
        %v4239 = vadd.f32 0.0, %v4238
        %v4240 = vpop.f32.mrf.mxu0
        %v4241 = vadd.f32 0.0, %v4240
        %v4242 = vpop.f32.mrf.mxu0
        %v4243 = vadd.f32 0.0, %v4242
        %v4244 = vpop.f32.mrf.mxu0
        %v4245 = vadd.f32 0.0, %v4244
        %4246 = vmatprep.mubr.bf16.mxu0 0
        %4247 = vmatmul.mubr.bf16.gmra.mxu0 %v3854
        %v4248 = vpop.f32.mrf.mxu0
        %v4249 = vadd.f32 0.0, %v4248
        %v4250 = vpop.f32.mrf.mxu0
        %v4251 = vadd.f32 0.0, %v4250
        %v4252 = vpop.f32.mrf.mxu0
        %v4253 = vadd.f32 0.0, %v4252
        %v4254 = vpop.f32.mrf.mxu0
        %v4255 = vadd.f32 0.0, %v4254
        %4256 = vmatprep.mubr.bf16.mxu0 0
        %4257 = vmatmul.mubr.bf16.gmra.mxu0 %v3856
        %v4258 = vpop.f32.mrf.mxu0
        %v4259 = vadd.f32 0.0, %v4258
        %v4260 = vpop.f32.mrf.mxu0
        %v4261 = vadd.f32 0.0, %v4260
        %v4262 = vpop.f32.mrf.mxu0
        %v4263 = vadd.f32 0.0, %v4262
        %v4264 = vpop.f32.mrf.mxu0
        %v4265 = vadd.f32 0.0, %v4264
        %4266 = vmatprep.mubr.bf16.mxu0 0
        %4267 = vmatmul.mubr.bf16.gmra.mxu0 %v3858
        %v4268 = vpop.f32.mrf.mxu0
        %v4269 = vadd.f32 0.0, %v4268
        %v4270 = vpop.f32.mrf.mxu0
        %v4271 = vadd.f32 0.0, %v4270
        %v4272 = vpop.f32.mrf.mxu0
        %v4273 = vadd.f32 0.0, %v4272
        %v4274 = vpop.f32.mrf.mxu0
        %v4275 = vadd.f32 0.0, %v4274
        %4276 = vmatprep.mubr.bf16.mxu0 0
        %4277 = vmatmul.mubr.bf16.gmra.mxu0 %v3860
        %v4278 = vpop.f32.mrf.mxu0
        %v4279 = vadd.f32 0.0, %v4278
        %v4280 = vpop.f32.mrf.mxu0
        %v4281 = vadd.f32 0.0, %v4280
        %v4282 = vpop.f32.mrf.mxu0
        %v4283 = vadd.f32 0.0, %v4282
        %v4284 = vpop.f32.mrf.mxu0
        %v4285 = vadd.f32 0.0, %v4284
        %4286 = vmatprep.mubr.bf16.mxu0 0
        %4287 = vmatmul.mubr.bf16.gmra.mxu0 %v3862
        %v4288 = vpop.f32.mrf.mxu0
        %v4289 = vadd.f32 0.0, %v4288
        %v4290 = vpop.f32.mrf.mxu0
        %v4291 = vadd.f32 0.0, %v4290
        %v4292 = vpop.f32.mrf.mxu0
        %v4293 = vadd.f32 0.0, %v4292
        %v4294 = vpop.f32.mrf.mxu0
        %v4295 = vadd.f32 0.0, %v4294
        %4296 = vmatprep.mubr.bf16.mxu0 0
        %4297 = vmatmul.mubr.bf16.gmra.mxu0 %v3864
        %v4298 = vpop.f32.mrf.mxu0
        %v4299 = vadd.f32 0.0, %v4298
        %v4300 = vpop.f32.mrf.mxu0
        %v4301 = vadd.f32 0.0, %v4300
        %v4302 = vpop.f32.mrf.mxu0
        %v4303 = vadd.f32 0.0, %v4302
        %v4304 = vpop.f32.mrf.mxu0
        %v4305 = vadd.f32 0.0, %v4304
        %4306 = vmatprep.mubr.bf16.mxu0 0
        %4307 = vmatmul.mubr.bf16.gmra.mxu0 %v3866
        %v4308 = vpop.f32.mrf.mxu0
        %v4309 = vadd.f32 0.0, %v4308
        %v4310 = vpop.f32.mrf.mxu0
        %v4311 = vadd.f32 0.0, %v4310
        %v4312 = vpop.f32.mrf.mxu0
        %v4313 = vadd.f32 0.0, %v4312
        %v4314 = vpop.f32.mrf.mxu0
        %v4315 = vadd.f32 0.0, %v4314
        %4316 = vmatprep.mubr.bf16.mxu0 0
        %4317 = vmatmul.mubr.bf16.gmra.mxu0 %v3868
        %v4318 = vpop.f32.mrf.mxu0
        %v4319 = vadd.f32 0.0, %v4318
        %v4320 = vpop.f32.mrf.mxu0
        %v4321 = vadd.f32 0.0, %v4320
        %v4322 = vpop.f32.mrf.mxu0
        %v4323 = vadd.f32 0.0, %v4322
        %v4324 = vpop.f32.mrf.mxu0
        %v4325 = vadd.f32 0.0, %v4324
        %4326 = vmatprep.mubr.bf16.mxu0 0
        %4327 = vmatmul.mubr.bf16.gmra.mxu0 %v3870
        %v4328 = vpop.f32.mrf.mxu0
        %v4329 = vadd.f32 0.0, %v4328
        %v4330 = vpop.f32.mrf.mxu0
        %v4331 = vadd.f32 0.0, %v4330
        %v4332 = vpop.f32.mrf.mxu0
        %v4333 = vadd.f32 0.0, %v4332
        %v4334 = vpop.f32.mrf.mxu0
        %v4335 = vadd.f32 0.0, %v4334
        %4336 = vmatprep.mubr.bf16.mxu0 0
        %4337 = vmatmul.mubr.bf16.gmra.mxu0 %v3872
        %v4338 = vpop.f32.mrf.mxu0
        %v4339 = vadd.f32 0.0, %v4338
        %v4340 = vpop.f32.mrf.mxu0
        %v4341 = vadd.f32 0.0, %v4340
        %v4342 = vpop.f32.mrf.mxu0
        %v4343 = vadd.f32 0.0, %v4342
        %v4344 = vpop.f32.mrf.mxu0
        %v4345 = vadd.f32 0.0, %v4344
        %4346 = vmatprep.mubr.bf16.mxu0 0
        %4347 = vmatmul.mubr.bf16.gmra.mxu0 %v3874
        %v4348 = vpop.f32.mrf.mxu0
        %v4349 = vadd.f32 0.0, %v4348
        %v4350 = vpop.f32.mrf.mxu0
        %v4351 = vadd.f32 0.0, %v4350
        %v4352 = vpop.f32.mrf.mxu0
        %v4353 = vadd.f32 0.0, %v4352
        %v4354 = vpop.f32.mrf.mxu0
        %v4355 = vadd.f32 0.0, %v4354
        %4356 = vmatprep.mubr.bf16.mxu0 0
        %4357 = vmatmul.mubr.bf16.gmra.mxu0 %v3876
        %v4358 = vpop.f32.mrf.mxu0
        %v4359 = vadd.f32 0.0, %v4358
        %v4360 = vpop.f32.mrf.mxu0
        %v4361 = vadd.f32 0.0, %v4360
        %v4362 = vpop.f32.mrf.mxu0
        %v4363 = vadd.f32 0.0, %v4362
        %v4364 = vpop.f32.mrf.mxu0
        %v4365 = vadd.f32 0.0, %v4364
        %4366 = vmatprep.mubr.bf16.mxu0 0
        %4367 = vmatmul.mubr.bf16.gmra.mxu0 %v3878
        %v4368 = vpop.f32.mrf.mxu0
        %v4369 = vadd.f32 0.0, %v4368
        %v4370 = vpop.f32.mrf.mxu0
        %v4371 = vadd.f32 0.0, %v4370
        %v4372 = vpop.f32.mrf.mxu0
        %v4373 = vadd.f32 0.0, %v4372
        %v4374 = vpop.f32.mrf.mxu0
        %v4375 = vadd.f32 0.0, %v4374
        %4376 = vmatprep.mubr.bf16.mxu0 0
        %4377 = vmatmul.mubr.bf16.gmra.mxu0 %v3880
        %v4378 = vpop.f32.mrf.mxu0
        %v4379 = vadd.f32 0.0, %v4378
        %v4380 = vpop.f32.mrf.mxu0
        %v4381 = vadd.f32 0.0, %v4380
        %v4382 = vpop.f32.mrf.mxu0
        %v4383 = vadd.f32 0.0, %v4382
        %v4384 = vpop.f32.mrf.mxu0
        %v4385 = vadd.f32 0.0, %v4384
        %4386 = vmatprep.mubr.bf16.mxu0 0
        %4387 = vmatmul.mubr.bf16.gmra.mxu0 %v3882
        %v4388 = vpop.f32.mrf.mxu0
        %v4389 = vadd.f32 0.0, %v4388
        %v4390 = vpop.f32.mrf.mxu0
        %v4391 = vadd.f32 0.0, %v4390
        %v4392 = vpop.f32.mrf.mxu0
        %v4393 = vadd.f32 0.0, %v4392
        %v4394 = vpop.f32.mrf.mxu0
        %v4395 = vadd.f32 0.0, %v4394
        %4396 = vdwg.mxu0
        %4397 = vmatprep.subr.bf16.mxu0 0
        %4398 = vmatpush1.bf16.xpose.msra.mxu0 %v4163
        %4399 = vmatprep.subr.bf16.mxu0 0
        %4400 = vmatpush1.bf16.xpose.msra.mxu0 %v4162
        %4401 = vmatprep.subr.bf16.mxu0 0
        %4402 = vmatpush1.bf16.xpose.msra.mxu0 %v4161
        %4403 = vmatprep.subr.bf16.mxu0 0
        %4404 = vmatpush1.bf16.xpose.msra.mxu0 %v4160
        %4405 = vmatprep.subr.bf16.mxu0 0
        %4406 = vmatpush1.bf16.xpose.msra.mxu0 %v4159
        %4407 = vmatprep.subr.bf16.mxu0 0
        %4408 = vmatpush1.bf16.xpose.msra.mxu0 %v4158
        %4409 = vmatprep.subr.bf16.mxu0 0
        %4410 = vmatpush1.bf16.xpose.msra.mxu0 %v4157
        %4411 = vmatprep.subr.bf16.mxu0 0
        %4412 = vmatpush1.bf16.xpose.msra.mxu0 %v4156
        %4413 = vmatprep.subr.bf16.mxu0 0
        %4414 = vmatpush2.bf16.xpose.msra.mxu0 %v4171
        %4415 = vmatprep.subr.bf16.mxu0 0
        %4416 = vmatpush2.bf16.xpose.msra.mxu0 %v4170
        %4417 = vmatprep.subr.bf16.mxu0 0
        %4418 = vmatpush2.bf16.xpose.msra.mxu0 %v4169
        %4419 = vmatprep.subr.bf16.mxu0 0
        %4420 = vmatpush2.bf16.xpose.msra.mxu0 %v4168
        %4421 = vmatprep.subr.bf16.mxu0 0
        %4422 = vmatpush2.bf16.xpose.msra.mxu0 %v4167
        %4423 = vmatprep.subr.bf16.mxu0 0
        %4424 = vmatpush2.bf16.xpose.msra.mxu0 %v4166
        %4425 = vmatprep.subr.bf16.mxu0 0
        %4426 = vmatpush2.bf16.xpose.msra.mxu0 %v4165
        %4427 = vmatprep.subr.bf16.mxu0 0
        %4428 = vmatpush2.bf16.xpose.msra.mxu0 %v4164
        %4429 = vmatprep.mubr.bf16.mxu0 0
        %4430 = vmatmul.mubr.bf16.gmra.mxu0 %v3852
        %v4431 = vpop.f32.mrf.mxu0
        %v4432 = vadd.f32 0.0, %v4431
        %v4433 = vpop.f32.mrf.mxu0
        %v4434 = vadd.f32 0.0, %v4433
        %v4435 = vpop.f32.mrf.mxu0
        %v4436 = vadd.f32 0.0, %v4435
        %v4437 = vpop.f32.mrf.mxu0
        %v4438 = vadd.f32 0.0, %v4437
        %4439 = vmatprep.mubr.bf16.mxu0 0
        %4440 = vmatmul.mubr.bf16.gmra.mxu0 %v3854
        %v4441 = vpop.f32.mrf.mxu0
        %v4442 = vadd.f32 0.0, %v4441
        %v4443 = vpop.f32.mrf.mxu0
        %v4444 = vadd.f32 0.0, %v4443
        %v4445 = vpop.f32.mrf.mxu0
        %v4446 = vadd.f32 0.0, %v4445
        %v4447 = vpop.f32.mrf.mxu0
        %v4448 = vadd.f32 0.0, %v4447
        %4449 = vmatprep.mubr.bf16.mxu0 0
        %4450 = vmatmul.mubr.bf16.gmra.mxu0 %v3856
        %v4451 = vpop.f32.mrf.mxu0
        %v4452 = vadd.f32 0.0, %v4451
        %v4453 = vpop.f32.mrf.mxu0
        %v4454 = vadd.f32 0.0, %v4453
        %v4455 = vpop.f32.mrf.mxu0
        %v4456 = vadd.f32 0.0, %v4455
        %v4457 = vpop.f32.mrf.mxu0
        %v4458 = vadd.f32 0.0, %v4457
        %4459 = vmatprep.mubr.bf16.mxu0 0
        %4460 = vmatmul.mubr.bf16.gmra.mxu0 %v3858
        %v4461 = vpop.f32.mrf.mxu0
        %v4462 = vadd.f32 0.0, %v4461
        %v4463 = vpop.f32.mrf.mxu0
        %v4464 = vadd.f32 0.0, %v4463
        %v4465 = vpop.f32.mrf.mxu0
        %v4466 = vadd.f32 0.0, %v4465
        %v4467 = vpop.f32.mrf.mxu0
        %v4468 = vadd.f32 0.0, %v4467
        %4469 = vmatprep.mubr.bf16.mxu0 0
        %4470 = vmatmul.mubr.bf16.gmra.mxu0 %v3860
        %v4471 = vpop.f32.mrf.mxu0
        %v4472 = vadd.f32 0.0, %v4471
        %v4473 = vpop.f32.mrf.mxu0
        %v4474 = vadd.f32 0.0, %v4473
        %v4475 = vpop.f32.mrf.mxu0
        %v4476 = vadd.f32 0.0, %v4475
        %v4477 = vpop.f32.mrf.mxu0
        %v4478 = vadd.f32 0.0, %v4477
        %4479 = vmatprep.mubr.bf16.mxu0 0
        %4480 = vmatmul.mubr.bf16.gmra.mxu0 %v3862
        %v4481 = vpop.f32.mrf.mxu0
        %v4482 = vadd.f32 0.0, %v4481
        %v4483 = vpop.f32.mrf.mxu0
        %v4484 = vadd.f32 0.0, %v4483
        %v4485 = vpop.f32.mrf.mxu0
        %v4486 = vadd.f32 0.0, %v4485
        %v4487 = vpop.f32.mrf.mxu0
        %v4488 = vadd.f32 0.0, %v4487
        %4489 = vmatprep.mubr.bf16.mxu0 0
        %4490 = vmatmul.mubr.bf16.gmra.mxu0 %v3864
        %v4491 = vpop.f32.mrf.mxu0
        %v4492 = vadd.f32 0.0, %v4491
        %v4493 = vpop.f32.mrf.mxu0
        %v4494 = vadd.f32 0.0, %v4493
        %v4495 = vpop.f32.mrf.mxu0
        %v4496 = vadd.f32 0.0, %v4495
        %v4497 = vpop.f32.mrf.mxu0
        %v4498 = vadd.f32 0.0, %v4497
        %4499 = vmatprep.mubr.bf16.mxu0 0
        %4500 = vmatmul.mubr.bf16.gmra.mxu0 %v3866
        %v4501 = vpop.f32.mrf.mxu0
        %v4502 = vadd.f32 0.0, %v4501
        %v4503 = vpop.f32.mrf.mxu0
        %v4504 = vadd.f32 0.0, %v4503
        %v4505 = vpop.f32.mrf.mxu0
        %v4506 = vadd.f32 0.0, %v4505
        %v4507 = vpop.f32.mrf.mxu0
        %v4508 = vadd.f32 0.0, %v4507
        %4509 = vmatprep.mubr.bf16.mxu0 0
        %4510 = vmatmul.mubr.bf16.gmra.mxu0 %v3868
        %v4511 = vpop.f32.mrf.mxu0
        %v4512 = vadd.f32 0.0, %v4511
        %v4513 = vpop.f32.mrf.mxu0
        %v4514 = vadd.f32 0.0, %v4513
        %v4515 = vpop.f32.mrf.mxu0
        %v4516 = vadd.f32 0.0, %v4515
        %v4517 = vpop.f32.mrf.mxu0
        %v4518 = vadd.f32 0.0, %v4517
        %4519 = vmatprep.mubr.bf16.mxu0 0
        %4520 = vmatmul.mubr.bf16.gmra.mxu0 %v3870
        %v4521 = vpop.f32.mrf.mxu0
        %v4522 = vadd.f32 0.0, %v4521
        %v4523 = vpop.f32.mrf.mxu0
        %v4524 = vadd.f32 0.0, %v4523
        %v4525 = vpop.f32.mrf.mxu0
        %v4526 = vadd.f32 0.0, %v4525
        %v4527 = vpop.f32.mrf.mxu0
        %v4528 = vadd.f32 0.0, %v4527
        %4529 = vmatprep.mubr.bf16.mxu0 0
        %4530 = vmatmul.mubr.bf16.gmra.mxu0 %v3872
        %v4531 = vpop.f32.mrf.mxu0
        %v4532 = vadd.f32 0.0, %v4531
        %v4533 = vpop.f32.mrf.mxu0
        %v4534 = vadd.f32 0.0, %v4533
        %v4535 = vpop.f32.mrf.mxu0
        %v4536 = vadd.f32 0.0, %v4535
        %v4537 = vpop.f32.mrf.mxu0
        %v4538 = vadd.f32 0.0, %v4537
        %4539 = vmatprep.mubr.bf16.mxu0 0
        %4540 = vmatmul.mubr.bf16.gmra.mxu0 %v3874
        %v4541 = vpop.f32.mrf.mxu0
        %v4542 = vadd.f32 0.0, %v4541
        %v4543 = vpop.f32.mrf.mxu0
        %v4544 = vadd.f32 0.0, %v4543
        %v4545 = vpop.f32.mrf.mxu0
        %v4546 = vadd.f32 0.0, %v4545
        %v4547 = vpop.f32.mrf.mxu0
        %v4548 = vadd.f32 0.0, %v4547
        %4549 = vmatprep.mubr.bf16.mxu0 0
        %4550 = vmatmul.mubr.bf16.gmra.mxu0 %v3876
        %v4551 = vpop.f32.mrf.mxu0
        %v4552 = vadd.f32 0.0, %v4551
        %v4553 = vpop.f32.mrf.mxu0
        %v4554 = vadd.f32 0.0, %v4553
        %v4555 = vpop.f32.mrf.mxu0
        %v4556 = vadd.f32 0.0, %v4555
        %v4557 = vpop.f32.mrf.mxu0
        %v4558 = vadd.f32 0.0, %v4557
        %4559 = vmatprep.mubr.bf16.mxu0 0
        %4560 = vmatmul.mubr.bf16.gmra.mxu0 %v3878
        %v4561 = vpop.f32.mrf.mxu0
        %v4562 = vadd.f32 0.0, %v4561
        %v4563 = vpop.f32.mrf.mxu0
        %v4564 = vadd.f32 0.0, %v4563
        %v4565 = vpop.f32.mrf.mxu0
        %v4566 = vadd.f32 0.0, %v4565
        %v4567 = vpop.f32.mrf.mxu0
        %v4568 = vadd.f32 0.0, %v4567
        %4569 = vmatprep.mubr.bf16.mxu0 0
        %4570 = vmatmul.mubr.bf16.gmra.mxu0 %v3880
        %v4571 = vpop.f32.mrf.mxu0
        %v4572 = vadd.f32 0.0, %v4571
        %v4573 = vpop.f32.mrf.mxu0
        %v4574 = vadd.f32 0.0, %v4573
        %v4575 = vpop.f32.mrf.mxu0
        %v4576 = vadd.f32 0.0, %v4575
        %v4577 = vpop.f32.mrf.mxu0
        %v4578 = vadd.f32 0.0, %v4577
        %4579 = vmatprep.mubr.bf16.mxu0 0
        %4580 = vmatmul.mubr.bf16.gmra.mxu0 %v3882
        %v4581 = vpop.f32.mrf.mxu0
        %v4582 = vadd.f32 0.0, %v4581
        %v4583 = vpop.f32.mrf.mxu0
        %v4584 = vadd.f32 0.0, %v4583
        %v4585 = vpop.f32.mrf.mxu0
        %v4586 = vadd.f32 0.0, %v4585
        %v4587 = vpop.f32.mrf.mxu0
        %v4588 = vadd.f32 0.0, %v4587
        %4589 = vdwg.mxu0
        %v4654 = vunpack.c.l.b16 %v3948
        %v4655 = vunpack.c.l.b16 %v3949
        %v4656 = vunpack.c.l.b16 %v3950
        %v4657 = vunpack.c.l.b16 %v3951
        %v4658 = vunpack.c.l.b16 %v3952
        %v4659 = vunpack.c.l.b16 %v3953
        %v4660 = vunpack.c.l.b16 %v3954
        %v4661 = vunpack.c.l.b16 %v3955
        %v4662 = vunpack.c.l.b16 %v3956
        %v4663 = vunpack.c.l.b16 %v3957
        %v4664 = vunpack.c.l.b16 %v3958
        %v4665 = vunpack.c.l.b16 %v3959
        %v4666 = vunpack.c.l.b16 %v3960
        %v4667 = vunpack.c.l.b16 %v3961
        %v4668 = vunpack.c.l.b16 %v3962
        %v4669 = vunpack.c.l.b16 %v3963
        %v4670 = vunpack.c.l.b16 %v3964
        %v4671 = vunpack.c.l.b16 %v3965
        %v4672 = vunpack.c.l.b16 %v3966
        %v4673 = vunpack.c.l.b16 %v3967
        %v4674 = vunpack.c.l.b16 %v3968
        %v4675 = vunpack.c.l.b16 %v3969
        %v4676 = vunpack.c.l.b16 %v3970
        %v4677 = vunpack.c.l.b16 %v3971
        %v4678 = vunpack.c.l.b16 %v3972
        %v4679 = vunpack.c.l.b16 %v3973
        %v4680 = vunpack.c.l.b16 %v3974
        %v4681 = vunpack.c.l.b16 %v3975
        %v4682 = vunpack.c.l.b16 %v3976
        %v4683 = vunpack.c.l.b16 %v3977
        %v4684 = vunpack.c.l.b16 %v3978
        %v4685 = vunpack.c.l.b16 %v3979
        %v4686 = vunpack.c.l.b16 %v3980
        %v4687 = vunpack.c.l.b16 %v3981
        %v4688 = vunpack.c.l.b16 %v3982
        %v4689 = vunpack.c.l.b16 %v3983
        %v4690 = vunpack.c.l.b16 %v3984
        %v4691 = vunpack.c.l.b16 %v3985
        %v4692 = vunpack.c.l.b16 %v3986
        %v4693 = vunpack.c.l.b16 %v3987
        %v4694 = vunpack.c.l.b16 %v3988
        %v4695 = vunpack.c.l.b16 %v3989
        %v4696 = vunpack.c.l.b16 %v3990
        %v4697 = vunpack.c.l.b16 %v3991
        %v4698 = vunpack.c.l.b16 %v3992
        %v4699 = vunpack.c.l.b16 %v3993
        %v4700 = vunpack.c.l.b16 %v3994
        %v4701 = vunpack.c.l.b16 %v3995
        %v4702 = vunpack.c.l.b16 %v3996
        %v4703 = vunpack.c.l.b16 %v3997
        %v4704 = vunpack.c.l.b16 %v3998
        %v4705 = vunpack.c.l.b16 %v3999
        %v4706 = vunpack.c.l.b16 %v4000
        %v4707 = vunpack.c.l.b16 %v4001
        %v4708 = vunpack.c.l.b16 %v4002
        %v4709 = vunpack.c.l.b16 %v4003
        %v4710 = vunpack.c.l.b16 %v4004
        %v4711 = vunpack.c.l.b16 %v4005
        %v4712 = vunpack.c.l.b16 %v4006
        %v4713 = vunpack.c.l.b16 %v4007
        %v4714 = vunpack.c.l.b16 %v4008
        %v4715 = vunpack.c.l.b16 %v4009
        %v4716 = vunpack.c.l.b16 %v4010
        %v4717 = vunpack.c.l.b16 %v4011
        %v4718 = vpack.c.b16 %v4655, %v4654
        %v4719 = vpack.c.b16 %v4657, %v4656
        %v4720 = vpack.c.b16 %v4659, %v4658
        %v4721 = vpack.c.b16 %v4661, %v4660
        %v4722 = vpack.c.b16 %v4663, %v4662
        %v4723 = vpack.c.b16 %v4665, %v4664
        %v4724 = vpack.c.b16 %v4667, %v4666
        %v4725 = vpack.c.b16 %v4669, %v4668
        %v4726 = vpack.c.b16 %v4671, %v4670
        %v4727 = vpack.c.b16 %v4673, %v4672
        %v4728 = vpack.c.b16 %v4675, %v4674
        %v4729 = vpack.c.b16 %v4677, %v4676
        %v4730 = vpack.c.b16 %v4679, %v4678
        %v4731 = vpack.c.b16 %v4681, %v4680
        %v4732 = vpack.c.b16 %v4683, %v4682
        %v4733 = vpack.c.b16 %v4685, %v4684
        %v4734 = vpack.c.b16 %v4687, %v4686
        %v4735 = vpack.c.b16 %v4689, %v4688
        %v4736 = vpack.c.b16 %v4691, %v4690
        %v4737 = vpack.c.b16 %v4693, %v4692
        %v4738 = vpack.c.b16 %v4695, %v4694
        %v4739 = vpack.c.b16 %v4697, %v4696
        %v4740 = vpack.c.b16 %v4699, %v4698
        %v4741 = vpack.c.b16 %v4701, %v4700
        %v4742 = vpack.c.b16 %v4703, %v4702
        %v4743 = vpack.c.b16 %v4705, %v4704
        %v4744 = vpack.c.b16 %v4707, %v4706
        %v4745 = vpack.c.b16 %v4709, %v4708
        %v4746 = vpack.c.b16 %v4711, %v4710
        %v4747 = vpack.c.b16 %v4713, %v4712
        %v4748 = vpack.c.b16 %v4715, %v4714
        %v4749 = vpack.c.b16 %v4717, %v4716
        %4782 = vmatprep.subr.bf16.mxu0 0
        %4783 = vmatpush1.bf16.xpose.msra.mxu0 %v4725
        %4784 = vmatprep.subr.bf16.mxu0 0
        %4785 = vmatpush1.bf16.xpose.msra.mxu0 %v4724
        %4786 = vmatprep.subr.bf16.mxu0 0
        %4787 = vmatpush1.bf16.xpose.msra.mxu0 %v4723
        %4788 = vmatprep.subr.bf16.mxu0 0
        %4789 = vmatpush1.bf16.xpose.msra.mxu0 %v4722
        %4790 = vmatprep.subr.bf16.mxu0 0
        %4791 = vmatpush1.bf16.xpose.msra.mxu0 %v4721
        %4792 = vmatprep.subr.bf16.mxu0 0
        %4793 = vmatpush1.bf16.xpose.msra.mxu0 %v4720
        %4794 = vmatprep.subr.bf16.mxu0 0
        %4795 = vmatpush1.bf16.xpose.msra.mxu0 %v4719
        %4796 = vmatprep.subr.bf16.mxu0 0
        %4797 = vmatpush1.bf16.xpose.msra.mxu0 %v4718
        %4798 = vmatprep.subr.bf16.mxu0 0
        %4799 = vmatpush2.bf16.xpose.msra.mxu0 %v4733
        %4800 = vmatprep.subr.bf16.mxu0 0
        %4801 = vmatpush2.bf16.xpose.msra.mxu0 %v4732
        %4802 = vmatprep.subr.bf16.mxu0 0
        %4803 = vmatpush2.bf16.xpose.msra.mxu0 %v4731
        %4804 = vmatprep.subr.bf16.mxu0 0
        %4805 = vmatpush2.bf16.xpose.msra.mxu0 %v4730
        %4806 = vmatprep.subr.bf16.mxu0 0
        %4807 = vmatpush2.bf16.xpose.msra.mxu0 %v4729
        %4808 = vmatprep.subr.bf16.mxu0 0
        %4809 = vmatpush2.bf16.xpose.msra.mxu0 %v4728
        %4810 = vmatprep.subr.bf16.mxu0 0
        %4811 = vmatpush2.bf16.xpose.msra.mxu0 %v4727
        %4812 = vmatprep.subr.bf16.mxu0 0
        %4813 = vmatpush2.bf16.xpose.msra.mxu0 %v4726
        %4814 = vmatprep.mubr.bf16.mxu0 0
        %4815 = vmatmul.mubr.bf16.gmra.mxu0 %v3853
        %v4816 = vpop.f32.mrf.mxu0
        %v4817 = vadd.f32 0.0, %v4816
        %v4818 = vpop.f32.mrf.mxu0
        %v4819 = vadd.f32 0.0, %v4818
        %v4820 = vpop.f32.mrf.mxu0
        %v4821 = vadd.f32 0.0, %v4820
        %v4822 = vpop.f32.mrf.mxu0
        %v4823 = vadd.f32 0.0, %v4822
        %4824 = vmatprep.mubr.bf16.mxu0 0
        %4825 = vmatmul.mubr.bf16.gmra.mxu0 %v3855
        %v4826 = vpop.f32.mrf.mxu0
        %v4827 = vadd.f32 0.0, %v4826
        %v4828 = vpop.f32.mrf.mxu0
        %v4829 = vadd.f32 0.0, %v4828
        %v4830 = vpop.f32.mrf.mxu0
        %v4831 = vadd.f32 0.0, %v4830
        %v4832 = vpop.f32.mrf.mxu0
        %v4833 = vadd.f32 0.0, %v4832
        %4834 = vmatprep.mubr.bf16.mxu0 0
        %4835 = vmatmul.mubr.bf16.gmra.mxu0 %v3857
        %v4836 = vpop.f32.mrf.mxu0
        %v4837 = vadd.f32 0.0, %v4836
        %v4838 = vpop.f32.mrf.mxu0
        %v4839 = vadd.f32 0.0, %v4838
        %v4840 = vpop.f32.mrf.mxu0
        %v4841 = vadd.f32 0.0, %v4840
        %v4842 = vpop.f32.mrf.mxu0
        %v4843 = vadd.f32 0.0, %v4842
        %4844 = vmatprep.mubr.bf16.mxu0 0
        %4845 = vmatmul.mubr.bf16.gmra.mxu0 %v3859
        %v4846 = vpop.f32.mrf.mxu0
        %v4847 = vadd.f32 0.0, %v4846
        %v4848 = vpop.f32.mrf.mxu0
        %v4849 = vadd.f32 0.0, %v4848
        %v4850 = vpop.f32.mrf.mxu0
        %v4851 = vadd.f32 0.0, %v4850
        %v4852 = vpop.f32.mrf.mxu0
        %v4853 = vadd.f32 0.0, %v4852
        %4854 = vmatprep.mubr.bf16.mxu0 0
        %4855 = vmatmul.mubr.bf16.gmra.mxu0 %v3861
        %v4856 = vpop.f32.mrf.mxu0
        %v4857 = vadd.f32 0.0, %v4856
        %v4858 = vpop.f32.mrf.mxu0
        %v4859 = vadd.f32 0.0, %v4858
        %v4860 = vpop.f32.mrf.mxu0
        %v4861 = vadd.f32 0.0, %v4860
        %v4862 = vpop.f32.mrf.mxu0
        %v4863 = vadd.f32 0.0, %v4862
        %4864 = vmatprep.mubr.bf16.mxu0 0
        %4865 = vmatmul.mubr.bf16.gmra.mxu0 %v3863
        %v4866 = vpop.f32.mrf.mxu0
        %v4867 = vadd.f32 0.0, %v4866
        %v4868 = vpop.f32.mrf.mxu0
        %v4869 = vadd.f32 0.0, %v4868
        %v4870 = vpop.f32.mrf.mxu0
        %v4871 = vadd.f32 0.0, %v4870
        %v4872 = vpop.f32.mrf.mxu0
        %v4873 = vadd.f32 0.0, %v4872
        %4874 = vmatprep.mubr.bf16.mxu0 0
        %4875 = vmatmul.mubr.bf16.gmra.mxu0 %v3865
        %v4876 = vpop.f32.mrf.mxu0
        %v4877 = vadd.f32 0.0, %v4876
        %v4878 = vpop.f32.mrf.mxu0
        %v4879 = vadd.f32 0.0, %v4878
        %v4880 = vpop.f32.mrf.mxu0
        %v4881 = vadd.f32 0.0, %v4880
        %v4882 = vpop.f32.mrf.mxu0
        %v4883 = vadd.f32 0.0, %v4882
        %4884 = vmatprep.mubr.bf16.mxu0 0
        %4885 = vmatmul.mubr.bf16.gmra.mxu0 %v3867
        %v4886 = vpop.f32.mrf.mxu0
        %v4887 = vadd.f32 0.0, %v4886
        %v4888 = vpop.f32.mrf.mxu0
        %v4889 = vadd.f32 0.0, %v4888
        %v4890 = vpop.f32.mrf.mxu0
        %v4891 = vadd.f32 0.0, %v4890
        %v4892 = vpop.f32.mrf.mxu0
        %v4893 = vadd.f32 0.0, %v4892
        %4894 = vmatprep.mubr.bf16.mxu0 0
        %4895 = vmatmul.mubr.bf16.gmra.mxu0 %v3869
        %v4896 = vpop.f32.mrf.mxu0
        %v4897 = vadd.f32 0.0, %v4896
        %v4898 = vpop.f32.mrf.mxu0
        %v4899 = vadd.f32 0.0, %v4898
        %v4900 = vpop.f32.mrf.mxu0
        %v4901 = vadd.f32 0.0, %v4900
        %v4902 = vpop.f32.mrf.mxu0
        %v4903 = vadd.f32 0.0, %v4902
        %4904 = vmatprep.mubr.bf16.mxu0 0
        %4905 = vmatmul.mubr.bf16.gmra.mxu0 %v3871
        %v4906 = vpop.f32.mrf.mxu0
        %v4907 = vadd.f32 0.0, %v4906
        %v4908 = vpop.f32.mrf.mxu0
        %v4909 = vadd.f32 0.0, %v4908
        %v4910 = vpop.f32.mrf.mxu0
        %v4911 = vadd.f32 0.0, %v4910
        %v4912 = vpop.f32.mrf.mxu0
        %v4913 = vadd.f32 0.0, %v4912
        %4914 = vmatprep.mubr.bf16.mxu0 0
        %4915 = vmatmul.mubr.bf16.gmra.mxu0 %v3873
        %v4916 = vpop.f32.mrf.mxu0
        %v4917 = vadd.f32 0.0, %v4916
        %v4918 = vpop.f32.mrf.mxu0
        %v4919 = vadd.f32 0.0, %v4918
        %v4920 = vpop.f32.mrf.mxu0
        %v4921 = vadd.f32 0.0, %v4920
        %v4922 = vpop.f32.mrf.mxu0
        %v4923 = vadd.f32 0.0, %v4922
        %4924 = vmatprep.mubr.bf16.mxu0 0
        %4925 = vmatmul.mubr.bf16.gmra.mxu0 %v3875
        %v4926 = vpop.f32.mrf.mxu0
        %v4927 = vadd.f32 0.0, %v4926
        %v4928 = vpop.f32.mrf.mxu0
        %v4929 = vadd.f32 0.0, %v4928
        %v4930 = vpop.f32.mrf.mxu0
        %v4931 = vadd.f32 0.0, %v4930
        %v4932 = vpop.f32.mrf.mxu0
        %v4933 = vadd.f32 0.0, %v4932
        %4934 = vmatprep.mubr.bf16.mxu0 0
        %4935 = vmatmul.mubr.bf16.gmra.mxu0 %v3877
        %v4936 = vpop.f32.mrf.mxu0
        %v4937 = vadd.f32 0.0, %v4936
        %v4938 = vpop.f32.mrf.mxu0
        %v4939 = vadd.f32 0.0, %v4938
        %v4940 = vpop.f32.mrf.mxu0
        %v4941 = vadd.f32 0.0, %v4940
        %v4942 = vpop.f32.mrf.mxu0
        %v4943 = vadd.f32 0.0, %v4942
        %4944 = vmatprep.mubr.bf16.mxu0 0
        %4945 = vmatmul.mubr.bf16.gmra.mxu0 %v3879
        %v4946 = vpop.f32.mrf.mxu0
        %v4947 = vadd.f32 0.0, %v4946
        %v4948 = vpop.f32.mrf.mxu0
        %v4949 = vadd.f32 0.0, %v4948
        %v4950 = vpop.f32.mrf.mxu0
        %v4951 = vadd.f32 0.0, %v4950
        %v4952 = vpop.f32.mrf.mxu0
        %v4953 = vadd.f32 0.0, %v4952
        %4954 = vmatprep.mubr.bf16.mxu0 0
        %4955 = vmatmul.mubr.bf16.gmra.mxu0 %v3881
        %v4956 = vpop.f32.mrf.mxu0
        %v4957 = vadd.f32 0.0, %v4956
        %v4958 = vpop.f32.mrf.mxu0
        %v4959 = vadd.f32 0.0, %v4958
        %v4960 = vpop.f32.mrf.mxu0
        %v4961 = vadd.f32 0.0, %v4960
        %v4962 = vpop.f32.mrf.mxu0
        %v4963 = vadd.f32 0.0, %v4962
        %4964 = vmatprep.mubr.bf16.mxu0 0
        %4965 = vmatmul.mubr.bf16.gmra.mxu0 %v3883
        %v4966 = vpop.f32.mrf.mxu0
        %v4967 = vadd.f32 0.0, %v4966
        %v4968 = vpop.f32.mrf.mxu0
        %v4969 = vadd.f32 0.0, %v4968
        %v4970 = vpop.f32.mrf.mxu0
        %v4971 = vadd.f32 0.0, %v4970
        %v4972 = vpop.f32.mrf.mxu0
        %v4973 = vadd.f32 0.0, %v4972
        %4974 = vdwg.mxu0
        %4975 = vmatprep.subr.bf16.mxu0 0
        %4976 = vmatpush1.bf16.xpose.msra.mxu0 %v4741
        %4977 = vmatprep.subr.bf16.mxu0 0
        %4978 = vmatpush1.bf16.xpose.msra.mxu0 %v4740
        %4979 = vmatprep.subr.bf16.mxu0 0
        %4980 = vmatpush1.bf16.xpose.msra.mxu0 %v4739
        %4981 = vmatprep.subr.bf16.mxu0 0
        %4982 = vmatpush1.bf16.xpose.msra.mxu0 %v4738
        %4983 = vmatprep.subr.bf16.mxu0 0
        %4984 = vmatpush1.bf16.xpose.msra.mxu0 %v4737
        %4985 = vmatprep.subr.bf16.mxu0 0
        %4986 = vmatpush1.bf16.xpose.msra.mxu0 %v4736
        %4987 = vmatprep.subr.bf16.mxu0 0
        %4988 = vmatpush1.bf16.xpose.msra.mxu0 %v4735
        %4989 = vmatprep.subr.bf16.mxu0 0
        %4990 = vmatpush1.bf16.xpose.msra.mxu0 %v4734
        %4991 = vmatprep.subr.bf16.mxu0 0
        %4992 = vmatpush2.bf16.xpose.msra.mxu0 %v4749
        %4993 = vmatprep.subr.bf16.mxu0 0
        %4994 = vmatpush2.bf16.xpose.msra.mxu0 %v4748
        %4995 = vmatprep.subr.bf16.mxu0 0
        %4996 = vmatpush2.bf16.xpose.msra.mxu0 %v4747
        %4997 = vmatprep.subr.bf16.mxu0 0
        %4998 = vmatpush2.bf16.xpose.msra.mxu0 %v4746
        %4999 = vmatprep.subr.bf16.mxu0 0
        %5000 = vmatpush2.bf16.xpose.msra.mxu0 %v4745
        %5001 = vmatprep.subr.bf16.mxu0 0
        %5002 = vmatpush2.bf16.xpose.msra.mxu0 %v4744
        %5003 = vmatprep.subr.bf16.mxu0 0
        %5004 = vmatpush2.bf16.xpose.msra.mxu0 %v4743
        %5005 = vmatprep.subr.bf16.mxu0 0
        %5006 = vmatpush2.bf16.xpose.msra.mxu0 %v4742
        %5007 = vmatprep.mubr.bf16.mxu0 0
        %5008 = vmatmul.mubr.bf16.gmra.mxu0 %v3853
        %v5009 = vpop.f32.mrf.mxu0
        %v5010 = vadd.f32 0.0, %v5009
        %v5011 = vpop.f32.mrf.mxu0
        %v5012 = vadd.f32 0.0, %v5011
        %v5013 = vpop.f32.mrf.mxu0
        %v5014 = vadd.f32 0.0, %v5013
        %v5015 = vpop.f32.mrf.mxu0
        %v5016 = vadd.f32 0.0, %v5015
        %5017 = vmatprep.mubr.bf16.mxu0 0
        %5018 = vmatmul.mubr.bf16.gmra.mxu0 %v3855
        %v5019 = vpop.f32.mrf.mxu0
        %v5020 = vadd.f32 0.0, %v5019
        %v5021 = vpop.f32.mrf.mxu0
        %v5022 = vadd.f32 0.0, %v5021
        %v5023 = vpop.f32.mrf.mxu0
        %v5024 = vadd.f32 0.0, %v5023
        %v5025 = vpop.f32.mrf.mxu0
        %v5026 = vadd.f32 0.0, %v5025
        %5027 = vmatprep.mubr.bf16.mxu0 0
        %5028 = vmatmul.mubr.bf16.gmra.mxu0 %v3857
        %v5029 = vpop.f32.mrf.mxu0
        %v5030 = vadd.f32 0.0, %v5029
        %v5031 = vpop.f32.mrf.mxu0
        %v5032 = vadd.f32 0.0, %v5031
        %v5033 = vpop.f32.mrf.mxu0
        %v5034 = vadd.f32 0.0, %v5033
        %v5035 = vpop.f32.mrf.mxu0
        %v5036 = vadd.f32 0.0, %v5035
        %5037 = vmatprep.mubr.bf16.mxu0 0
        %5038 = vmatmul.mubr.bf16.gmra.mxu0 %v3859
        %v5039 = vpop.f32.mrf.mxu0
        %v5040 = vadd.f32 0.0, %v5039
        %v5041 = vpop.f32.mrf.mxu0
        %v5042 = vadd.f32 0.0, %v5041
        %v5043 = vpop.f32.mrf.mxu0
        %v5044 = vadd.f32 0.0, %v5043
        %v5045 = vpop.f32.mrf.mxu0
        %v5046 = vadd.f32 0.0, %v5045
        %5047 = vmatprep.mubr.bf16.mxu0 0
        %5048 = vmatmul.mubr.bf16.gmra.mxu0 %v3861
        %v5049 = vpop.f32.mrf.mxu0
        %v5050 = vadd.f32 0.0, %v5049
        %v5051 = vpop.f32.mrf.mxu0
        %v5052 = vadd.f32 0.0, %v5051
        %v5053 = vpop.f32.mrf.mxu0
        %v5054 = vadd.f32 0.0, %v5053
        %v5055 = vpop.f32.mrf.mxu0
        %v5056 = vadd.f32 0.0, %v5055
        %5057 = vmatprep.mubr.bf16.mxu0 0
        %5058 = vmatmul.mubr.bf16.gmra.mxu0 %v3863
        %v5059 = vpop.f32.mrf.mxu0
        %v5060 = vadd.f32 0.0, %v5059
        %v5061 = vpop.f32.mrf.mxu0
        %v5062 = vadd.f32 0.0, %v5061
        %v5063 = vpop.f32.mrf.mxu0
        %v5064 = vadd.f32 0.0, %v5063
        %v5065 = vpop.f32.mrf.mxu0
        %v5066 = vadd.f32 0.0, %v5065
        %5067 = vmatprep.mubr.bf16.mxu0 0
        %5068 = vmatmul.mubr.bf16.gmra.mxu0 %v3865
        %v5069 = vpop.f32.mrf.mxu0
        %v5070 = vadd.f32 0.0, %v5069
        %v5071 = vpop.f32.mrf.mxu0
        %v5072 = vadd.f32 0.0, %v5071
        %v5073 = vpop.f32.mrf.mxu0
        %v5074 = vadd.f32 0.0, %v5073
        %v5075 = vpop.f32.mrf.mxu0
        %v5076 = vadd.f32 0.0, %v5075
        %5077 = vmatprep.mubr.bf16.mxu0 0
        %5078 = vmatmul.mubr.bf16.gmra.mxu0 %v3867
        %v5079 = vpop.f32.mrf.mxu0
        %v5080 = vadd.f32 0.0, %v5079
        %v5081 = vpop.f32.mrf.mxu0
        %v5082 = vadd.f32 0.0, %v5081
        %v5083 = vpop.f32.mrf.mxu0
        %v5084 = vadd.f32 0.0, %v5083
        %v5085 = vpop.f32.mrf.mxu0
        %v5086 = vadd.f32 0.0, %v5085
        %5087 = vmatprep.mubr.bf16.mxu0 0
        %5088 = vmatmul.mubr.bf16.gmra.mxu0 %v3869
        %v5089 = vpop.f32.mrf.mxu0
        %v5090 = vadd.f32 0.0, %v5089
        %v5091 = vpop.f32.mrf.mxu0
        %v5092 = vadd.f32 0.0, %v5091
        %v5093 = vpop.f32.mrf.mxu0
        %v5094 = vadd.f32 0.0, %v5093
        %v5095 = vpop.f32.mrf.mxu0
        %v5096 = vadd.f32 0.0, %v5095
        %5097 = vmatprep.mubr.bf16.mxu0 0
        %5098 = vmatmul.mubr.bf16.gmra.mxu0 %v3871
        %v5099 = vpop.f32.mrf.mxu0
        %v5100 = vadd.f32 0.0, %v5099
        %v5101 = vpop.f32.mrf.mxu0
        %v5102 = vadd.f32 0.0, %v5101
        %v5103 = vpop.f32.mrf.mxu0
        %v5104 = vadd.f32 0.0, %v5103
        %v5105 = vpop.f32.mrf.mxu0
        %v5106 = vadd.f32 0.0, %v5105
        %5107 = vmatprep.mubr.bf16.mxu0 0
        %5108 = vmatmul.mubr.bf16.gmra.mxu0 %v3873
        %v5109 = vpop.f32.mrf.mxu0
        %v5110 = vadd.f32 0.0, %v5109
        %v5111 = vpop.f32.mrf.mxu0
        %v5112 = vadd.f32 0.0, %v5111
        %v5113 = vpop.f32.mrf.mxu0
        %v5114 = vadd.f32 0.0, %v5113
        %v5115 = vpop.f32.mrf.mxu0
        %v5116 = vadd.f32 0.0, %v5115
        %5117 = vmatprep.mubr.bf16.mxu0 0
        %5118 = vmatmul.mubr.bf16.gmra.mxu0 %v3875
        %v5119 = vpop.f32.mrf.mxu0
        %v5120 = vadd.f32 0.0, %v5119
        %v5121 = vpop.f32.mrf.mxu0
        %v5122 = vadd.f32 0.0, %v5121
        %v5123 = vpop.f32.mrf.mxu0
        %v5124 = vadd.f32 0.0, %v5123
        %v5125 = vpop.f32.mrf.mxu0
        %v5126 = vadd.f32 0.0, %v5125
        %5127 = vmatprep.mubr.bf16.mxu0 0
        %5128 = vmatmul.mubr.bf16.gmra.mxu0 %v3877
        %v5129 = vpop.f32.mrf.mxu0
        %v5130 = vadd.f32 0.0, %v5129
        %v5131 = vpop.f32.mrf.mxu0
        %v5132 = vadd.f32 0.0, %v5131
        %v5133 = vpop.f32.mrf.mxu0
        %v5134 = vadd.f32 0.0, %v5133
        %v5135 = vpop.f32.mrf.mxu0
        %v5136 = vadd.f32 0.0, %v5135
        %5137 = vmatprep.mubr.bf16.mxu0 0
        %5138 = vmatmul.mubr.bf16.gmra.mxu0 %v3879
        %v5139 = vpop.f32.mrf.mxu0
        %v5140 = vadd.f32 0.0, %v5139
        %v5141 = vpop.f32.mrf.mxu0
        %v5142 = vadd.f32 0.0, %v5141
        %v5143 = vpop.f32.mrf.mxu0
        %v5144 = vadd.f32 0.0, %v5143
        %v5145 = vpop.f32.mrf.mxu0
        %v5146 = vadd.f32 0.0, %v5145
        %5147 = vmatprep.mubr.bf16.mxu0 0
        %5148 = vmatmul.mubr.bf16.gmra.mxu0 %v3881
        %v5149 = vpop.f32.mrf.mxu0
        %v5150 = vadd.f32 0.0, %v5149
        %v5151 = vpop.f32.mrf.mxu0
        %v5152 = vadd.f32 0.0, %v5151
        %v5153 = vpop.f32.mrf.mxu0
        %v5154 = vadd.f32 0.0, %v5153
        %v5155 = vpop.f32.mrf.mxu0
        %v5156 = vadd.f32 0.0, %v5155
        %5157 = vmatprep.mubr.bf16.mxu0 0
        %5158 = vmatmul.mubr.bf16.gmra.mxu0 %v3883
        %v5159 = vpop.f32.mrf.mxu0
        %v5160 = vadd.f32 0.0, %v5159
        %v5161 = vpop.f32.mrf.mxu0
        %v5162 = vadd.f32 0.0, %v5161
        %v5163 = vpop.f32.mrf.mxu0
        %v5164 = vadd.f32 0.0, %v5163
        %v5165 = vpop.f32.mrf.mxu0
        %v5166 = vadd.f32 0.0, %v5165
        %5167 = vdwg.mxu0
        %v5168 = vlaneseq
        %v5169 = vshrl.u32 %v5168, 7
        %v5170 = vadd.s32 %v5169, 8
        %v5171 = vadd.s32 %v5169, 16
        %v5172 = vadd.s32 %v5169, 24
        %v5173 = vadd.s32 %v5169, 32
        %v5174 = vadd.s32 %v5169, 40
        %v5175 = vadd.s32 %v5169, 48
        %v5176 = vadd.s32 %v5169, 56
        %v5177 = vadd.s32 %v5169, 64
        %v5178 = vadd.s32 %v5169, 72
        %v5179 = vadd.s32 %v5169, 80
        %v5180 = vadd.s32 %v5169, 88
        %v5181 = vadd.s32 %v5169, 96
        %v5182 = vadd.s32 %v5169, 104
        %v5183 = vadd.s32 %v5169, 112
        %v5184 = vadd.s32 %v5169, 120
        %v5185 = vadd.s32 %v5169, 128
        %v5186 = vadd.s32 %v5169, 136
        %v5187 = vadd.s32 %v5169, 144
        %v5188 = vadd.s32 %v5169, 152
        %v5189 = vadd.s32 %v5169, 160
        %v5190 = vadd.s32 %v5169, 168
        %v5191 = vadd.s32 %v5169, 176
        %v5192 = vadd.s32 %v5169, 184
        %v5193 = vadd.s32 %v5169, 192
        %v5194 = vadd.s32 %v5169, 200
        %v5195 = vadd.s32 %v5169, 208
        %v5196 = vadd.s32 %v5169, 216
        %v5197 = vadd.s32 %v5169, 224
        %v5198 = vadd.s32 %v5169, 232
        %v5199 = vadd.s32 %v5169, 240
        %v5200 = vadd.s32 %v5169, 248
        %s5201 = smul.u32 %s36, 256
        %v5202 = vstv %s5201
        %v5203 = vadd.s32 %v5169, %v5202
        %v5204 = vadd.s32 %v5170, %v5202
        %v5205 = vadd.s32 %v5171, %v5202
        %v5206 = vadd.s32 %v5172, %v5202
        %v5207 = vadd.s32 %v5173, %v5202
        %v5208 = vadd.s32 %v5174, %v5202
        %v5209 = vadd.s32 %v5175, %v5202
        %v5210 = vadd.s32 %v5176, %v5202
        %v5211 = vadd.s32 %v5177, %v5202
        %v5212 = vadd.s32 %v5178, %v5202
        %v5213 = vadd.s32 %v5179, %v5202
        %v5214 = vadd.s32 %v5180, %v5202
        %v5215 = vadd.s32 %v5181, %v5202
        %v5216 = vadd.s32 %v5182, %v5202
        %v5217 = vadd.s32 %v5183, %v5202
        %v5218 = vadd.s32 %v5184, %v5202
        %v5219 = vadd.s32 %v5185, %v5202
        %v5220 = vadd.s32 %v5186, %v5202
        %v5221 = vadd.s32 %v5187, %v5202
        %v5222 = vadd.s32 %v5188, %v5202
        %v5223 = vadd.s32 %v5189, %v5202
        %v5224 = vadd.s32 %v5190, %v5202
        %v5225 = vadd.s32 %v5191, %v5202
        %v5226 = vadd.s32 %v5192, %v5202
        %v5227 = vadd.s32 %v5193, %v5202
        %v5228 = vadd.s32 %v5194, %v5202
        %v5229 = vadd.s32 %v5195, %v5202
        %v5230 = vadd.s32 %v5196, %v5202
        %v5231 = vadd.s32 %v5197, %v5202
        %v5232 = vadd.s32 %v5198, %v5202
        %v5233 = vadd.s32 %v5199, %v5202
        %v5234 = vadd.s32 %v5200, %v5202
        %v5235 = vlaneseq
        %v5236 = vand.u32 %v5235, 127
        %v5237 = vadd.s32 %v5236, 128
        %v5238 = vadd.s32 %v5236, 256
        %v5239 = vadd.s32 %v5236, 384
        %vm5240 = vcmp.le.s32.totalorder %v5236, %v5203
        %vm5241 = vcmp.le.s32.totalorder %v5237, %v5203
        %vm5242 = vcmp.le.s32.totalorder %v5238, %v5203
        %vm5243 = vcmp.le.s32.totalorder %v5239, %v5203
        %vm5244 = vcmp.le.s32.totalorder %v5236, %v5204
        %vm5245 = vcmp.le.s32.totalorder %v5237, %v5204
        %vm5246 = vcmp.le.s32.totalorder %v5238, %v5204
        %vm5247 = vcmp.le.s32.totalorder %v5239, %v5204
        %vm5248 = vcmp.le.s32.totalorder %v5236, %v5205
        %vm5249 = vcmp.le.s32.totalorder %v5237, %v5205
        %vm5250 = vcmp.le.s32.totalorder %v5238, %v5205
        %vm5251 = vcmp.le.s32.totalorder %v5239, %v5205
        %vm5252 = vcmp.le.s32.totalorder %v5236, %v5206
        %vm5253 = vcmp.le.s32.totalorder %v5237, %v5206
        %vm5254 = vcmp.le.s32.totalorder %v5238, %v5206
        %vm5255 = vcmp.le.s32.totalorder %v5239, %v5206
        %vm5256 = vcmp.le.s32.totalorder %v5236, %v5207
        %vm5257 = vcmp.le.s32.totalorder %v5237, %v5207
        %vm5258 = vcmp.le.s32.totalorder %v5238, %v5207
        %vm5259 = vcmp.le.s32.totalorder %v5239, %v5207
        %vm5260 = vcmp.le.s32.totalorder %v5236, %v5208
        %vm5261 = vcmp.le.s32.totalorder %v5237, %v5208
        %vm5262 = vcmp.le.s32.totalorder %v5238, %v5208
        %vm5263 = vcmp.le.s32.totalorder %v5239, %v5208
        %vm5264 = vcmp.le.s32.totalorder %v5236, %v5209
        %vm5265 = vcmp.le.s32.totalorder %v5237, %v5209
        %vm5266 = vcmp.le.s32.totalorder %v5238, %v5209
        %vm5267 = vcmp.le.s32.totalorder %v5239, %v5209
        %vm5268 = vcmp.le.s32.totalorder %v5236, %v5210
        %vm5269 = vcmp.le.s32.totalorder %v5237, %v5210
        %vm5270 = vcmp.le.s32.totalorder %v5238, %v5210
        %vm5271 = vcmp.le.s32.totalorder %v5239, %v5210
        %vm5272 = vcmp.le.s32.totalorder %v5236, %v5211
        %vm5273 = vcmp.le.s32.totalorder %v5237, %v5211
        %vm5274 = vcmp.le.s32.totalorder %v5238, %v5211
        %vm5275 = vcmp.le.s32.totalorder %v5239, %v5211
        %vm5276 = vcmp.le.s32.totalorder %v5236, %v5212
        %vm5277 = vcmp.le.s32.totalorder %v5237, %v5212
        %vm5278 = vcmp.le.s32.totalorder %v5238, %v5212
        %vm5279 = vcmp.le.s32.totalorder %v5239, %v5212
        %vm5280 = vcmp.le.s32.totalorder %v5236, %v5213
        %vm5281 = vcmp.le.s32.totalorder %v5237, %v5213
        %vm5282 = vcmp.le.s32.totalorder %v5238, %v5213
        %vm5283 = vcmp.le.s32.totalorder %v5239, %v5213
        %vm5284 = vcmp.le.s32.totalorder %v5236, %v5214
        %vm5285 = vcmp.le.s32.totalorder %v5237, %v5214
        %vm5286 = vcmp.le.s32.totalorder %v5238, %v5214
        %vm5287 = vcmp.le.s32.totalorder %v5239, %v5214
        %vm5288 = vcmp.le.s32.totalorder %v5236, %v5215
        %vm5289 = vcmp.le.s32.totalorder %v5237, %v5215
        %vm5290 = vcmp.le.s32.totalorder %v5238, %v5215
        %vm5291 = vcmp.le.s32.totalorder %v5239, %v5215
        %vm5292 = vcmp.le.s32.totalorder %v5236, %v5216
        %vm5293 = vcmp.le.s32.totalorder %v5237, %v5216
        %vm5294 = vcmp.le.s32.totalorder %v5238, %v5216
        %vm5295 = vcmp.le.s32.totalorder %v5239, %v5216
        %vm5296 = vcmp.le.s32.totalorder %v5236, %v5217
        %vm5297 = vcmp.le.s32.totalorder %v5237, %v5217
        %vm5298 = vcmp.le.s32.totalorder %v5238, %v5217
        %vm5299 = vcmp.le.s32.totalorder %v5239, %v5217
        %vm5300 = vcmp.le.s32.totalorder %v5236, %v5218
        %vm5301 = vcmp.le.s32.totalorder %v5237, %v5218
        %vm5302 = vcmp.le.s32.totalorder %v5238, %v5218
        %vm5303 = vcmp.le.s32.totalorder %v5239, %v5218
        %vm5304 = vcmp.le.s32.totalorder %v5236, %v5219
        %vm5305 = vcmp.le.s32.totalorder %v5237, %v5219
        %vm5306 = vcmp.le.s32.totalorder %v5238, %v5219
        %vm5307 = vcmp.le.s32.totalorder %v5239, %v5219
        %vm5308 = vcmp.le.s32.totalorder %v5236, %v5220
        %vm5309 = vcmp.le.s32.totalorder %v5237, %v5220
        %vm5310 = vcmp.le.s32.totalorder %v5238, %v5220
        %vm5311 = vcmp.le.s32.totalorder %v5239, %v5220
        %vm5312 = vcmp.le.s32.totalorder %v5236, %v5221
        %vm5313 = vcmp.le.s32.totalorder %v5237, %v5221
        %vm5314 = vcmp.le.s32.totalorder %v5238, %v5221
        %vm5315 = vcmp.le.s32.totalorder %v5239, %v5221
        %vm5316 = vcmp.le.s32.totalorder %v5236, %v5222
        %vm5317 = vcmp.le.s32.totalorder %v5237, %v5222
        %vm5318 = vcmp.le.s32.totalorder %v5238, %v5222
        %vm5319 = vcmp.le.s32.totalorder %v5239, %v5222
        %vm5320 = vcmp.le.s32.totalorder %v5236, %v5223
        %vm5321 = vcmp.le.s32.totalorder %v5237, %v5223
        %vm5322 = vcmp.le.s32.totalorder %v5238, %v5223
        %vm5323 = vcmp.le.s32.totalorder %v5239, %v5223
        %vm5324 = vcmp.le.s32.totalorder %v5236, %v5224
        %vm5325 = vcmp.le.s32.totalorder %v5237, %v5224
        %vm5326 = vcmp.le.s32.totalorder %v5238, %v5224
        %vm5327 = vcmp.le.s32.totalorder %v5239, %v5224
        %vm5328 = vcmp.le.s32.totalorder %v5236, %v5225
        %vm5329 = vcmp.le.s32.totalorder %v5237, %v5225
        %vm5330 = vcmp.le.s32.totalorder %v5238, %v5225
        %vm5331 = vcmp.le.s32.totalorder %v5239, %v5225
        %vm5332 = vcmp.le.s32.totalorder %v5236, %v5226
        %vm5333 = vcmp.le.s32.totalorder %v5237, %v5226
        %vm5334 = vcmp.le.s32.totalorder %v5238, %v5226
        %vm5335 = vcmp.le.s32.totalorder %v5239, %v5226
        %vm5336 = vcmp.le.s32.totalorder %v5236, %v5227
        %vm5337 = vcmp.le.s32.totalorder %v5237, %v5227
        %vm5338 = vcmp.le.s32.totalorder %v5238, %v5227
        %vm5339 = vcmp.le.s32.totalorder %v5239, %v5227
        %vm5340 = vcmp.le.s32.totalorder %v5236, %v5228
        %vm5341 = vcmp.le.s32.totalorder %v5237, %v5228
        %vm5342 = vcmp.le.s32.totalorder %v5238, %v5228
        %vm5343 = vcmp.le.s32.totalorder %v5239, %v5228
        %vm5344 = vcmp.le.s32.totalorder %v5236, %v5229
        %vm5345 = vcmp.le.s32.totalorder %v5237, %v5229
        %vm5346 = vcmp.le.s32.totalorder %v5238, %v5229
        %vm5347 = vcmp.le.s32.totalorder %v5239, %v5229
        %vm5348 = vcmp.le.s32.totalorder %v5236, %v5230
        %vm5349 = vcmp.le.s32.totalorder %v5237, %v5230
        %vm5350 = vcmp.le.s32.totalorder %v5238, %v5230
        %vm5351 = vcmp.le.s32.totalorder %v5239, %v5230
        %vm5352 = vcmp.le.s32.totalorder %v5236, %v5231
        %vm5353 = vcmp.le.s32.totalorder %v5237, %v5231
        %vm5354 = vcmp.le.s32.totalorder %v5238, %v5231
        %vm5355 = vcmp.le.s32.totalorder %v5239, %v5231
        %vm5356 = vcmp.le.s32.totalorder %v5236, %v5232
        %vm5357 = vcmp.le.s32.totalorder %v5237, %v5232
        %vm5358 = vcmp.le.s32.totalorder %v5238, %v5232
        %vm5359 = vcmp.le.s32.totalorder %v5239, %v5232
        %vm5360 = vcmp.le.s32.totalorder %v5236, %v5233
        %vm5361 = vcmp.le.s32.totalorder %v5237, %v5233
        %vm5362 = vcmp.le.s32.totalorder %v5238, %v5233
        %vm5363 = vcmp.le.s32.totalorder %v5239, %v5233
        %vm5364 = vcmp.le.s32.totalorder %v5236, %v5234
        %vm5365 = vcmp.le.s32.totalorder %v5237, %v5234
        %vm5366 = vcmp.le.s32.totalorder %v5238, %v5234
        %vm5367 = vcmp.le.s32.totalorder %v5239, %v5234
        %v5368 = vsel %vm5240, 1, 0
        %v5369 = vsel %vm5241, 1, 0
        %v5370 = vsel %vm5242, 1, 0
        %v5371 = vsel %vm5243, 1, 0
        %v5372 = vsel %vm5244, 1, 0
        %v5373 = vsel %vm5245, 1, 0
        %v5374 = vsel %vm5246, 1, 0
        %v5375 = vsel %vm5247, 1, 0
        %v5376 = vsel %vm5248, 1, 0
        %v5377 = vsel %vm5249, 1, 0
        %v5378 = vsel %vm5250, 1, 0
        %v5379 = vsel %vm5251, 1, 0
        %v5380 = vsel %vm5252, 1, 0
        %v5381 = vsel %vm5253, 1, 0
        %v5382 = vsel %vm5254, 1, 0
        %v5383 = vsel %vm5255, 1, 0
        %v5384 = vsel %vm5256, 1, 0
        %v5385 = vsel %vm5257, 1, 0
        %v5386 = vsel %vm5258, 1, 0
        %v5387 = vsel %vm5259, 1, 0
        %v5388 = vsel %vm5260, 1, 0
        %v5389 = vsel %vm5261, 1, 0
        %v5390 = vsel %vm5262, 1, 0
        %v5391 = vsel %vm5263, 1, 0
        %v5392 = vsel %vm5264, 1, 0
        %v5393 = vsel %vm5265, 1, 0
        %v5394 = vsel %vm5266, 1, 0
        %v5395 = vsel %vm5267, 1, 0
        %v5396 = vsel %vm5268, 1, 0
        %v5397 = vsel %vm5269, 1, 0
        %v5398 = vsel %vm5270, 1, 0
        %v5399 = vsel %vm5271, 1, 0
        %v5400 = vsel %vm5272, 1, 0
        %v5401 = vsel %vm5273, 1, 0
        %v5402 = vsel %vm5274, 1, 0
        %v5403 = vsel %vm5275, 1, 0
        %v5404 = vsel %vm5276, 1, 0
        %v5405 = vsel %vm5277, 1, 0
        %v5406 = vsel %vm5278, 1, 0
        %v5407 = vsel %vm5279, 1, 0
        %v5408 = vsel %vm5280, 1, 0
        %v5409 = vsel %vm5281, 1, 0
        %v5410 = vsel %vm5282, 1, 0
        %v5411 = vsel %vm5283, 1, 0
        %v5412 = vsel %vm5284, 1, 0
        %v5413 = vsel %vm5285, 1, 0
        %v5414 = vsel %vm5286, 1, 0
        %v5415 = vsel %vm5287, 1, 0
        %v5416 = vsel %vm5288, 1, 0
        %v5417 = vsel %vm5289, 1, 0
        %v5418 = vsel %vm5290, 1, 0
        %v5419 = vsel %vm5291, 1, 0
        %v5420 = vsel %vm5292, 1, 0
        %v5421 = vsel %vm5293, 1, 0
        %v5422 = vsel %vm5294, 1, 0
        %v5423 = vsel %vm5295, 1, 0
        %v5424 = vsel %vm5296, 1, 0
        %v5425 = vsel %vm5297, 1, 0
        %v5426 = vsel %vm5298, 1, 0
        %v5427 = vsel %vm5299, 1, 0
        %v5428 = vsel %vm5300, 1, 0
        %v5429 = vsel %vm5301, 1, 0
        %v5430 = vsel %vm5302, 1, 0
        %v5431 = vsel %vm5303, 1, 0
        %v5432 = vsel %vm5304, 1, 0
        %v5433 = vsel %vm5305, 1, 0
        %v5434 = vsel %vm5306, 1, 0
        %v5435 = vsel %vm5307, 1, 0
        %v5436 = vsel %vm5308, 1, 0
        %v5437 = vsel %vm5309, 1, 0
        %v5438 = vsel %vm5310, 1, 0
        %v5439 = vsel %vm5311, 1, 0
        %v5440 = vsel %vm5312, 1, 0
        %v5441 = vsel %vm5313, 1, 0
        %v5442 = vsel %vm5314, 1, 0
        %v5443 = vsel %vm5315, 1, 0
        %v5444 = vsel %vm5316, 1, 0
        %v5445 = vsel %vm5317, 1, 0
        %v5446 = vsel %vm5318, 1, 0
        %v5447 = vsel %vm5319, 1, 0
        %v5448 = vsel %vm5320, 1, 0
        %v5449 = vsel %vm5321, 1, 0
        %v5450 = vsel %vm5322, 1, 0
        %v5451 = vsel %vm5323, 1, 0
        %v5452 = vsel %vm5324, 1, 0
        %v5453 = vsel %vm5325, 1, 0
        %v5454 = vsel %vm5326, 1, 0
        %v5455 = vsel %vm5327, 1, 0
        %v5456 = vsel %vm5328, 1, 0
        %v5457 = vsel %vm5329, 1, 0
        %v5458 = vsel %vm5330, 1, 0
        %v5459 = vsel %vm5331, 1, 0
        %v5460 = vsel %vm5332, 1, 0
        %v5461 = vsel %vm5333, 1, 0
        %v5462 = vsel %vm5334, 1, 0
        %v5463 = vsel %vm5335, 1, 0
        %v5464 = vsel %vm5336, 1, 0
        %v5465 = vsel %vm5337, 1, 0
        %v5466 = vsel %vm5338, 1, 0
        %v5467 = vsel %vm5339, 1, 0
        %v5468 = vsel %vm5340, 1, 0
        %v5469 = vsel %vm5341, 1, 0
        %v5470 = vsel %vm5342, 1, 0
        %v5471 = vsel %vm5343, 1, 0
        %v5472 = vsel %vm5344, 1, 0
        %v5473 = vsel %vm5345, 1, 0
        %v5474 = vsel %vm5346, 1, 0
        %v5475 = vsel %vm5347, 1, 0
        %v5476 = vsel %vm5348, 1, 0
        %v5477 = vsel %vm5349, 1, 0
        %v5478 = vsel %vm5350, 1, 0
        %v5479 = vsel %vm5351, 1, 0
        %v5480 = vsel %vm5352, 1, 0
        %v5481 = vsel %vm5353, 1, 0
        %v5482 = vsel %vm5354, 1, 0
        %v5483 = vsel %vm5355, 1, 0
        %v5484 = vsel %vm5356, 1, 0
        %v5485 = vsel %vm5357, 1, 0
        %v5486 = vsel %vm5358, 1, 0
        %v5487 = vsel %vm5359, 1, 0
        %v5488 = vsel %vm5360, 1, 0
        %v5489 = vsel %vm5361, 1, 0
        %v5490 = vsel %vm5362, 1, 0
        %v5491 = vsel %vm5363, 1, 0
        %v5492 = vsel %vm5364, 1, 0
        %v5493 = vsel %vm5365, 1, 0
        %v5494 = vsel %vm5366, 1, 0
        %v5495 = vsel %vm5367, 1, 0
        %vm5496 = vcmp.eq.s32.totalorder %v5368, 1
        %vm5497 = vcmp.eq.s32.totalorder %v5369, 1
        %vm5498 = vcmp.eq.s32.totalorder %v5370, 1
        %vm5499 = vcmp.eq.s32.totalorder %v5371, 1
        %vm5500 = vcmp.eq.s32.totalorder %v5372, 1
        %vm5501 = vcmp.eq.s32.totalorder %v5373, 1
        %vm5502 = vcmp.eq.s32.totalorder %v5374, 1
        %vm5503 = vcmp.eq.s32.totalorder %v5375, 1
        %vm5504 = vcmp.eq.s32.totalorder %v5376, 1
        %vm5505 = vcmp.eq.s32.totalorder %v5377, 1
        %vm5506 = vcmp.eq.s32.totalorder %v5378, 1
        %vm5507 = vcmp.eq.s32.totalorder %v5379, 1
        %vm5508 = vcmp.eq.s32.totalorder %v5380, 1
        %vm5509 = vcmp.eq.s32.totalorder %v5381, 1
        %vm5510 = vcmp.eq.s32.totalorder %v5382, 1
        %vm5511 = vcmp.eq.s32.totalorder %v5383, 1
        %vm5512 = vcmp.eq.s32.totalorder %v5384, 1
        %vm5513 = vcmp.eq.s32.totalorder %v5385, 1
        %vm5514 = vcmp.eq.s32.totalorder %v5386, 1
        %vm5515 = vcmp.eq.s32.totalorder %v5387, 1
        %vm5516 = vcmp.eq.s32.totalorder %v5388, 1
        %vm5517 = vcmp.eq.s32.totalorder %v5389, 1
        %vm5518 = vcmp.eq.s32.totalorder %v5390, 1
        %vm5519 = vcmp.eq.s32.totalorder %v5391, 1
        %vm5520 = vcmp.eq.s32.totalorder %v5392, 1
        %vm5521 = vcmp.eq.s32.totalorder %v5393, 1
        %vm5522 = vcmp.eq.s32.totalorder %v5394, 1
        %vm5523 = vcmp.eq.s32.totalorder %v5395, 1
        %vm5524 = vcmp.eq.s32.totalorder %v5396, 1
        %vm5525 = vcmp.eq.s32.totalorder %v5397, 1
        %vm5526 = vcmp.eq.s32.totalorder %v5398, 1
        %vm5527 = vcmp.eq.s32.totalorder %v5399, 1
        %vm5528 = vcmp.eq.s32.totalorder %v5400, 1
        %vm5529 = vcmp.eq.s32.totalorder %v5401, 1
        %vm5530 = vcmp.eq.s32.totalorder %v5402, 1
        %vm5531 = vcmp.eq.s32.totalorder %v5403, 1
        %vm5532 = vcmp.eq.s32.totalorder %v5404, 1
        %vm5533 = vcmp.eq.s32.totalorder %v5405, 1
        %vm5534 = vcmp.eq.s32.totalorder %v5406, 1
        %vm5535 = vcmp.eq.s32.totalorder %v5407, 1
        %vm5536 = vcmp.eq.s32.totalorder %v5408, 1
        %vm5537 = vcmp.eq.s32.totalorder %v5409, 1
        %vm5538 = vcmp.eq.s32.totalorder %v5410, 1
        %vm5539 = vcmp.eq.s32.totalorder %v5411, 1
        %vm5540 = vcmp.eq.s32.totalorder %v5412, 1
        %vm5541 = vcmp.eq.s32.totalorder %v5413, 1
        %vm5542 = vcmp.eq.s32.totalorder %v5414, 1
        %vm5543 = vcmp.eq.s32.totalorder %v5415, 1
        %vm5544 = vcmp.eq.s32.totalorder %v5416, 1
        %vm5545 = vcmp.eq.s32.totalorder %v5417, 1
        %vm5546 = vcmp.eq.s32.totalorder %v5418, 1
        %vm5547 = vcmp.eq.s32.totalorder %v5419, 1
        %vm5548 = vcmp.eq.s32.totalorder %v5420, 1
        %vm5549 = vcmp.eq.s32.totalorder %v5421, 1
        %vm5550 = vcmp.eq.s32.totalorder %v5422, 1
        %vm5551 = vcmp.eq.s32.totalorder %v5423, 1
        %vm5552 = vcmp.eq.s32.totalorder %v5424, 1
        %vm5553 = vcmp.eq.s32.totalorder %v5425, 1
        %vm5554 = vcmp.eq.s32.totalorder %v5426, 1
        %vm5555 = vcmp.eq.s32.totalorder %v5427, 1
        %vm5556 = vcmp.eq.s32.totalorder %v5428, 1
        %vm5557 = vcmp.eq.s32.totalorder %v5429, 1
        %vm5558 = vcmp.eq.s32.totalorder %v5430, 1
        %vm5559 = vcmp.eq.s32.totalorder %v5431, 1
        %vm5560 = vcmp.eq.s32.totalorder %v5432, 1
        %vm5561 = vcmp.eq.s32.totalorder %v5433, 1
        %vm5562 = vcmp.eq.s32.totalorder %v5434, 1
        %vm5563 = vcmp.eq.s32.totalorder %v5435, 1
        %vm5564 = vcmp.eq.s32.totalorder %v5436, 1
        %vm5565 = vcmp.eq.s32.totalorder %v5437, 1
        %vm5566 = vcmp.eq.s32.totalorder %v5438, 1
        %vm5567 = vcmp.eq.s32.totalorder %v5439, 1
        %vm5568 = vcmp.eq.s32.totalorder %v5440, 1
        %vm5569 = vcmp.eq.s32.totalorder %v5441, 1
        %vm5570 = vcmp.eq.s32.totalorder %v5442, 1
        %vm5571 = vcmp.eq.s32.totalorder %v5443, 1
        %vm5572 = vcmp.eq.s32.totalorder %v5444, 1
        %vm5573 = vcmp.eq.s32.totalorder %v5445, 1
        %vm5574 = vcmp.eq.s32.totalorder %v5446, 1
        %vm5575 = vcmp.eq.s32.totalorder %v5447, 1
        %vm5576 = vcmp.eq.s32.totalorder %v5448, 1
        %vm5577 = vcmp.eq.s32.totalorder %v5449, 1
        %vm5578 = vcmp.eq.s32.totalorder %v5450, 1
        %vm5579 = vcmp.eq.s32.totalorder %v5451, 1
        %vm5580 = vcmp.eq.s32.totalorder %v5452, 1
        %vm5581 = vcmp.eq.s32.totalorder %v5453, 1
        %vm5582 = vcmp.eq.s32.totalorder %v5454, 1
        %vm5583 = vcmp.eq.s32.totalorder %v5455, 1
        %vm5584 = vcmp.eq.s32.totalorder %v5456, 1
        %vm5585 = vcmp.eq.s32.totalorder %v5457, 1
        %vm5586 = vcmp.eq.s32.totalorder %v5458, 1
        %vm5587 = vcmp.eq.s32.totalorder %v5459, 1
        %vm5588 = vcmp.eq.s32.totalorder %v5460, 1
        %vm5589 = vcmp.eq.s32.totalorder %v5461, 1
        %vm5590 = vcmp.eq.s32.totalorder %v5462, 1
        %vm5591 = vcmp.eq.s32.totalorder %v5463, 1
        %vm5592 = vcmp.eq.s32.totalorder %v5464, 1
        %vm5593 = vcmp.eq.s32.totalorder %v5465, 1
        %vm5594 = vcmp.eq.s32.totalorder %v5466, 1
        %vm5595 = vcmp.eq.s32.totalorder %v5467, 1
        %vm5596 = vcmp.eq.s32.totalorder %v5468, 1
        %vm5597 = vcmp.eq.s32.totalorder %v5469, 1
        %vm5598 = vcmp.eq.s32.totalorder %v5470, 1
        %vm5599 = vcmp.eq.s32.totalorder %v5471, 1
        %vm5600 = vcmp.eq.s32.totalorder %v5472, 1
        %vm5601 = vcmp.eq.s32.totalorder %v5473, 1
        %vm5602 = vcmp.eq.s32.totalorder %v5474, 1
        %vm5603 = vcmp.eq.s32.totalorder %v5475, 1
        %vm5604 = vcmp.eq.s32.totalorder %v5476, 1
        %vm5605 = vcmp.eq.s32.totalorder %v5477, 1
        %vm5606 = vcmp.eq.s32.totalorder %v5478, 1
        %vm5607 = vcmp.eq.s32.totalorder %v5479, 1
        %vm5608 = vcmp.eq.s32.totalorder %v5480, 1
        %vm5609 = vcmp.eq.s32.totalorder %v5481, 1
        %vm5610 = vcmp.eq.s32.totalorder %v5482, 1
        %vm5611 = vcmp.eq.s32.totalorder %v5483, 1
        %vm5612 = vcmp.eq.s32.totalorder %v5484, 1
        %vm5613 = vcmp.eq.s32.totalorder %v5485, 1
        %vm5614 = vcmp.eq.s32.totalorder %v5486, 1
        %vm5615 = vcmp.eq.s32.totalorder %v5487, 1
        %vm5616 = vcmp.eq.s32.totalorder %v5488, 1
        %vm5617 = vcmp.eq.s32.totalorder %v5489, 1
        %vm5618 = vcmp.eq.s32.totalorder %v5490, 1
        %vm5619 = vcmp.eq.s32.totalorder %v5491, 1
        %vm5620 = vcmp.eq.s32.totalorder %v5492, 1
        %vm5621 = vcmp.eq.s32.totalorder %v5493, 1
        %vm5622 = vcmp.eq.s32.totalorder %v5494, 1
        %vm5623 = vcmp.eq.s32.totalorder %v5495, 1
        %v5624 = vsel %vm5496, %v4239, -1e+09
        %v5625 = vsel %vm5497, %v4241, -1e+09
        %v5626 = vsel %vm5498, %v4432, -1e+09
        %v5627 = vsel %vm5499, %v4434, -1e+09
        %v5628 = vsel %vm5500, %v4243, -1e+09
        %v5629 = vsel %vm5501, %v4245, -1e+09
        %v5630 = vsel %vm5502, %v4436, -1e+09
        %v5631 = vsel %vm5503, %v4438, -1e+09
        %v5632 = vsel %vm5504, %v4249, -1e+09
        %v5633 = vsel %vm5505, %v4251, -1e+09
        %v5634 = vsel %vm5506, %v4442, -1e+09
        %v5635 = vsel %vm5507, %v4444, -1e+09
        %v5636 = vsel %vm5508, %v4253, -1e+09
        %v5637 = vsel %vm5509, %v4255, -1e+09
        %v5638 = vsel %vm5510, %v4446, -1e+09
        %v5639 = vsel %vm5511, %v4448, -1e+09
        %v5640 = vsel %vm5512, %v4259, -1e+09
        %v5641 = vsel %vm5513, %v4261, -1e+09
        %v5642 = vsel %vm5514, %v4452, -1e+09
        %v5643 = vsel %vm5515, %v4454, -1e+09
        %v5644 = vsel %vm5516, %v4263, -1e+09
        %v5645 = vsel %vm5517, %v4265, -1e+09
        %v5646 = vsel %vm5518, %v4456, -1e+09
        %v5647 = vsel %vm5519, %v4458, -1e+09
        %v5648 = vsel %vm5520, %v4269, -1e+09
        %v5649 = vsel %vm5521, %v4271, -1e+09
        %v5650 = vsel %vm5522, %v4462, -1e+09
        %v5651 = vsel %vm5523, %v4464, -1e+09
        %v5652 = vsel %vm5524, %v4273, -1e+09
        %v5653 = vsel %vm5525, %v4275, -1e+09
        %v5654 = vsel %vm5526, %v4466, -1e+09
        %v5655 = vsel %vm5527, %v4468, -1e+09
        %v5656 = vsel %vm5528, %v4279, -1e+09
        %v5657 = vsel %vm5529, %v4281, -1e+09
        %v5658 = vsel %vm5530, %v4472, -1e+09
        %v5659 = vsel %vm5531, %v4474, -1e+09
        %v5660 = vsel %vm5532, %v4283, -1e+09
        %v5661 = vsel %vm5533, %v4285, -1e+09
        %v5662 = vsel %vm5534, %v4476, -1e+09
        %v5663 = vsel %vm5535, %v4478, -1e+09
        %v5664 = vsel %vm5536, %v4289, -1e+09
        %v5665 = vsel %vm5537, %v4291, -1e+09
        %v5666 = vsel %vm5538, %v4482, -1e+09
        %v5667 = vsel %vm5539, %v4484, -1e+09
        %v5668 = vsel %vm5540, %v4293, -1e+09
        %v5669 = vsel %vm5541, %v4295, -1e+09
        %v5670 = vsel %vm5542, %v4486, -1e+09
        %v5671 = vsel %vm5543, %v4488, -1e+09
        %v5672 = vsel %vm5544, %v4299, -1e+09
        %v5673 = vsel %vm5545, %v4301, -1e+09
        %v5674 = vsel %vm5546, %v4492, -1e+09
        %v5675 = vsel %vm5547, %v4494, -1e+09
        %v5676 = vsel %vm5548, %v4303, -1e+09
        %v5677 = vsel %vm5549, %v4305, -1e+09
        %v5678 = vsel %vm5550, %v4496, -1e+09
        %v5679 = vsel %vm5551, %v4498, -1e+09
        %v5680 = vsel %vm5552, %v4309, -1e+09
        %v5681 = vsel %vm5553, %v4311, -1e+09
        %v5682 = vsel %vm5554, %v4502, -1e+09
        %v5683 = vsel %vm5555, %v4504, -1e+09
        %v5684 = vsel %vm5556, %v4313, -1e+09
        %v5685 = vsel %vm5557, %v4315, -1e+09
        %v5686 = vsel %vm5558, %v4506, -1e+09
        %v5687 = vsel %vm5559, %v4508, -1e+09
        %v5688 = vsel %vm5560, %v4319, -1e+09
        %v5689 = vsel %vm5561, %v4321, -1e+09
        %v5690 = vsel %vm5562, %v4512, -1e+09
        %v5691 = vsel %vm5563, %v4514, -1e+09
        %v5692 = vsel %vm5564, %v4323, -1e+09
        %v5693 = vsel %vm5565, %v4325, -1e+09
        %v5694 = vsel %vm5566, %v4516, -1e+09
        %v5695 = vsel %vm5567, %v4518, -1e+09
        %v5696 = vsel %vm5568, %v4329, -1e+09
        %v5697 = vsel %vm5569, %v4331, -1e+09
        %v5698 = vsel %vm5570, %v4522, -1e+09
        %v5699 = vsel %vm5571, %v4524, -1e+09
        %v5700 = vsel %vm5572, %v4333, -1e+09
        %v5701 = vsel %vm5573, %v4335, -1e+09
        %v5702 = vsel %vm5574, %v4526, -1e+09
        %v5703 = vsel %vm5575, %v4528, -1e+09
        %v5704 = vsel %vm5576, %v4339, -1e+09
        %v5705 = vsel %vm5577, %v4341, -1e+09
        %v5706 = vsel %vm5578, %v4532, -1e+09
        %v5707 = vsel %vm5579, %v4534, -1e+09
        %v5708 = vsel %vm5580, %v4343, -1e+09
        %v5709 = vsel %vm5581, %v4345, -1e+09
        %v5710 = vsel %vm5582, %v4536, -1e+09
        %v5711 = vsel %vm5583, %v4538, -1e+09
        %v5712 = vsel %vm5584, %v4349, -1e+09
        %v5713 = vsel %vm5585, %v4351, -1e+09
        %v5714 = vsel %vm5586, %v4542, -1e+09
        %v5715 = vsel %vm5587, %v4544, -1e+09
        %v5716 = vsel %vm5588, %v4353, -1e+09
        %v5717 = vsel %vm5589, %v4355, -1e+09
        %v5718 = vsel %vm5590, %v4546, -1e+09
        %v5719 = vsel %vm5591, %v4548, -1e+09
        %v5720 = vsel %vm5592, %v4359, -1e+09
        %v5721 = vsel %vm5593, %v4361, -1e+09
        %v5722 = vsel %vm5594, %v4552, -1e+09
        %v5723 = vsel %vm5595, %v4554, -1e+09
        %v5724 = vsel %vm5596, %v4363, -1e+09
        %v5725 = vsel %vm5597, %v4365, -1e+09
        %v5726 = vsel %vm5598, %v4556, -1e+09
        %v5727 = vsel %vm5599, %v4558, -1e+09
        %v5728 = vsel %vm5600, %v4369, -1e+09
        %v5729 = vsel %vm5601, %v4371, -1e+09
        %v5730 = vsel %vm5602, %v4562, -1e+09
        %v5731 = vsel %vm5603, %v4564, -1e+09
        %v5732 = vsel %vm5604, %v4373, -1e+09
        %v5733 = vsel %vm5605, %v4375, -1e+09
        %v5734 = vsel %vm5606, %v4566, -1e+09
        %v5735 = vsel %vm5607, %v4568, -1e+09
        %v5736 = vsel %vm5608, %v4379, -1e+09
        %v5737 = vsel %vm5609, %v4381, -1e+09
        %v5738 = vsel %vm5610, %v4572, -1e+09
        %v5739 = vsel %vm5611, %v4574, -1e+09
        %v5740 = vsel %vm5612, %v4383, -1e+09
        %v5741 = vsel %vm5613, %v4385, -1e+09
        %v5742 = vsel %vm5614, %v4576, -1e+09
        %v5743 = vsel %vm5615, %v4578, -1e+09
        %v5744 = vsel %vm5616, %v4389, -1e+09
        %v5745 = vsel %vm5617, %v4391, -1e+09
        %v5746 = vsel %vm5618, %v4582, -1e+09
        %v5747 = vsel %vm5619, %v4584, -1e+09
        %v5748 = vsel %vm5620, %v4393, -1e+09
        %v5749 = vsel %vm5621, %v4395, -1e+09
        %v5750 = vsel %vm5622, %v4586, -1e+09
        %v5751 = vsel %vm5623, %v4588, -1e+09
        %v5752 = vsel %vm5496, %v4817, -1e+09
        %v5753 = vsel %vm5497, %v4819, -1e+09
        %v5754 = vsel %vm5498, %v5010, -1e+09
        %v5755 = vsel %vm5499, %v5012, -1e+09
        %v5756 = vsel %vm5500, %v4821, -1e+09
        %v5757 = vsel %vm5501, %v4823, -1e+09
        %v5758 = vsel %vm5502, %v5014, -1e+09
        %v5759 = vsel %vm5503, %v5016, -1e+09
        %v5760 = vsel %vm5504, %v4827, -1e+09
        %v5761 = vsel %vm5505, %v4829, -1e+09
        %v5762 = vsel %vm5506, %v5020, -1e+09
        %v5763 = vsel %vm5507, %v5022, -1e+09
        %v5764 = vsel %vm5508, %v4831, -1e+09
        %v5765 = vsel %vm5509, %v4833, -1e+09
        %v5766 = vsel %vm5510, %v5024, -1e+09
        %v5767 = vsel %vm5511, %v5026, -1e+09
        %v5768 = vsel %vm5512, %v4837, -1e+09
        %v5769 = vsel %vm5513, %v4839, -1e+09
        %v5770 = vsel %vm5514, %v5030, -1e+09
        %v5771 = vsel %vm5515, %v5032, -1e+09
        %v5772 = vsel %vm5516, %v4841, -1e+09
        %v5773 = vsel %vm5517, %v4843, -1e+09
        %v5774 = vsel %vm5518, %v5034, -1e+09
        %v5775 = vsel %vm5519, %v5036, -1e+09
        %v5776 = vsel %vm5520, %v4847, -1e+09
        %v5777 = vsel %vm5521, %v4849, -1e+09
        %v5778 = vsel %vm5522, %v5040, -1e+09
        %v5779 = vsel %vm5523, %v5042, -1e+09
        %v5780 = vsel %vm5524, %v4851, -1e+09
        %v5781 = vsel %vm5525, %v4853, -1e+09
        %v5782 = vsel %vm5526, %v5044, -1e+09
        %v5783 = vsel %vm5527, %v5046, -1e+09
        %v5784 = vsel %vm5528, %v4857, -1e+09
        %v5785 = vsel %vm5529, %v4859, -1e+09
        %v5786 = vsel %vm5530, %v5050, -1e+09
        %v5787 = vsel %vm5531, %v5052, -1e+09
        %v5788 = vsel %vm5532, %v4861, -1e+09
        %v5789 = vsel %vm5533, %v4863, -1e+09
        %v5790 = vsel %vm5534, %v5054, -1e+09
        %v5791 = vsel %vm5535, %v5056, -1e+09
        %v5792 = vsel %vm5536, %v4867, -1e+09
        %v5793 = vsel %vm5537, %v4869, -1e+09
        %v5794 = vsel %vm5538, %v5060, -1e+09
        %v5795 = vsel %vm5539, %v5062, -1e+09
        %v5796 = vsel %vm5540, %v4871, -1e+09
        %v5797 = vsel %vm5541, %v4873, -1e+09
        %v5798 = vsel %vm5542, %v5064, -1e+09
        %v5799 = vsel %vm5543, %v5066, -1e+09
        %v5800 = vsel %vm5544, %v4877, -1e+09
        %v5801 = vsel %vm5545, %v4879, -1e+09
        %v5802 = vsel %vm5546, %v5070, -1e+09
        %v5803 = vsel %vm5547, %v5072, -1e+09
        %v5804 = vsel %vm5548, %v4881, -1e+09
        %v5805 = vsel %vm5549, %v4883, -1e+09
        %v5806 = vsel %vm5550, %v5074, -1e+09
        %v5807 = vsel %vm5551, %v5076, -1e+09
        %v5808 = vsel %vm5552, %v4887, -1e+09
        %v5809 = vsel %vm5553, %v4889, -1e+09
        %v5810 = vsel %vm5554, %v5080, -1e+09
        %v5811 = vsel %vm5555, %v5082, -1e+09
        %v5812 = vsel %vm5556, %v4891, -1e+09
        %v5813 = vsel %vm5557, %v4893, -1e+09
        %v5814 = vsel %vm5558, %v5084, -1e+09
        %v5815 = vsel %vm5559, %v5086, -1e+09
        %v5816 = vsel %vm5560, %v4897, -1e+09
        %v5817 = vsel %vm5561, %v4899, -1e+09
        %v5818 = vsel %vm5562, %v5090, -1e+09
        %v5819 = vsel %vm5563, %v5092, -1e+09
        %v5820 = vsel %vm5564, %v4901, -1e+09
        %v5821 = vsel %vm5565, %v4903, -1e+09
        %v5822 = vsel %vm5566, %v5094, -1e+09
        %v5823 = vsel %vm5567, %v5096, -1e+09
        %v5824 = vsel %vm5568, %v4907, -1e+09
        %v5825 = vsel %vm5569, %v4909, -1e+09
        %v5826 = vsel %vm5570, %v5100, -1e+09
        %v5827 = vsel %vm5571, %v5102, -1e+09
        %v5828 = vsel %vm5572, %v4911, -1e+09
        %v5829 = vsel %vm5573, %v4913, -1e+09
        %v5830 = vsel %vm5574, %v5104, -1e+09
        %v5831 = vsel %vm5575, %v5106, -1e+09
        %v5832 = vsel %vm5576, %v4917, -1e+09
        %v5833 = vsel %vm5577, %v4919, -1e+09
        %v5834 = vsel %vm5578, %v5110, -1e+09
        %v5835 = vsel %vm5579, %v5112, -1e+09
        %v5836 = vsel %vm5580, %v4921, -1e+09
        %v5837 = vsel %vm5581, %v4923, -1e+09
        %v5838 = vsel %vm5582, %v5114, -1e+09
        %v5839 = vsel %vm5583, %v5116, -1e+09
        %v5840 = vsel %vm5584, %v4927, -1e+09
        %v5841 = vsel %vm5585, %v4929, -1e+09
        %v5842 = vsel %vm5586, %v5120, -1e+09
        %v5843 = vsel %vm5587, %v5122, -1e+09
        %v5844 = vsel %vm5588, %v4931, -1e+09
        %v5845 = vsel %vm5589, %v4933, -1e+09
        %v5846 = vsel %vm5590, %v5124, -1e+09
        %v5847 = vsel %vm5591, %v5126, -1e+09
        %v5848 = vsel %vm5592, %v4937, -1e+09
        %v5849 = vsel %vm5593, %v4939, -1e+09
        %v5850 = vsel %vm5594, %v5130, -1e+09
        %v5851 = vsel %vm5595, %v5132, -1e+09
        %v5852 = vsel %vm5596, %v4941, -1e+09
        %v5853 = vsel %vm5597, %v4943, -1e+09
        %v5854 = vsel %vm5598, %v5134, -1e+09
        %v5855 = vsel %vm5599, %v5136, -1e+09
        %v5856 = vsel %vm5600, %v4947, -1e+09
        %v5857 = vsel %vm5601, %v4949, -1e+09
        %v5858 = vsel %vm5602, %v5140, -1e+09
        %v5859 = vsel %vm5603, %v5142, -1e+09
        %v5860 = vsel %vm5604, %v4951, -1e+09
        %v5861 = vsel %vm5605, %v4953, -1e+09
        %v5862 = vsel %vm5606, %v5144, -1e+09
        %v5863 = vsel %vm5607, %v5146, -1e+09
        %v5864 = vsel %vm5608, %v4957, -1e+09
        %v5865 = vsel %vm5609, %v4959, -1e+09
        %v5866 = vsel %vm5610, %v5150, -1e+09
        %v5867 = vsel %vm5611, %v5152, -1e+09
        %v5868 = vsel %vm5612, %v4961, -1e+09
        %v5869 = vsel %vm5613, %v4963, -1e+09
        %v5870 = vsel %vm5614, %v5154, -1e+09
        %v5871 = vsel %vm5615, %v5156, -1e+09
        %v5872 = vsel %vm5616, %v4967, -1e+09
        %v5873 = vsel %vm5617, %v4969, -1e+09
        %v5874 = vsel %vm5618, %v5160, -1e+09
        %v5875 = vsel %vm5619, %v5162, -1e+09
        %v5876 = vsel %vm5620, %v4971, -1e+09
        %v5877 = vsel %vm5621, %v4973, -1e+09
        %v5878 = vsel %vm5622, %v5164, -1e+09
        %v5879 = vsel %vm5623, %v5166, -1e+09
        %v5880 = vmax.f32 %v5624, %v5625
        %v5881 = vmax.f32 %v5880, %v5626
        %v5882 = vmax.f32 %v5881, %v5627
        %5883 = vmax.xlane.f32.xlu0 %v5882
        %v5884 = vpop.xlane.xlu0 %5883
        %v5885 = vmax.f32 %v5628, %v5629
        %v5886 = vmax.f32 %v5885, %v5630
        %v5887 = vmax.f32 %v5886, %v5631
        %5888 = vmax.xlane.f32.xlu0 %v5887
        %v5889 = vpop.xlane.xlu0 %5888
        %v5890 = vmax.f32 %v5632, %v5633
        %v5891 = vmax.f32 %v5890, %v5634
        %v5892 = vmax.f32 %v5891, %v5635
        %5893 = vmax.xlane.f32.xlu0 %v5892
        %v5894 = vpop.xlane.xlu0 %5893
        %v5895 = vmax.f32 %v5636, %v5637
        %v5896 = vmax.f32 %v5895, %v5638
        %v5897 = vmax.f32 %v5896, %v5639
        %5898 = vmax.xlane.f32.xlu0 %v5897
        %v5899 = vpop.xlane.xlu0 %5898
        %v5900 = vmax.f32 %v5640, %v5641
        %v5901 = vmax.f32 %v5900, %v5642
        %v5902 = vmax.f32 %v5901, %v5643
        %5903 = vmax.xlane.f32.xlu0 %v5902
        %v5904 = vpop.xlane.xlu0 %5903
        %v5905 = vmax.f32 %v5644, %v5645
        %v5906 = vmax.f32 %v5905, %v5646
        %v5907 = vmax.f32 %v5906, %v5647
        %5908 = vmax.xlane.f32.xlu0 %v5907
        %v5909 = vpop.xlane.xlu0 %5908
        %v5910 = vmax.f32 %v5648, %v5649
        %v5911 = vmax.f32 %v5910, %v5650
        %v5912 = vmax.f32 %v5911, %v5651
        %5913 = vmax.xlane.f32.xlu0 %v5912
        %v5914 = vpop.xlane.xlu0 %5913
        %v5915 = vmax.f32 %v5652, %v5653
        %v5916 = vmax.f32 %v5915, %v5654
        %v5917 = vmax.f32 %v5916, %v5655
        %5918 = vmax.xlane.f32.xlu0 %v5917
        %v5919 = vpop.xlane.xlu0 %5918
        %v5920 = vmax.f32 %v5656, %v5657
        %v5921 = vmax.f32 %v5920, %v5658
        %v5922 = vmax.f32 %v5921, %v5659
        %5923 = vmax.xlane.f32.xlu0 %v5922
        %v5924 = vpop.xlane.xlu0 %5923
        %v5925 = vmax.f32 %v5660, %v5661
        %v5926 = vmax.f32 %v5925, %v5662
        %v5927 = vmax.f32 %v5926, %v5663
        %5928 = vmax.xlane.f32.xlu0 %v5927
        %v5929 = vpop.xlane.xlu0 %5928
        %v5930 = vmax.f32 %v5664, %v5665
        %v5931 = vmax.f32 %v5930, %v5666
        %v5932 = vmax.f32 %v5931, %v5667
        %5933 = vmax.xlane.f32.xlu0 %v5932
        %v5934 = vpop.xlane.xlu0 %5933
        %v5935 = vmax.f32 %v5668, %v5669
        %v5936 = vmax.f32 %v5935, %v5670
        %v5937 = vmax.f32 %v5936, %v5671
        %5938 = vmax.xlane.f32.xlu0 %v5937
        %v5939 = vpop.xlane.xlu0 %5938
        %v5940 = vmax.f32 %v5672, %v5673
        %v5941 = vmax.f32 %v5940, %v5674
        %v5942 = vmax.f32 %v5941, %v5675
        %5943 = vmax.xlane.f32.xlu0 %v5942
        %v5944 = vpop.xlane.xlu0 %5943
        %v5945 = vmax.f32 %v5676, %v5677
        %v5946 = vmax.f32 %v5945, %v5678
        %v5947 = vmax.f32 %v5946, %v5679
        %5948 = vmax.xlane.f32.xlu0 %v5947
        %v5949 = vpop.xlane.xlu0 %5948
        %v5950 = vmax.f32 %v5680, %v5681
        %v5951 = vmax.f32 %v5950, %v5682
        %v5952 = vmax.f32 %v5951, %v5683
        %5953 = vmax.xlane.f32.xlu0 %v5952
        %v5954 = vpop.xlane.xlu0 %5953
        %v5955 = vmax.f32 %v5684, %v5685
        %v5956 = vmax.f32 %v5955, %v5686
        %v5957 = vmax.f32 %v5956, %v5687
        %5958 = vmax.xlane.f32.xlu0 %v5957
        %v5959 = vpop.xlane.xlu0 %5958
        %v5960 = vmax.f32 %v5688, %v5689
        %v5961 = vmax.f32 %v5960, %v5690
        %v5962 = vmax.f32 %v5961, %v5691
        %5963 = vmax.xlane.f32.xlu0 %v5962
        %v5964 = vpop.xlane.xlu0 %5963
        %v5965 = vmax.f32 %v5692, %v5693
        %v5966 = vmax.f32 %v5965, %v5694
        %v5967 = vmax.f32 %v5966, %v5695
        %5968 = vmax.xlane.f32.xlu0 %v5967
        %v5969 = vpop.xlane.xlu0 %5968
        %v5970 = vmax.f32 %v5696, %v5697
        %v5971 = vmax.f32 %v5970, %v5698
        %v5972 = vmax.f32 %v5971, %v5699
        %5973 = vmax.xlane.f32.xlu0 %v5972
        %v5974 = vpop.xlane.xlu0 %5973
        %v5975 = vmax.f32 %v5700, %v5701
        %v5976 = vmax.f32 %v5975, %v5702
        %v5977 = vmax.f32 %v5976, %v5703
        %5978 = vmax.xlane.f32.xlu0 %v5977
        %v5979 = vpop.xlane.xlu0 %5978
        %v5980 = vmax.f32 %v5704, %v5705
        %v5981 = vmax.f32 %v5980, %v5706
        %v5982 = vmax.f32 %v5981, %v5707
        %5983 = vmax.xlane.f32.xlu0 %v5982
        %v5984 = vpop.xlane.xlu0 %5983
        %v5985 = vmax.f32 %v5708, %v5709
        %v5986 = vmax.f32 %v5985, %v5710
        %v5987 = vmax.f32 %v5986, %v5711
        %5988 = vmax.xlane.f32.xlu0 %v5987
        %v5989 = vpop.xlane.xlu0 %5988
        %v5990 = vmax.f32 %v5712, %v5713
        %v5991 = vmax.f32 %v5990, %v5714
        %v5992 = vmax.f32 %v5991, %v5715
        %5993 = vmax.xlane.f32.xlu0 %v5992
        %v5994 = vpop.xlane.xlu0 %5993
        %v5995 = vmax.f32 %v5716, %v5717
        %v5996 = vmax.f32 %v5995, %v5718
        %v5997 = vmax.f32 %v5996, %v5719
        %5998 = vmax.xlane.f32.xlu0 %v5997
        %v5999 = vpop.xlane.xlu0 %5998
        %v6000 = vmax.f32 %v5720, %v5721
        %v6001 = vmax.f32 %v6000, %v5722
        %v6002 = vmax.f32 %v6001, %v5723
        %6003 = vmax.xlane.f32.xlu0 %v6002
        %v6004 = vpop.xlane.xlu0 %6003
        %v6005 = vmax.f32 %v5724, %v5725
        %v6006 = vmax.f32 %v6005, %v5726
        %v6007 = vmax.f32 %v6006, %v5727
        %6008 = vmax.xlane.f32.xlu0 %v6007
        %v6009 = vpop.xlane.xlu0 %6008
        %v6010 = vmax.f32 %v5728, %v5729
        %v6011 = vmax.f32 %v6010, %v5730
        %v6012 = vmax.f32 %v6011, %v5731
        %6013 = vmax.xlane.f32.xlu0 %v6012
        %v6014 = vpop.xlane.xlu0 %6013
        %v6015 = vmax.f32 %v5732, %v5733
        %v6016 = vmax.f32 %v6015, %v5734
        %v6017 = vmax.f32 %v6016, %v5735
        %6018 = vmax.xlane.f32.xlu0 %v6017
        %v6019 = vpop.xlane.xlu0 %6018
        %v6020 = vmax.f32 %v5736, %v5737
        %v6021 = vmax.f32 %v6020, %v5738
        %v6022 = vmax.f32 %v6021, %v5739
        %6023 = vmax.xlane.f32.xlu0 %v6022
        %v6024 = vpop.xlane.xlu0 %6023
        %v6025 = vmax.f32 %v5740, %v5741
        %v6026 = vmax.f32 %v6025, %v5742
        %v6027 = vmax.f32 %v6026, %v5743
        %6028 = vmax.xlane.f32.xlu0 %v6027
        %v6029 = vpop.xlane.xlu0 %6028
        %v6030 = vmax.f32 %v5744, %v5745
        %v6031 = vmax.f32 %v6030, %v5746
        %v6032 = vmax.f32 %v6031, %v5747
        %6033 = vmax.xlane.f32.xlu0 %v6032
        %v6034 = vpop.xlane.xlu0 %6033
        %v6035 = vmax.f32 %v5748, %v5749
        %v6036 = vmax.f32 %v6035, %v5750
        %v6037 = vmax.f32 %v6036, %v5751
        %6038 = vmax.xlane.f32.xlu0 %v6037
        %v6039 = vpop.xlane.xlu0 %6038
        %v6040 = vmax.f32 %v5752, %v5753
        %v6041 = vmax.f32 %v6040, %v5754
        %v6042 = vmax.f32 %v6041, %v5755
        %6043 = vmax.xlane.f32.xlu0 %v6042
        %v6044 = vpop.xlane.xlu0 %6043
        %v6045 = vmax.f32 %v5756, %v5757
        %v6046 = vmax.f32 %v6045, %v5758
        %v6047 = vmax.f32 %v6046, %v5759
        %6048 = vmax.xlane.f32.xlu0 %v6047
        %v6049 = vpop.xlane.xlu0 %6048
        %v6050 = vmax.f32 %v5760, %v5761
        %v6051 = vmax.f32 %v6050, %v5762
        %v6052 = vmax.f32 %v6051, %v5763
        %6053 = vmax.xlane.f32.xlu0 %v6052
        %v6054 = vpop.xlane.xlu0 %6053
        %v6055 = vmax.f32 %v5764, %v5765
        %v6056 = vmax.f32 %v6055, %v5766
        %v6057 = vmax.f32 %v6056, %v5767
        %6058 = vmax.xlane.f32.xlu0 %v6057
        %v6059 = vpop.xlane.xlu0 %6058
        %v6060 = vmax.f32 %v5768, %v5769
        %v6061 = vmax.f32 %v6060, %v5770
        %v6062 = vmax.f32 %v6061, %v5771
        %6063 = vmax.xlane.f32.xlu0 %v6062
        %v6064 = vpop.xlane.xlu0 %6063
        %v6065 = vmax.f32 %v5772, %v5773
        %v6066 = vmax.f32 %v6065, %v5774
        %v6067 = vmax.f32 %v6066, %v5775
        %6068 = vmax.xlane.f32.xlu0 %v6067
        %v6069 = vpop.xlane.xlu0 %6068
        %v6070 = vmax.f32 %v5776, %v5777
        %v6071 = vmax.f32 %v6070, %v5778
        %v6072 = vmax.f32 %v6071, %v5779
        %6073 = vmax.xlane.f32.xlu0 %v6072
        %v6074 = vpop.xlane.xlu0 %6073
        %v6075 = vmax.f32 %v5780, %v5781
        %v6076 = vmax.f32 %v6075, %v5782
        %v6077 = vmax.f32 %v6076, %v5783
        %6078 = vmax.xlane.f32.xlu0 %v6077
        %v6079 = vpop.xlane.xlu0 %6078
        %v6080 = vmax.f32 %v5784, %v5785
        %v6081 = vmax.f32 %v6080, %v5786
        %v6082 = vmax.f32 %v6081, %v5787
        %6083 = vmax.xlane.f32.xlu0 %v6082
        %v6084 = vpop.xlane.xlu0 %6083
        %v6085 = vmax.f32 %v5788, %v5789
        %v6086 = vmax.f32 %v6085, %v5790
        %v6087 = vmax.f32 %v6086, %v5791
        %6088 = vmax.xlane.f32.xlu0 %v6087
        %v6089 = vpop.xlane.xlu0 %6088
        %v6090 = vmax.f32 %v5792, %v5793
        %v6091 = vmax.f32 %v6090, %v5794
        %v6092 = vmax.f32 %v6091, %v5795
        %6093 = vmax.xlane.f32.xlu0 %v6092
        %v6094 = vpop.xlane.xlu0 %6093
        %v6095 = vmax.f32 %v5796, %v5797
        %v6096 = vmax.f32 %v6095, %v5798
        %v6097 = vmax.f32 %v6096, %v5799
        %6098 = vmax.xlane.f32.xlu0 %v6097
        %v6099 = vpop.xlane.xlu0 %6098
        %v6100 = vmax.f32 %v5800, %v5801
        %v6101 = vmax.f32 %v6100, %v5802
        %v6102 = vmax.f32 %v6101, %v5803
        %6103 = vmax.xlane.f32.xlu0 %v6102
        %v6104 = vpop.xlane.xlu0 %6103
        %v6105 = vmax.f32 %v5804, %v5805
        %v6106 = vmax.f32 %v6105, %v5806
        %v6107 = vmax.f32 %v6106, %v5807
        %6108 = vmax.xlane.f32.xlu0 %v6107
        %v6109 = vpop.xlane.xlu0 %6108
        %v6110 = vmax.f32 %v5808, %v5809
        %v6111 = vmax.f32 %v6110, %v5810
        %v6112 = vmax.f32 %v6111, %v5811
        %6113 = vmax.xlane.f32.xlu0 %v6112
        %v6114 = vpop.xlane.xlu0 %6113
        %v6115 = vmax.f32 %v5812, %v5813
        %v6116 = vmax.f32 %v6115, %v5814
        %v6117 = vmax.f32 %v6116, %v5815
        %6118 = vmax.xlane.f32.xlu0 %v6117
        %v6119 = vpop.xlane.xlu0 %6118
        %v6120 = vmax.f32 %v5816, %v5817
        %v6121 = vmax.f32 %v6120, %v5818
        %v6122 = vmax.f32 %v6121, %v5819
        %6123 = vmax.xlane.f32.xlu0 %v6122
        %v6124 = vpop.xlane.xlu0 %6123
        %v6125 = vmax.f32 %v5820, %v5821
        %v6126 = vmax.f32 %v6125, %v5822
        %v6127 = vmax.f32 %v6126, %v5823
        %6128 = vmax.xlane.f32.xlu0 %v6127
        %v6129 = vpop.xlane.xlu0 %6128
        %v6130 = vmax.f32 %v5824, %v5825
        %v6131 = vmax.f32 %v6130, %v5826
        %v6132 = vmax.f32 %v6131, %v5827
        %6133 = vmax.xlane.f32.xlu0 %v6132
        %v6134 = vpop.xlane.xlu0 %6133
        %v6135 = vmax.f32 %v5828, %v5829
        %v6136 = vmax.f32 %v6135, %v5830
        %v6137 = vmax.f32 %v6136, %v5831
        %6138 = vmax.xlane.f32.xlu0 %v6137
        %v6139 = vpop.xlane.xlu0 %6138
        %v6140 = vmax.f32 %v5832, %v5833
        %v6141 = vmax.f32 %v6140, %v5834
        %v6142 = vmax.f32 %v6141, %v5835
        %6143 = vmax.xlane.f32.xlu0 %v6142
        %v6144 = vpop.xlane.xlu0 %6143
        %v6145 = vmax.f32 %v5836, %v5837
        %v6146 = vmax.f32 %v6145, %v5838
        %v6147 = vmax.f32 %v6146, %v5839
        %6148 = vmax.xlane.f32.xlu0 %v6147
        %v6149 = vpop.xlane.xlu0 %6148
        %v6150 = vmax.f32 %v5840, %v5841
        %v6151 = vmax.f32 %v6150, %v5842
        %v6152 = vmax.f32 %v6151, %v5843
        %6153 = vmax.xlane.f32.xlu0 %v6152
        %v6154 = vpop.xlane.xlu0 %6153
        %v6155 = vmax.f32 %v5844, %v5845
        %v6156 = vmax.f32 %v6155, %v5846
        %v6157 = vmax.f32 %v6156, %v5847
        %6158 = vmax.xlane.f32.xlu0 %v6157
        %v6159 = vpop.xlane.xlu0 %6158
        %v6160 = vmax.f32 %v5848, %v5849
        %v6161 = vmax.f32 %v6160, %v5850
        %v6162 = vmax.f32 %v6161, %v5851
        %6163 = vmax.xlane.f32.xlu0 %v6162
        %v6164 = vpop.xlane.xlu0 %6163
        %v6165 = vmax.f32 %v5852, %v5853
        %v6166 = vmax.f32 %v6165, %v5854
        %v6167 = vmax.f32 %v6166, %v5855
        %6168 = vmax.xlane.f32.xlu0 %v6167
        %v6169 = vpop.xlane.xlu0 %6168
        %v6170 = vmax.f32 %v5856, %v5857
        %v6171 = vmax.f32 %v6170, %v5858
        %v6172 = vmax.f32 %v6171, %v5859
        %6173 = vmax.xlane.f32.xlu0 %v6172
        %v6174 = vpop.xlane.xlu0 %6173
        %v6175 = vmax.f32 %v5860, %v5861
        %v6176 = vmax.f32 %v6175, %v5862
        %v6177 = vmax.f32 %v6176, %v5863
        %6178 = vmax.xlane.f32.xlu0 %v6177
        %v6179 = vpop.xlane.xlu0 %6178
        %v6180 = vmax.f32 %v5864, %v5865
        %v6181 = vmax.f32 %v6180, %v5866
        %v6182 = vmax.f32 %v6181, %v5867
        %6183 = vmax.xlane.f32.xlu0 %v6182
        %v6184 = vpop.xlane.xlu0 %6183
        %v6185 = vmax.f32 %v5868, %v5869
        %v6186 = vmax.f32 %v6185, %v5870
        %v6187 = vmax.f32 %v6186, %v5871
        %6188 = vmax.xlane.f32.xlu0 %v6187
        %v6189 = vpop.xlane.xlu0 %6188
        %v6190 = vmax.f32 %v5872, %v5873
        %v6191 = vmax.f32 %v6190, %v5874
        %v6192 = vmax.f32 %v6191, %v5875
        %6193 = vmax.xlane.f32.xlu0 %v6192
        %v6194 = vpop.xlane.xlu0 %6193
        %v6195 = vmax.f32 %v5876, %v5877
        %v6196 = vmax.f32 %v6195, %v5878
        %v6197 = vmax.f32 %v6196, %v5879
        %6198 = vmax.xlane.f32.xlu0 %v6197
        %v6199 = vpop.xlane.xlu0 %6198
        %v6200 = vsub.f32 %v5624, %v5884
        %v6201 = vsub.f32 %v5625, %v5884
        %v6202 = vsub.f32 %v5626, %v5884
        %v6203 = vsub.f32 %v5627, %v5884
        %v6204 = vsub.f32 %v5628, %v5889
        %v6205 = vsub.f32 %v5629, %v5889
        %v6206 = vsub.f32 %v5630, %v5889
        %v6207 = vsub.f32 %v5631, %v5889
        %v6208 = vsub.f32 %v5632, %v5894
        %v6209 = vsub.f32 %v5633, %v5894
        %v6210 = vsub.f32 %v5634, %v5894
        %v6211 = vsub.f32 %v5635, %v5894
        %v6212 = vsub.f32 %v5636, %v5899
        %v6213 = vsub.f32 %v5637, %v5899
        %v6214 = vsub.f32 %v5638, %v5899
        %v6215 = vsub.f32 %v5639, %v5899
        %v6216 = vsub.f32 %v5640, %v5904
        %v6217 = vsub.f32 %v5641, %v5904
        %v6218 = vsub.f32 %v5642, %v5904
        %v6219 = vsub.f32 %v5643, %v5904
        %v6220 = vsub.f32 %v5644, %v5909
        %v6221 = vsub.f32 %v5645, %v5909
        %v6222 = vsub.f32 %v5646, %v5909
        %v6223 = vsub.f32 %v5647, %v5909
        %v6224 = vsub.f32 %v5648, %v5914
        %v6225 = vsub.f32 %v5649, %v5914
        %v6226 = vsub.f32 %v5650, %v5914
        %v6227 = vsub.f32 %v5651, %v5914
        %v6228 = vsub.f32 %v5652, %v5919
        %v6229 = vsub.f32 %v5653, %v5919
        %v6230 = vsub.f32 %v5654, %v5919
        %v6231 = vsub.f32 %v5655, %v5919
        %v6232 = vsub.f32 %v5656, %v5924
        %v6233 = vsub.f32 %v5657, %v5924
        %v6234 = vsub.f32 %v5658, %v5924
        %v6235 = vsub.f32 %v5659, %v5924
        %v6236 = vsub.f32 %v5660, %v5929
        %v6237 = vsub.f32 %v5661, %v5929
        %v6238 = vsub.f32 %v5662, %v5929
        %v6239 = vsub.f32 %v5663, %v5929
        %v6240 = vsub.f32 %v5664, %v5934
        %v6241 = vsub.f32 %v5665, %v5934
        %v6242 = vsub.f32 %v5666, %v5934
        %v6243 = vsub.f32 %v5667, %v5934
        %v6244 = vsub.f32 %v5668, %v5939
        %v6245 = vsub.f32 %v5669, %v5939
        %v6246 = vsub.f32 %v5670, %v5939
        %v6247 = vsub.f32 %v5671, %v5939
        %v6248 = vsub.f32 %v5672, %v5944
        %v6249 = vsub.f32 %v5673, %v5944
        %v6250 = vsub.f32 %v5674, %v5944
        %v6251 = vsub.f32 %v5675, %v5944
        %v6252 = vsub.f32 %v5676, %v5949
        %v6253 = vsub.f32 %v5677, %v5949
        %v6254 = vsub.f32 %v5678, %v5949
        %v6255 = vsub.f32 %v5679, %v5949
        %v6256 = vsub.f32 %v5680, %v5954
        %v6257 = vsub.f32 %v5681, %v5954
        %v6258 = vsub.f32 %v5682, %v5954
        %v6259 = vsub.f32 %v5683, %v5954
        %v6260 = vsub.f32 %v5684, %v5959
        %v6261 = vsub.f32 %v5685, %v5959
        %v6262 = vsub.f32 %v5686, %v5959
        %v6263 = vsub.f32 %v5687, %v5959
        %v6264 = vsub.f32 %v5688, %v5964
        %v6265 = vsub.f32 %v5689, %v5964
        %v6266 = vsub.f32 %v5690, %v5964
        %v6267 = vsub.f32 %v5691, %v5964
        %v6268 = vsub.f32 %v5692, %v5969
        %v6269 = vsub.f32 %v5693, %v5969
        %v6270 = vsub.f32 %v5694, %v5969
        %v6271 = vsub.f32 %v5695, %v5969
        %v6272 = vsub.f32 %v5696, %v5974
        %v6273 = vsub.f32 %v5697, %v5974
        %v6274 = vsub.f32 %v5698, %v5974
        %v6275 = vsub.f32 %v5699, %v5974
        %v6276 = vsub.f32 %v5700, %v5979
        %v6277 = vsub.f32 %v5701, %v5979
        %v6278 = vsub.f32 %v5702, %v5979
        %v6279 = vsub.f32 %v5703, %v5979
        %v6280 = vsub.f32 %v5704, %v5984
        %v6281 = vsub.f32 %v5705, %v5984
        %v6282 = vsub.f32 %v5706, %v5984
        %v6283 = vsub.f32 %v5707, %v5984
        %v6284 = vsub.f32 %v5708, %v5989
        %v6285 = vsub.f32 %v5709, %v5989
        %v6286 = vsub.f32 %v5710, %v5989
        %v6287 = vsub.f32 %v5711, %v5989
        %v6288 = vsub.f32 %v5712, %v5994
        %v6289 = vsub.f32 %v5713, %v5994
        %v6290 = vsub.f32 %v5714, %v5994
        %v6291 = vsub.f32 %v5715, %v5994
        %v6292 = vsub.f32 %v5716, %v5999
        %v6293 = vsub.f32 %v5717, %v5999
        %v6294 = vsub.f32 %v5718, %v5999
        %v6295 = vsub.f32 %v5719, %v5999
        %v6296 = vsub.f32 %v5720, %v6004
        %v6297 = vsub.f32 %v5721, %v6004
        %v6298 = vsub.f32 %v5722, %v6004
        %v6299 = vsub.f32 %v5723, %v6004
        %v6300 = vsub.f32 %v5724, %v6009
        %v6301 = vsub.f32 %v5725, %v6009
        %v6302 = vsub.f32 %v5726, %v6009
        %v6303 = vsub.f32 %v5727, %v6009
        %v6304 = vsub.f32 %v5728, %v6014
        %v6305 = vsub.f32 %v5729, %v6014
        %v6306 = vsub.f32 %v5730, %v6014
        %v6307 = vsub.f32 %v5731, %v6014
        %v6308 = vsub.f32 %v5732, %v6019
        %v6309 = vsub.f32 %v5733, %v6019
        %v6310 = vsub.f32 %v5734, %v6019
        %v6311 = vsub.f32 %v5735, %v6019
        %v6312 = vsub.f32 %v5736, %v6024
        %v6313 = vsub.f32 %v5737, %v6024
        %v6314 = vsub.f32 %v5738, %v6024
        %v6315 = vsub.f32 %v5739, %v6024
        %v6316 = vsub.f32 %v5740, %v6029
        %v6317 = vsub.f32 %v5741, %v6029
        %v6318 = vsub.f32 %v5742, %v6029
        %v6319 = vsub.f32 %v5743, %v6029
        %v6320 = vsub.f32 %v5744, %v6034
        %v6321 = vsub.f32 %v5745, %v6034
        %v6322 = vsub.f32 %v5746, %v6034
        %v6323 = vsub.f32 %v5747, %v6034
        %v6324 = vsub.f32 %v5748, %v6039
        %v6325 = vsub.f32 %v5749, %v6039
        %v6326 = vsub.f32 %v5750, %v6039
        %v6327 = vsub.f32 %v5751, %v6039
        %v6328 = vsub.f32 %v5752, %v6044
        %v6329 = vsub.f32 %v5753, %v6044
        %v6330 = vsub.f32 %v5754, %v6044
        %v6331 = vsub.f32 %v5755, %v6044
        %v6332 = vsub.f32 %v5756, %v6049
        %v6333 = vsub.f32 %v5757, %v6049
        %v6334 = vsub.f32 %v5758, %v6049
        %v6335 = vsub.f32 %v5759, %v6049
        %v6336 = vsub.f32 %v5760, %v6054
        %v6337 = vsub.f32 %v5761, %v6054
        %v6338 = vsub.f32 %v5762, %v6054
        %v6339 = vsub.f32 %v5763, %v6054
        %v6340 = vsub.f32 %v5764, %v6059
        %v6341 = vsub.f32 %v5765, %v6059
        %v6342 = vsub.f32 %v5766, %v6059
        %v6343 = vsub.f32 %v5767, %v6059
        %v6344 = vsub.f32 %v5768, %v6064
        %v6345 = vsub.f32 %v5769, %v6064
        %v6346 = vsub.f32 %v5770, %v6064
        %v6347 = vsub.f32 %v5771, %v6064
        %v6348 = vsub.f32 %v5772, %v6069
        %v6349 = vsub.f32 %v5773, %v6069
        %v6350 = vsub.f32 %v5774, %v6069
        %v6351 = vsub.f32 %v5775, %v6069
        %v6352 = vsub.f32 %v5776, %v6074
        %v6353 = vsub.f32 %v5777, %v6074
        %v6354 = vsub.f32 %v5778, %v6074
        %v6355 = vsub.f32 %v5779, %v6074
        %v6356 = vsub.f32 %v5780, %v6079
        %v6357 = vsub.f32 %v5781, %v6079
        %v6358 = vsub.f32 %v5782, %v6079
        %v6359 = vsub.f32 %v5783, %v6079
        %v6360 = vsub.f32 %v5784, %v6084
        %v6361 = vsub.f32 %v5785, %v6084
        %v6362 = vsub.f32 %v5786, %v6084
        %v6363 = vsub.f32 %v5787, %v6084
        %v6364 = vsub.f32 %v5788, %v6089
        %v6365 = vsub.f32 %v5789, %v6089
        %v6366 = vsub.f32 %v5790, %v6089
        %v6367 = vsub.f32 %v5791, %v6089
        %v6368 = vsub.f32 %v5792, %v6094
        %v6369 = vsub.f32 %v5793, %v6094
        %v6370 = vsub.f32 %v5794, %v6094
        %v6371 = vsub.f32 %v5795, %v6094
        %v6372 = vsub.f32 %v5796, %v6099
        %v6373 = vsub.f32 %v5797, %v6099
        %v6374 = vsub.f32 %v5798, %v6099
        %v6375 = vsub.f32 %v5799, %v6099
        %v6376 = vsub.f32 %v5800, %v6104
        %v6377 = vsub.f32 %v5801, %v6104
        %v6378 = vsub.f32 %v5802, %v6104
        %v6379 = vsub.f32 %v5803, %v6104
        %v6380 = vsub.f32 %v5804, %v6109
        %v6381 = vsub.f32 %v5805, %v6109
        %v6382 = vsub.f32 %v5806, %v6109
        %v6383 = vsub.f32 %v5807, %v6109
        %v6384 = vsub.f32 %v5808, %v6114
        %v6385 = vsub.f32 %v5809, %v6114
        %v6386 = vsub.f32 %v5810, %v6114
        %v6387 = vsub.f32 %v5811, %v6114
        %v6388 = vsub.f32 %v5812, %v6119
        %v6389 = vsub.f32 %v5813, %v6119
        %v6390 = vsub.f32 %v5814, %v6119
        %v6391 = vsub.f32 %v5815, %v6119
        %v6392 = vsub.f32 %v5816, %v6124
        %v6393 = vsub.f32 %v5817, %v6124
        %v6394 = vsub.f32 %v5818, %v6124
        %v6395 = vsub.f32 %v5819, %v6124
        %v6396 = vsub.f32 %v5820, %v6129
        %v6397 = vsub.f32 %v5821, %v6129
        %v6398 = vsub.f32 %v5822, %v6129
        %v6399 = vsub.f32 %v5823, %v6129
        %v6400 = vsub.f32 %v5824, %v6134
        %v6401 = vsub.f32 %v5825, %v6134
        %v6402 = vsub.f32 %v5826, %v6134
        %v6403 = vsub.f32 %v5827, %v6134
        %v6404 = vsub.f32 %v5828, %v6139
        %v6405 = vsub.f32 %v5829, %v6139
        %v6406 = vsub.f32 %v5830, %v6139
        %v6407 = vsub.f32 %v5831, %v6139
        %v6408 = vsub.f32 %v5832, %v6144
        %v6409 = vsub.f32 %v5833, %v6144
        %v6410 = vsub.f32 %v5834, %v6144
        %v6411 = vsub.f32 %v5835, %v6144
        %v6412 = vsub.f32 %v5836, %v6149
        %v6413 = vsub.f32 %v5837, %v6149
        %v6414 = vsub.f32 %v5838, %v6149
        %v6415 = vsub.f32 %v5839, %v6149
        %v6416 = vsub.f32 %v5840, %v6154
        %v6417 = vsub.f32 %v5841, %v6154
        %v6418 = vsub.f32 %v5842, %v6154
        %v6419 = vsub.f32 %v5843, %v6154
        %v6420 = vsub.f32 %v5844, %v6159
        %v6421 = vsub.f32 %v5845, %v6159
        %v6422 = vsub.f32 %v5846, %v6159
        %v6423 = vsub.f32 %v5847, %v6159
        %v6424 = vsub.f32 %v5848, %v6164
        %v6425 = vsub.f32 %v5849, %v6164
        %v6426 = vsub.f32 %v5850, %v6164
        %v6427 = vsub.f32 %v5851, %v6164
        %v6428 = vsub.f32 %v5852, %v6169
        %v6429 = vsub.f32 %v5853, %v6169
        %v6430 = vsub.f32 %v5854, %v6169
        %v6431 = vsub.f32 %v5855, %v6169
        %v6432 = vsub.f32 %v5856, %v6174
        %v6433 = vsub.f32 %v5857, %v6174
        %v6434 = vsub.f32 %v5858, %v6174
        %v6435 = vsub.f32 %v5859, %v6174
        %v6436 = vsub.f32 %v5860, %v6179
        %v6437 = vsub.f32 %v5861, %v6179
        %v6438 = vsub.f32 %v5862, %v6179
        %v6439 = vsub.f32 %v5863, %v6179
        %v6440 = vsub.f32 %v5864, %v6184
        %v6441 = vsub.f32 %v5865, %v6184
        %v6442 = vsub.f32 %v5866, %v6184
        %v6443 = vsub.f32 %v5867, %v6184
        %v6444 = vsub.f32 %v5868, %v6189
        %v6445 = vsub.f32 %v5869, %v6189
        %v6446 = vsub.f32 %v5870, %v6189
        %v6447 = vsub.f32 %v5871, %v6189
        %v6448 = vsub.f32 %v5872, %v6194
        %v6449 = vsub.f32 %v5873, %v6194
        %v6450 = vsub.f32 %v5874, %v6194
        %v6451 = vsub.f32 %v5875, %v6194
        %v6452 = vsub.f32 %v5876, %v6199
        %v6453 = vsub.f32 %v5877, %v6199
        %v6454 = vsub.f32 %v5878, %v6199
        %v6455 = vsub.f32 %v5879, %v6199
        %v6456 = vmul.f32 %v6200, 1.442695
        %v6457 = vpow.pop %v6456
        %v6458 = vmul.f32 %v6201, 1.442695
        %v6459 = vpow.pop %v6458
        %v6460 = vmul.f32 %v6202, 1.442695
        %v6461 = vpow.pop %v6460
        %v6462 = vmul.f32 %v6203, 1.442695
        %v6463 = vpow.pop %v6462
        %v6464 = vmul.f32 %v6204, 1.442695
        %v6465 = vpow.pop %v6464
        %v6466 = vmul.f32 %v6205, 1.442695
        %v6467 = vpow.pop %v6466
        %v6468 = vmul.f32 %v6206, 1.442695
        %v6469 = vpow.pop %v6468
        %v6470 = vmul.f32 %v6207, 1.442695
        %v6471 = vpow.pop %v6470
        %v6472 = vmul.f32 %v6208, 1.442695
        %v6473 = vpow.pop %v6472
        %v6474 = vmul.f32 %v6209, 1.442695
        %v6475 = vpow.pop %v6474
        %v6476 = vmul.f32 %v6210, 1.442695
        %v6477 = vpow.pop %v6476
        %v6478 = vmul.f32 %v6211, 1.442695
        %v6479 = vpow.pop %v6478
        %v6480 = vmul.f32 %v6212, 1.442695
        %v6481 = vpow.pop %v6480
        %v6482 = vmul.f32 %v6213, 1.442695
        %v6483 = vpow.pop %v6482
        %v6484 = vmul.f32 %v6214, 1.442695
        %v6485 = vpow.pop %v6484
        %v6486 = vmul.f32 %v6215, 1.442695
        %v6487 = vpow.pop %v6486
        %v6488 = vmul.f32 %v6216, 1.442695
        %v6489 = vpow.pop %v6488
        %v6490 = vmul.f32 %v6217, 1.442695
        %v6491 = vpow.pop %v6490
        %v6492 = vmul.f32 %v6218, 1.442695
        %v6493 = vpow.pop %v6492
        %v6494 = vmul.f32 %v6219, 1.442695
        %v6495 = vpow.pop %v6494
        %v6496 = vmul.f32 %v6220, 1.442695
        %v6497 = vpow.pop %v6496
        %v6498 = vmul.f32 %v6221, 1.442695
        %v6499 = vpow.pop %v6498
        %v6500 = vmul.f32 %v6222, 1.442695
        %v6501 = vpow.pop %v6500
        %v6502 = vmul.f32 %v6223, 1.442695
        %v6503 = vpow.pop %v6502
        %v6504 = vmul.f32 %v6224, 1.442695
        %v6505 = vpow.pop %v6504
        %v6506 = vmul.f32 %v6225, 1.442695
        %v6507 = vpow.pop %v6506
        %v6508 = vmul.f32 %v6226, 1.442695
        %v6509 = vpow.pop %v6508
        %v6510 = vmul.f32 %v6227, 1.442695
        %v6511 = vpow.pop %v6510
        %v6512 = vmul.f32 %v6228, 1.442695
        %v6513 = vpow.pop %v6512
        %v6514 = vmul.f32 %v6229, 1.442695
        %v6515 = vpow.pop %v6514
        %v6516 = vmul.f32 %v6230, 1.442695
        %v6517 = vpow.pop %v6516
        %v6518 = vmul.f32 %v6231, 1.442695
        %v6519 = vpow.pop %v6518
        %v6520 = vmul.f32 %v6232, 1.442695
        %v6521 = vpow.pop %v6520
        %v6522 = vmul.f32 %v6233, 1.442695
        %v6523 = vpow.pop %v6522
        %v6524 = vmul.f32 %v6234, 1.442695
        %v6525 = vpow.pop %v6524
        %v6526 = vmul.f32 %v6235, 1.442695
        %v6527 = vpow.pop %v6526
        %v6528 = vmul.f32 %v6236, 1.442695
        %v6529 = vpow.pop %v6528
        %v6530 = vmul.f32 %v6237, 1.442695
        %v6531 = vpow.pop %v6530
        %v6532 = vmul.f32 %v6238, 1.442695
        %v6533 = vpow.pop %v6532
        %v6534 = vmul.f32 %v6239, 1.442695
        %v6535 = vpow.pop %v6534
        %v6536 = vmul.f32 %v6240, 1.442695
        %v6537 = vpow.pop %v6536
        %v6538 = vmul.f32 %v6241, 1.442695
        %v6539 = vpow.pop %v6538
        %v6540 = vmul.f32 %v6242, 1.442695
        %v6541 = vpow.pop %v6540
        %v6542 = vmul.f32 %v6243, 1.442695
        %v6543 = vpow.pop %v6542
        %v6544 = vmul.f32 %v6244, 1.442695
        %v6545 = vpow.pop %v6544
        %v6546 = vmul.f32 %v6245, 1.442695
        %v6547 = vpow.pop %v6546
        %v6548 = vmul.f32 %v6246, 1.442695
        %v6549 = vpow.pop %v6548
        %v6550 = vmul.f32 %v6247, 1.442695
        %v6551 = vpow.pop %v6550
        %v6552 = vmul.f32 %v6248, 1.442695
        %v6553 = vpow.pop %v6552
        %v6554 = vmul.f32 %v6249, 1.442695
        %v6555 = vpow.pop %v6554
        %v6556 = vmul.f32 %v6250, 1.442695
        %v6557 = vpow.pop %v6556
        %v6558 = vmul.f32 %v6251, 1.442695
        %v6559 = vpow.pop %v6558
        %v6560 = vmul.f32 %v6252, 1.442695
        %v6561 = vpow.pop %v6560
        %v6562 = vmul.f32 %v6253, 1.442695
        %v6563 = vpow.pop %v6562
        %v6564 = vmul.f32 %v6254, 1.442695
        %v6565 = vpow.pop %v6564
        %v6566 = vmul.f32 %v6255, 1.442695
        %v6567 = vpow.pop %v6566
        %v6568 = vmul.f32 %v6256, 1.442695
        %v6569 = vpow.pop %v6568
        %v6570 = vmul.f32 %v6257, 1.442695
        %v6571 = vpow.pop %v6570
        %v6572 = vmul.f32 %v6258, 1.442695
        %v6573 = vpow.pop %v6572
        %v6574 = vmul.f32 %v6259, 1.442695
        %v6575 = vpow.pop %v6574
        %v6576 = vmul.f32 %v6260, 1.442695
        %v6577 = vpow.pop %v6576
        %v6578 = vmul.f32 %v6261, 1.442695
        %v6579 = vpow.pop %v6578
        %v6580 = vmul.f32 %v6262, 1.442695
        %v6581 = vpow.pop %v6580
        %v6582 = vmul.f32 %v6263, 1.442695
        %v6583 = vpow.pop %v6582
        %v6584 = vmul.f32 %v6264, 1.442695
        %v6585 = vpow.pop %v6584
        %v6586 = vmul.f32 %v6265, 1.442695
        %v6587 = vpow.pop %v6586
        %v6588 = vmul.f32 %v6266, 1.442695
        %v6589 = vpow.pop %v6588
        %v6590 = vmul.f32 %v6267, 1.442695
        %v6591 = vpow.pop %v6590
        %v6592 = vmul.f32 %v6268, 1.442695
        %v6593 = vpow.pop %v6592
        %v6594 = vmul.f32 %v6269, 1.442695
        %v6595 = vpow.pop %v6594
        %v6596 = vmul.f32 %v6270, 1.442695
        %v6597 = vpow.pop %v6596
        %v6598 = vmul.f32 %v6271, 1.442695
        %v6599 = vpow.pop %v6598
        %v6600 = vmul.f32 %v6272, 1.442695
        %v6601 = vpow.pop %v6600
        %v6602 = vmul.f32 %v6273, 1.442695
        %v6603 = vpow.pop %v6602
        %v6604 = vmul.f32 %v6274, 1.442695
        %v6605 = vpow.pop %v6604
        %v6606 = vmul.f32 %v6275, 1.442695
        %v6607 = vpow.pop %v6606
        %v6608 = vmul.f32 %v6276, 1.442695
        %v6609 = vpow.pop %v6608
        %v6610 = vmul.f32 %v6277, 1.442695
        %v6611 = vpow.pop %v6610
        %v6612 = vmul.f32 %v6278, 1.442695
        %v6613 = vpow.pop %v6612
        %v6614 = vmul.f32 %v6279, 1.442695
        %v6615 = vpow.pop %v6614
        %v6616 = vmul.f32 %v6280, 1.442695
        %v6617 = vpow.pop %v6616
        %v6618 = vmul.f32 %v6281, 1.442695
        %v6619 = vpow.pop %v6618
        %v6620 = vmul.f32 %v6282, 1.442695
        %v6621 = vpow.pop %v6620
        %v6622 = vmul.f32 %v6283, 1.442695
        %v6623 = vpow.pop %v6622
        %v6624 = vmul.f32 %v6284, 1.442695
        %v6625 = vpow.pop %v6624
        %v6626 = vmul.f32 %v6285, 1.442695
        %v6627 = vpow.pop %v6626
        %v6628 = vmul.f32 %v6286, 1.442695
        %v6629 = vpow.pop %v6628
        %v6630 = vmul.f32 %v6287, 1.442695
        %v6631 = vpow.pop %v6630
        %v6632 = vmul.f32 %v6288, 1.442695
        %v6633 = vpow.pop %v6632
        %v6634 = vmul.f32 %v6289, 1.442695
        %v6635 = vpow.pop %v6634
        %v6636 = vmul.f32 %v6290, 1.442695
        %v6637 = vpow.pop %v6636
        %v6638 = vmul.f32 %v6291, 1.442695
        %v6639 = vpow.pop %v6638
        %v6640 = vmul.f32 %v6292, 1.442695
        %v6641 = vpow.pop %v6640
        %v6642 = vmul.f32 %v6293, 1.442695
        %v6643 = vpow.pop %v6642
        %v6644 = vmul.f32 %v6294, 1.442695
        %v6645 = vpow.pop %v6644
        %v6646 = vmul.f32 %v6295, 1.442695
        %v6647 = vpow.pop %v6646
        %v6648 = vmul.f32 %v6296, 1.442695
        %v6649 = vpow.pop %v6648
        %v6650 = vmul.f32 %v6297, 1.442695
        %v6651 = vpow.pop %v6650
        %v6652 = vmul.f32 %v6298, 1.442695
        %v6653 = vpow.pop %v6652
        %v6654 = vmul.f32 %v6299, 1.442695
        %v6655 = vpow.pop %v6654
        %v6656 = vmul.f32 %v6300, 1.442695
        %v6657 = vpow.pop %v6656
        %v6658 = vmul.f32 %v6301, 1.442695
        %v6659 = vpow.pop %v6658
        %v6660 = vmul.f32 %v6302, 1.442695
        %v6661 = vpow.pop %v6660
        %v6662 = vmul.f32 %v6303, 1.442695
        %v6663 = vpow.pop %v6662
        %v6664 = vmul.f32 %v6304, 1.442695
        %v6665 = vpow.pop %v6664
        %v6666 = vmul.f32 %v6305, 1.442695
        %v6667 = vpow.pop %v6666
        %v6668 = vmul.f32 %v6306, 1.442695
        %v6669 = vpow.pop %v6668
        %v6670 = vmul.f32 %v6307, 1.442695
        %v6671 = vpow.pop %v6670
        %v6672 = vmul.f32 %v6308, 1.442695
        %v6673 = vpow.pop %v6672
        %v6674 = vmul.f32 %v6309, 1.442695
        %v6675 = vpow.pop %v6674
        %v6676 = vmul.f32 %v6310, 1.442695
        %v6677 = vpow.pop %v6676
        %v6678 = vmul.f32 %v6311, 1.442695
        %v6679 = vpow.pop %v6678
        %v6680 = vmul.f32 %v6312, 1.442695
        %v6681 = vpow.pop %v6680
        %v6682 = vmul.f32 %v6313, 1.442695
        %v6683 = vpow.pop %v6682
        %v6684 = vmul.f32 %v6314, 1.442695
        %v6685 = vpow.pop %v6684
        %v6686 = vmul.f32 %v6315, 1.442695
        %v6687 = vpow.pop %v6686
        %v6688 = vmul.f32 %v6316, 1.442695
        %v6689 = vpow.pop %v6688
        %v6690 = vmul.f32 %v6317, 1.442695
        %v6691 = vpow.pop %v6690
        %v6692 = vmul.f32 %v6318, 1.442695
        %v6693 = vpow.pop %v6692
        %v6694 = vmul.f32 %v6319, 1.442695
        %v6695 = vpow.pop %v6694
        %v6696 = vmul.f32 %v6320, 1.442695
        %v6697 = vpow.pop %v6696
        %v6698 = vmul.f32 %v6321, 1.442695
        %v6699 = vpow.pop %v6698
        %v6700 = vmul.f32 %v6322, 1.442695
        %v6701 = vpow.pop %v6700
        %v6702 = vmul.f32 %v6323, 1.442695
        %v6703 = vpow.pop %v6702
        %v6704 = vmul.f32 %v6324, 1.442695
        %v6705 = vpow.pop %v6704
        %v6706 = vmul.f32 %v6325, 1.442695
        %v6707 = vpow.pop %v6706
        %v6708 = vmul.f32 %v6326, 1.442695
        %v6709 = vpow.pop %v6708
        %v6710 = vmul.f32 %v6327, 1.442695
        %v6711 = vpow.pop %v6710
        %v6712 = vmul.f32 %v6328, 1.442695
        %v6713 = vpow.pop %v6712
        %v6714 = vmul.f32 %v6329, 1.442695
        %v6715 = vpow.pop %v6714
        %v6716 = vmul.f32 %v6330, 1.442695
        %v6717 = vpow.pop %v6716
        %v6718 = vmul.f32 %v6331, 1.442695
        %v6719 = vpow.pop %v6718
        %v6720 = vmul.f32 %v6332, 1.442695
        %v6721 = vpow.pop %v6720
        %v6722 = vmul.f32 %v6333, 1.442695
        %v6723 = vpow.pop %v6722
        %v6724 = vmul.f32 %v6334, 1.442695
        %v6725 = vpow.pop %v6724
        %v6726 = vmul.f32 %v6335, 1.442695
        %v6727 = vpow.pop %v6726
        %v6728 = vmul.f32 %v6336, 1.442695
        %v6729 = vpow.pop %v6728
        %v6730 = vmul.f32 %v6337, 1.442695
        %v6731 = vpow.pop %v6730
        %v6732 = vmul.f32 %v6338, 1.442695
        %v6733 = vpow.pop %v6732
        %v6734 = vmul.f32 %v6339, 1.442695
        %v6735 = vpow.pop %v6734
        %v6736 = vmul.f32 %v6340, 1.442695
        %v6737 = vpow.pop %v6736
        %v6738 = vmul.f32 %v6341, 1.442695
        %v6739 = vpow.pop %v6738
        %v6740 = vmul.f32 %v6342, 1.442695
        %v6741 = vpow.pop %v6740
        %v6742 = vmul.f32 %v6343, 1.442695
        %v6743 = vpow.pop %v6742
        %v6744 = vmul.f32 %v6344, 1.442695
        %v6745 = vpow.pop %v6744
        %v6746 = vmul.f32 %v6345, 1.442695
        %v6747 = vpow.pop %v6746
        %v6748 = vmul.f32 %v6346, 1.442695
        %v6749 = vpow.pop %v6748
        %v6750 = vmul.f32 %v6347, 1.442695
        %v6751 = vpow.pop %v6750
        %v6752 = vmul.f32 %v6348, 1.442695
        %v6753 = vpow.pop %v6752
        %v6754 = vmul.f32 %v6349, 1.442695
        %v6755 = vpow.pop %v6754
        %v6756 = vmul.f32 %v6350, 1.442695
        %v6757 = vpow.pop %v6756
        %v6758 = vmul.f32 %v6351, 1.442695
        %v6759 = vpow.pop %v6758
        %v6760 = vmul.f32 %v6352, 1.442695
        %v6761 = vpow.pop %v6760
        %v6762 = vmul.f32 %v6353, 1.442695
        %v6763 = vpow.pop %v6762
        %v6764 = vmul.f32 %v6354, 1.442695
        %v6765 = vpow.pop %v6764
        %v6766 = vmul.f32 %v6355, 1.442695
        %v6767 = vpow.pop %v6766
        %v6768 = vmul.f32 %v6356, 1.442695
        %v6769 = vpow.pop %v6768
        %v6770 = vmul.f32 %v6357, 1.442695
        %v6771 = vpow.pop %v6770
        %v6772 = vmul.f32 %v6358, 1.442695
        %v6773 = vpow.pop %v6772
        %v6774 = vmul.f32 %v6359, 1.442695
        %v6775 = vpow.pop %v6774
        %v6776 = vmul.f32 %v6360, 1.442695
        %v6777 = vpow.pop %v6776
        %v6778 = vmul.f32 %v6361, 1.442695
        %v6779 = vpow.pop %v6778
        %v6780 = vmul.f32 %v6362, 1.442695
        %v6781 = vpow.pop %v6780
        %v6782 = vmul.f32 %v6363, 1.442695
        %v6783 = vpow.pop %v6782
        %v6784 = vmul.f32 %v6364, 1.442695
        %v6785 = vpow.pop %v6784
        %v6786 = vmul.f32 %v6365, 1.442695
        %v6787 = vpow.pop %v6786
        %v6788 = vmul.f32 %v6366, 1.442695
        %v6789 = vpow.pop %v6788
        %v6790 = vmul.f32 %v6367, 1.442695
        %v6791 = vpow.pop %v6790
        %v6792 = vmul.f32 %v6368, 1.442695
        %v6793 = vpow.pop %v6792
        %v6794 = vmul.f32 %v6369, 1.442695
        %v6795 = vpow.pop %v6794
        %v6796 = vmul.f32 %v6370, 1.442695
        %v6797 = vpow.pop %v6796
        %v6798 = vmul.f32 %v6371, 1.442695
        %v6799 = vpow.pop %v6798
        %v6800 = vmul.f32 %v6372, 1.442695
        %v6801 = vpow.pop %v6800
        %v6802 = vmul.f32 %v6373, 1.442695
        %v6803 = vpow.pop %v6802
        %v6804 = vmul.f32 %v6374, 1.442695
        %v6805 = vpow.pop %v6804
        %v6806 = vmul.f32 %v6375, 1.442695
        %v6807 = vpow.pop %v6806
        %v6808 = vmul.f32 %v6376, 1.442695
        %v6809 = vpow.pop %v6808
        %v6810 = vmul.f32 %v6377, 1.442695
        %v6811 = vpow.pop %v6810
        %v6812 = vmul.f32 %v6378, 1.442695
        %v6813 = vpow.pop %v6812
        %v6814 = vmul.f32 %v6379, 1.442695
        %v6815 = vpow.pop %v6814
        %v6816 = vmul.f32 %v6380, 1.442695
        %v6817 = vpow.pop %v6816
        %v6818 = vmul.f32 %v6381, 1.442695
        %v6819 = vpow.pop %v6818
        %v6820 = vmul.f32 %v6382, 1.442695
        %v6821 = vpow.pop %v6820
        %v6822 = vmul.f32 %v6383, 1.442695
        %v6823 = vpow.pop %v6822
        %v6824 = vmul.f32 %v6384, 1.442695
        %v6825 = vpow.pop %v6824
        %v6826 = vmul.f32 %v6385, 1.442695
        %v6827 = vpow.pop %v6826
        %v6828 = vmul.f32 %v6386, 1.442695
        %v6829 = vpow.pop %v6828
        %v6830 = vmul.f32 %v6387, 1.442695
        %v6831 = vpow.pop %v6830
        %v6832 = vmul.f32 %v6388, 1.442695
        %v6833 = vpow.pop %v6832
        %v6834 = vmul.f32 %v6389, 1.442695
        %v6835 = vpow.pop %v6834
        %v6836 = vmul.f32 %v6390, 1.442695
        %v6837 = vpow.pop %v6836
        %v6838 = vmul.f32 %v6391, 1.442695
        %v6839 = vpow.pop %v6838
        %v6840 = vmul.f32 %v6392, 1.442695
        %v6841 = vpow.pop %v6840
        %v6842 = vmul.f32 %v6393, 1.442695
        %v6843 = vpow.pop %v6842
        %v6844 = vmul.f32 %v6394, 1.442695
        %v6845 = vpow.pop %v6844
        %v6846 = vmul.f32 %v6395, 1.442695
        %v6847 = vpow.pop %v6846
        %v6848 = vmul.f32 %v6396, 1.442695
        %v6849 = vpow.pop %v6848
        %v6850 = vmul.f32 %v6397, 1.442695
        %v6851 = vpow.pop %v6850
        %v6852 = vmul.f32 %v6398, 1.442695
        %v6853 = vpow.pop %v6852
        %v6854 = vmul.f32 %v6399, 1.442695
        %v6855 = vpow.pop %v6854
        %v6856 = vmul.f32 %v6400, 1.442695
        %v6857 = vpow.pop %v6856
        %v6858 = vmul.f32 %v6401, 1.442695
        %v6859 = vpow.pop %v6858
        %v6860 = vmul.f32 %v6402, 1.442695
        %v6861 = vpow.pop %v6860
        %v6862 = vmul.f32 %v6403, 1.442695
        %v6863 = vpow.pop %v6862
        %v6864 = vmul.f32 %v6404, 1.442695
        %v6865 = vpow.pop %v6864
        %v6866 = vmul.f32 %v6405, 1.442695
        %v6867 = vpow.pop %v6866
        %v6868 = vmul.f32 %v6406, 1.442695
        %v6869 = vpow.pop %v6868
        %v6870 = vmul.f32 %v6407, 1.442695
        %v6871 = vpow.pop %v6870
        %v6872 = vmul.f32 %v6408, 1.442695
        %v6873 = vpow.pop %v6872
        %v6874 = vmul.f32 %v6409, 1.442695
        %v6875 = vpow.pop %v6874
        %v6876 = vmul.f32 %v6410, 1.442695
        %v6877 = vpow.pop %v6876
        %v6878 = vmul.f32 %v6411, 1.442695
        %v6879 = vpow.pop %v6878
        %v6880 = vmul.f32 %v6412, 1.442695
        %v6881 = vpow.pop %v6880
        %v6882 = vmul.f32 %v6413, 1.442695
        %v6883 = vpow.pop %v6882
        %v6884 = vmul.f32 %v6414, 1.442695
        %v6885 = vpow.pop %v6884
        %v6886 = vmul.f32 %v6415, 1.442695
        %v6887 = vpow.pop %v6886
        %v6888 = vmul.f32 %v6416, 1.442695
        %v6889 = vpow.pop %v6888
        %v6890 = vmul.f32 %v6417, 1.442695
        %v6891 = vpow.pop %v6890
        %v6892 = vmul.f32 %v6418, 1.442695
        %v6893 = vpow.pop %v6892
        %v6894 = vmul.f32 %v6419, 1.442695
        %v6895 = vpow.pop %v6894
        %v6896 = vmul.f32 %v6420, 1.442695
        %v6897 = vpow.pop %v6896
        %v6898 = vmul.f32 %v6421, 1.442695
        %v6899 = vpow.pop %v6898
        %v6900 = vmul.f32 %v6422, 1.442695
        %v6901 = vpow.pop %v6900
        %v6902 = vmul.f32 %v6423, 1.442695
        %v6903 = vpow.pop %v6902
        %v6904 = vmul.f32 %v6424, 1.442695
        %v6905 = vpow.pop %v6904
        %v6906 = vmul.f32 %v6425, 1.442695
        %v6907 = vpow.pop %v6906
        %v6908 = vmul.f32 %v6426, 1.442695
        %v6909 = vpow.pop %v6908
        %v6910 = vmul.f32 %v6427, 1.442695
        %v6911 = vpow.pop %v6910
        %v6912 = vmul.f32 %v6428, 1.442695
        %v6913 = vpow.pop %v6912
        %v6914 = vmul.f32 %v6429, 1.442695
        %v6915 = vpow.pop %v6914
        %v6916 = vmul.f32 %v6430, 1.442695
        %v6917 = vpow.pop %v6916
        %v6918 = vmul.f32 %v6431, 1.442695
        %v6919 = vpow.pop %v6918
        %v6920 = vmul.f32 %v6432, 1.442695
        %v6921 = vpow.pop %v6920
        %v6922 = vmul.f32 %v6433, 1.442695
        %v6923 = vpow.pop %v6922
        %v6924 = vmul.f32 %v6434, 1.442695
        %v6925 = vpow.pop %v6924
        %v6926 = vmul.f32 %v6435, 1.442695
        %v6927 = vpow.pop %v6926
        %v6928 = vmul.f32 %v6436, 1.442695
        %v6929 = vpow.pop %v6928
        %v6930 = vmul.f32 %v6437, 1.442695
        %v6931 = vpow.pop %v6930
        %v6932 = vmul.f32 %v6438, 1.442695
        %v6933 = vpow.pop %v6932
        %v6934 = vmul.f32 %v6439, 1.442695
        %v6935 = vpow.pop %v6934
        %v6936 = vmul.f32 %v6440, 1.442695
        %v6937 = vpow.pop %v6936
        %v6938 = vmul.f32 %v6441, 1.442695
        %v6939 = vpow.pop %v6938
        %v6940 = vmul.f32 %v6442, 1.442695
        %v6941 = vpow.pop %v6940
        %v6942 = vmul.f32 %v6443, 1.442695
        %v6943 = vpow.pop %v6942
        %v6944 = vmul.f32 %v6444, 1.442695
        %v6945 = vpow.pop %v6944
        %v6946 = vmul.f32 %v6445, 1.442695
        %v6947 = vpow.pop %v6946
        %v6948 = vmul.f32 %v6446, 1.442695
        %v6949 = vpow.pop %v6948
        %v6950 = vmul.f32 %v6447, 1.442695
        %v6951 = vpow.pop %v6950
        %v6952 = vmul.f32 %v6448, 1.442695
        %v6953 = vpow.pop %v6952
        %v6954 = vmul.f32 %v6449, 1.442695
        %v6955 = vpow.pop %v6954
        %v6956 = vmul.f32 %v6450, 1.442695
        %v6957 = vpow.pop %v6956
        %v6958 = vmul.f32 %v6451, 1.442695
        %v6959 = vpow.pop %v6958
        %v6960 = vmul.f32 %v6452, 1.442695
        %v6961 = vpow.pop %v6960
        %v6962 = vmul.f32 %v6453, 1.442695
        %v6963 = vpow.pop %v6962
        %v6964 = vmul.f32 %v6454, 1.442695
        %v6965 = vpow.pop %v6964
        %v6966 = vmul.f32 %v6455, 1.442695
        %v6967 = vpow.pop %v6966
        %v6968 = vadd.f32 %v6457, %v6459
        %v6969 = vadd.f32 %v6968, %v6461
        %v6970 = vadd.f32 %v6969, %v6463
        %6971 = vadd.xlane.f32.xlu0 %v6970
        %v6972 = vpop.xlane.xlu0 %6971
        %v6973 = vadd.f32 %v6465, %v6467
        %v6974 = vadd.f32 %v6973, %v6469
        %v6975 = vadd.f32 %v6974, %v6471
        %6976 = vadd.xlane.f32.xlu0 %v6975
        %v6977 = vpop.xlane.xlu0 %6976
        %v6978 = vadd.f32 %v6473, %v6475
        %v6979 = vadd.f32 %v6978, %v6477
        %v6980 = vadd.f32 %v6979, %v6479
        %6981 = vadd.xlane.f32.xlu0 %v6980
        %v6982 = vpop.xlane.xlu0 %6981
        %v6983 = vadd.f32 %v6481, %v6483
        %v6984 = vadd.f32 %v6983, %v6485
        %v6985 = vadd.f32 %v6984, %v6487
        %6986 = vadd.xlane.f32.xlu0 %v6985
        %v6987 = vpop.xlane.xlu0 %6986
        %v6988 = vadd.f32 %v6489, %v6491
        %v6989 = vadd.f32 %v6988, %v6493
        %v6990 = vadd.f32 %v6989, %v6495
        %6991 = vadd.xlane.f32.xlu0 %v6990
        %v6992 = vpop.xlane.xlu0 %6991
        %v6993 = vadd.f32 %v6497, %v6499
        %v6994 = vadd.f32 %v6993, %v6501
        %v6995 = vadd.f32 %v6994, %v6503
        %6996 = vadd.xlane.f32.xlu0 %v6995
        %v6997 = vpop.xlane.xlu0 %6996
        %v6998 = vadd.f32 %v6505, %v6507
        %v6999 = vadd.f32 %v6998, %v6509
        %v7000 = vadd.f32 %v6999, %v6511
        %7001 = vadd.xlane.f32.xlu0 %v7000
        %v7002 = vpop.xlane.xlu0 %7001
        %v7003 = vadd.f32 %v6513, %v6515
        %v7004 = vadd.f32 %v7003, %v6517
        %v7005 = vadd.f32 %v7004, %v6519
        %7006 = vadd.xlane.f32.xlu0 %v7005
        %v7007 = vpop.xlane.xlu0 %7006
        %v7008 = vadd.f32 %v6521, %v6523
        %v7009 = vadd.f32 %v7008, %v6525
        %v7010 = vadd.f32 %v7009, %v6527
        %7011 = vadd.xlane.f32.xlu0 %v7010
        %v7012 = vpop.xlane.xlu0 %7011
        %v7013 = vadd.f32 %v6529, %v6531
        %v7014 = vadd.f32 %v7013, %v6533
        %v7015 = vadd.f32 %v7014, %v6535
        %7016 = vadd.xlane.f32.xlu0 %v7015
        %v7017 = vpop.xlane.xlu0 %7016
        %v7018 = vadd.f32 %v6537, %v6539
        %v7019 = vadd.f32 %v7018, %v6541
        %v7020 = vadd.f32 %v7019, %v6543
        %7021 = vadd.xlane.f32.xlu0 %v7020
        %v7022 = vpop.xlane.xlu0 %7021
        %v7023 = vadd.f32 %v6545, %v6547
        %v7024 = vadd.f32 %v7023, %v6549
        %v7025 = vadd.f32 %v7024, %v6551
        %7026 = vadd.xlane.f32.xlu0 %v7025
        %v7027 = vpop.xlane.xlu0 %7026
        %v7028 = vadd.f32 %v6553, %v6555
        %v7029 = vadd.f32 %v7028, %v6557
        %v7030 = vadd.f32 %v7029, %v6559
        %7031 = vadd.xlane.f32.xlu0 %v7030
        %v7032 = vpop.xlane.xlu0 %7031
        %v7033 = vadd.f32 %v6561, %v6563
        %v7034 = vadd.f32 %v7033, %v6565
        %v7035 = vadd.f32 %v7034, %v6567
        %7036 = vadd.xlane.f32.xlu0 %v7035
        %v7037 = vpop.xlane.xlu0 %7036
        %v7038 = vadd.f32 %v6569, %v6571
        %v7039 = vadd.f32 %v7038, %v6573
        %v7040 = vadd.f32 %v7039, %v6575
        %7041 = vadd.xlane.f32.xlu0 %v7040
        %v7042 = vpop.xlane.xlu0 %7041
        %v7043 = vadd.f32 %v6577, %v6579
        %v7044 = vadd.f32 %v7043, %v6581
        %v7045 = vadd.f32 %v7044, %v6583
        %7046 = vadd.xlane.f32.xlu0 %v7045
        %v7047 = vpop.xlane.xlu0 %7046
        %v7048 = vadd.f32 %v6585, %v6587
        %v7049 = vadd.f32 %v7048, %v6589
        %v7050 = vadd.f32 %v7049, %v6591
        %7051 = vadd.xlane.f32.xlu0 %v7050
        %v7052 = vpop.xlane.xlu0 %7051
        %v7053 = vadd.f32 %v6593, %v6595
        %v7054 = vadd.f32 %v7053, %v6597
        %v7055 = vadd.f32 %v7054, %v6599
        %7056 = vadd.xlane.f32.xlu0 %v7055
        %v7057 = vpop.xlane.xlu0 %7056
        %v7058 = vadd.f32 %v6601, %v6603
        %v7059 = vadd.f32 %v7058, %v6605
        %v7060 = vadd.f32 %v7059, %v6607
        %7061 = vadd.xlane.f32.xlu0 %v7060
        %v7062 = vpop.xlane.xlu0 %7061
        %v7063 = vadd.f32 %v6609, %v6611
        %v7064 = vadd.f32 %v7063, %v6613
        %v7065 = vadd.f32 %v7064, %v6615
        %7066 = vadd.xlane.f32.xlu0 %v7065
        %v7067 = vpop.xlane.xlu0 %7066
        %v7068 = vadd.f32 %v6617, %v6619
        %v7069 = vadd.f32 %v7068, %v6621
        %v7070 = vadd.f32 %v7069, %v6623
        %7071 = vadd.xlane.f32.xlu0 %v7070
        %v7072 = vpop.xlane.xlu0 %7071
        %v7073 = vadd.f32 %v6625, %v6627
        %v7074 = vadd.f32 %v7073, %v6629
        %v7075 = vadd.f32 %v7074, %v6631
        %7076 = vadd.xlane.f32.xlu0 %v7075
        %v7077 = vpop.xlane.xlu0 %7076
        %v7078 = vadd.f32 %v6633, %v6635
        %v7079 = vadd.f32 %v7078, %v6637
        %v7080 = vadd.f32 %v7079, %v6639
        %7081 = vadd.xlane.f32.xlu0 %v7080
        %v7082 = vpop.xlane.xlu0 %7081
        %v7083 = vadd.f32 %v6641, %v6643
        %v7084 = vadd.f32 %v7083, %v6645
        %v7085 = vadd.f32 %v7084, %v6647
        %7086 = vadd.xlane.f32.xlu0 %v7085
        %v7087 = vpop.xlane.xlu0 %7086
        %v7088 = vadd.f32 %v6649, %v6651
        %v7089 = vadd.f32 %v7088, %v6653
        %v7090 = vadd.f32 %v7089, %v6655
        %7091 = vadd.xlane.f32.xlu0 %v7090
        %v7092 = vpop.xlane.xlu0 %7091
        %v7093 = vadd.f32 %v6657, %v6659
        %v7094 = vadd.f32 %v7093, %v6661
        %v7095 = vadd.f32 %v7094, %v6663
        %7096 = vadd.xlane.f32.xlu0 %v7095
        %v7097 = vpop.xlane.xlu0 %7096
        %v7098 = vadd.f32 %v6665, %v6667
        %v7099 = vadd.f32 %v7098, %v6669
        %v7100 = vadd.f32 %v7099, %v6671
        %7101 = vadd.xlane.f32.xlu0 %v7100
        %v7102 = vpop.xlane.xlu0 %7101
        %v7103 = vadd.f32 %v6673, %v6675
        %v7104 = vadd.f32 %v7103, %v6677
        %v7105 = vadd.f32 %v7104, %v6679
        %7106 = vadd.xlane.f32.xlu0 %v7105
        %v7107 = vpop.xlane.xlu0 %7106
        %v7108 = vadd.f32 %v6681, %v6683
        %v7109 = vadd.f32 %v7108, %v6685
        %v7110 = vadd.f32 %v7109, %v6687
        %7111 = vadd.xlane.f32.xlu0 %v7110
        %v7112 = vpop.xlane.xlu0 %7111
        %v7113 = vadd.f32 %v6689, %v6691
        %v7114 = vadd.f32 %v7113, %v6693
        %v7115 = vadd.f32 %v7114, %v6695
        %7116 = vadd.xlane.f32.xlu0 %v7115
        %v7117 = vpop.xlane.xlu0 %7116
        %v7118 = vadd.f32 %v6697, %v6699
        %v7119 = vadd.f32 %v7118, %v6701
        %v7120 = vadd.f32 %v7119, %v6703
        %7121 = vadd.xlane.f32.xlu0 %v7120
        %v7122 = vpop.xlane.xlu0 %7121
        %v7123 = vadd.f32 %v6705, %v6707
        %v7124 = vadd.f32 %v7123, %v6709
        %v7125 = vadd.f32 %v7124, %v6711
        %7126 = vadd.xlane.f32.xlu0 %v7125
        %v7127 = vpop.xlane.xlu0 %7126
        %v7128 = vadd.f32 %v6713, %v6715
        %v7129 = vadd.f32 %v7128, %v6717
        %v7130 = vadd.f32 %v7129, %v6719
        %7131 = vadd.xlane.f32.xlu0 %v7130
        %v7132 = vpop.xlane.xlu0 %7131
        %v7133 = vadd.f32 %v6721, %v6723
        %v7134 = vadd.f32 %v7133, %v6725
        %v7135 = vadd.f32 %v7134, %v6727
        %7136 = vadd.xlane.f32.xlu0 %v7135
        %v7137 = vpop.xlane.xlu0 %7136
        %v7138 = vadd.f32 %v6729, %v6731
        %v7139 = vadd.f32 %v7138, %v6733
        %v7140 = vadd.f32 %v7139, %v6735
        %7141 = vadd.xlane.f32.xlu0 %v7140
        %v7142 = vpop.xlane.xlu0 %7141
        %v7143 = vadd.f32 %v6737, %v6739
        %v7144 = vadd.f32 %v7143, %v6741
        %v7145 = vadd.f32 %v7144, %v6743
        %7146 = vadd.xlane.f32.xlu0 %v7145
        %v7147 = vpop.xlane.xlu0 %7146
        %v7148 = vadd.f32 %v6745, %v6747
        %v7149 = vadd.f32 %v7148, %v6749
        %v7150 = vadd.f32 %v7149, %v6751
        %7151 = vadd.xlane.f32.xlu0 %v7150
        %v7152 = vpop.xlane.xlu0 %7151
        %v7153 = vadd.f32 %v6753, %v6755
        %v7154 = vadd.f32 %v7153, %v6757
        %v7155 = vadd.f32 %v7154, %v6759
        %7156 = vadd.xlane.f32.xlu0 %v7155
        %v7157 = vpop.xlane.xlu0 %7156
        %v7158 = vadd.f32 %v6761, %v6763
        %v7159 = vadd.f32 %v7158, %v6765
        %v7160 = vadd.f32 %v7159, %v6767
        %7161 = vadd.xlane.f32.xlu0 %v7160
        %v7162 = vpop.xlane.xlu0 %7161
        %v7163 = vadd.f32 %v6769, %v6771
        %v7164 = vadd.f32 %v7163, %v6773
        %v7165 = vadd.f32 %v7164, %v6775
        %7166 = vadd.xlane.f32.xlu0 %v7165
        %v7167 = vpop.xlane.xlu0 %7166
        %v7168 = vadd.f32 %v6777, %v6779
        %v7169 = vadd.f32 %v7168, %v6781
        %v7170 = vadd.f32 %v7169, %v6783
        %7171 = vadd.xlane.f32.xlu0 %v7170
        %v7172 = vpop.xlane.xlu0 %7171
        %v7173 = vadd.f32 %v6785, %v6787
        %v7174 = vadd.f32 %v7173, %v6789
        %v7175 = vadd.f32 %v7174, %v6791
        %7176 = vadd.xlane.f32.xlu0 %v7175
        %v7177 = vpop.xlane.xlu0 %7176
        %v7178 = vadd.f32 %v6793, %v6795
        %v7179 = vadd.f32 %v7178, %v6797
        %v7180 = vadd.f32 %v7179, %v6799
        %7181 = vadd.xlane.f32.xlu0 %v7180
        %v7182 = vpop.xlane.xlu0 %7181
        %v7183 = vadd.f32 %v6801, %v6803
        %v7184 = vadd.f32 %v7183, %v6805
        %v7185 = vadd.f32 %v7184, %v6807
        %7186 = vadd.xlane.f32.xlu0 %v7185
        %v7187 = vpop.xlane.xlu0 %7186
        %v7188 = vadd.f32 %v6809, %v6811
        %v7189 = vadd.f32 %v7188, %v6813
        %v7190 = vadd.f32 %v7189, %v6815
        %7191 = vadd.xlane.f32.xlu0 %v7190
        %v7192 = vpop.xlane.xlu0 %7191
        %v7193 = vadd.f32 %v6817, %v6819
        %v7194 = vadd.f32 %v7193, %v6821
        %v7195 = vadd.f32 %v7194, %v6823
        %7196 = vadd.xlane.f32.xlu0 %v7195
        %v7197 = vpop.xlane.xlu0 %7196
        %v7198 = vadd.f32 %v6825, %v6827
        %v7199 = vadd.f32 %v7198, %v6829
        %v7200 = vadd.f32 %v7199, %v6831
        %7201 = vadd.xlane.f32.xlu0 %v7200
        %v7202 = vpop.xlane.xlu0 %7201
        %v7203 = vadd.f32 %v6833, %v6835
        %v7204 = vadd.f32 %v7203, %v6837
        %v7205 = vadd.f32 %v7204, %v6839
        %7206 = vadd.xlane.f32.xlu0 %v7205
        %v7207 = vpop.xlane.xlu0 %7206
        %v7208 = vadd.f32 %v6841, %v6843
        %v7209 = vadd.f32 %v7208, %v6845
        %v7210 = vadd.f32 %v7209, %v6847
        %7211 = vadd.xlane.f32.xlu0 %v7210
        %v7212 = vpop.xlane.xlu0 %7211
        %v7213 = vadd.f32 %v6849, %v6851
        %v7214 = vadd.f32 %v7213, %v6853
        %v7215 = vadd.f32 %v7214, %v6855
        %7216 = vadd.xlane.f32.xlu0 %v7215
        %v7217 = vpop.xlane.xlu0 %7216
        %v7218 = vadd.f32 %v6857, %v6859
        %v7219 = vadd.f32 %v7218, %v6861
        %v7220 = vadd.f32 %v7219, %v6863
        %7221 = vadd.xlane.f32.xlu0 %v7220
        %v7222 = vpop.xlane.xlu0 %7221
        %v7223 = vadd.f32 %v6865, %v6867
        %v7224 = vadd.f32 %v7223, %v6869
        %v7225 = vadd.f32 %v7224, %v6871
        %7226 = vadd.xlane.f32.xlu0 %v7225
        %v7227 = vpop.xlane.xlu0 %7226
        %v7228 = vadd.f32 %v6873, %v6875
        %v7229 = vadd.f32 %v7228, %v6877
        %v7230 = vadd.f32 %v7229, %v6879
        %7231 = vadd.xlane.f32.xlu0 %v7230
        %v7232 = vpop.xlane.xlu0 %7231
        %v7233 = vadd.f32 %v6881, %v6883
        %v7234 = vadd.f32 %v7233, %v6885
        %v7235 = vadd.f32 %v7234, %v6887
        %7236 = vadd.xlane.f32.xlu0 %v7235
        %v7237 = vpop.xlane.xlu0 %7236
        %v7238 = vadd.f32 %v6889, %v6891
        %v7239 = vadd.f32 %v7238, %v6893
        %v7240 = vadd.f32 %v7239, %v6895
        %7241 = vadd.xlane.f32.xlu0 %v7240
        %v7242 = vpop.xlane.xlu0 %7241
        %v7243 = vadd.f32 %v6897, %v6899
        %v7244 = vadd.f32 %v7243, %v6901
        %v7245 = vadd.f32 %v7244, %v6903
        %7246 = vadd.xlane.f32.xlu0 %v7245
        %v7247 = vpop.xlane.xlu0 %7246
        %v7248 = vadd.f32 %v6905, %v6907
        %v7249 = vadd.f32 %v7248, %v6909
        %v7250 = vadd.f32 %v7249, %v6911
        %7251 = vadd.xlane.f32.xlu0 %v7250
        %v7252 = vpop.xlane.xlu0 %7251
        %v7253 = vadd.f32 %v6913, %v6915
        %v7254 = vadd.f32 %v7253, %v6917
        %v7255 = vadd.f32 %v7254, %v6919
        %7256 = vadd.xlane.f32.xlu0 %v7255
        %v7257 = vpop.xlane.xlu0 %7256
        %v7258 = vadd.f32 %v6921, %v6923
        %v7259 = vadd.f32 %v7258, %v6925
        %v7260 = vadd.f32 %v7259, %v6927
        %7261 = vadd.xlane.f32.xlu0 %v7260
        %v7262 = vpop.xlane.xlu0 %7261
        %v7263 = vadd.f32 %v6929, %v6931
        %v7264 = vadd.f32 %v7263, %v6933
        %v7265 = vadd.f32 %v7264, %v6935
        %7266 = vadd.xlane.f32.xlu0 %v7265
        %v7267 = vpop.xlane.xlu0 %7266
        %v7268 = vadd.f32 %v6937, %v6939
        %v7269 = vadd.f32 %v7268, %v6941
        %v7270 = vadd.f32 %v7269, %v6943
        %7271 = vadd.xlane.f32.xlu0 %v7270
        %v7272 = vpop.xlane.xlu0 %7271
        %v7273 = vadd.f32 %v6945, %v6947
        %v7274 = vadd.f32 %v7273, %v6949
        %v7275 = vadd.f32 %v7274, %v6951
        %7276 = vadd.xlane.f32.xlu0 %v7275
        %v7277 = vpop.xlane.xlu0 %7276
        %v7278 = vadd.f32 %v6953, %v6955
        %v7279 = vadd.f32 %v7278, %v6957
        %v7280 = vadd.f32 %v7279, %v6959
        %7281 = vadd.xlane.f32.xlu0 %v7280
        %v7282 = vpop.xlane.xlu0 %7281
        %v7283 = vadd.f32 %v6961, %v6963
        %v7284 = vadd.f32 %v7283, %v6965
        %v7285 = vadd.f32 %v7284, %v6967
        %7286 = vadd.xlane.f32.xlu0 %v7285
        %v7287 = vpop.xlane.xlu0 %7286
        %v7288 = vrcp.pop %v6972
        %v7289 = vmul.f32 1.0, %v7288
        %v7290 = vrcp.pop %v6977
        %v7291 = vmul.f32 1.0, %v7290
        %v7292 = vrcp.pop %v6982
        %v7293 = vmul.f32 1.0, %v7292
        %v7294 = vrcp.pop %v6987
        %v7295 = vmul.f32 1.0, %v7294
        %v7296 = vrcp.pop %v6992
        %v7297 = vmul.f32 1.0, %v7296
        %v7298 = vrcp.pop %v6997
        %v7299 = vmul.f32 1.0, %v7298
        %v7300 = vrcp.pop %v7002
        %v7301 = vmul.f32 1.0, %v7300
        %v7302 = vrcp.pop %v7007
        %v7303 = vmul.f32 1.0, %v7302
        %v7304 = vrcp.pop %v7012
        %v7305 = vmul.f32 1.0, %v7304
        %v7306 = vrcp.pop %v7017
        %v7307 = vmul.f32 1.0, %v7306
        %v7308 = vrcp.pop %v7022
        %v7309 = vmul.f32 1.0, %v7308
        %v7310 = vrcp.pop %v7027
        %v7311 = vmul.f32 1.0, %v7310
        %v7312 = vrcp.pop %v7032
        %v7313 = vmul.f32 1.0, %v7312
        %v7314 = vrcp.pop %v7037
        %v7315 = vmul.f32 1.0, %v7314
        %v7316 = vrcp.pop %v7042
        %v7317 = vmul.f32 1.0, %v7316
        %v7318 = vrcp.pop %v7047
        %v7319 = vmul.f32 1.0, %v7318
        %v7320 = vrcp.pop %v7052
        %v7321 = vmul.f32 1.0, %v7320
        %v7322 = vrcp.pop %v7057
        %v7323 = vmul.f32 1.0, %v7322
        %v7324 = vrcp.pop %v7062
        %v7325 = vmul.f32 1.0, %v7324
        %v7326 = vrcp.pop %v7067
        %v7327 = vmul.f32 1.0, %v7326
        %v7328 = vrcp.pop %v7072
        %v7329 = vmul.f32 1.0, %v7328
        %v7330 = vrcp.pop %v7077
        %v7331 = vmul.f32 1.0, %v7330
        %v7332 = vrcp.pop %v7082
        %v7333 = vmul.f32 1.0, %v7332
        %v7334 = vrcp.pop %v7087
        %v7335 = vmul.f32 1.0, %v7334
        %v7336 = vrcp.pop %v7092
        %v7337 = vmul.f32 1.0, %v7336
        %v7338 = vrcp.pop %v7097
        %v7339 = vmul.f32 1.0, %v7338
        %v7340 = vrcp.pop %v7102
        %v7341 = vmul.f32 1.0, %v7340
        %v7342 = vrcp.pop %v7107
        %v7343 = vmul.f32 1.0, %v7342
        %v7344 = vrcp.pop %v7112
        %v7345 = vmul.f32 1.0, %v7344
        %v7346 = vrcp.pop %v7117
        %v7347 = vmul.f32 1.0, %v7346
        %v7348 = vrcp.pop %v7122
        %v7349 = vmul.f32 1.0, %v7348
        %v7350 = vrcp.pop %v7127
        %v7351 = vmul.f32 1.0, %v7350
        %v7352 = vrcp.pop %v7132
        %v7353 = vmul.f32 1.0, %v7352
        %v7354 = vrcp.pop %v7137
        %v7355 = vmul.f32 1.0, %v7354
        %v7356 = vrcp.pop %v7142
        %v7357 = vmul.f32 1.0, %v7356
        %v7358 = vrcp.pop %v7147
        %v7359 = vmul.f32 1.0, %v7358
        %v7360 = vrcp.pop %v7152
        %v7361 = vmul.f32 1.0, %v7360
        %v7362 = vrcp.pop %v7157
        %v7363 = vmul.f32 1.0, %v7362
        %v7364 = vrcp.pop %v7162
        %v7365 = vmul.f32 1.0, %v7364
        %v7366 = vrcp.pop %v7167
        %v7367 = vmul.f32 1.0, %v7366
        %v7368 = vrcp.pop %v7172
        %v7369 = vmul.f32 1.0, %v7368
        %v7370 = vrcp.pop %v7177
        %v7371 = vmul.f32 1.0, %v7370
        %v7372 = vrcp.pop %v7182
        %v7373 = vmul.f32 1.0, %v7372
        %v7374 = vrcp.pop %v7187
        %v7375 = vmul.f32 1.0, %v7374
        %v7376 = vrcp.pop %v7192
        %v7377 = vmul.f32 1.0, %v7376
        %v7378 = vrcp.pop %v7197
        %v7379 = vmul.f32 1.0, %v7378
        %v7380 = vrcp.pop %v7202
        %v7381 = vmul.f32 1.0, %v7380
        %v7382 = vrcp.pop %v7207
        %v7383 = vmul.f32 1.0, %v7382
        %v7384 = vrcp.pop %v7212
        %v7385 = vmul.f32 1.0, %v7384
        %v7386 = vrcp.pop %v7217
        %v7387 = vmul.f32 1.0, %v7386
        %v7388 = vrcp.pop %v7222
        %v7389 = vmul.f32 1.0, %v7388
        %v7390 = vrcp.pop %v7227
        %v7391 = vmul.f32 1.0, %v7390
        %v7392 = vrcp.pop %v7232
        %v7393 = vmul.f32 1.0, %v7392
        %v7394 = vrcp.pop %v7237
        %v7395 = vmul.f32 1.0, %v7394
        %v7396 = vrcp.pop %v7242
        %v7397 = vmul.f32 1.0, %v7396
        %v7398 = vrcp.pop %v7247
        %v7399 = vmul.f32 1.0, %v7398
        %v7400 = vrcp.pop %v7252
        %v7401 = vmul.f32 1.0, %v7400
        %v7402 = vrcp.pop %v7257
        %v7403 = vmul.f32 1.0, %v7402
        %v7404 = vrcp.pop %v7262
        %v7405 = vmul.f32 1.0, %v7404
        %v7406 = vrcp.pop %v7267
        %v7407 = vmul.f32 1.0, %v7406
        %v7408 = vrcp.pop %v7272
        %v7409 = vmul.f32 1.0, %v7408
        %v7410 = vrcp.pop %v7277
        %v7411 = vmul.f32 1.0, %v7410
        %v7412 = vrcp.pop %v7282
        %v7413 = vmul.f32 1.0, %v7412
        %v7414 = vrcp.pop %v7287
        %v7415 = vmul.f32 1.0, %v7414
        %v7416 = vmul.f32 %v6457, %v7289
        %v7417 = vmul.f32 %v6459, %v7289
        %v7418 = vmul.f32 %v6461, %v7289
        %v7419 = vmul.f32 %v6463, %v7289
        %v7420 = vmul.f32 %v6465, %v7291
        %v7421 = vmul.f32 %v6467, %v7291
        %v7422 = vmul.f32 %v6469, %v7291
        %v7423 = vmul.f32 %v6471, %v7291
        %v7424 = vmul.f32 %v6473, %v7293
        %v7425 = vmul.f32 %v6475, %v7293
        %v7426 = vmul.f32 %v6477, %v7293
        %v7427 = vmul.f32 %v6479, %v7293
        %v7428 = vmul.f32 %v6481, %v7295
        %v7429 = vmul.f32 %v6483, %v7295
        %v7430 = vmul.f32 %v6485, %v7295
        %v7431 = vmul.f32 %v6487, %v7295
        %v7432 = vmul.f32 %v6489, %v7297
        %v7433 = vmul.f32 %v6491, %v7297
        %v7434 = vmul.f32 %v6493, %v7297
        %v7435 = vmul.f32 %v6495, %v7297
        %v7436 = vmul.f32 %v6497, %v7299
        %v7437 = vmul.f32 %v6499, %v7299
        %v7438 = vmul.f32 %v6501, %v7299
        %v7439 = vmul.f32 %v6503, %v7299
        %v7440 = vmul.f32 %v6505, %v7301
        %v7441 = vmul.f32 %v6507, %v7301
        %v7442 = vmul.f32 %v6509, %v7301
        %v7443 = vmul.f32 %v6511, %v7301
        %v7444 = vmul.f32 %v6513, %v7303
        %v7445 = vmul.f32 %v6515, %v7303
        %v7446 = vmul.f32 %v6517, %v7303
        %v7447 = vmul.f32 %v6519, %v7303
        %v7448 = vmul.f32 %v6521, %v7305
        %v7449 = vmul.f32 %v6523, %v7305
        %v7450 = vmul.f32 %v6525, %v7305
        %v7451 = vmul.f32 %v6527, %v7305
        %v7452 = vmul.f32 %v6529, %v7307
        %v7453 = vmul.f32 %v6531, %v7307
        %v7454 = vmul.f32 %v6533, %v7307
        %v7455 = vmul.f32 %v6535, %v7307
        %v7456 = vmul.f32 %v6537, %v7309
        %v7457 = vmul.f32 %v6539, %v7309
        %v7458 = vmul.f32 %v6541, %v7309
        %v7459 = vmul.f32 %v6543, %v7309
        %v7460 = vmul.f32 %v6545, %v7311
        %v7461 = vmul.f32 %v6547, %v7311
        %v7462 = vmul.f32 %v6549, %v7311
        %v7463 = vmul.f32 %v6551, %v7311
        %v7464 = vmul.f32 %v6553, %v7313
        %v7465 = vmul.f32 %v6555, %v7313
        %v7466 = vmul.f32 %v6557, %v7313
        %v7467 = vmul.f32 %v6559, %v7313
        %v7468 = vmul.f32 %v6561, %v7315
        %v7469 = vmul.f32 %v6563, %v7315
        %v7470 = vmul.f32 %v6565, %v7315
        %v7471 = vmul.f32 %v6567, %v7315
        %v7472 = vmul.f32 %v6569, %v7317
        %v7473 = vmul.f32 %v6571, %v7317
        %v7474 = vmul.f32 %v6573, %v7317
        %v7475 = vmul.f32 %v6575, %v7317
        %v7476 = vmul.f32 %v6577, %v7319
        %v7477 = vmul.f32 %v6579, %v7319
        %v7478 = vmul.f32 %v6581, %v7319
        %v7479 = vmul.f32 %v6583, %v7319
        %v7480 = vmul.f32 %v6585, %v7321
        %v7481 = vmul.f32 %v6587, %v7321
        %v7482 = vmul.f32 %v6589, %v7321
        %v7483 = vmul.f32 %v6591, %v7321
        %v7484 = vmul.f32 %v6593, %v7323
        %v7485 = vmul.f32 %v6595, %v7323
        %v7486 = vmul.f32 %v6597, %v7323
        %v7487 = vmul.f32 %v6599, %v7323
        %v7488 = vmul.f32 %v6601, %v7325
        %v7489 = vmul.f32 %v6603, %v7325
        %v7490 = vmul.f32 %v6605, %v7325
        %v7491 = vmul.f32 %v6607, %v7325
        %v7492 = vmul.f32 %v6609, %v7327
        %v7493 = vmul.f32 %v6611, %v7327
        %v7494 = vmul.f32 %v6613, %v7327
        %v7495 = vmul.f32 %v6615, %v7327
        %v7496 = vmul.f32 %v6617, %v7329
        %v7497 = vmul.f32 %v6619, %v7329
        %v7498 = vmul.f32 %v6621, %v7329
        %v7499 = vmul.f32 %v6623, %v7329
        %v7500 = vmul.f32 %v6625, %v7331
        %v7501 = vmul.f32 %v6627, %v7331
        %v7502 = vmul.f32 %v6629, %v7331
        %v7503 = vmul.f32 %v6631, %v7331
        %v7504 = vmul.f32 %v6633, %v7333
        %v7505 = vmul.f32 %v6635, %v7333
        %v7506 = vmul.f32 %v6637, %v7333
        %v7507 = vmul.f32 %v6639, %v7333
        %v7508 = vmul.f32 %v6641, %v7335
        %v7509 = vmul.f32 %v6643, %v7335
        %v7510 = vmul.f32 %v6645, %v7335
        %v7511 = vmul.f32 %v6647, %v7335
        %v7512 = vmul.f32 %v6649, %v7337
        %v7513 = vmul.f32 %v6651, %v7337
        %v7514 = vmul.f32 %v6653, %v7337
        %v7515 = vmul.f32 %v6655, %v7337
        %v7516 = vmul.f32 %v6657, %v7339
        %v7517 = vmul.f32 %v6659, %v7339
        %v7518 = vmul.f32 %v6661, %v7339
        %v7519 = vmul.f32 %v6663, %v7339
        %v7520 = vmul.f32 %v6665, %v7341
        %v7521 = vmul.f32 %v6667, %v7341
        %v7522 = vmul.f32 %v6669, %v7341
        %v7523 = vmul.f32 %v6671, %v7341
        %v7524 = vmul.f32 %v6673, %v7343
        %v7525 = vmul.f32 %v6675, %v7343
        %v7526 = vmul.f32 %v6677, %v7343
        %v7527 = vmul.f32 %v6679, %v7343
        %v7528 = vmul.f32 %v6681, %v7345
        %v7529 = vmul.f32 %v6683, %v7345
        %v7530 = vmul.f32 %v6685, %v7345
        %v7531 = vmul.f32 %v6687, %v7345
        %v7532 = vmul.f32 %v6689, %v7347
        %v7533 = vmul.f32 %v6691, %v7347
        %v7534 = vmul.f32 %v6693, %v7347
        %v7535 = vmul.f32 %v6695, %v7347
        %v7536 = vmul.f32 %v6697, %v7349
        %v7537 = vmul.f32 %v6699, %v7349
        %v7538 = vmul.f32 %v6701, %v7349
        %v7539 = vmul.f32 %v6703, %v7349
        %v7540 = vmul.f32 %v6705, %v7351
        %v7541 = vmul.f32 %v6707, %v7351
        %v7542 = vmul.f32 %v6709, %v7351
        %v7543 = vmul.f32 %v6711, %v7351
        %v7544 = vmul.f32 %v6713, %v7353
        %v7545 = vmul.f32 %v6715, %v7353
        %v7546 = vmul.f32 %v6717, %v7353
        %v7547 = vmul.f32 %v6719, %v7353
        %v7548 = vmul.f32 %v6721, %v7355
        %v7549 = vmul.f32 %v6723, %v7355
        %v7550 = vmul.f32 %v6725, %v7355
        %v7551 = vmul.f32 %v6727, %v7355
        %v7552 = vmul.f32 %v6729, %v7357
        %v7553 = vmul.f32 %v6731, %v7357
        %v7554 = vmul.f32 %v6733, %v7357
        %v7555 = vmul.f32 %v6735, %v7357
        %v7556 = vmul.f32 %v6737, %v7359
        %v7557 = vmul.f32 %v6739, %v7359
        %v7558 = vmul.f32 %v6741, %v7359
        %v7559 = vmul.f32 %v6743, %v7359
        %v7560 = vmul.f32 %v6745, %v7361
        %v7561 = vmul.f32 %v6747, %v7361
        %v7562 = vmul.f32 %v6749, %v7361
        %v7563 = vmul.f32 %v6751, %v7361
        %v7564 = vmul.f32 %v6753, %v7363
        %v7565 = vmul.f32 %v6755, %v7363
        %v7566 = vmul.f32 %v6757, %v7363
        %v7567 = vmul.f32 %v6759, %v7363
        %v7568 = vmul.f32 %v6761, %v7365
        %v7569 = vmul.f32 %v6763, %v7365
        %v7570 = vmul.f32 %v6765, %v7365
        %v7571 = vmul.f32 %v6767, %v7365
        %v7572 = vmul.f32 %v6769, %v7367
        %v7573 = vmul.f32 %v6771, %v7367
        %v7574 = vmul.f32 %v6773, %v7367
        %v7575 = vmul.f32 %v6775, %v7367
        %v7576 = vmul.f32 %v6777, %v7369
        %v7577 = vmul.f32 %v6779, %v7369
        %v7578 = vmul.f32 %v6781, %v7369
        %v7579 = vmul.f32 %v6783, %v7369
        %v7580 = vmul.f32 %v6785, %v7371
        %v7581 = vmul.f32 %v6787, %v7371
        %v7582 = vmul.f32 %v6789, %v7371
        %v7583 = vmul.f32 %v6791, %v7371
        %v7584 = vmul.f32 %v6793, %v7373
        %v7585 = vmul.f32 %v6795, %v7373
        %v7586 = vmul.f32 %v6797, %v7373
        %v7587 = vmul.f32 %v6799, %v7373
        %v7588 = vmul.f32 %v6801, %v7375
        %v7589 = vmul.f32 %v6803, %v7375
        %v7590 = vmul.f32 %v6805, %v7375
        %v7591 = vmul.f32 %v6807, %v7375
        %v7592 = vmul.f32 %v6809, %v7377
        %v7593 = vmul.f32 %v6811, %v7377
        %v7594 = vmul.f32 %v6813, %v7377
        %v7595 = vmul.f32 %v6815, %v7377
        %v7596 = vmul.f32 %v6817, %v7379
        %v7597 = vmul.f32 %v6819, %v7379
        %v7598 = vmul.f32 %v6821, %v7379
        %v7599 = vmul.f32 %v6823, %v7379
        %v7600 = vmul.f32 %v6825, %v7381
        %v7601 = vmul.f32 %v6827, %v7381
        %v7602 = vmul.f32 %v6829, %v7381
        %v7603 = vmul.f32 %v6831, %v7381
        %v7604 = vmul.f32 %v6833, %v7383
        %v7605 = vmul.f32 %v6835, %v7383
        %v7606 = vmul.f32 %v6837, %v7383
        %v7607 = vmul.f32 %v6839, %v7383
        %v7608 = vmul.f32 %v6841, %v7385
        %v7609 = vmul.f32 %v6843, %v7385
        %v7610 = vmul.f32 %v6845, %v7385
        %v7611 = vmul.f32 %v6847, %v7385
        %v7612 = vmul.f32 %v6849, %v7387
        %v7613 = vmul.f32 %v6851, %v7387
        %v7614 = vmul.f32 %v6853, %v7387
        %v7615 = vmul.f32 %v6855, %v7387
        %v7616 = vmul.f32 %v6857, %v7389
        %v7617 = vmul.f32 %v6859, %v7389
        %v7618 = vmul.f32 %v6861, %v7389
        %v7619 = vmul.f32 %v6863, %v7389
        %v7620 = vmul.f32 %v6865, %v7391
        %v7621 = vmul.f32 %v6867, %v7391
        %v7622 = vmul.f32 %v6869, %v7391
        %v7623 = vmul.f32 %v6871, %v7391
        %v7624 = vmul.f32 %v6873, %v7393
        %v7625 = vmul.f32 %v6875, %v7393
        %v7626 = vmul.f32 %v6877, %v7393
        %v7627 = vmul.f32 %v6879, %v7393
        %v7628 = vmul.f32 %v6881, %v7395
        %v7629 = vmul.f32 %v6883, %v7395
        %v7630 = vmul.f32 %v6885, %v7395
        %v7631 = vmul.f32 %v6887, %v7395
        %v7632 = vmul.f32 %v6889, %v7397
        %v7633 = vmul.f32 %v6891, %v7397
        %v7634 = vmul.f32 %v6893, %v7397
        %v7635 = vmul.f32 %v6895, %v7397
        %v7636 = vmul.f32 %v6897, %v7399
        %v7637 = vmul.f32 %v6899, %v7399
        %v7638 = vmul.f32 %v6901, %v7399
        %v7639 = vmul.f32 %v6903, %v7399
        %v7640 = vmul.f32 %v6905, %v7401
        %v7641 = vmul.f32 %v6907, %v7401
        %v7642 = vmul.f32 %v6909, %v7401
        %v7643 = vmul.f32 %v6911, %v7401
        %v7644 = vmul.f32 %v6913, %v7403
        %v7645 = vmul.f32 %v6915, %v7403
        %v7646 = vmul.f32 %v6917, %v7403
        %v7647 = vmul.f32 %v6919, %v7403
        %v7648 = vmul.f32 %v6921, %v7405
        %v7649 = vmul.f32 %v6923, %v7405
        %v7650 = vmul.f32 %v6925, %v7405
        %v7651 = vmul.f32 %v6927, %v7405
        %v7652 = vmul.f32 %v6929, %v7407
        %v7653 = vmul.f32 %v6931, %v7407
        %v7654 = vmul.f32 %v6933, %v7407
        %v7655 = vmul.f32 %v6935, %v7407
        %v7656 = vmul.f32 %v6937, %v7409
        %v7657 = vmul.f32 %v6939, %v7409
        %v7658 = vmul.f32 %v6941, %v7409
        %v7659 = vmul.f32 %v6943, %v7409
        %v7660 = vmul.f32 %v6945, %v7411
        %v7661 = vmul.f32 %v6947, %v7411
        %v7662 = vmul.f32 %v6949, %v7411
        %v7663 = vmul.f32 %v6951, %v7411
        %v7664 = vmul.f32 %v6953, %v7413
        %v7665 = vmul.f32 %v6955, %v7413
        %v7666 = vmul.f32 %v6957, %v7413
        %v7667 = vmul.f32 %v6959, %v7413
        %v7668 = vmul.f32 %v6961, %v7415
        %v7669 = vmul.f32 %v6963, %v7415
        %v7670 = vmul.f32 %v6965, %v7415
        %v7671 = vmul.f32 %v6967, %v7415
        %v7672 = vpack.c.bf16 %v7420, %v7416
        %v7673 = vpack.c.bf16 %v7421, %v7417
        %v7674 = vpack.c.bf16 %v7422, %v7418
        %v7675 = vpack.c.bf16 %v7423, %v7419
        %v7676 = vpack.c.bf16 %v7428, %v7424
        %v7677 = vpack.c.bf16 %v7429, %v7425
        %v7678 = vpack.c.bf16 %v7430, %v7426
        %v7679 = vpack.c.bf16 %v7431, %v7427
        %v7680 = vpack.c.bf16 %v7436, %v7432
        %v7681 = vpack.c.bf16 %v7437, %v7433
        %v7682 = vpack.c.bf16 %v7438, %v7434
        %v7683 = vpack.c.bf16 %v7439, %v7435
        %v7684 = vpack.c.bf16 %v7444, %v7440
        %v7685 = vpack.c.bf16 %v7445, %v7441
        %v7686 = vpack.c.bf16 %v7446, %v7442
        %v7687 = vpack.c.bf16 %v7447, %v7443
        %v7688 = vpack.c.bf16 %v7452, %v7448
        %v7689 = vpack.c.bf16 %v7453, %v7449
        %v7690 = vpack.c.bf16 %v7454, %v7450
        %v7691 = vpack.c.bf16 %v7455, %v7451
        %v7692 = vpack.c.bf16 %v7460, %v7456
        %v7693 = vpack.c.bf16 %v7461, %v7457
        %v7694 = vpack.c.bf16 %v7462, %v7458
        %v7695 = vpack.c.bf16 %v7463, %v7459
        %v7696 = vpack.c.bf16 %v7468, %v7464
        %v7697 = vpack.c.bf16 %v7469, %v7465
        %v7698 = vpack.c.bf16 %v7470, %v7466
        %v7699 = vpack.c.bf16 %v7471, %v7467
        %v7700 = vpack.c.bf16 %v7476, %v7472
        %v7701 = vpack.c.bf16 %v7477, %v7473
        %v7702 = vpack.c.bf16 %v7478, %v7474
        %v7703 = vpack.c.bf16 %v7479, %v7475
        %v7704 = vpack.c.bf16 %v7484, %v7480
        %v7705 = vpack.c.bf16 %v7485, %v7481
        %v7706 = vpack.c.bf16 %v7486, %v7482
        %v7707 = vpack.c.bf16 %v7487, %v7483
        %v7708 = vpack.c.bf16 %v7492, %v7488
        %v7709 = vpack.c.bf16 %v7493, %v7489
        %v7710 = vpack.c.bf16 %v7494, %v7490
        %v7711 = vpack.c.bf16 %v7495, %v7491
        %v7712 = vpack.c.bf16 %v7500, %v7496
        %v7713 = vpack.c.bf16 %v7501, %v7497
        %v7714 = vpack.c.bf16 %v7502, %v7498
        %v7715 = vpack.c.bf16 %v7503, %v7499
        %v7716 = vpack.c.bf16 %v7508, %v7504
        %v7717 = vpack.c.bf16 %v7509, %v7505
        %v7718 = vpack.c.bf16 %v7510, %v7506
        %v7719 = vpack.c.bf16 %v7511, %v7507
        %v7720 = vpack.c.bf16 %v7516, %v7512
        %v7721 = vpack.c.bf16 %v7517, %v7513
        %v7722 = vpack.c.bf16 %v7518, %v7514
        %v7723 = vpack.c.bf16 %v7519, %v7515
        %v7724 = vpack.c.bf16 %v7524, %v7520
        %v7725 = vpack.c.bf16 %v7525, %v7521
        %v7726 = vpack.c.bf16 %v7526, %v7522
        %v7727 = vpack.c.bf16 %v7527, %v7523
        %v7728 = vpack.c.bf16 %v7532, %v7528
        %v7729 = vpack.c.bf16 %v7533, %v7529
        %v7730 = vpack.c.bf16 %v7534, %v7530
        %v7731 = vpack.c.bf16 %v7535, %v7531
        %v7732 = vpack.c.bf16 %v7540, %v7536
        %v7733 = vpack.c.bf16 %v7541, %v7537
        %v7734 = vpack.c.bf16 %v7542, %v7538
        %v7735 = vpack.c.bf16 %v7543, %v7539
        %v7736 = vpack.c.bf16 %v7548, %v7544
        %v7737 = vpack.c.bf16 %v7549, %v7545
        %v7738 = vpack.c.bf16 %v7550, %v7546
        %v7739 = vpack.c.bf16 %v7551, %v7547
        %v7740 = vpack.c.bf16 %v7556, %v7552
        %v7741 = vpack.c.bf16 %v7557, %v7553
        %v7742 = vpack.c.bf16 %v7558, %v7554
        %v7743 = vpack.c.bf16 %v7559, %v7555
        %v7744 = vpack.c.bf16 %v7564, %v7560
        %v7745 = vpack.c.bf16 %v7565, %v7561
        %v7746 = vpack.c.bf16 %v7566, %v7562
        %v7747 = vpack.c.bf16 %v7567, %v7563
        %v7748 = vpack.c.bf16 %v7572, %v7568
        %v7749 = vpack.c.bf16 %v7573, %v7569
        %v7750 = vpack.c.bf16 %v7574, %v7570
        %v7751 = vpack.c.bf16 %v7575, %v7571
        %v7752 = vpack.c.bf16 %v7580, %v7576
        %v7753 = vpack.c.bf16 %v7581, %v7577
        %v7754 = vpack.c.bf16 %v7582, %v7578
        %v7755 = vpack.c.bf16 %v7583, %v7579
        %v7756 = vpack.c.bf16 %v7588, %v7584
        %v7757 = vpack.c.bf16 %v7589, %v7585
        %v7758 = vpack.c.bf16 %v7590, %v7586
        %v7759 = vpack.c.bf16 %v7591, %v7587
        %v7760 = vpack.c.bf16 %v7596, %v7592
        %v7761 = vpack.c.bf16 %v7597, %v7593
        %v7762 = vpack.c.bf16 %v7598, %v7594
        %v7763 = vpack.c.bf16 %v7599, %v7595
        %v7764 = vpack.c.bf16 %v7604, %v7600
        %v7765 = vpack.c.bf16 %v7605, %v7601
        %v7766 = vpack.c.bf16 %v7606, %v7602
        %v7767 = vpack.c.bf16 %v7607, %v7603
        %v7768 = vpack.c.bf16 %v7612, %v7608
        %v7769 = vpack.c.bf16 %v7613, %v7609
        %v7770 = vpack.c.bf16 %v7614, %v7610
        %v7771 = vpack.c.bf16 %v7615, %v7611
        %v7772 = vpack.c.bf16 %v7620, %v7616
        %v7773 = vpack.c.bf16 %v7621, %v7617
        %v7774 = vpack.c.bf16 %v7622, %v7618
        %v7775 = vpack.c.bf16 %v7623, %v7619
        %v7776 = vpack.c.bf16 %v7628, %v7624
        %v7777 = vpack.c.bf16 %v7629, %v7625
        %v7778 = vpack.c.bf16 %v7630, %v7626
        %v7779 = vpack.c.bf16 %v7631, %v7627
        %v7780 = vpack.c.bf16 %v7636, %v7632
        %v7781 = vpack.c.bf16 %v7637, %v7633
        %v7782 = vpack.c.bf16 %v7638, %v7634
        %v7783 = vpack.c.bf16 %v7639, %v7635
        %v7784 = vpack.c.bf16 %v7644, %v7640
        %v7785 = vpack.c.bf16 %v7645, %v7641
        %v7786 = vpack.c.bf16 %v7646, %v7642
        %v7787 = vpack.c.bf16 %v7647, %v7643
        %v7788 = vpack.c.bf16 %v7652, %v7648
        %v7789 = vpack.c.bf16 %v7653, %v7649
        %v7790 = vpack.c.bf16 %v7654, %v7650
        %v7791 = vpack.c.bf16 %v7655, %v7651
        %v7792 = vpack.c.bf16 %v7660, %v7656
        %v7793 = vpack.c.bf16 %v7661, %v7657
        %v7794 = vpack.c.bf16 %v7662, %v7658
        %v7795 = vpack.c.bf16 %v7663, %v7659
        %v7796 = vpack.c.bf16 %v7668, %v7664
        %v7797 = vpack.c.bf16 %v7669, %v7665
        %v7798 = vpack.c.bf16 %v7670, %v7666
        %v7799 = vpack.c.bf16 %v7671, %v7667
        %v7800 = vld [vmem:[#allocation3] sm:$0xf]
        %v7801 = vld [vmem:[#allocation3 + $0x4] sm:$0xf]
        %v7802 = vld [vmem:[#allocation3 + $0x8] sm:$0xf]
        %v7803 = vld [vmem:[#allocation3 + $0xc] sm:$0xf]
        %v7804 = vld [vmem:[#allocation3 + $0x10] sm:$0xf]
        %v7805 = vld [vmem:[#allocation3 + $0x14] sm:$0xf]
        %v7806 = vld [vmem:[#allocation3 + $0x18] sm:$0xf]
        %v7807 = vld [vmem:[#allocation3 + $0x1c] sm:$0xf]
        %v7808 = vld [vmem:[#allocation3 + $0x20] sm:$0xf]
        %v7809 = vld [vmem:[#allocation3 + $0x24] sm:$0xf]
        %v7810 = vld [vmem:[#allocation3 + $0x28] sm:$0xf]
        %v7811 = vld [vmem:[#allocation3 + $0x2c] sm:$0xf]
        %v7812 = vld [vmem:[#allocation3 + $0x30] sm:$0xf]
        %v7813 = vld [vmem:[#allocation3 + $0x34] sm:$0xf]
        %v7814 = vld [vmem:[#allocation3 + $0x38] sm:$0xf]
        %v7815 = vld [vmem:[#allocation3 + $0x3c] sm:$0xf]
        %v7816 = vld [vmem:[#allocation3 + $0x40] sm:$0xf]
        %v7817 = vld [vmem:[#allocation3 + $0x44] sm:$0xf]
        %v7818 = vld [vmem:[#allocation3 + $0x48] sm:$0xf]
        %v7819 = vld [vmem:[#allocation3 + $0x4c] sm:$0xf]
        %v7820 = vld [vmem:[#allocation3 + $0x50] sm:$0xf]
        %v7821 = vld [vmem:[#allocation3 + $0x54] sm:$0xf]
        %v7822 = vld [vmem:[#allocation3 + $0x58] sm:$0xf]
        %v7823 = vld [vmem:[#allocation3 + $0x5c] sm:$0xf]
        %v7824 = vld [vmem:[#allocation3 + $0x60] sm:$0xf]
        %v7825 = vld [vmem:[#allocation3 + $0x64] sm:$0xf]
        %v7826 = vld [vmem:[#allocation3 + $0x68] sm:$0xf]
        %v7827 = vld [vmem:[#allocation3 + $0x6c] sm:$0xf]
        %v7828 = vld [vmem:[#allocation3 + $0x70] sm:$0xf]
        %v7829 = vld [vmem:[#allocation3 + $0x74] sm:$0xf]
        %v7830 = vld [vmem:[#allocation3 + $0x78] sm:$0xf]
        %v7831 = vld [vmem:[#allocation3 + $0x7c] sm:$0xf]
        %v7832 = vld [vmem:[#allocation3 + $0x80] sm:$0xf]
        %v7833 = vld [vmem:[#allocation3 + $0x84] sm:$0xf]
        %v7834 = vld [vmem:[#allocation3 + $0x88] sm:$0xf]
        %v7835 = vld [vmem:[#allocation3 + $0x8c] sm:$0xf]
        %v7836 = vld [vmem:[#allocation3 + $0x90] sm:$0xf]
        %v7837 = vld [vmem:[#allocation3 + $0x94] sm:$0xf]
        %v7838 = vld [vmem:[#allocation3 + $0x98] sm:$0xf]
        %v7839 = vld [vmem:[#allocation3 + $0x9c] sm:$0xf]
        %v7840 = vld [vmem:[#allocation3 + $0xa0] sm:$0xf]
        %v7841 = vld [vmem:[#allocation3 + $0xa4] sm:$0xf]
        %v7842 = vld [vmem:[#allocation3 + $0xa8] sm:$0xf]
        %v7843 = vld [vmem:[#allocation3 + $0xac] sm:$0xf]
        %v7844 = vld [vmem:[#allocation3 + $0xb0] sm:$0xf]
        %v7845 = vld [vmem:[#allocation3 + $0xb4] sm:$0xf]
        %v7846 = vld [vmem:[#allocation3 + $0xb8] sm:$0xf]
        %v7847 = vld [vmem:[#allocation3 + $0xbc] sm:$0xf]
        %v7848 = vld [vmem:[#allocation3 + $0xc0] sm:$0xf]
        %v7849 = vld [vmem:[#allocation3 + $0xc4] sm:$0xf]
        %v7850 = vld [vmem:[#allocation3 + $0xc8] sm:$0xf]
        %v7851 = vld [vmem:[#allocation3 + $0xcc] sm:$0xf]
        %v7852 = vld [vmem:[#allocation3 + $0xd0] sm:$0xf]
        %v7853 = vld [vmem:[#allocation3 + $0xd4] sm:$0xf]
        %v7854 = vld [vmem:[#allocation3 + $0xd8] sm:$0xf]
        %v7855 = vld [vmem:[#allocation3 + $0xdc] sm:$0xf]
        %v7856 = vld [vmem:[#allocation3 + $0xe0] sm:$0xf]
        %v7857 = vld [vmem:[#allocation3 + $0xe4] sm:$0xf]
        %v7858 = vld [vmem:[#allocation3 + $0xe8] sm:$0xf]
        %v7859 = vld [vmem:[#allocation3 + $0xec] sm:$0xf]
        %v7860 = vld [vmem:[#allocation3 + $0xf0] sm:$0xf]
        %v7861 = vld [vmem:[#allocation3 + $0xf4] sm:$0xf]
        %v7862 = vld [vmem:[#allocation3 + $0xf8] sm:$0xf]
        %v7863 = vld [vmem:[#allocation3 + $0xfc] sm:$0xf]
        %v7864 = vld [vmem:[#allocation3 + $0x100] sm:$0xf]
        %v7865 = vld [vmem:[#allocation3 + $0x104] sm:$0xf]
        %v7866 = vld [vmem:[#allocation3 + $0x108] sm:$0xf]
        %v7867 = vld [vmem:[#allocation3 + $0x10c] sm:$0xf]
        %v7868 = vld [vmem:[#allocation3 + $0x110] sm:$0xf]
        %v7869 = vld [vmem:[#allocation3 + $0x114] sm:$0xf]
        %v7870 = vld [vmem:[#allocation3 + $0x118] sm:$0xf]
        %v7871 = vld [vmem:[#allocation3 + $0x11c] sm:$0xf]
        %v7872 = vld [vmem:[#allocation3 + $0x120] sm:$0xf]
        %v7873 = vld [vmem:[#allocation3 + $0x124] sm:$0xf]
        %v7874 = vld [vmem:[#allocation3 + $0x128] sm:$0xf]
        %v7875 = vld [vmem:[#allocation3 + $0x12c] sm:$0xf]
        %v7876 = vld [vmem:[#allocation3 + $0x130] sm:$0xf]
        %v7877 = vld [vmem:[#allocation3 + $0x134] sm:$0xf]
        %v7878 = vld [vmem:[#allocation3 + $0x138] sm:$0xf]
        %v7879 = vld [vmem:[#allocation3 + $0x13c] sm:$0xf]
        %v7880 = vld [vmem:[#allocation3 + $0x140] sm:$0xf]
        %v7881 = vld [vmem:[#allocation3 + $0x144] sm:$0xf]
        %v7882 = vld [vmem:[#allocation3 + $0x148] sm:$0xf]
        %v7883 = vld [vmem:[#allocation3 + $0x14c] sm:$0xf]
        %v7884 = vld [vmem:[#allocation3 + $0x150] sm:$0xf]
        %v7885 = vld [vmem:[#allocation3 + $0x154] sm:$0xf]
        %v7886 = vld [vmem:[#allocation3 + $0x158] sm:$0xf]
        %v7887 = vld [vmem:[#allocation3 + $0x15c] sm:$0xf]
        %v7888 = vld [vmem:[#allocation3 + $0x160] sm:$0xf]
        %v7889 = vld [vmem:[#allocation3 + $0x164] sm:$0xf]
        %v7890 = vld [vmem:[#allocation3 + $0x168] sm:$0xf]
        %v7891 = vld [vmem:[#allocation3 + $0x16c] sm:$0xf]
        %v7892 = vld [vmem:[#allocation3 + $0x170] sm:$0xf]
        %v7893 = vld [vmem:[#allocation3 + $0x174] sm:$0xf]
        %v7894 = vld [vmem:[#allocation3 + $0x178] sm:$0xf]
        %v7895 = vld [vmem:[#allocation3 + $0x17c] sm:$0xf]
        %v7896 = vld [vmem:[#allocation3 + $0x180] sm:$0xf]
        %v7897 = vld [vmem:[#allocation3 + $0x184] sm:$0xf]
        %v7898 = vld [vmem:[#allocation3 + $0x188] sm:$0xf]
        %v7899 = vld [vmem:[#allocation3 + $0x18c] sm:$0xf]
        %v7900 = vld [vmem:[#allocation3 + $0x190] sm:$0xf]
        %v7901 = vld [vmem:[#allocation3 + $0x194] sm:$0xf]
        %v7902 = vld [vmem:[#allocation3 + $0x198] sm:$0xf]
        %v7903 = vld [vmem:[#allocation3 + $0x19c] sm:$0xf]
        %v7904 = vld [vmem:[#allocation3 + $0x1a0] sm:$0xf]
        %v7905 = vld [vmem:[#allocation3 + $0x1a4] sm:$0xf]
        %v7906 = vld [vmem:[#allocation3 + $0x1a8] sm:$0xf]
        %v7907 = vld [vmem:[#allocation3 + $0x1ac] sm:$0xf]
        %v7908 = vld [vmem:[#allocation3 + $0x1b0] sm:$0xf]
        %v7909 = vld [vmem:[#allocation3 + $0x1b4] sm:$0xf]
        %v7910 = vld [vmem:[#allocation3 + $0x1b8] sm:$0xf]
        %v7911 = vld [vmem:[#allocation3 + $0x1bc] sm:$0xf]
        %v7912 = vld [vmem:[#allocation3 + $0x1c0] sm:$0xf]
        %v7913 = vld [vmem:[#allocation3 + $0x1c4] sm:$0xf]
        %v7914 = vld [vmem:[#allocation3 + $0x1c8] sm:$0xf]
        %v7915 = vld [vmem:[#allocation3 + $0x1cc] sm:$0xf]
        %v7916 = vld [vmem:[#allocation3 + $0x1d0] sm:$0xf]
        %v7917 = vld [vmem:[#allocation3 + $0x1d4] sm:$0xf]
        %v7918 = vld [vmem:[#allocation3 + $0x1d8] sm:$0xf]
        %v7919 = vld [vmem:[#allocation3 + $0x1dc] sm:$0xf]
        %v7920 = vld [vmem:[#allocation3 + $0x1e0] sm:$0xf]
        %v7921 = vld [vmem:[#allocation3 + $0x1e4] sm:$0xf]
        %v7922 = vld [vmem:[#allocation3 + $0x1e8] sm:$0xf]
        %v7923 = vld [vmem:[#allocation3 + $0x1ec] sm:$0xf]
        %v7924 = vld [vmem:[#allocation3 + $0x1f0] sm:$0xf]
        %v7925 = vld [vmem:[#allocation3 + $0x1f4] sm:$0xf]
        %v7926 = vld [vmem:[#allocation3 + $0x1f8] sm:$0xf]
        %v7927 = vld [vmem:[#allocation3 + $0x1fc] sm:$0xf]
        %v7992 = vunpack.c.l.b16 %v7800
        %v7993 = vunpack.c.l.b16 %v7801
        %v7994 = vunpack.c.l.b16 %v7802
        %v7995 = vunpack.c.l.b16 %v7803
        %v7996 = vunpack.c.l.b16 %v7804
        %v7997 = vunpack.c.l.b16 %v7805
        %v7998 = vunpack.c.l.b16 %v7806
        %v7999 = vunpack.c.l.b16 %v7807
        %v8000 = vunpack.c.l.b16 %v7808
        %v8001 = vunpack.c.l.b16 %v7809
        %v8002 = vunpack.c.l.b16 %v7810
        %v8003 = vunpack.c.l.b16 %v7811
        %v8004 = vunpack.c.l.b16 %v7812
        %v8005 = vunpack.c.l.b16 %v7813
        %v8006 = vunpack.c.l.b16 %v7814
        %v8007 = vunpack.c.l.b16 %v7815
        %v8008 = vunpack.c.l.b16 %v7816
        %v8009 = vunpack.c.l.b16 %v7817
        %v8010 = vunpack.c.l.b16 %v7818
        %v8011 = vunpack.c.l.b16 %v7819
        %v8012 = vunpack.c.l.b16 %v7820
        %v8013 = vunpack.c.l.b16 %v7821
        %v8014 = vunpack.c.l.b16 %v7822
        %v8015 = vunpack.c.l.b16 %v7823
        %v8016 = vunpack.c.l.b16 %v7824
        %v8017 = vunpack.c.l.b16 %v7825
        %v8018 = vunpack.c.l.b16 %v7826
        %v8019 = vunpack.c.l.b16 %v7827
        %v8020 = vunpack.c.l.b16 %v7828
        %v8021 = vunpack.c.l.b16 %v7829
        %v8022 = vunpack.c.l.b16 %v7830
        %v8023 = vunpack.c.l.b16 %v7831
        %v8024 = vunpack.c.l.b16 %v7832
        %v8025 = vunpack.c.l.b16 %v7833
        %v8026 = vunpack.c.l.b16 %v7834
        %v8027 = vunpack.c.l.b16 %v7835
        %v8028 = vunpack.c.l.b16 %v7836
        %v8029 = vunpack.c.l.b16 %v7837
        %v8030 = vunpack.c.l.b16 %v7838
        %v8031 = vunpack.c.l.b16 %v7839
        %v8032 = vunpack.c.l.b16 %v7840
        %v8033 = vunpack.c.l.b16 %v7841
        %v8034 = vunpack.c.l.b16 %v7842
        %v8035 = vunpack.c.l.b16 %v7843
        %v8036 = vunpack.c.l.b16 %v7844
        %v8037 = vunpack.c.l.b16 %v7845
        %v8038 = vunpack.c.l.b16 %v7846
        %v8039 = vunpack.c.l.b16 %v7847
        %v8040 = vunpack.c.l.b16 %v7848
        %v8041 = vunpack.c.l.b16 %v7849
        %v8042 = vunpack.c.l.b16 %v7850
        %v8043 = vunpack.c.l.b16 %v7851
        %v8044 = vunpack.c.l.b16 %v7852
        %v8045 = vunpack.c.l.b16 %v7853
        %v8046 = vunpack.c.l.b16 %v7854
        %v8047 = vunpack.c.l.b16 %v7855
        %v8048 = vunpack.c.l.b16 %v7856
        %v8049 = vunpack.c.l.b16 %v7857
        %v8050 = vunpack.c.l.b16 %v7858
        %v8051 = vunpack.c.l.b16 %v7859
        %v8052 = vunpack.c.l.b16 %v7860
        %v8053 = vunpack.c.l.b16 %v7861
        %v8054 = vunpack.c.l.b16 %v7862
        %v8055 = vunpack.c.l.b16 %v7863
        %v8056 = vpack.c.b16 %v7993, %v7992
        %v8057 = vpack.c.b16 %v7995, %v7994
        %v8058 = vpack.c.b16 %v7997, %v7996
        %v8059 = vpack.c.b16 %v7999, %v7998
        %v8060 = vpack.c.b16 %v8001, %v8000
        %v8061 = vpack.c.b16 %v8003, %v8002
        %v8062 = vpack.c.b16 %v8005, %v8004
        %v8063 = vpack.c.b16 %v8007, %v8006
        %v8064 = vpack.c.b16 %v8009, %v8008
        %v8065 = vpack.c.b16 %v8011, %v8010
        %v8066 = vpack.c.b16 %v8013, %v8012
        %v8067 = vpack.c.b16 %v8015, %v8014
        %v8068 = vpack.c.b16 %v8017, %v8016
        %v8069 = vpack.c.b16 %v8019, %v8018
        %v8070 = vpack.c.b16 %v8021, %v8020
        %v8071 = vpack.c.b16 %v8023, %v8022
        %v8072 = vpack.c.b16 %v8025, %v8024
        %v8073 = vpack.c.b16 %v8027, %v8026
        %v8074 = vpack.c.b16 %v8029, %v8028
        %v8075 = vpack.c.b16 %v8031, %v8030
        %v8076 = vpack.c.b16 %v8033, %v8032
        %v8077 = vpack.c.b16 %v8035, %v8034
        %v8078 = vpack.c.b16 %v8037, %v8036
        %v8079 = vpack.c.b16 %v8039, %v8038
        %v8080 = vpack.c.b16 %v8041, %v8040
        %v8081 = vpack.c.b16 %v8043, %v8042
        %v8082 = vpack.c.b16 %v8045, %v8044
        %v8083 = vpack.c.b16 %v8047, %v8046
        %v8084 = vpack.c.b16 %v8049, %v8048
        %v8085 = vpack.c.b16 %v8051, %v8050
        %v8086 = vpack.c.b16 %v8053, %v8052
        %v8087 = vpack.c.b16 %v8055, %v8054
        %8120 = vmatprep.subr.bf16.mxu0 0
        %8121 = vmatpush1.bf16.msra.mxu0 %v8063
        %8122 = vmatprep.subr.bf16.mxu0 0
        %8123 = vmatpush1.bf16.msra.mxu0 %v8062
        %8124 = vmatprep.subr.bf16.mxu0 0
        %8125 = vmatpush1.bf16.msra.mxu0 %v8061
        %8126 = vmatprep.subr.bf16.mxu0 0
        %8127 = vmatpush1.bf16.msra.mxu0 %v8060
        %8128 = vmatprep.subr.bf16.mxu0 0
        %8129 = vmatpush1.bf16.msra.mxu0 %v8059
        %8130 = vmatprep.subr.bf16.mxu0 0
        %8131 = vmatpush1.bf16.msra.mxu0 %v8058
        %8132 = vmatprep.subr.bf16.mxu0 0
        %8133 = vmatpush1.bf16.msra.mxu0 %v8057
        %8134 = vmatprep.subr.bf16.mxu0 0
        %8135 = vmatpush1.bf16.msra.mxu0 %v8056
        %8136 = vmatprep.subr.bf16.mxu0 0
        %8137 = vmatpush2.bf16.msra.mxu0 %v8071
        %8138 = vmatprep.subr.bf16.mxu0 0
        %8139 = vmatpush2.bf16.msra.mxu0 %v8070
        %8140 = vmatprep.subr.bf16.mxu0 0
        %8141 = vmatpush2.bf16.msra.mxu0 %v8069
        %8142 = vmatprep.subr.bf16.mxu0 0
        %8143 = vmatpush2.bf16.msra.mxu0 %v8068
        %8144 = vmatprep.subr.bf16.mxu0 0
        %8145 = vmatpush2.bf16.msra.mxu0 %v8067
        %8146 = vmatprep.subr.bf16.mxu0 0
        %8147 = vmatpush2.bf16.msra.mxu0 %v8066
        %8148 = vmatprep.subr.bf16.mxu0 0
        %8149 = vmatpush2.bf16.msra.mxu0 %v8065
        %8150 = vmatprep.subr.bf16.mxu0 0
        %8151 = vmatpush2.bf16.msra.mxu0 %v8064
        %8152 = vmatprep.mubr.bf16.mxu0 %v7673
        %8153 = vmatmul.mubr.bf16.gmra.mxu0 %v7672
        %v8154 = vpop.f32.mrf.mxu0
        %v8155 = vadd.f32 0.0, %v8154
        %v8156 = vpop.f32.mrf.mxu0
        %v8157 = vpop.f32.mrf.mxu0
        %v8158 = vadd.f32 0.0, %v8157
        %v8159 = vpop.f32.mrf.mxu0
        %8160 = vmatprep.mubr.bf16.mxu0 %v7677
        %8161 = vmatmul.mubr.bf16.gmra.mxu0 %v7676
        %v8162 = vpop.f32.mrf.mxu0
        %v8163 = vadd.f32 0.0, %v8162
        %v8164 = vpop.f32.mrf.mxu0
        %v8165 = vpop.f32.mrf.mxu0
        %v8166 = vadd.f32 0.0, %v8165
        %v8167 = vpop.f32.mrf.mxu0
        %8168 = vmatprep.mubr.bf16.mxu0 %v7681
        %8169 = vmatmul.mubr.bf16.gmra.mxu0 %v7680
        %v8170 = vpop.f32.mrf.mxu0
        %v8171 = vadd.f32 0.0, %v8170
        %v8172 = vpop.f32.mrf.mxu0
        %v8173 = vpop.f32.mrf.mxu0
        %v8174 = vadd.f32 0.0, %v8173
        %v8175 = vpop.f32.mrf.mxu0
        %8176 = vmatprep.mubr.bf16.mxu0 %v7685
        %8177 = vmatmul.mubr.bf16.gmra.mxu0 %v7684
        %v8178 = vpop.f32.mrf.mxu0
        %v8179 = vadd.f32 0.0, %v8178
        %v8180 = vpop.f32.mrf.mxu0
        %v8181 = vpop.f32.mrf.mxu0
        %v8182 = vadd.f32 0.0, %v8181
        %v8183 = vpop.f32.mrf.mxu0
        %8184 = vmatprep.mubr.bf16.mxu0 %v7689
        %8185 = vmatmul.mubr.bf16.gmra.mxu0 %v7688
        %v8186 = vpop.f32.mrf.mxu0
        %v8187 = vadd.f32 0.0, %v8186
        %v8188 = vpop.f32.mrf.mxu0
        %v8189 = vpop.f32.mrf.mxu0
        %v8190 = vadd.f32 0.0, %v8189
        %v8191 = vpop.f32.mrf.mxu0
        %8192 = vmatprep.mubr.bf16.mxu0 %v7693
        %8193 = vmatmul.mubr.bf16.gmra.mxu0 %v7692
        %v8194 = vpop.f32.mrf.mxu0
        %v8195 = vadd.f32 0.0, %v8194
        %v8196 = vpop.f32.mrf.mxu0
        %v8197 = vpop.f32.mrf.mxu0
        %v8198 = vadd.f32 0.0, %v8197
        %v8199 = vpop.f32.mrf.mxu0
        %8200 = vmatprep.mubr.bf16.mxu0 %v7697
        %8201 = vmatmul.mubr.bf16.gmra.mxu0 %v7696
        %v8202 = vpop.f32.mrf.mxu0
        %v8203 = vadd.f32 0.0, %v8202
        %v8204 = vpop.f32.mrf.mxu0
        %v8205 = vpop.f32.mrf.mxu0
        %v8206 = vadd.f32 0.0, %v8205
        %v8207 = vpop.f32.mrf.mxu0
        %8208 = vmatprep.mubr.bf16.mxu0 %v7701
        %8209 = vmatmul.mubr.bf16.gmra.mxu0 %v7700
        %v8210 = vpop.f32.mrf.mxu0
        %v8211 = vadd.f32 0.0, %v8210
        %v8212 = vpop.f32.mrf.mxu0
        %v8213 = vpop.f32.mrf.mxu0
        %v8214 = vadd.f32 0.0, %v8213
        %v8215 = vpop.f32.mrf.mxu0
        %8216 = vmatprep.mubr.bf16.mxu0 %v7705
        %8217 = vmatmul.mubr.bf16.gmra.mxu0 %v7704
        %v8218 = vpop.f32.mrf.mxu0
        %v8219 = vadd.f32 0.0, %v8218
        %v8220 = vpop.f32.mrf.mxu0
        %v8221 = vpop.f32.mrf.mxu0
        %v8222 = vadd.f32 0.0, %v8221
        %v8223 = vpop.f32.mrf.mxu0
        %8224 = vmatprep.mubr.bf16.mxu0 %v7709
        %8225 = vmatmul.mubr.bf16.gmra.mxu0 %v7708
        %v8226 = vpop.f32.mrf.mxu0
        %v8227 = vadd.f32 0.0, %v8226
        %v8228 = vpop.f32.mrf.mxu0
        %v8229 = vpop.f32.mrf.mxu0
        %v8230 = vadd.f32 0.0, %v8229
        %v8231 = vpop.f32.mrf.mxu0
        %8232 = vmatprep.mubr.bf16.mxu0 %v7713
        %8233 = vmatmul.mubr.bf16.gmra.mxu0 %v7712
        %v8234 = vpop.f32.mrf.mxu0
        %v8235 = vadd.f32 0.0, %v8234
        %v8236 = vpop.f32.mrf.mxu0
        %v8237 = vpop.f32.mrf.mxu0
        %v8238 = vadd.f32 0.0, %v8237
        %v8239 = vpop.f32.mrf.mxu0
        %8240 = vmatprep.mubr.bf16.mxu0 %v7717
        %8241 = vmatmul.mubr.bf16.gmra.mxu0 %v7716
        %v8242 = vpop.f32.mrf.mxu0
        %v8243 = vadd.f32 0.0, %v8242
        %v8244 = vpop.f32.mrf.mxu0
        %v8245 = vpop.f32.mrf.mxu0
        %v8246 = vadd.f32 0.0, %v8245
        %v8247 = vpop.f32.mrf.mxu0
        %8248 = vmatprep.mubr.bf16.mxu0 %v7721
        %8249 = vmatmul.mubr.bf16.gmra.mxu0 %v7720
        %v8250 = vpop.f32.mrf.mxu0
        %v8251 = vadd.f32 0.0, %v8250
        %v8252 = vpop.f32.mrf.mxu0
        %v8253 = vpop.f32.mrf.mxu0
        %v8254 = vadd.f32 0.0, %v8253
        %v8255 = vpop.f32.mrf.mxu0
        %8256 = vmatprep.mubr.bf16.mxu0 %v7725
        %8257 = vmatmul.mubr.bf16.gmra.mxu0 %v7724
        %v8258 = vpop.f32.mrf.mxu0
        %v8259 = vadd.f32 0.0, %v8258
        %v8260 = vpop.f32.mrf.mxu0
        %v8261 = vpop.f32.mrf.mxu0
        %v8262 = vadd.f32 0.0, %v8261
        %v8263 = vpop.f32.mrf.mxu0
        %8264 = vmatprep.mubr.bf16.mxu0 %v7729
        %8265 = vmatmul.mubr.bf16.gmra.mxu0 %v7728
        %v8266 = vpop.f32.mrf.mxu0
        %v8267 = vadd.f32 0.0, %v8266
        %v8268 = vpop.f32.mrf.mxu0
        %v8269 = vpop.f32.mrf.mxu0
        %v8270 = vadd.f32 0.0, %v8269
        %v8271 = vpop.f32.mrf.mxu0
        %8272 = vmatprep.mubr.bf16.mxu0 %v7733
        %8273 = vmatmul.mubr.bf16.gmra.mxu0 %v7732
        %v8274 = vpop.f32.mrf.mxu0
        %v8275 = vadd.f32 0.0, %v8274
        %v8276 = vpop.f32.mrf.mxu0
        %v8277 = vpop.f32.mrf.mxu0
        %v8278 = vadd.f32 0.0, %v8277
        %v8279 = vpop.f32.mrf.mxu0
        %8280 = vdwg.mxu0
        %8281 = vmatprep.subr.bf16.mxu0 0
        %8282 = vmatpush1.bf16.msra.mxu0 %v8079
        %8283 = vmatprep.subr.bf16.mxu0 0
        %8284 = vmatpush1.bf16.msra.mxu0 %v8078
        %8285 = vmatprep.subr.bf16.mxu0 0
        %8286 = vmatpush1.bf16.msra.mxu0 %v8077
        %8287 = vmatprep.subr.bf16.mxu0 0
        %8288 = vmatpush1.bf16.msra.mxu0 %v8076
        %8289 = vmatprep.subr.bf16.mxu0 0
        %8290 = vmatpush1.bf16.msra.mxu0 %v8075
        %8291 = vmatprep.subr.bf16.mxu0 0
        %8292 = vmatpush1.bf16.msra.mxu0 %v8074
        %8293 = vmatprep.subr.bf16.mxu0 0
        %8294 = vmatpush1.bf16.msra.mxu0 %v8073
        %8295 = vmatprep.subr.bf16.mxu0 0
        %8296 = vmatpush1.bf16.msra.mxu0 %v8072
        %8297 = vmatprep.subr.bf16.mxu0 0
        %8298 = vmatpush2.bf16.msra.mxu0 %v8087
        %8299 = vmatprep.subr.bf16.mxu0 0
        %8300 = vmatpush2.bf16.msra.mxu0 %v8086
        %8301 = vmatprep.subr.bf16.mxu0 0
        %8302 = vmatpush2.bf16.msra.mxu0 %v8085
        %8303 = vmatprep.subr.bf16.mxu0 0
        %8304 = vmatpush2.bf16.msra.mxu0 %v8084
        %8305 = vmatprep.subr.bf16.mxu0 0
        %8306 = vmatpush2.bf16.msra.mxu0 %v8083
        %8307 = vmatprep.subr.bf16.mxu0 0
        %8308 = vmatpush2.bf16.msra.mxu0 %v8082
        %8309 = vmatprep.subr.bf16.mxu0 0
        %8310 = vmatpush2.bf16.msra.mxu0 %v8081
        %8311 = vmatprep.subr.bf16.mxu0 0
        %8312 = vmatpush2.bf16.msra.mxu0 %v8080
        %8313 = vmatprep.mubr.bf16.mxu0 %v7675
        %8314 = vmatmul.mubr.bf16.gmra.mxu0 %v7674
        %v8315 = vpop.f32.mrf.mxu0
        %v8316 = vadd.f32 %v8155, %v8315
        %v8317 = vpop.f32.mrf.mxu0
        %v8318 = vpop.f32.mrf.mxu0
        %v8319 = vadd.f32 %v8158, %v8318
        %v8320 = vpop.f32.mrf.mxu0
        %8321 = vmatprep.mubr.bf16.mxu0 %v7679
        %8322 = vmatmul.mubr.bf16.gmra.mxu0 %v7678
        %v8323 = vpop.f32.mrf.mxu0
        %v8324 = vadd.f32 %v8163, %v8323
        %v8325 = vpop.f32.mrf.mxu0
        %v8326 = vpop.f32.mrf.mxu0
        %v8327 = vadd.f32 %v8166, %v8326
        %v8328 = vpop.f32.mrf.mxu0
        %8329 = vmatprep.mubr.bf16.mxu0 %v7683
        %8330 = vmatmul.mubr.bf16.gmra.mxu0 %v7682
        %v8331 = vpop.f32.mrf.mxu0
        %v8332 = vadd.f32 %v8171, %v8331
        %v8333 = vpop.f32.mrf.mxu0
        %v8334 = vpop.f32.mrf.mxu0
        %v8335 = vadd.f32 %v8174, %v8334
        %v8336 = vpop.f32.mrf.mxu0
        %8337 = vmatprep.mubr.bf16.mxu0 %v7687
        %8338 = vmatmul.mubr.bf16.gmra.mxu0 %v7686
        %v8339 = vpop.f32.mrf.mxu0
        %v8340 = vadd.f32 %v8179, %v8339
        %v8341 = vpop.f32.mrf.mxu0
        %v8342 = vpop.f32.mrf.mxu0
        %v8343 = vadd.f32 %v8182, %v8342
        %v8344 = vpop.f32.mrf.mxu0
        %8345 = vmatprep.mubr.bf16.mxu0 %v7691
        %8346 = vmatmul.mubr.bf16.gmra.mxu0 %v7690
        %v8347 = vpop.f32.mrf.mxu0
        %v8348 = vadd.f32 %v8187, %v8347
        %v8349 = vpop.f32.mrf.mxu0
        %v8350 = vpop.f32.mrf.mxu0
        %v8351 = vadd.f32 %v8190, %v8350
        %v8352 = vpop.f32.mrf.mxu0
        %8353 = vmatprep.mubr.bf16.mxu0 %v7695
        %8354 = vmatmul.mubr.bf16.gmra.mxu0 %v7694
        %v8355 = vpop.f32.mrf.mxu0
        %v8356 = vadd.f32 %v8195, %v8355
        %v8357 = vpop.f32.mrf.mxu0
        %v8358 = vpop.f32.mrf.mxu0
        %v8359 = vadd.f32 %v8198, %v8358
        %v8360 = vpop.f32.mrf.mxu0
        %8361 = vmatprep.mubr.bf16.mxu0 %v7699
        %8362 = vmatmul.mubr.bf16.gmra.mxu0 %v7698
        %v8363 = vpop.f32.mrf.mxu0
        %v8364 = vadd.f32 %v8203, %v8363
        %v8365 = vpop.f32.mrf.mxu0
        %v8366 = vpop.f32.mrf.mxu0
        %v8367 = vadd.f32 %v8206, %v8366
        %v8368 = vpop.f32.mrf.mxu0
        %8369 = vmatprep.mubr.bf16.mxu0 %v7703
        %8370 = vmatmul.mubr.bf16.gmra.mxu0 %v7702
        %v8371 = vpop.f32.mrf.mxu0
        %v8372 = vadd.f32 %v8211, %v8371
        %v8373 = vpop.f32.mrf.mxu0
        %v8374 = vpop.f32.mrf.mxu0
        %v8375 = vadd.f32 %v8214, %v8374
        %v8376 = vpop.f32.mrf.mxu0
        %8377 = vmatprep.mubr.bf16.mxu0 %v7707
        %8378 = vmatmul.mubr.bf16.gmra.mxu0 %v7706
        %v8379 = vpop.f32.mrf.mxu0
        %v8380 = vadd.f32 %v8219, %v8379
        %v8381 = vpop.f32.mrf.mxu0
        %v8382 = vpop.f32.mrf.mxu0
        %v8383 = vadd.f32 %v8222, %v8382
        %v8384 = vpop.f32.mrf.mxu0
        %8385 = vmatprep.mubr.bf16.mxu0 %v7711
        %8386 = vmatmul.mubr.bf16.gmra.mxu0 %v7710
        %v8387 = vpop.f32.mrf.mxu0
        %v8388 = vadd.f32 %v8227, %v8387
        %v8389 = vpop.f32.mrf.mxu0
        %v8390 = vpop.f32.mrf.mxu0
        %v8391 = vadd.f32 %v8230, %v8390
        %v8392 = vpop.f32.mrf.mxu0
        %8393 = vmatprep.mubr.bf16.mxu0 %v7715
        %8394 = vmatmul.mubr.bf16.gmra.mxu0 %v7714
        %v8395 = vpop.f32.mrf.mxu0
        %v8396 = vadd.f32 %v8235, %v8395
        %v8397 = vpop.f32.mrf.mxu0
        %v8398 = vpop.f32.mrf.mxu0
        %v8399 = vadd.f32 %v8238, %v8398
        %v8400 = vpop.f32.mrf.mxu0
        %8401 = vmatprep.mubr.bf16.mxu0 %v7719
        %8402 = vmatmul.mubr.bf16.gmra.mxu0 %v7718
        %v8403 = vpop.f32.mrf.mxu0
        %v8404 = vadd.f32 %v8243, %v8403
        %v8405 = vpop.f32.mrf.mxu0
        %v8406 = vpop.f32.mrf.mxu0
        %v8407 = vadd.f32 %v8246, %v8406
        %v8408 = vpop.f32.mrf.mxu0
        %8409 = vmatprep.mubr.bf16.mxu0 %v7723
        %8410 = vmatmul.mubr.bf16.gmra.mxu0 %v7722
        %v8411 = vpop.f32.mrf.mxu0
        %v8412 = vadd.f32 %v8251, %v8411
        %v8413 = vpop.f32.mrf.mxu0
        %v8414 = vpop.f32.mrf.mxu0
        %v8415 = vadd.f32 %v8254, %v8414
        %v8416 = vpop.f32.mrf.mxu0
        %8417 = vmatprep.mubr.bf16.mxu0 %v7727
        %8418 = vmatmul.mubr.bf16.gmra.mxu0 %v7726
        %v8419 = vpop.f32.mrf.mxu0
        %v8420 = vadd.f32 %v8259, %v8419
        %v8421 = vpop.f32.mrf.mxu0
        %v8422 = vpop.f32.mrf.mxu0
        %v8423 = vadd.f32 %v8262, %v8422
        %v8424 = vpop.f32.mrf.mxu0
        %8425 = vmatprep.mubr.bf16.mxu0 %v7731
        %8426 = vmatmul.mubr.bf16.gmra.mxu0 %v7730
        %v8427 = vpop.f32.mrf.mxu0
        %v8428 = vadd.f32 %v8267, %v8427
        %v8429 = vpop.f32.mrf.mxu0
        %v8430 = vpop.f32.mrf.mxu0
        %v8431 = vadd.f32 %v8270, %v8430
        %v8432 = vpop.f32.mrf.mxu0
        %8433 = vmatprep.mubr.bf16.mxu0 %v7735
        %8434 = vmatmul.mubr.bf16.gmra.mxu0 %v7734
        %v8435 = vpop.f32.mrf.mxu0
        %v8436 = vadd.f32 %v8275, %v8435
        %v8437 = vpop.f32.mrf.mxu0
        %v8438 = vpop.f32.mrf.mxu0
        %v8439 = vadd.f32 %v8278, %v8438
        %v8440 = vpop.f32.mrf.mxu0
        %8441 = vdwg.mxu0
        %v8506 = vunpack.c.l.b16 %v7864
        %v8507 = vunpack.c.l.b16 %v7865
        %v8508 = vunpack.c.l.b16 %v7866
        %v8509 = vunpack.c.l.b16 %v7867
        %v8510 = vunpack.c.l.b16 %v7868
        %v8511 = vunpack.c.l.b16 %v7869
        %v8512 = vunpack.c.l.b16 %v7870
        %v8513 = vunpack.c.l.b16 %v7871
        %v8514 = vunpack.c.l.b16 %v7872
        %v8515 = vunpack.c.l.b16 %v7873
        %v8516 = vunpack.c.l.b16 %v7874
        %v8517 = vunpack.c.l.b16 %v7875
        %v8518 = vunpack.c.l.b16 %v7876
        %v8519 = vunpack.c.l.b16 %v7877
        %v8520 = vunpack.c.l.b16 %v7878
        %v8521 = vunpack.c.l.b16 %v7879
        %v8522 = vunpack.c.l.b16 %v7880
        %v8523 = vunpack.c.l.b16 %v7881
        %v8524 = vunpack.c.l.b16 %v7882
        %v8525 = vunpack.c.l.b16 %v7883
        %v8526 = vunpack.c.l.b16 %v7884
        %v8527 = vunpack.c.l.b16 %v7885
        %v8528 = vunpack.c.l.b16 %v7886
        %v8529 = vunpack.c.l.b16 %v7887
        %v8530 = vunpack.c.l.b16 %v7888
        %v8531 = vunpack.c.l.b16 %v7889
        %v8532 = vunpack.c.l.b16 %v7890
        %v8533 = vunpack.c.l.b16 %v7891
        %v8534 = vunpack.c.l.b16 %v7892
        %v8535 = vunpack.c.l.b16 %v7893
        %v8536 = vunpack.c.l.b16 %v7894
        %v8537 = vunpack.c.l.b16 %v7895
        %v8538 = vunpack.c.l.b16 %v7896
        %v8539 = vunpack.c.l.b16 %v7897
        %v8540 = vunpack.c.l.b16 %v7898
        %v8541 = vunpack.c.l.b16 %v7899
        %v8542 = vunpack.c.l.b16 %v7900
        %v8543 = vunpack.c.l.b16 %v7901
        %v8544 = vunpack.c.l.b16 %v7902
        %v8545 = vunpack.c.l.b16 %v7903
        %v8546 = vunpack.c.l.b16 %v7904
        %v8547 = vunpack.c.l.b16 %v7905
        %v8548 = vunpack.c.l.b16 %v7906
        %v8549 = vunpack.c.l.b16 %v7907
        %v8550 = vunpack.c.l.b16 %v7908
        %v8551 = vunpack.c.l.b16 %v7909
        %v8552 = vunpack.c.l.b16 %v7910
        %v8553 = vunpack.c.l.b16 %v7911
        %v8554 = vunpack.c.l.b16 %v7912
        %v8555 = vunpack.c.l.b16 %v7913
        %v8556 = vunpack.c.l.b16 %v7914
        %v8557 = vunpack.c.l.b16 %v7915
        %v8558 = vunpack.c.l.b16 %v7916
        %v8559 = vunpack.c.l.b16 %v7917
        %v8560 = vunpack.c.l.b16 %v7918
        %v8561 = vunpack.c.l.b16 %v7919
        %v8562 = vunpack.c.l.b16 %v7920
        %v8563 = vunpack.c.l.b16 %v7921
        %v8564 = vunpack.c.l.b16 %v7922
        %v8565 = vunpack.c.l.b16 %v7923
        %v8566 = vunpack.c.l.b16 %v7924
        %v8567 = vunpack.c.l.b16 %v7925
        %v8568 = vunpack.c.l.b16 %v7926
        %v8569 = vunpack.c.l.b16 %v7927
        %v8570 = vpack.c.b16 %v8507, %v8506
        %v8571 = vpack.c.b16 %v8509, %v8508
        %v8572 = vpack.c.b16 %v8511, %v8510
        %v8573 = vpack.c.b16 %v8513, %v8512
        %v8574 = vpack.c.b16 %v8515, %v8514
        %v8575 = vpack.c.b16 %v8517, %v8516
        %v8576 = vpack.c.b16 %v8519, %v8518
        %v8577 = vpack.c.b16 %v8521, %v8520
        %v8578 = vpack.c.b16 %v8523, %v8522
        %v8579 = vpack.c.b16 %v8525, %v8524
        %v8580 = vpack.c.b16 %v8527, %v8526
        %v8581 = vpack.c.b16 %v8529, %v8528
        %v8582 = vpack.c.b16 %v8531, %v8530
        %v8583 = vpack.c.b16 %v8533, %v8532
        %v8584 = vpack.c.b16 %v8535, %v8534
        %v8585 = vpack.c.b16 %v8537, %v8536
        %v8586 = vpack.c.b16 %v8539, %v8538
        %v8587 = vpack.c.b16 %v8541, %v8540
        %v8588 = vpack.c.b16 %v8543, %v8542
        %v8589 = vpack.c.b16 %v8545, %v8544
        %v8590 = vpack.c.b16 %v8547, %v8546
        %v8591 = vpack.c.b16 %v8549, %v8548
        %v8592 = vpack.c.b16 %v8551, %v8550
        %v8593 = vpack.c.b16 %v8553, %v8552
        %v8594 = vpack.c.b16 %v8555, %v8554
        %v8595 = vpack.c.b16 %v8557, %v8556
        %v8596 = vpack.c.b16 %v8559, %v8558
        %v8597 = vpack.c.b16 %v8561, %v8560
        %v8598 = vpack.c.b16 %v8563, %v8562
        %v8599 = vpack.c.b16 %v8565, %v8564
        %v8600 = vpack.c.b16 %v8567, %v8566
        %v8601 = vpack.c.b16 %v8569, %v8568
        %8634 = vmatprep.subr.bf16.mxu0 0
        %8635 = vmatpush1.bf16.msra.mxu0 %v8577
        %8636 = vmatprep.subr.bf16.mxu0 0
        %8637 = vmatpush1.bf16.msra.mxu0 %v8576
        %8638 = vmatprep.subr.bf16.mxu0 0
        %8639 = vmatpush1.bf16.msra.mxu0 %v8575
        %8640 = vmatprep.subr.bf16.mxu0 0
        %8641 = vmatpush1.bf16.msra.mxu0 %v8574
        %8642 = vmatprep.subr.bf16.mxu0 0
        %8643 = vmatpush1.bf16.msra.mxu0 %v8573
        %8644 = vmatprep.subr.bf16.mxu0 0
        %8645 = vmatpush1.bf16.msra.mxu0 %v8572
        %8646 = vmatprep.subr.bf16.mxu0 0
        %8647 = vmatpush1.bf16.msra.mxu0 %v8571
        %8648 = vmatprep.subr.bf16.mxu0 0
        %8649 = vmatpush1.bf16.msra.mxu0 %v8570
        %8650 = vmatprep.subr.bf16.mxu0 0
        %8651 = vmatpush2.bf16.msra.mxu0 %v8585
        %8652 = vmatprep.subr.bf16.mxu0 0
        %8653 = vmatpush2.bf16.msra.mxu0 %v8584
        %8654 = vmatprep.subr.bf16.mxu0 0
        %8655 = vmatpush2.bf16.msra.mxu0 %v8583
        %8656 = vmatprep.subr.bf16.mxu0 0
        %8657 = vmatpush2.bf16.msra.mxu0 %v8582
        %8658 = vmatprep.subr.bf16.mxu0 0
        %8659 = vmatpush2.bf16.msra.mxu0 %v8581
        %8660 = vmatprep.subr.bf16.mxu0 0
        %8661 = vmatpush2.bf16.msra.mxu0 %v8580
        %8662 = vmatprep.subr.bf16.mxu0 0
        %8663 = vmatpush2.bf16.msra.mxu0 %v8579
        %8664 = vmatprep.subr.bf16.mxu0 0
        %8665 = vmatpush2.bf16.msra.mxu0 %v8578
        %8666 = vmatprep.mubr.bf16.mxu0 %v7737
        %8667 = vmatmul.mubr.bf16.gmra.mxu0 %v7736
        %v8668 = vpop.f32.mrf.mxu0
        %v8669 = vadd.f32 0.0, %v8668
        %v8670 = vpop.f32.mrf.mxu0
        %v8671 = vpop.f32.mrf.mxu0
        %v8672 = vadd.f32 0.0, %v8671
        %v8673 = vpop.f32.mrf.mxu0
        %8674 = vmatprep.mubr.bf16.mxu0 %v7741
        %8675 = vmatmul.mubr.bf16.gmra.mxu0 %v7740
        %v8676 = vpop.f32.mrf.mxu0
        %v8677 = vadd.f32 0.0, %v8676
        %v8678 = vpop.f32.mrf.mxu0
        %v8679 = vpop.f32.mrf.mxu0
        %v8680 = vadd.f32 0.0, %v8679
        %v8681 = vpop.f32.mrf.mxu0
        %8682 = vmatprep.mubr.bf16.mxu0 %v7745
        %8683 = vmatmul.mubr.bf16.gmra.mxu0 %v7744
        %v8684 = vpop.f32.mrf.mxu0
        %v8685 = vadd.f32 0.0, %v8684
        %v8686 = vpop.f32.mrf.mxu0
        %v8687 = vpop.f32.mrf.mxu0
        %v8688 = vadd.f32 0.0, %v8687
        %v8689 = vpop.f32.mrf.mxu0
        %8690 = vmatprep.mubr.bf16.mxu0 %v7749
        %8691 = vmatmul.mubr.bf16.gmra.mxu0 %v7748
        %v8692 = vpop.f32.mrf.mxu0
        %v8693 = vadd.f32 0.0, %v8692
        %v8694 = vpop.f32.mrf.mxu0
        %v8695 = vpop.f32.mrf.mxu0
        %v8696 = vadd.f32 0.0, %v8695
        %v8697 = vpop.f32.mrf.mxu0
        %8698 = vmatprep.mubr.bf16.mxu0 %v7753
        %8699 = vmatmul.mubr.bf16.gmra.mxu0 %v7752
        %v8700 = vpop.f32.mrf.mxu0
        %v8701 = vadd.f32 0.0, %v8700
        %v8702 = vpop.f32.mrf.mxu0
        %v8703 = vpop.f32.mrf.mxu0
        %v8704 = vadd.f32 0.0, %v8703
        %v8705 = vpop.f32.mrf.mxu0
        %8706 = vmatprep.mubr.bf16.mxu0 %v7757
        %8707 = vmatmul.mubr.bf16.gmra.mxu0 %v7756
        %v8708 = vpop.f32.mrf.mxu0
        %v8709 = vadd.f32 0.0, %v8708
        %v8710 = vpop.f32.mrf.mxu0
        %v8711 = vpop.f32.mrf.mxu0
        %v8712 = vadd.f32 0.0, %v8711
        %v8713 = vpop.f32.mrf.mxu0
        %8714 = vmatprep.mubr.bf16.mxu0 %v7761
        %8715 = vmatmul.mubr.bf16.gmra.mxu0 %v7760
        %v8716 = vpop.f32.mrf.mxu0
        %v8717 = vadd.f32 0.0, %v8716
        %v8718 = vpop.f32.mrf.mxu0
        %v8719 = vpop.f32.mrf.mxu0
        %v8720 = vadd.f32 0.0, %v8719
        %v8721 = vpop.f32.mrf.mxu0
        %8722 = vmatprep.mubr.bf16.mxu0 %v7765
        %8723 = vmatmul.mubr.bf16.gmra.mxu0 %v7764
        %v8724 = vpop.f32.mrf.mxu0
        %v8725 = vadd.f32 0.0, %v8724
        %v8726 = vpop.f32.mrf.mxu0
        %v8727 = vpop.f32.mrf.mxu0
        %v8728 = vadd.f32 0.0, %v8727
        %v8729 = vpop.f32.mrf.mxu0
        %8730 = vmatprep.mubr.bf16.mxu0 %v7769
        %8731 = vmatmul.mubr.bf16.gmra.mxu0 %v7768
        %v8732 = vpop.f32.mrf.mxu0
        %v8733 = vadd.f32 0.0, %v8732
        %v8734 = vpop.f32.mrf.mxu0
        %v8735 = vpop.f32.mrf.mxu0
        %v8736 = vadd.f32 0.0, %v8735
        %v8737 = vpop.f32.mrf.mxu0
        %8738 = vmatprep.mubr.bf16.mxu0 %v7773
        %8739 = vmatmul.mubr.bf16.gmra.mxu0 %v7772
        %v8740 = vpop.f32.mrf.mxu0
        %v8741 = vadd.f32 0.0, %v8740
        %v8742 = vpop.f32.mrf.mxu0
        %v8743 = vpop.f32.mrf.mxu0
        %v8744 = vadd.f32 0.0, %v8743
        %v8745 = vpop.f32.mrf.mxu0
        %8746 = vmatprep.mubr.bf16.mxu0 %v7777
        %8747 = vmatmul.mubr.bf16.gmra.mxu0 %v7776
        %v8748 = vpop.f32.mrf.mxu0
        %v8749 = vadd.f32 0.0, %v8748
        %v8750 = vpop.f32.mrf.mxu0
        %v8751 = vpop.f32.mrf.mxu0
        %v8752 = vadd.f32 0.0, %v8751
        %v8753 = vpop.f32.mrf.mxu0
        %8754 = vmatprep.mubr.bf16.mxu0 %v7781
        %8755 = vmatmul.mubr.bf16.gmra.mxu0 %v7780
        %v8756 = vpop.f32.mrf.mxu0
        %v8757 = vadd.f32 0.0, %v8756
        %v8758 = vpop.f32.mrf.mxu0
        %v8759 = vpop.f32.mrf.mxu0
        %v8760 = vadd.f32 0.0, %v8759
        %v8761 = vpop.f32.mrf.mxu0
        %8762 = vmatprep.mubr.bf16.mxu0 %v7785
        %8763 = vmatmul.mubr.bf16.gmra.mxu0 %v7784
        %v8764 = vpop.f32.mrf.mxu0
        %v8765 = vadd.f32 0.0, %v8764
        %v8766 = vpop.f32.mrf.mxu0
        %v8767 = vpop.f32.mrf.mxu0
        %v8768 = vadd.f32 0.0, %v8767
        %v8769 = vpop.f32.mrf.mxu0
        %8770 = vmatprep.mubr.bf16.mxu0 %v7789
        %8771 = vmatmul.mubr.bf16.gmra.mxu0 %v7788
        %v8772 = vpop.f32.mrf.mxu0
        %v8773 = vadd.f32 0.0, %v8772
        %v8774 = vpop.f32.mrf.mxu0
        %v8775 = vpop.f32.mrf.mxu0
        %v8776 = vadd.f32 0.0, %v8775
        %v8777 = vpop.f32.mrf.mxu0
        %8778 = vmatprep.mubr.bf16.mxu0 %v7793
        %8779 = vmatmul.mubr.bf16.gmra.mxu0 %v7792
        %v8780 = vpop.f32.mrf.mxu0
        %v8781 = vadd.f32 0.0, %v8780
        %v8782 = vpop.f32.mrf.mxu0
        %v8783 = vpop.f32.mrf.mxu0
        %v8784 = vadd.f32 0.0, %v8783
        %v8785 = vpop.f32.mrf.mxu0
        %8786 = vmatprep.mubr.bf16.mxu0 %v7797
        %8787 = vmatmul.mubr.bf16.gmra.mxu0 %v7796
        %v8788 = vpop.f32.mrf.mxu0
        %v8789 = vadd.f32 0.0, %v8788
        %v8790 = vpop.f32.mrf.mxu0
        %v8791 = vpop.f32.mrf.mxu0
        %v8792 = vadd.f32 0.0, %v8791
        %v8793 = vpop.f32.mrf.mxu0
        %8794 = vdwg.mxu0
        %8795 = vmatprep.subr.bf16.mxu0 0
        %8796 = vmatpush1.bf16.msra.mxu0 %v8593
        %8797 = vmatprep.subr.bf16.mxu0 0
        %8798 = vmatpush1.bf16.msra.mxu0 %v8592
        %8799 = vmatprep.subr.bf16.mxu0 0
        %8800 = vmatpush1.bf16.msra.mxu0 %v8591
        %8801 = vmatprep.subr.bf16.mxu0 0
        %8802 = vmatpush1.bf16.msra.mxu0 %v8590
        %8803 = vmatprep.subr.bf16.mxu0 0
        %8804 = vmatpush1.bf16.msra.mxu0 %v8589
        %8805 = vmatprep.subr.bf16.mxu0 0
        %8806 = vmatpush1.bf16.msra.mxu0 %v8588
        %8807 = vmatprep.subr.bf16.mxu0 0
        %8808 = vmatpush1.bf16.msra.mxu0 %v8587
        %8809 = vmatprep.subr.bf16.mxu0 0
        %8810 = vmatpush1.bf16.msra.mxu0 %v8586
        %8811 = vmatprep.subr.bf16.mxu0 0
        %8812 = vmatpush2.bf16.msra.mxu0 %v8601
        %8813 = vmatprep.subr.bf16.mxu0 0
        %8814 = vmatpush2.bf16.msra.mxu0 %v8600
        %8815 = vmatprep.subr.bf16.mxu0 0
        %8816 = vmatpush2.bf16.msra.mxu0 %v8599
        %8817 = vmatprep.subr.bf16.mxu0 0
        %8818 = vmatpush2.bf16.msra.mxu0 %v8598
        %8819 = vmatprep.subr.bf16.mxu0 0
        %8820 = vmatpush2.bf16.msra.mxu0 %v8597
        %8821 = vmatprep.subr.bf16.mxu0 0
        %8822 = vmatpush2.bf16.msra.mxu0 %v8596
        %8823 = vmatprep.subr.bf16.mxu0 0
        %8824 = vmatpush2.bf16.msra.mxu0 %v8595
        %8825 = vmatprep.subr.bf16.mxu0 0
        %8826 = vmatpush2.bf16.msra.mxu0 %v8594
        %8827 = vmatprep.mubr.bf16.mxu0 %v7739
        %8828 = vmatmul.mubr.bf16.gmra.mxu0 %v7738
        %v8829 = vpop.f32.mrf.mxu0
        %v8830 = vadd.f32 %v8669, %v8829
        %v8831 = vpop.f32.mrf.mxu0
        %v8832 = vpop.f32.mrf.mxu0
        %v8833 = vadd.f32 %v8672, %v8832
        %v8834 = vpop.f32.mrf.mxu0
        %8835 = vmatprep.mubr.bf16.mxu0 %v7743
        %8836 = vmatmul.mubr.bf16.gmra.mxu0 %v7742
        %v8837 = vpop.f32.mrf.mxu0
        %v8838 = vadd.f32 %v8677, %v8837
        %v8839 = vpop.f32.mrf.mxu0
        %v8840 = vpop.f32.mrf.mxu0
        %v8841 = vadd.f32 %v8680, %v8840
        %v8842 = vpop.f32.mrf.mxu0
        %8843 = vmatprep.mubr.bf16.mxu0 %v7747
        %8844 = vmatmul.mubr.bf16.gmra.mxu0 %v7746
        %v8845 = vpop.f32.mrf.mxu0
        %v8846 = vadd.f32 %v8685, %v8845
        %v8847 = vpop.f32.mrf.mxu0
        %v8848 = vpop.f32.mrf.mxu0
        %v8849 = vadd.f32 %v8688, %v8848
        %v8850 = vpop.f32.mrf.mxu0
        %8851 = vmatprep.mubr.bf16.mxu0 %v7751
        %8852 = vmatmul.mubr.bf16.gmra.mxu0 %v7750
        %v8853 = vpop.f32.mrf.mxu0
        %v8854 = vadd.f32 %v8693, %v8853
        %v8855 = vpop.f32.mrf.mxu0
        %v8856 = vpop.f32.mrf.mxu0
        %v8857 = vadd.f32 %v8696, %v8856
        %v8858 = vpop.f32.mrf.mxu0
        %8859 = vmatprep.mubr.bf16.mxu0 %v7755
        %8860 = vmatmul.mubr.bf16.gmra.mxu0 %v7754
        %v8861 = vpop.f32.mrf.mxu0
        %v8862 = vadd.f32 %v8701, %v8861
        %v8863 = vpop.f32.mrf.mxu0
        %v8864 = vpop.f32.mrf.mxu0
        %v8865 = vadd.f32 %v8704, %v8864
        %v8866 = vpop.f32.mrf.mxu0
        %8867 = vmatprep.mubr.bf16.mxu0 %v7759
        %8868 = vmatmul.mubr.bf16.gmra.mxu0 %v7758
        %v8869 = vpop.f32.mrf.mxu0
        %v8870 = vadd.f32 %v8709, %v8869
        %v8871 = vpop.f32.mrf.mxu0
        %v8872 = vpop.f32.mrf.mxu0
        %v8873 = vadd.f32 %v8712, %v8872
        %v8874 = vpop.f32.mrf.mxu0
        %8875 = vmatprep.mubr.bf16.mxu0 %v7763
        %8876 = vmatmul.mubr.bf16.gmra.mxu0 %v7762
        %v8877 = vpop.f32.mrf.mxu0
        %v8878 = vadd.f32 %v8717, %v8877
        %v8879 = vpop.f32.mrf.mxu0
        %v8880 = vpop.f32.mrf.mxu0
        %v8881 = vadd.f32 %v8720, %v8880
        %v8882 = vpop.f32.mrf.mxu0
        %8883 = vmatprep.mubr.bf16.mxu0 %v7767
        %8884 = vmatmul.mubr.bf16.gmra.mxu0 %v7766
        %v8885 = vpop.f32.mrf.mxu0
        %v8886 = vadd.f32 %v8725, %v8885
        %v8887 = vpop.f32.mrf.mxu0
        %v8888 = vpop.f32.mrf.mxu0
        %v8889 = vadd.f32 %v8728, %v8888
        %v8890 = vpop.f32.mrf.mxu0
        %8891 = vmatprep.mubr.bf16.mxu0 %v7771
        %8892 = vmatmul.mubr.bf16.gmra.mxu0 %v7770
        %v8893 = vpop.f32.mrf.mxu0
        %v8894 = vadd.f32 %v8733, %v8893
        %v8895 = vpop.f32.mrf.mxu0
        %v8896 = vpop.f32.mrf.mxu0
        %v8897 = vadd.f32 %v8736, %v8896
        %v8898 = vpop.f32.mrf.mxu0
        %8899 = vmatprep.mubr.bf16.mxu0 %v7775
        %8900 = vmatmul.mubr.bf16.gmra.mxu0 %v7774
        %v8901 = vpop.f32.mrf.mxu0
        %v8902 = vadd.f32 %v8741, %v8901
        %v8903 = vpop.f32.mrf.mxu0
        %v8904 = vpop.f32.mrf.mxu0
        %v8905 = vadd.f32 %v8744, %v8904
        %v8906 = vpop.f32.mrf.mxu0
        %8907 = vmatprep.mubr.bf16.mxu0 %v7779
        %8908 = vmatmul.mubr.bf16.gmra.mxu0 %v7778
        %v8909 = vpop.f32.mrf.mxu0
        %v8910 = vadd.f32 %v8749, %v8909
        %v8911 = vpop.f32.mrf.mxu0
        %v8912 = vpop.f32.mrf.mxu0
        %v8913 = vadd.f32 %v8752, %v8912
        %v8914 = vpop.f32.mrf.mxu0
        %8915 = vmatprep.mubr.bf16.mxu0 %v7783
        %8916 = vmatmul.mubr.bf16.gmra.mxu0 %v7782
        %v8917 = vpop.f32.mrf.mxu0
        %v8918 = vadd.f32 %v8757, %v8917
        %v8919 = vpop.f32.mrf.mxu0
        %v8920 = vpop.f32.mrf.mxu0
        %v8921 = vadd.f32 %v8760, %v8920
        %v8922 = vpop.f32.mrf.mxu0
        %8923 = vmatprep.mubr.bf16.mxu0 %v7787
        %8924 = vmatmul.mubr.bf16.gmra.mxu0 %v7786
        %v8925 = vpop.f32.mrf.mxu0
        %v8926 = vadd.f32 %v8765, %v8925
        %v8927 = vpop.f32.mrf.mxu0
        %v8928 = vpop.f32.mrf.mxu0
        %v8929 = vadd.f32 %v8768, %v8928
        %v8930 = vpop.f32.mrf.mxu0
        %8931 = vmatprep.mubr.bf16.mxu0 %v7791
        %8932 = vmatmul.mubr.bf16.gmra.mxu0 %v7790
        %v8933 = vpop.f32.mrf.mxu0
        %v8934 = vadd.f32 %v8773, %v8933
        %v8935 = vpop.f32.mrf.mxu0
        %v8936 = vpop.f32.mrf.mxu0
        %v8937 = vadd.f32 %v8776, %v8936
        %v8938 = vpop.f32.mrf.mxu0
        %8939 = vmatprep.mubr.bf16.mxu0 %v7795
        %8940 = vmatmul.mubr.bf16.gmra.mxu0 %v7794
        %v8941 = vpop.f32.mrf.mxu0
        %v8942 = vadd.f32 %v8781, %v8941
        %v8943 = vpop.f32.mrf.mxu0
        %v8944 = vpop.f32.mrf.mxu0
        %v8945 = vadd.f32 %v8784, %v8944
        %v8946 = vpop.f32.mrf.mxu0
        %8947 = vmatprep.mubr.bf16.mxu0 %v7799
        %8948 = vmatmul.mubr.bf16.gmra.mxu0 %v7798
        %v8949 = vpop.f32.mrf.mxu0
        %v8950 = vadd.f32 %v8789, %v8949
        %v8951 = vpop.f32.mrf.mxu0
        %v8952 = vpop.f32.mrf.mxu0
        %v8953 = vadd.f32 %v8792, %v8952
        %v8954 = vpop.f32.mrf.mxu0
        %8955 = vdwg.mxu0
        %v8956 = vpack.c.bf16 %v8319, %v8316
        %v8957 = vpack.c.bf16 %v8833, %v8830
        %v8958 = vpack.c.bf16 %v8327, %v8324
        %v8959 = vpack.c.bf16 %v8841, %v8838
        %v8960 = vpack.c.bf16 %v8335, %v8332
        %v8961 = vpack.c.bf16 %v8849, %v8846
        %v8962 = vpack.c.bf16 %v8343, %v8340
        %v8963 = vpack.c.bf16 %v8857, %v8854
        %v8964 = vpack.c.bf16 %v8351, %v8348
        %v8965 = vpack.c.bf16 %v8865, %v8862
        %v8966 = vpack.c.bf16 %v8359, %v8356
        %v8967 = vpack.c.bf16 %v8873, %v8870
        %v8968 = vpack.c.bf16 %v8367, %v8364
        %v8969 = vpack.c.bf16 %v8881, %v8878
        %v8970 = vpack.c.bf16 %v8375, %v8372
        %v8971 = vpack.c.bf16 %v8889, %v8886
        %v8972 = vpack.c.bf16 %v8383, %v8380
        %v8973 = vpack.c.bf16 %v8897, %v8894
        %v8974 = vpack.c.bf16 %v8391, %v8388
        %v8975 = vpack.c.bf16 %v8905, %v8902
        %v8976 = vpack.c.bf16 %v8399, %v8396
        %v8977 = vpack.c.bf16 %v8913, %v8910
        %v8978 = vpack.c.bf16 %v8407, %v8404
        %v8979 = vpack.c.bf16 %v8921, %v8918
        %v8980 = vpack.c.bf16 %v8415, %v8412
        %v8981 = vpack.c.bf16 %v8929, %v8926
        %v8982 = vpack.c.bf16 %v8423, %v8420
        %v8983 = vpack.c.bf16 %v8937, %v8934
        %v8984 = vpack.c.bf16 %v8431, %v8428
        %v8985 = vpack.c.bf16 %v8945, %v8942
        %v8986 = vpack.c.bf16 %v8439, %v8436
        %v8987 = vpack.c.bf16 %v8953, %v8950
        %v8988 = vld [vmem:[#allocation12] sm:$0xff]
        %v8989 = vld [vmem:[#allocation12 + $0x8] sm:$0xff]
        %v8990 = vld [vmem:[#allocation12 + $0x10] sm:$0xff]
        %v8991 = vld [vmem:[#allocation12 + $0x18] sm:$0xff]
        %v8992 = vld [vmem:[#allocation12 + $0x20] sm:$0xff]
        %v8993 = vld [vmem:[#allocation12 + $0x28] sm:$0xff]
        %v8994 = vld [vmem:[#allocation12 + $0x30] sm:$0xff]
        %v8995 = vld [vmem:[#allocation12 + $0x38] sm:$0xff]
        %v8996 = vld [vmem:[#allocation12 + $0x40] sm:$0xff]
        %v8997 = vld [vmem:[#allocation12 + $0x48] sm:$0xff]
        %v8998 = vld [vmem:[#allocation12 + $0x50] sm:$0xff]
        %v8999 = vld [vmem:[#allocation12 + $0x58] sm:$0xff]
        %v9000 = vld [vmem:[#allocation12 + $0x60] sm:$0xff]
        %v9001 = vld [vmem:[#allocation12 + $0x68] sm:$0xff]
        %v9002 = vld [vmem:[#allocation12 + $0x70] sm:$0xff]
        %v9003 = vld [vmem:[#allocation12 + $0x78] sm:$0xff]
        %v9004 = vld [vmem:[#allocation12 + $0x80] sm:$0xff]
        %v9005 = vld [vmem:[#allocation12 + $0x88] sm:$0xff]
        %v9006 = vld [vmem:[#allocation12 + $0x90] sm:$0xff]
        %v9007 = vld [vmem:[#allocation12 + $0x98] sm:$0xff]
        %v9008 = vld [vmem:[#allocation12 + $0xa0] sm:$0xff]
        %v9009 = vld [vmem:[#allocation12 + $0xa8] sm:$0xff]
        %v9010 = vld [vmem:[#allocation12 + $0xb0] sm:$0xff]
        %v9011 = vld [vmem:[#allocation12 + $0xb8] sm:$0xff]
        %v9012 = vld [vmem:[#allocation12 + $0xc0] sm:$0xff]
        %v9013 = vld [vmem:[#allocation12 + $0xc8] sm:$0xff]
        %v9014 = vld [vmem:[#allocation12 + $0xd0] sm:$0xff]
        %v9015 = vld [vmem:[#allocation12 + $0xd8] sm:$0xff]
        %v9016 = vld [vmem:[#allocation12 + $0xe0] sm:$0xff]
        %v9017 = vld [vmem:[#allocation12 + $0xe8] sm:$0xff]
        %v9018 = vld [vmem:[#allocation12 + $0xf0] sm:$0xff]
        %v9019 = vld [vmem:[#allocation12 + $0xf8] sm:$0xff]
        %v9020 = vld [vmem:[%s7] sm:$0x3]
        %v9022 = vlaneseq
        %v9023 = vshrl.u32 %v9022, 7
        %v9024 = vsub.s32 0, %v9023
        %v9025 = vrot.slane %v9020, %v9024
        %v9026 = vlaneseq
        %v9027 = vshrl.u32 %v9026, 7
        %v9028 = vsub.s32 1, %v9027
        %v9029 = vrot.slane %v9020, %v9028
        %v9064 = vunpack.c.l.b16 %v8988
        %v9065 = vunpack.c.h.b16 %v8988
        %v9066 = vunpack.c.l.b16 %v8989
        %v9067 = vunpack.c.h.b16 %v8989
        %v9068 = vunpack.c.l.b16 %v8990
        %v9069 = vunpack.c.h.b16 %v8990
        %v9070 = vunpack.c.l.b16 %v8991
        %v9071 = vunpack.c.h.b16 %v8991
        %v9072 = vunpack.c.l.b16 %v8992
        %v9073 = vunpack.c.h.b16 %v8992
        %v9074 = vunpack.c.l.b16 %v8993
        %v9075 = vunpack.c.h.b16 %v8993
        %v9076 = vunpack.c.l.b16 %v8994
        %v9077 = vunpack.c.h.b16 %v8994
        %v9078 = vunpack.c.l.b16 %v8995
        %v9079 = vunpack.c.h.b16 %v8995
        %v9080 = vunpack.c.l.b16 %v8996
        %v9081 = vunpack.c.h.b16 %v8996
        %v9082 = vunpack.c.l.b16 %v8997
        %v9083 = vunpack.c.h.b16 %v8997
        %v9084 = vunpack.c.l.b16 %v8998
        %v9085 = vunpack.c.h.b16 %v8998
        %v9086 = vunpack.c.l.b16 %v8999
        %v9087 = vunpack.c.h.b16 %v8999
        %v9088 = vunpack.c.l.b16 %v9000
        %v9089 = vunpack.c.h.b16 %v9000
        %v9090 = vunpack.c.l.b16 %v9001
        %v9091 = vunpack.c.h.b16 %v9001
        %v9092 = vunpack.c.l.b16 %v9002
        %v9093 = vunpack.c.h.b16 %v9002
        %v9094 = vunpack.c.l.b16 %v9003
        %v9095 = vunpack.c.h.b16 %v9003
        %v9096 = vunpack.c.l.b16 %v9004
        %v9097 = vunpack.c.h.b16 %v9004
        %v9098 = vunpack.c.l.b16 %v9005
        %v9099 = vunpack.c.h.b16 %v9005
        %v9100 = vunpack.c.l.b16 %v9006
        %v9101 = vunpack.c.h.b16 %v9006
        %v9102 = vunpack.c.l.b16 %v9007
        %v9103 = vunpack.c.h.b16 %v9007
        %v9104 = vunpack.c.l.b16 %v9008
        %v9105 = vunpack.c.h.b16 %v9008
        %v9106 = vunpack.c.l.b16 %v9009
        %v9107 = vunpack.c.h.b16 %v9009
        %v9108 = vunpack.c.l.b16 %v9010
        %v9109 = vunpack.c.h.b16 %v9010
        %v9110 = vunpack.c.l.b16 %v9011
        %v9111 = vunpack.c.h.b16 %v9011
        %v9112 = vunpack.c.l.b16 %v9012
        %v9113 = vunpack.c.h.b16 %v9012
        %v9114 = vunpack.c.l.b16 %v9013
        %v9115 = vunpack.c.h.b16 %v9013
        %v9116 = vunpack.c.l.b16 %v9014
        %v9117 = vunpack.c.h.b16 %v9014
        %v9118 = vunpack.c.l.b16 %v9015
        %v9119 = vunpack.c.h.b16 %v9015
        %v9120 = vunpack.c.l.b16 %v9016
        %v9121 = vunpack.c.h.b16 %v9016
        %v9122 = vunpack.c.l.b16 %v9017
        %v9123 = vunpack.c.h.b16 %v9017
        %v9124 = vunpack.c.l.b16 %v9018
        %v9125 = vunpack.c.h.b16 %v9018
        %v9126 = vunpack.c.l.b16 %v9019
        %v9127 = vunpack.c.h.b16 %v9019
        %v9128 = vpack.c.b16 %v9066, %v9064
        %v9129 = vpack.c.b16 %v9067, %v9065
        %v9130 = vpack.c.b16 %v9070, %v9068
        %v9131 = vpack.c.b16 %v9071, %v9069
        %v9132 = vpack.c.b16 %v9074, %v9072
        %v9133 = vpack.c.b16 %v9075, %v9073
        %v9134 = vpack.c.b16 %v9078, %v9076
        %v9135 = vpack.c.b16 %v9079, %v9077
        %v9136 = vpack.c.b16 %v9082, %v9080
        %v9137 = vpack.c.b16 %v9083, %v9081
        %v9138 = vpack.c.b16 %v9086, %v9084
        %v9139 = vpack.c.b16 %v9087, %v9085
        %v9140 = vpack.c.b16 %v9090, %v9088
        %v9141 = vpack.c.b16 %v9091, %v9089
        %v9142 = vpack.c.b16 %v9094, %v9092
        %v9143 = vpack.c.b16 %v9095, %v9093
        %v9144 = vpack.c.b16 %v9098, %v9096
        %v9145 = vpack.c.b16 %v9099, %v9097
        %v9146 = vpack.c.b16 %v9102, %v9100
        %v9147 = vpack.c.b16 %v9103, %v9101
        %v9148 = vpack.c.b16 %v9106, %v9104
        %v9149 = vpack.c.b16 %v9107, %v9105
        %v9150 = vpack.c.b16 %v9110, %v9108
        %v9151 = vpack.c.b16 %v9111, %v9109
        %v9152 = vpack.c.b16 %v9114, %v9112
        %v9153 = vpack.c.b16 %v9115, %v9113
        %v9154 = vpack.c.b16 %v9118, %v9116
        %v9155 = vpack.c.b16 %v9119, %v9117
        %v9156 = vpack.c.b16 %v9122, %v9120
        %v9157 = vpack.c.b16 %v9123, %v9121
        %v9158 = vpack.c.b16 %v9126, %v9124
        %v9159 = vpack.c.b16 %v9127, %v9125
        %9192 = vmatprep.subr.bf16.mxu0 %v9143
        %9193 = vmatpush1.bf16.msra.mxu0 %v9142
        %9194 = vmatprep.subr.bf16.mxu0 %v9141
        %9195 = vmatpush1.bf16.msra.mxu0 %v9140
        %9196 = vmatprep.subr.bf16.mxu0 %v9139
        %9197 = vmatpush1.bf16.msra.mxu0 %v9138
        %9198 = vmatprep.subr.bf16.mxu0 %v9137
        %9199 = vmatpush1.bf16.msra.mxu0 %v9136
        %9200 = vmatprep.subr.bf16.mxu0 %v9135
        %9201 = vmatpush1.bf16.msra.mxu0 %v9134
        %9202 = vmatprep.subr.bf16.mxu0 %v9133
        %9203 = vmatpush1.bf16.msra.mxu0 %v9132
        %9204 = vmatprep.subr.bf16.mxu0 %v9131
        %9205 = vmatpush1.bf16.msra.mxu0 %v9130
        %9206 = vmatprep.subr.bf16.mxu0 %v9129
        %9207 = vmatpush1.bf16.msra.mxu0 %v9128
        %9208 = vmatprep.subr.bf16.mxu0 %v9159
        %9209 = vmatpush2.bf16.msra.mxu0 %v9158
        %9210 = vmatprep.subr.bf16.mxu0 %v9157
        %9211 = vmatpush2.bf16.msra.mxu0 %v9156
        %9212 = vmatprep.subr.bf16.mxu0 %v9155
        %9213 = vmatpush2.bf16.msra.mxu0 %v9154
        %9214 = vmatprep.subr.bf16.mxu0 %v9153
        %9215 = vmatpush2.bf16.msra.mxu0 %v9152
        %9216 = vmatprep.subr.bf16.mxu0 %v9151
        %9217 = vmatpush2.bf16.msra.mxu0 %v9150
        %9218 = vmatprep.subr.bf16.mxu0 %v9149
        %9219 = vmatpush2.bf16.msra.mxu0 %v9148
        %9220 = vmatprep.subr.bf16.mxu0 %v9147
        %9221 = vmatpush2.bf16.msra.mxu0 %v9146
        %9222 = vmatprep.subr.bf16.mxu0 %v9145
        %9223 = vmatpush2.bf16.msra.mxu0 %v9144
        %9224 = vmatprep.mubr.bf16.mxu0 %v8957
        %9225 = vmatmul.mubr.bf16.gmra.mxu0 %v8956
        %v9226 = vpop.f32.mrf.mxu0
        %v9227 = vadd.f32 %v9025, %v9226
        %v9228 = vpop.f32.mrf.mxu0
        %v9229 = vadd.f32 %v9029, %v9228
        %v9230 = vpop.f32.mrf.mxu0
        %v9231 = vadd.f32 %v9025, %v9230
        %v9232 = vpop.f32.mrf.mxu0
        %v9233 = vadd.f32 %v9029, %v9232
        %9234 = vmatprep.mubr.bf16.mxu0 %v8959
        %9235 = vmatmul.mubr.bf16.gmra.mxu0 %v8958
        %v9236 = vpop.f32.mrf.mxu0
        %v9237 = vadd.f32 %v9025, %v9236
        %v9238 = vpop.f32.mrf.mxu0
        %v9239 = vadd.f32 %v9029, %v9238
        %v9240 = vpop.f32.mrf.mxu0
        %v9241 = vadd.f32 %v9025, %v9240
        %v9242 = vpop.f32.mrf.mxu0
        %v9243 = vadd.f32 %v9029, %v9242
        %9244 = vmatprep.mubr.bf16.mxu0 %v8961
        %9245 = vmatmul.mubr.bf16.gmra.mxu0 %v8960
        %v9246 = vpop.f32.mrf.mxu0
        %v9247 = vadd.f32 %v9025, %v9246
        %v9248 = vpop.f32.mrf.mxu0
        %v9249 = vadd.f32 %v9029, %v9248
        %v9250 = vpop.f32.mrf.mxu0
        %v9251 = vadd.f32 %v9025, %v9250
        %v9252 = vpop.f32.mrf.mxu0
        %v9253 = vadd.f32 %v9029, %v9252
        %9254 = vmatprep.mubr.bf16.mxu0 %v8963
        %9255 = vmatmul.mubr.bf16.gmra.mxu0 %v8962
        %v9256 = vpop.f32.mrf.mxu0
        %v9257 = vadd.f32 %v9025, %v9256
        %v9258 = vpop.f32.mrf.mxu0
        %v9259 = vadd.f32 %v9029, %v9258
        %v9260 = vpop.f32.mrf.mxu0
        %v9261 = vadd.f32 %v9025, %v9260
        %v9262 = vpop.f32.mrf.mxu0
        %v9263 = vadd.f32 %v9029, %v9262
        %9264 = vmatprep.mubr.bf16.mxu0 %v8965
        %9265 = vmatmul.mubr.bf16.gmra.mxu0 %v8964
        %v9266 = vpop.f32.mrf.mxu0
        %v9267 = vadd.f32 %v9025, %v9266
        %v9268 = vpop.f32.mrf.mxu0
        %v9269 = vadd.f32 %v9029, %v9268
        %v9270 = vpop.f32.mrf.mxu0
        %v9271 = vadd.f32 %v9025, %v9270
        %v9272 = vpop.f32.mrf.mxu0
        %v9273 = vadd.f32 %v9029, %v9272
        %9274 = vmatprep.mubr.bf16.mxu0 %v8967
        %9275 = vmatmul.mubr.bf16.gmra.mxu0 %v8966
        %v9276 = vpop.f32.mrf.mxu0
        %v9277 = vadd.f32 %v9025, %v9276
        %v9278 = vpop.f32.mrf.mxu0
        %v9279 = vadd.f32 %v9029, %v9278
        %v9280 = vpop.f32.mrf.mxu0
        %v9281 = vadd.f32 %v9025, %v9280
        %v9282 = vpop.f32.mrf.mxu0
        %v9283 = vadd.f32 %v9029, %v9282
        %9284 = vmatprep.mubr.bf16.mxu0 %v8969
        %9285 = vmatmul.mubr.bf16.gmra.mxu0 %v8968
        %v9286 = vpop.f32.mrf.mxu0
        %v9287 = vadd.f32 %v9025, %v9286
        %v9288 = vpop.f32.mrf.mxu0
        %v9289 = vadd.f32 %v9029, %v9288
        %v9290 = vpop.f32.mrf.mxu0
        %v9291 = vadd.f32 %v9025, %v9290
        %v9292 = vpop.f32.mrf.mxu0
        %v9293 = vadd.f32 %v9029, %v9292
        %9294 = vmatprep.mubr.bf16.mxu0 %v8971
        %9295 = vmatmul.mubr.bf16.gmra.mxu0 %v8970
        %v9296 = vpop.f32.mrf.mxu0
        %v9297 = vadd.f32 %v9025, %v9296
        %v9298 = vpop.f32.mrf.mxu0
        %v9299 = vadd.f32 %v9029, %v9298
        %v9300 = vpop.f32.mrf.mxu0
        %v9301 = vadd.f32 %v9025, %v9300
        %v9302 = vpop.f32.mrf.mxu0
        %v9303 = vadd.f32 %v9029, %v9302
        %9304 = vmatprep.mubr.bf16.mxu0 %v8973
        %9305 = vmatmul.mubr.bf16.gmra.mxu0 %v8972
        %v9306 = vpop.f32.mrf.mxu0
        %v9307 = vadd.f32 %v9025, %v9306
        %v9308 = vpop.f32.mrf.mxu0
        %v9309 = vadd.f32 %v9029, %v9308
        %v9310 = vpop.f32.mrf.mxu0
        %v9311 = vadd.f32 %v9025, %v9310
        %v9312 = vpop.f32.mrf.mxu0
        %v9313 = vadd.f32 %v9029, %v9312
        %9314 = vmatprep.mubr.bf16.mxu0 %v8975
        %9315 = vmatmul.mubr.bf16.gmra.mxu0 %v8974
        %v9316 = vpop.f32.mrf.mxu0
        %v9317 = vadd.f32 %v9025, %v9316
        %v9318 = vpop.f32.mrf.mxu0
        %v9319 = vadd.f32 %v9029, %v9318
        %v9320 = vpop.f32.mrf.mxu0
        %v9321 = vadd.f32 %v9025, %v9320
        %v9322 = vpop.f32.mrf.mxu0
        %v9323 = vadd.f32 %v9029, %v9322
        %9324 = vmatprep.mubr.bf16.mxu0 %v8977
        %9325 = vmatmul.mubr.bf16.gmra.mxu0 %v8976
        %v9326 = vpop.f32.mrf.mxu0
        %v9327 = vadd.f32 %v9025, %v9326
        %v9328 = vpop.f32.mrf.mxu0
        %v9329 = vadd.f32 %v9029, %v9328
        %v9330 = vpop.f32.mrf.mxu0
        %v9331 = vadd.f32 %v9025, %v9330
        %v9332 = vpop.f32.mrf.mxu0
        %v9333 = vadd.f32 %v9029, %v9332
        %9334 = vmatprep.mubr.bf16.mxu0 %v8979
        %9335 = vmatmul.mubr.bf16.gmra.mxu0 %v8978
        %v9336 = vpop.f32.mrf.mxu0
        %v9337 = vadd.f32 %v9025, %v9336
        %v9338 = vpop.f32.mrf.mxu0
        %v9339 = vadd.f32 %v9029, %v9338
        %v9340 = vpop.f32.mrf.mxu0
        %v9341 = vadd.f32 %v9025, %v9340
        %v9342 = vpop.f32.mrf.mxu0
        %v9343 = vadd.f32 %v9029, %v9342
        %9344 = vmatprep.mubr.bf16.mxu0 %v8981
        %9345 = vmatmul.mubr.bf16.gmra.mxu0 %v8980
        %v9346 = vpop.f32.mrf.mxu0
        %v9347 = vadd.f32 %v9025, %v9346
        %v9348 = vpop.f32.mrf.mxu0
        %v9349 = vadd.f32 %v9029, %v9348
        %v9350 = vpop.f32.mrf.mxu0
        %v9351 = vadd.f32 %v9025, %v9350
        %v9352 = vpop.f32.mrf.mxu0
        %v9353 = vadd.f32 %v9029, %v9352
        %9354 = vmatprep.mubr.bf16.mxu0 %v8983
        %9355 = vmatmul.mubr.bf16.gmra.mxu0 %v8982
        %v9356 = vpop.f32.mrf.mxu0
        %v9357 = vadd.f32 %v9025, %v9356
        %v9358 = vpop.f32.mrf.mxu0
        %v9359 = vadd.f32 %v9029, %v9358
        %v9360 = vpop.f32.mrf.mxu0
        %v9361 = vadd.f32 %v9025, %v9360
        %v9362 = vpop.f32.mrf.mxu0
        %v9363 = vadd.f32 %v9029, %v9362
        %9364 = vmatprep.mubr.bf16.mxu0 %v8985
        %9365 = vmatmul.mubr.bf16.gmra.mxu0 %v8984
        %v9366 = vpop.f32.mrf.mxu0
        %v9367 = vadd.f32 %v9025, %v9366
        %v9368 = vpop.f32.mrf.mxu0
        %v9369 = vadd.f32 %v9029, %v9368
        %v9370 = vpop.f32.mrf.mxu0
        %v9371 = vadd.f32 %v9025, %v9370
        %v9372 = vpop.f32.mrf.mxu0
        %v9373 = vadd.f32 %v9029, %v9372
        %9374 = vmatprep.mubr.bf16.mxu0 %v8987
        %9375 = vmatmul.mubr.bf16.gmra.mxu0 %v8986
        %v9376 = vpop.f32.mrf.mxu0
        %v9377 = vadd.f32 %v9025, %v9376
        %v9378 = vpop.f32.mrf.mxu0
        %v9379 = vadd.f32 %v9029, %v9378
        %v9380 = vpop.f32.mrf.mxu0
        %v9381 = vadd.f32 %v9025, %v9380
        %v9382 = vpop.f32.mrf.mxu0
        %v9383 = vadd.f32 %v9029, %v9382
        %9384 = vdwg.mxu0
        %v9385 = vunpack.c.l.bf16 %v3263
        %v9386 = vunpack.c.h.bf16 %v3263
        %v9387 = vunpack.c.l.bf16 %v3264
        %v9388 = vunpack.c.h.bf16 %v3264
        %v9389 = vunpack.c.l.bf16 %v3265
        %v9390 = vunpack.c.h.bf16 %v3265
        %v9391 = vunpack.c.l.bf16 %v3266
        %v9392 = vunpack.c.h.bf16 %v3266
        %v9393 = vunpack.c.l.bf16 %v3267
        %v9394 = vunpack.c.h.bf16 %v3267
        %v9395 = vunpack.c.l.bf16 %v3268
        %v9396 = vunpack.c.h.bf16 %v3268
        %v9397 = vunpack.c.l.bf16 %v3269
        %v9398 = vunpack.c.h.bf16 %v3269
        %v9399 = vunpack.c.l.bf16 %v3270
        %v9400 = vunpack.c.h.bf16 %v3270
        %v9401 = vunpack.c.l.bf16 %v3271
        %v9402 = vunpack.c.h.bf16 %v3271
        %v9403 = vunpack.c.l.bf16 %v3272
        %v9404 = vunpack.c.h.bf16 %v3272
        %v9405 = vunpack.c.l.bf16 %v3273
        %v9406 = vunpack.c.h.bf16 %v3273
        %v9407 = vunpack.c.l.bf16 %v3274
        %v9408 = vunpack.c.h.bf16 %v3274
        %v9409 = vunpack.c.l.bf16 %v3275
        %v9410 = vunpack.c.h.bf16 %v3275
        %v9411 = vunpack.c.l.bf16 %v3276
        %v9412 = vunpack.c.h.bf16 %v3276
        %v9413 = vunpack.c.l.bf16 %v3277
        %v9414 = vunpack.c.h.bf16 %v3277
        %v9415 = vunpack.c.l.bf16 %v3278
        %v9416 = vunpack.c.h.bf16 %v3278
        %v9417 = vunpack.c.l.bf16 %v3279
        %v9418 = vunpack.c.h.bf16 %v3279
        %v9419 = vunpack.c.l.bf16 %v3280
        %v9420 = vunpack.c.h.bf16 %v3280
        %v9421 = vunpack.c.l.bf16 %v3281
        %v9422 = vunpack.c.h.bf16 %v3281
        %v9423 = vunpack.c.l.bf16 %v3282
        %v9424 = vunpack.c.h.bf16 %v3282
        %v9425 = vunpack.c.l.bf16 %v3283
        %v9426 = vunpack.c.h.bf16 %v3283
        %v9427 = vunpack.c.l.bf16 %v3284
        %v9428 = vunpack.c.h.bf16 %v3284
        %v9429 = vunpack.c.l.bf16 %v3285
        %v9430 = vunpack.c.h.bf16 %v3285
        %v9431 = vunpack.c.l.bf16 %v3286
        %v9432 = vunpack.c.h.bf16 %v3286
        %v9433 = vunpack.c.l.bf16 %v3287
        %v9434 = vunpack.c.h.bf16 %v3287
        %v9435 = vunpack.c.l.bf16 %v3288
        %v9436 = vunpack.c.h.bf16 %v3288
        %v9437 = vunpack.c.l.bf16 %v3289
        %v9438 = vunpack.c.h.bf16 %v3289
        %v9439 = vunpack.c.l.bf16 %v3290
        %v9440 = vunpack.c.h.bf16 %v3290
        %v9441 = vunpack.c.l.bf16 %v3291
        %v9442 = vunpack.c.h.bf16 %v3291
        %v9443 = vunpack.c.l.bf16 %v3292
        %v9444 = vunpack.c.h.bf16 %v3292
        %v9445 = vunpack.c.l.bf16 %v3293
        %v9446 = vunpack.c.h.bf16 %v3293
        %v9447 = vunpack.c.l.bf16 %v3294
        %v9448 = vunpack.c.h.bf16 %v3294
        %v9449 = vadd.f32 %v9385, %v9227
        %v9450 = vadd.f32 %v9386, %v9229
        %v9451 = vadd.f32 %v9387, %v9231
        %v9452 = vadd.f32 %v9388, %v9233
        %v9453 = vadd.f32 %v9389, %v9237
        %v9454 = vadd.f32 %v9390, %v9239
        %v9455 = vadd.f32 %v9391, %v9241
        %v9456 = vadd.f32 %v9392, %v9243
        %v9457 = vadd.f32 %v9393, %v9247
        %v9458 = vadd.f32 %v9394, %v9249
        %v9459 = vadd.f32 %v9395, %v9251
        %v9460 = vadd.f32 %v9396, %v9253
        %v9461 = vadd.f32 %v9397, %v9257
        %v9462 = vadd.f32 %v9398, %v9259
        %v9463 = vadd.f32 %v9399, %v9261
        %v9464 = vadd.f32 %v9400, %v9263
        %v9465 = vadd.f32 %v9401, %v9267
        %v9466 = vadd.f32 %v9402, %v9269
        %v9467 = vadd.f32 %v9403, %v9271
        %v9468 = vadd.f32 %v9404, %v9273
        %v9469 = vadd.f32 %v9405, %v9277
        %v9470 = vadd.f32 %v9406, %v9279
        %v9471 = vadd.f32 %v9407, %v9281
        %v9472 = vadd.f32 %v9408, %v9283
        %v9473 = vadd.f32 %v9409, %v9287
        %v9474 = vadd.f32 %v9410, %v9289
        %v9475 = vadd.f32 %v9411, %v9291
        %v9476 = vadd.f32 %v9412, %v9293
        %v9477 = vadd.f32 %v9413, %v9297
        %v9478 = vadd.f32 %v9414, %v9299
        %v9479 = vadd.f32 %v9415, %v9301
        %v9480 = vadd.f32 %v9416, %v9303
        %v9481 = vadd.f32 %v9417, %v9307
        %v9482 = vadd.f32 %v9418, %v9309
        %v9483 = vadd.f32 %v9419, %v9311
        %v9484 = vadd.f32 %v9420, %v9313
        %v9485 = vadd.f32 %v9421, %v9317
        %v9486 = vadd.f32 %v9422, %v9319
        %v9487 = vadd.f32 %v9423, %v9321
        %v9488 = vadd.f32 %v9424, %v9323
        %v9489 = vadd.f32 %v9425, %v9327
        %v9490 = vadd.f32 %v9426, %v9329
        %v9491 = vadd.f32 %v9427, %v9331
        %v9492 = vadd.f32 %v9428, %v9333
        %v9493 = vadd.f32 %v9429, %v9337
        %v9494 = vadd.f32 %v9430, %v9339
        %v9495 = vadd.f32 %v9431, %v9341
        %v9496 = vadd.f32 %v9432, %v9343
        %v9497 = vadd.f32 %v9433, %v9347
        %v9498 = vadd.f32 %v9434, %v9349
        %v9499 = vadd.f32 %v9435, %v9351
        %v9500 = vadd.f32 %v9436, %v9353
        %v9501 = vadd.f32 %v9437, %v9357
        %v9502 = vadd.f32 %v9438, %v9359
        %v9503 = vadd.f32 %v9439, %v9361
        %v9504 = vadd.f32 %v9440, %v9363
        %v9505 = vadd.f32 %v9441, %v9367
        %v9506 = vadd.f32 %v9442, %v9369
        %v9507 = vadd.f32 %v9443, %v9371
        %v9508 = vadd.f32 %v9444, %v9373
        %v9509 = vadd.f32 %v9445, %v9377
        %v9510 = vadd.f32 %v9446, %v9379
        %v9511 = vadd.f32 %v9447, %v9381
        %v9512 = vadd.f32 %v9448, %v9383
        %v9513 = vadd.f32 %v9449, %v9450
        %9514 = vadd.xlane.f32.xlu0 %v9513
        %v9515 = vpop.xlane.xlu0 %9514
        %v9516 = vadd.f32 %v9451, %v9452
        %9517 = vadd.xlane.f32.xlu0 %v9516
        %v9518 = vpop.xlane.xlu0 %9517
        %v9519 = vadd.f32 %v9453, %v9454
        %9520 = vadd.xlane.f32.xlu0 %v9519
        %v9521 = vpop.xlane.xlu0 %9520
        %v9522 = vadd.f32 %v9455, %v9456
        %9523 = vadd.xlane.f32.xlu0 %v9522
        %v9524 = vpop.xlane.xlu0 %9523
        %v9525 = vadd.f32 %v9457, %v9458
        %9526 = vadd.xlane.f32.xlu0 %v9525
        %v9527 = vpop.xlane.xlu0 %9526
        %v9528 = vadd.f32 %v9459, %v9460
        %9529 = vadd.xlane.f32.xlu0 %v9528
        %v9530 = vpop.xlane.xlu0 %9529
        %v9531 = vadd.f32 %v9461, %v9462
        %9532 = vadd.xlane.f32.xlu0 %v9531
        %v9533 = vpop.xlane.xlu0 %9532
        %v9534 = vadd.f32 %v9463, %v9464
        %9535 = vadd.xlane.f32.xlu0 %v9534
        %v9536 = vpop.xlane.xlu0 %9535
        %v9537 = vadd.f32 %v9465, %v9466
        %9538 = vadd.xlane.f32.xlu0 %v9537
        %v9539 = vpop.xlane.xlu0 %9538
        %v9540 = vadd.f32 %v9467, %v9468
        %9541 = vadd.xlane.f32.xlu0 %v9540
        %v9542 = vpop.xlane.xlu0 %9541
        %v9543 = vadd.f32 %v9469, %v9470
        %9544 = vadd.xlane.f32.xlu0 %v9543
        %v9545 = vpop.xlane.xlu0 %9544
        %v9546 = vadd.f32 %v9471, %v9472
        %9547 = vadd.xlane.f32.xlu0 %v9546
        %v9548 = vpop.xlane.xlu0 %9547
        %v9549 = vadd.f32 %v9473, %v9474
        %9550 = vadd.xlane.f32.xlu0 %v9549
        %v9551 = vpop.xlane.xlu0 %9550
        %v9552 = vadd.f32 %v9475, %v9476
        %9553 = vadd.xlane.f32.xlu0 %v9552
        %v9554 = vpop.xlane.xlu0 %9553
        %v9555 = vadd.f32 %v9477, %v9478
        %9556 = vadd.xlane.f32.xlu0 %v9555
        %v9557 = vpop.xlane.xlu0 %9556
        %v9558 = vadd.f32 %v9479, %v9480
        %9559 = vadd.xlane.f32.xlu0 %v9558
        %v9560 = vpop.xlane.xlu0 %9559
        %v9561 = vadd.f32 %v9481, %v9482
        %9562 = vadd.xlane.f32.xlu0 %v9561
        %v9563 = vpop.xlane.xlu0 %9562
        %v9564 = vadd.f32 %v9483, %v9484
        %9565 = vadd.xlane.f32.xlu0 %v9564
        %v9566 = vpop.xlane.xlu0 %9565
        %v9567 = vadd.f32 %v9485, %v9486
        %9568 = vadd.xlane.f32.xlu0 %v9567
        %v9569 = vpop.xlane.xlu0 %9568
        %v9570 = vadd.f32 %v9487, %v9488
        %9571 = vadd.xlane.f32.xlu0 %v9570
        %v9572 = vpop.xlane.xlu0 %9571
        %v9573 = vadd.f32 %v9489, %v9490
        %9574 = vadd.xlane.f32.xlu0 %v9573
        %v9575 = vpop.xlane.xlu0 %9574
        %v9576 = vadd.f32 %v9491, %v9492
        %9577 = vadd.xlane.f32.xlu0 %v9576
        %v9578 = vpop.xlane.xlu0 %9577
        %v9579 = vadd.f32 %v9493, %v9494
        %9580 = vadd.xlane.f32.xlu0 %v9579
        %v9581 = vpop.xlane.xlu0 %9580
        %v9582 = vadd.f32 %v9495, %v9496
        %9583 = vadd.xlane.f32.xlu0 %v9582
        %v9584 = vpop.xlane.xlu0 %9583
        %v9585 = vadd.f32 %v9497, %v9498
        %9586 = vadd.xlane.f32.xlu0 %v9585
        %v9587 = vpop.xlane.xlu0 %9586
        %v9588 = vadd.f32 %v9499, %v9500
        %9589 = vadd.xlane.f32.xlu0 %v9588
        %v9590 = vpop.xlane.xlu0 %9589
        %v9591 = vadd.f32 %v9501, %v9502
        %9592 = vadd.xlane.f32.xlu0 %v9591
        %v9593 = vpop.xlane.xlu0 %9592
        %v9594 = vadd.f32 %v9503, %v9504
        %9595 = vadd.xlane.f32.xlu0 %v9594
        %v9596 = vpop.xlane.xlu0 %9595
        %v9597 = vadd.f32 %v9505, %v9506
        %9598 = vadd.xlane.f32.xlu0 %v9597
        %v9599 = vpop.xlane.xlu0 %9598
        %v9600 = vadd.f32 %v9507, %v9508
        %9601 = vadd.xlane.f32.xlu0 %v9600
        %v9602 = vpop.xlane.xlu0 %9601
        %v9603 = vadd.f32 %v9509, %v9510
        %9604 = vadd.xlane.f32.xlu0 %v9603
        %v9605 = vpop.xlane.xlu0 %9604
        %v9606 = vadd.f32 %v9511, %v9512
        %9607 = vadd.xlane.f32.xlu0 %v9606
        %v9608 = vpop.xlane.xlu0 %9607
        %v9609 = vrcp.pop 256.0
        %v9610 = vmul.f32 %v9515, %v9609
        %v9611 = vmul.f32 %v9518, %v9609
        %v9612 = vmul.f32 %v9521, %v9609
        %v9613 = vmul.f32 %v9524, %v9609
        %v9614 = vmul.f32 %v9527, %v9609
        %v9615 = vmul.f32 %v9530, %v9609
        %v9616 = vmul.f32 %v9533, %v9609
        %v9617 = vmul.f32 %v9536, %v9609
        %v9618 = vmul.f32 %v9539, %v9609
        %v9619 = vmul.f32 %v9542, %v9609
        %v9620 = vmul.f32 %v9545, %v9609
        %v9621 = vmul.f32 %v9548, %v9609
        %v9622 = vmul.f32 %v9551, %v9609
        %v9623 = vmul.f32 %v9554, %v9609
        %v9624 = vmul.f32 %v9557, %v9609
        %v9625 = vmul.f32 %v9560, %v9609
        %v9626 = vmul.f32 %v9563, %v9609
        %v9627 = vmul.f32 %v9566, %v9609
        %v9628 = vmul.f32 %v9569, %v9609
        %v9629 = vmul.f32 %v9572, %v9609
        %v9630 = vmul.f32 %v9575, %v9609
        %v9631 = vmul.f32 %v9578, %v9609
        %v9632 = vmul.f32 %v9581, %v9609
        %v9633 = vmul.f32 %v9584, %v9609
        %v9634 = vmul.f32 %v9587, %v9609
        %v9635 = vmul.f32 %v9590, %v9609
        %v9636 = vmul.f32 %v9593, %v9609
        %v9637 = vmul.f32 %v9596, %v9609
        %v9638 = vmul.f32 %v9599, %v9609
        %v9639 = vmul.f32 %v9602, %v9609
        %v9640 = vmul.f32 %v9605, %v9609
        %v9641 = vmul.f32 %v9608, %v9609
        %v9642 = vsub.f32 %v9449, %v9610
        %v9643 = vsub.f32 %v9450, %v9610
        %v9644 = vsub.f32 %v9451, %v9611
        %v9645 = vsub.f32 %v9452, %v9611
        %v9646 = vsub.f32 %v9453, %v9612
        %v9647 = vsub.f32 %v9454, %v9612
        %v9648 = vsub.f32 %v9455, %v9613
        %v9649 = vsub.f32 %v9456, %v9613
        %v9650 = vsub.f32 %v9457, %v9614
        %v9651 = vsub.f32 %v9458, %v9614
        %v9652 = vsub.f32 %v9459, %v9615
        %v9653 = vsub.f32 %v9460, %v9615
        %v9654 = vsub.f32 %v9461, %v9616
        %v9655 = vsub.f32 %v9462, %v9616
        %v9656 = vsub.f32 %v9463, %v9617
        %v9657 = vsub.f32 %v9464, %v9617
        %v9658 = vsub.f32 %v9465, %v9618
        %v9659 = vsub.f32 %v9466, %v9618
        %v9660 = vsub.f32 %v9467, %v9619
        %v9661 = vsub.f32 %v9468, %v9619
        %v9662 = vsub.f32 %v9469, %v9620
        %v9663 = vsub.f32 %v9470, %v9620
        %v9664 = vsub.f32 %v9471, %v9621
        %v9665 = vsub.f32 %v9472, %v9621
        %v9666 = vsub.f32 %v9473, %v9622
        %v9667 = vsub.f32 %v9474, %v9622
        %v9668 = vsub.f32 %v9475, %v9623
        %v9669 = vsub.f32 %v9476, %v9623
        %v9670 = vsub.f32 %v9477, %v9624
        %v9671 = vsub.f32 %v9478, %v9624
        %v9672 = vsub.f32 %v9479, %v9625
        %v9673 = vsub.f32 %v9480, %v9625
        %v9674 = vsub.f32 %v9481, %v9626
        %v9675 = vsub.f32 %v9482, %v9626
        %v9676 = vsub.f32 %v9483, %v9627
        %v9677 = vsub.f32 %v9484, %v9627
        %v9678 = vsub.f32 %v9485, %v9628
        %v9679 = vsub.f32 %v9486, %v9628
        %v9680 = vsub.f32 %v9487, %v9629
        %v9681 = vsub.f32 %v9488, %v9629
        %v9682 = vsub.f32 %v9489, %v9630
        %v9683 = vsub.f32 %v9490, %v9630
        %v9684 = vsub.f32 %v9491, %v9631
        %v9685 = vsub.f32 %v9492, %v9631
        %v9686 = vsub.f32 %v9493, %v9632
        %v9687 = vsub.f32 %v9494, %v9632
        %v9688 = vsub.f32 %v9495, %v9633
        %v9689 = vsub.f32 %v9496, %v9633
        %v9690 = vsub.f32 %v9497, %v9634
        %v9691 = vsub.f32 %v9498, %v9634
        %v9692 = vsub.f32 %v9499, %v9635
        %v9693 = vsub.f32 %v9500, %v9635
        %v9694 = vsub.f32 %v9501, %v9636
        %v9695 = vsub.f32 %v9502, %v9636
        %v9696 = vsub.f32 %v9503, %v9637
        %v9697 = vsub.f32 %v9504, %v9637
        %v9698 = vsub.f32 %v9505, %v9638
        %v9699 = vsub.f32 %v9506, %v9638
        %v9700 = vsub.f32 %v9507, %v9639
        %v9701 = vsub.f32 %v9508, %v9639
        %v9702 = vsub.f32 %v9509, %v9640
        %v9703 = vsub.f32 %v9510, %v9640
        %v9704 = vsub.f32 %v9511, %v9641
        %v9705 = vsub.f32 %v9512, %v9641
        %v9706 = vmul.f32 %v9642, %v9642
        %v9707 = vmul.f32 %v9643, %v9643
        %v9708 = vmul.f32 %v9644, %v9644
        %v9709 = vmul.f32 %v9645, %v9645
        %v9710 = vmul.f32 %v9646, %v9646
        %v9711 = vmul.f32 %v9647, %v9647
        %v9712 = vmul.f32 %v9648, %v9648
        %v9713 = vmul.f32 %v9649, %v9649
        %v9714 = vmul.f32 %v9650, %v9650
        %v9715 = vmul.f32 %v9651, %v9651
        %v9716 = vmul.f32 %v9652, %v9652
        %v9717 = vmul.f32 %v9653, %v9653
        %v9718 = vmul.f32 %v9654, %v9654
        %v9719 = vmul.f32 %v9655, %v9655
        %v9720 = vmul.f32 %v9656, %v9656
        %v9721 = vmul.f32 %v9657, %v9657
        %v9722 = vmul.f32 %v9658, %v9658
        %v9723 = vmul.f32 %v9659, %v9659
        %v9724 = vmul.f32 %v9660, %v9660
        %v9725 = vmul.f32 %v9661, %v9661
        %v9726 = vmul.f32 %v9662, %v9662
        %v9727 = vmul.f32 %v9663, %v9663
        %v9728 = vmul.f32 %v9664, %v9664
        %v9729 = vmul.f32 %v9665, %v9665
        %v9730 = vmul.f32 %v9666, %v9666
        %v9731 = vmul.f32 %v9667, %v9667
        %v9732 = vmul.f32 %v9668, %v9668
        %v9733 = vmul.f32 %v9669, %v9669
        %v9734 = vmul.f32 %v9670, %v9670
        %v9735 = vmul.f32 %v9671, %v9671
        %v9736 = vmul.f32 %v9672, %v9672
        %v9737 = vmul.f32 %v9673, %v9673
        %v9738 = vmul.f32 %v9674, %v9674
        %v9739 = vmul.f32 %v9675, %v9675
        %v9740 = vmul.f32 %v9676, %v9676
        %v9741 = vmul.f32 %v9677, %v9677
        %v9742 = vmul.f32 %v9678, %v9678
        %v9743 = vmul.f32 %v9679, %v9679
        %v9744 = vmul.f32 %v9680, %v9680
        %v9745 = vmul.f32 %v9681, %v9681
        %v9746 = vmul.f32 %v9682, %v9682
        %v9747 = vmul.f32 %v9683, %v9683
        %v9748 = vmul.f32 %v9684, %v9684
        %v9749 = vmul.f32 %v9685, %v9685
        %v9750 = vmul.f32 %v9686, %v9686
        %v9751 = vmul.f32 %v9687, %v9687
        %v9752 = vmul.f32 %v9688, %v9688
        %v9753 = vmul.f32 %v9689, %v9689
        %v9754 = vmul.f32 %v9690, %v9690
        %v9755 = vmul.f32 %v9691, %v9691
        %v9756 = vmul.f32 %v9692, %v9692
        %v9757 = vmul.f32 %v9693, %v9693
        %v9758 = vmul.f32 %v9694, %v9694
        %v9759 = vmul.f32 %v9695, %v9695
        %v9760 = vmul.f32 %v9696, %v9696
        %v9761 = vmul.f32 %v9697, %v9697
        %v9762 = vmul.f32 %v9698, %v9698
        %v9763 = vmul.f32 %v9699, %v9699
        %v9764 = vmul.f32 %v9700, %v9700
        %v9765 = vmul.f32 %v9701, %v9701
        %v9766 = vmul.f32 %v9702, %v9702
        %v9767 = vmul.f32 %v9703, %v9703
        %v9768 = vmul.f32 %v9704, %v9704
        %v9769 = vmul.f32 %v9705, %v9705
        %v9770 = vadd.f32 %v9706, %v9707
        %9771 = vadd.xlane.f32.xlu0 %v9770
        %v9772 = vpop.xlane.xlu0 %9771
        %v9773 = vadd.f32 %v9708, %v9709
        %9774 = vadd.xlane.f32.xlu0 %v9773
        %v9775 = vpop.xlane.xlu0 %9774
        %v9776 = vadd.f32 %v9710, %v9711
        %9777 = vadd.xlane.f32.xlu0 %v9776
        %v9778 = vpop.xlane.xlu0 %9777
        %v9779 = vadd.f32 %v9712, %v9713
        %9780 = vadd.xlane.f32.xlu0 %v9779
        %v9781 = vpop.xlane.xlu0 %9780
        %v9782 = vadd.f32 %v9714, %v9715
        %9783 = vadd.xlane.f32.xlu0 %v9782
        %v9784 = vpop.xlane.xlu0 %9783
        %v9785 = vadd.f32 %v9716, %v9717
        %9786 = vadd.xlane.f32.xlu0 %v9785
        %v9787 = vpop.xlane.xlu0 %9786
        %v9788 = vadd.f32 %v9718, %v9719
        %9789 = vadd.xlane.f32.xlu0 %v9788
        %v9790 = vpop.xlane.xlu0 %9789
        %v9791 = vadd.f32 %v9720, %v9721
        %9792 = vadd.xlane.f32.xlu0 %v9791
        %v9793 = vpop.xlane.xlu0 %9792
        %v9794 = vadd.f32 %v9722, %v9723
        %9795 = vadd.xlane.f32.xlu0 %v9794
        %v9796 = vpop.xlane.xlu0 %9795
        %v9797 = vadd.f32 %v9724, %v9725
        %9798 = vadd.xlane.f32.xlu0 %v9797
        %v9799 = vpop.xlane.xlu0 %9798
        %v9800 = vadd.f32 %v9726, %v9727
        %9801 = vadd.xlane.f32.xlu0 %v9800
        %v9802 = vpop.xlane.xlu0 %9801
        %v9803 = vadd.f32 %v9728, %v9729
        %9804 = vadd.xlane.f32.xlu0 %v9803
        %v9805 = vpop.xlane.xlu0 %9804
        %v9806 = vadd.f32 %v9730, %v9731
        %9807 = vadd.xlane.f32.xlu0 %v9806
        %v9808 = vpop.xlane.xlu0 %9807
        %v9809 = vadd.f32 %v9732, %v9733
        %9810 = vadd.xlane.f32.xlu0 %v9809
        %v9811 = vpop.xlane.xlu0 %9810
        %v9812 = vadd.f32 %v9734, %v9735
        %9813 = vadd.xlane.f32.xlu0 %v9812
        %v9814 = vpop.xlane.xlu0 %9813
        %v9815 = vadd.f32 %v9736, %v9737
        %9816 = vadd.xlane.f32.xlu0 %v9815
        %v9817 = vpop.xlane.xlu0 %9816
        %v9818 = vadd.f32 %v9738, %v9739
        %9819 = vadd.xlane.f32.xlu0 %v9818
        %v9820 = vpop.xlane.xlu0 %9819
        %v9821 = vadd.f32 %v9740, %v9741
        %9822 = vadd.xlane.f32.xlu0 %v9821
        %v9823 = vpop.xlane.xlu0 %9822
        %v9824 = vadd.f32 %v9742, %v9743
        %9825 = vadd.xlane.f32.xlu0 %v9824
        %v9826 = vpop.xlane.xlu0 %9825
        %v9827 = vadd.f32 %v9744, %v9745
        %9828 = vadd.xlane.f32.xlu0 %v9827
        %v9829 = vpop.xlane.xlu0 %9828
        %v9830 = vadd.f32 %v9746, %v9747
        %9831 = vadd.xlane.f32.xlu0 %v9830
        %v9832 = vpop.xlane.xlu0 %9831
        %v9833 = vadd.f32 %v9748, %v9749
        %9834 = vadd.xlane.f32.xlu0 %v9833
        %v9835 = vpop.xlane.xlu0 %9834
        %v9836 = vadd.f32 %v9750, %v9751
        %9837 = vadd.xlane.f32.xlu0 %v9836
        %v9838 = vpop.xlane.xlu0 %9837
        %v9839 = vadd.f32 %v9752, %v9753
        %9840 = vadd.xlane.f32.xlu0 %v9839
        %v9841 = vpop.xlane.xlu0 %9840
        %v9842 = vadd.f32 %v9754, %v9755
        %9843 = vadd.xlane.f32.xlu0 %v9842
        %v9844 = vpop.xlane.xlu0 %9843
        %v9845 = vadd.f32 %v9756, %v9757
        %9846 = vadd.xlane.f32.xlu0 %v9845
        %v9847 = vpop.xlane.xlu0 %9846
        %v9848 = vadd.f32 %v9758, %v9759
        %9849 = vadd.xlane.f32.xlu0 %v9848
        %v9850 = vpop.xlane.xlu0 %9849
        %v9851 = vadd.f32 %v9760, %v9761
        %9852 = vadd.xlane.f32.xlu0 %v9851
        %v9853 = vpop.xlane.xlu0 %9852
        %v9854 = vadd.f32 %v9762, %v9763
        %9855 = vadd.xlane.f32.xlu0 %v9854
        %v9856 = vpop.xlane.xlu0 %9855
        %v9857 = vadd.f32 %v9764, %v9765
        %9858 = vadd.xlane.f32.xlu0 %v9857
        %v9859 = vpop.xlane.xlu0 %9858
        %v9860 = vadd.f32 %v9766, %v9767
        %9861 = vadd.xlane.f32.xlu0 %v9860
        %v9862 = vpop.xlane.xlu0 %9861
        %v9863 = vadd.f32 %v9768, %v9769
        %9864 = vadd.xlane.f32.xlu0 %v9863
        %v9865 = vpop.xlane.xlu0 %9864
        %v9866 = vmul.f32 %v9772, %v9609
        %v9867 = vmul.f32 %v9775, %v9609
        %v9868 = vmul.f32 %v9778, %v9609
        %v9869 = vmul.f32 %v9781, %v9609
        %v9870 = vmul.f32 %v9784, %v9609
        %v9871 = vmul.f32 %v9787, %v9609
        %v9872 = vmul.f32 %v9790, %v9609
        %v9873 = vmul.f32 %v9793, %v9609
        %v9874 = vmul.f32 %v9796, %v9609
        %v9875 = vmul.f32 %v9799, %v9609
        %v9876 = vmul.f32 %v9802, %v9609
        %v9877 = vmul.f32 %v9805, %v9609
        %v9878 = vmul.f32 %v9808, %v9609
        %v9879 = vmul.f32 %v9811, %v9609
        %v9880 = vmul.f32 %v9814, %v9609
        %v9881 = vmul.f32 %v9817, %v9609
        %v9882 = vmul.f32 %v9820, %v9609
        %v9883 = vmul.f32 %v9823, %v9609
        %v9884 = vmul.f32 %v9826, %v9609
        %v9885 = vmul.f32 %v9829, %v9609
        %v9886 = vmul.f32 %v9832, %v9609
        %v9887 = vmul.f32 %v9835, %v9609
        %v9888 = vmul.f32 %v9838, %v9609
        %v9889 = vmul.f32 %v9841, %v9609
        %v9890 = vmul.f32 %v9844, %v9609
        %v9891 = vmul.f32 %v9847, %v9609
        %v9892 = vmul.f32 %v9850, %v9609
        %v9893 = vmul.f32 %v9853, %v9609
        %v9894 = vmul.f32 %v9856, %v9609
        %v9895 = vmul.f32 %v9859, %v9609
        %v9896 = vmul.f32 %v9862, %v9609
        %v9897 = vmul.f32 %v9865, %v9609
        %v9898 = vadd.f32 %v9866, 1e-05
        %v9899 = vadd.f32 %v9867, 1e-05
        %v9900 = vadd.f32 %v9868, 1e-05
        %v9901 = vadd.f32 %v9869, 1e-05
        %v9902 = vadd.f32 %v9870, 1e-05
        %v9903 = vadd.f32 %v9871, 1e-05
        %v9904 = vadd.f32 %v9872, 1e-05
        %v9905 = vadd.f32 %v9873, 1e-05
        %v9906 = vadd.f32 %v9874, 1e-05
        %v9907 = vadd.f32 %v9875, 1e-05
        %v9908 = vadd.f32 %v9876, 1e-05
        %v9909 = vadd.f32 %v9877, 1e-05
        %v9910 = vadd.f32 %v9878, 1e-05
        %v9911 = vadd.f32 %v9879, 1e-05
        %v9912 = vadd.f32 %v9880, 1e-05
        %v9913 = vadd.f32 %v9881, 1e-05
        %v9914 = vadd.f32 %v9882, 1e-05
        %v9915 = vadd.f32 %v9883, 1e-05
        %v9916 = vadd.f32 %v9884, 1e-05
        %v9917 = vadd.f32 %v9885, 1e-05
        %v9918 = vadd.f32 %v9886, 1e-05
        %v9919 = vadd.f32 %v9887, 1e-05
        %v9920 = vadd.f32 %v9888, 1e-05
        %v9921 = vadd.f32 %v9889, 1e-05
        %v9922 = vadd.f32 %v9890, 1e-05
        %v9923 = vadd.f32 %v9891, 1e-05
        %v9924 = vadd.f32 %v9892, 1e-05
        %v9925 = vadd.f32 %v9893, 1e-05
        %v9926 = vadd.f32 %v9894, 1e-05
        %v9927 = vadd.f32 %v9895, 1e-05
        %v9928 = vadd.f32 %v9896, 1e-05
        %v9929 = vadd.f32 %v9897, 1e-05
        %v9930 = vrsqrt.pop %v9898
        %v9931 = vrsqrt.pop %v9899
        %v9932 = vrsqrt.pop %v9900
        %v9933 = vrsqrt.pop %v9901
        %v9934 = vrsqrt.pop %v9902
        %v9935 = vrsqrt.pop %v9903
        %v9936 = vrsqrt.pop %v9904
        %v9937 = vrsqrt.pop %v9905
        %v9938 = vrsqrt.pop %v9906
        %v9939 = vrsqrt.pop %v9907
        %v9940 = vrsqrt.pop %v9908
        %v9941 = vrsqrt.pop %v9909
        %v9942 = vrsqrt.pop %v9910
        %v9943 = vrsqrt.pop %v9911
        %v9944 = vrsqrt.pop %v9912
        %v9945 = vrsqrt.pop %v9913
        %v9946 = vrsqrt.pop %v9914
        %v9947 = vrsqrt.pop %v9915
        %v9948 = vrsqrt.pop %v9916
        %v9949 = vrsqrt.pop %v9917
        %v9950 = vrsqrt.pop %v9918
        %v9951 = vrsqrt.pop %v9919
        %v9952 = vrsqrt.pop %v9920
        %v9953 = vrsqrt.pop %v9921
        %v9954 = vrsqrt.pop %v9922
        %v9955 = vrsqrt.pop %v9923
        %v9956 = vrsqrt.pop %v9924
        %v9957 = vrsqrt.pop %v9925
        %v9958 = vrsqrt.pop %v9926
        %v9959 = vrsqrt.pop %v9927
        %v9960 = vrsqrt.pop %v9928
        %v9961 = vrsqrt.pop %v9929
        %v9962 = vmul.f32 %v9642, %v9930
        %v9963 = vmul.f32 %v9643, %v9930
        %v9964 = vmul.f32 %v9644, %v9931
        %v9965 = vmul.f32 %v9645, %v9931
        %v9966 = vmul.f32 %v9646, %v9932
        %v9967 = vmul.f32 %v9647, %v9932
        %v9968 = vmul.f32 %v9648, %v9933
        %v9969 = vmul.f32 %v9649, %v9933
        %v9970 = vmul.f32 %v9650, %v9934
        %v9971 = vmul.f32 %v9651, %v9934
        %v9972 = vmul.f32 %v9652, %v9935
        %v9973 = vmul.f32 %v9653, %v9935
        %v9974 = vmul.f32 %v9654, %v9936
        %v9975 = vmul.f32 %v9655, %v9936
        %v9976 = vmul.f32 %v9656, %v9937
        %v9977 = vmul.f32 %v9657, %v9937
        %v9978 = vmul.f32 %v9658, %v9938
        %v9979 = vmul.f32 %v9659, %v9938
        %v9980 = vmul.f32 %v9660, %v9939
        %v9981 = vmul.f32 %v9661, %v9939
        %v9982 = vmul.f32 %v9662, %v9940
        %v9983 = vmul.f32 %v9663, %v9940
        %v9984 = vmul.f32 %v9664, %v9941
        %v9985 = vmul.f32 %v9665, %v9941
        %v9986 = vmul.f32 %v9666, %v9942
        %v9987 = vmul.f32 %v9667, %v9942
        %v9988 = vmul.f32 %v9668, %v9943
        %v9989 = vmul.f32 %v9669, %v9943
        %v9990 = vmul.f32 %v9670, %v9944
        %v9991 = vmul.f32 %v9671, %v9944
        %v9992 = vmul.f32 %v9672, %v9945
        %v9993 = vmul.f32 %v9673, %v9945
        %v9994 = vmul.f32 %v9674, %v9946
        %v9995 = vmul.f32 %v9675, %v9946
        %v9996 = vmul.f32 %v9676, %v9947
        %v9997 = vmul.f32 %v9677, %v9947
        %v9998 = vmul.f32 %v9678, %v9948
        %v9999 = vmul.f32 %v9679, %v9948
        %v10000 = vmul.f32 %v9680, %v9949
        %v10001 = vmul.f32 %v9681, %v9949
        %v10002 = vmul.f32 %v9682, %v9950
        %v10003 = vmul.f32 %v9683, %v9950
        %v10004 = vmul.f32 %v9684, %v9951
        %v10005 = vmul.f32 %v9685, %v9951
        %v10006 = vmul.f32 %v9686, %v9952
        %v10007 = vmul.f32 %v9687, %v9952
        %v10008 = vmul.f32 %v9688, %v9953
        %v10009 = vmul.f32 %v9689, %v9953
        %v10010 = vmul.f32 %v9690, %v9954
        %v10011 = vmul.f32 %v9691, %v9954
        %v10012 = vmul.f32 %v9692, %v9955
        %v10013 = vmul.f32 %v9693, %v9955
        %v10014 = vmul.f32 %v9694, %v9956
        %v10015 = vmul.f32 %v9695, %v9956
        %v10016 = vmul.f32 %v9696, %v9957
        %v10017 = vmul.f32 %v9697, %v9957
        %v10018 = vmul.f32 %v9698, %v9958
        %v10019 = vmul.f32 %v9699, %v9958
        %v10020 = vmul.f32 %v9700, %v9959
        %v10021 = vmul.f32 %v9701, %v9959
        %v10022 = vmul.f32 %v9702, %v9960
        %v10023 = vmul.f32 %v9703, %v9960
        %v10024 = vmul.f32 %v9704, %v9961
        %v10025 = vmul.f32 %v9705, %v9961
        %v10026 = vld [vmem:[%s8] sm:$0x3]
        %v10028 = vlaneseq
        %v10029 = vshrl.u32 %v10028, 7
        %v10030 = vsub.s32 0, %v10029
        %v10031 = vrot.slane %v10026, %v10030
        %v10032 = vlaneseq
        %v10033 = vshrl.u32 %v10032, 7
        %v10034 = vsub.s32 1, %v10033
        %v10035 = vrot.slane %v10026, %v10034
        %v10038 = vmul.f32 %v9962, %v10031
        %v10039 = vmul.f32 %v9963, %v10035
        %v10040 = vmul.f32 %v9964, %v10031
        %v10041 = vmul.f32 %v9965, %v10035
        %v10042 = vmul.f32 %v9966, %v10031
        %v10043 = vmul.f32 %v9967, %v10035
        %v10044 = vmul.f32 %v9968, %v10031
        %v10045 = vmul.f32 %v9969, %v10035
        %v10046 = vmul.f32 %v9970, %v10031
        %v10047 = vmul.f32 %v9971, %v10035
        %v10048 = vmul.f32 %v9972, %v10031
        %v10049 = vmul.f32 %v9973, %v10035
        %v10050 = vmul.f32 %v9974, %v10031
        %v10051 = vmul.f32 %v9975, %v10035
        %v10052 = vmul.f32 %v9976, %v10031
        %v10053 = vmul.f32 %v9977, %v10035
        %v10054 = vmul.f32 %v9978, %v10031
        %v10055 = vmul.f32 %v9979, %v10035
        %v10056 = vmul.f32 %v9980, %v10031
        %v10057 = vmul.f32 %v9981, %v10035
        %v10058 = vmul.f32 %v9982, %v10031
        %v10059 = vmul.f32 %v9983, %v10035
        %v10060 = vmul.f32 %v9984, %v10031
        %v10061 = vmul.f32 %v9985, %v10035
        %v10062 = vmul.f32 %v9986, %v10031
        %v10063 = vmul.f32 %v9987, %v10035
        %v10064 = vmul.f32 %v9988, %v10031
        %v10065 = vmul.f32 %v9989, %v10035
        %v10066 = vmul.f32 %v9990, %v10031
        %v10067 = vmul.f32 %v9991, %v10035
        %v10068 = vmul.f32 %v9992, %v10031
        %v10069 = vmul.f32 %v9993, %v10035
        %v10070 = vmul.f32 %v9994, %v10031
        %v10071 = vmul.f32 %v9995, %v10035
        %v10072 = vmul.f32 %v9996, %v10031
        %v10073 = vmul.f32 %v9997, %v10035
        %v10074 = vmul.f32 %v9998, %v10031
        %v10075 = vmul.f32 %v9999, %v10035
        %v10076 = vmul.f32 %v10000, %v10031
        %v10077 = vmul.f32 %v10001, %v10035
        %v10078 = vmul.f32 %v10002, %v10031
        %v10079 = vmul.f32 %v10003, %v10035
        %v10080 = vmul.f32 %v10004, %v10031
        %v10081 = vmul.f32 %v10005, %v10035
        %v10082 = vmul.f32 %v10006, %v10031
        %v10083 = vmul.f32 %v10007, %v10035
        %v10084 = vmul.f32 %v10008, %v10031
        %v10085 = vmul.f32 %v10009, %v10035
        %v10086 = vmul.f32 %v10010, %v10031
        %v10087 = vmul.f32 %v10011, %v10035
        %v10088 = vmul.f32 %v10012, %v10031
        %v10089 = vmul.f32 %v10013, %v10035
        %v10090 = vmul.f32 %v10014, %v10031
        %v10091 = vmul.f32 %v10015, %v10035
        %v10092 = vmul.f32 %v10016, %v10031
        %v10093 = vmul.f32 %v10017, %v10035
        %v10094 = vmul.f32 %v10018, %v10031
        %v10095 = vmul.f32 %v10019, %v10035
        %v10096 = vmul.f32 %v10020, %v10031
        %v10097 = vmul.f32 %v10021, %v10035
        %v10098 = vmul.f32 %v10022, %v10031
        %v10099 = vmul.f32 %v10023, %v10035
        %v10100 = vmul.f32 %v10024, %v10031
        %v10101 = vmul.f32 %v10025, %v10035
        %v10102 = vld [vmem:[%s9] sm:$0x3]
        %v10104 = vlaneseq
        %v10105 = vshrl.u32 %v10104, 7
        %v10106 = vsub.s32 0, %v10105
        %v10107 = vrot.slane %v10102, %v10106
        %v10108 = vlaneseq
        %v10109 = vshrl.u32 %v10108, 7
        %v10110 = vsub.s32 1, %v10109
        %v10111 = vrot.slane %v10102, %v10110
        %v10114 = vadd.f32 %v10038, %v10107
        %v10115 = vadd.f32 %v10039, %v10111
        %v10116 = vadd.f32 %v10040, %v10107
        %v10117 = vadd.f32 %v10041, %v10111
        %v10118 = vadd.f32 %v10042, %v10107
        %v10119 = vadd.f32 %v10043, %v10111
        %v10120 = vadd.f32 %v10044, %v10107
        %v10121 = vadd.f32 %v10045, %v10111
        %v10122 = vadd.f32 %v10046, %v10107
        %v10123 = vadd.f32 %v10047, %v10111
        %v10124 = vadd.f32 %v10048, %v10107
        %v10125 = vadd.f32 %v10049, %v10111
        %v10126 = vadd.f32 %v10050, %v10107
        %v10127 = vadd.f32 %v10051, %v10111
        %v10128 = vadd.f32 %v10052, %v10107
        %v10129 = vadd.f32 %v10053, %v10111
        %v10130 = vadd.f32 %v10054, %v10107
        %v10131 = vadd.f32 %v10055, %v10111
        %v10132 = vadd.f32 %v10056, %v10107
        %v10133 = vadd.f32 %v10057, %v10111
        %v10134 = vadd.f32 %v10058, %v10107
        %v10135 = vadd.f32 %v10059, %v10111
        %v10136 = vadd.f32 %v10060, %v10107
        %v10137 = vadd.f32 %v10061, %v10111
        %v10138 = vadd.f32 %v10062, %v10107
        %v10139 = vadd.f32 %v10063, %v10111
        %v10140 = vadd.f32 %v10064, %v10107
        %v10141 = vadd.f32 %v10065, %v10111
        %v10142 = vadd.f32 %v10066, %v10107
        %v10143 = vadd.f32 %v10067, %v10111
        %v10144 = vadd.f32 %v10068, %v10107
        %v10145 = vadd.f32 %v10069, %v10111
        %v10146 = vadd.f32 %v10070, %v10107
        %v10147 = vadd.f32 %v10071, %v10111
        %v10148 = vadd.f32 %v10072, %v10107
        %v10149 = vadd.f32 %v10073, %v10111
        %v10150 = vadd.f32 %v10074, %v10107
        %v10151 = vadd.f32 %v10075, %v10111
        %v10152 = vadd.f32 %v10076, %v10107
        %v10153 = vadd.f32 %v10077, %v10111
        %v10154 = vadd.f32 %v10078, %v10107
        %v10155 = vadd.f32 %v10079, %v10111
        %v10156 = vadd.f32 %v10080, %v10107
        %v10157 = vadd.f32 %v10081, %v10111
        %v10158 = vadd.f32 %v10082, %v10107
        %v10159 = vadd.f32 %v10083, %v10111
        %v10160 = vadd.f32 %v10084, %v10107
        %v10161 = vadd.f32 %v10085, %v10111
        %v10162 = vadd.f32 %v10086, %v10107
        %v10163 = vadd.f32 %v10087, %v10111
        %v10164 = vadd.f32 %v10088, %v10107
        %v10165 = vadd.f32 %v10089, %v10111
        %v10166 = vadd.f32 %v10090, %v10107
        %v10167 = vadd.f32 %v10091, %v10111
        %v10168 = vadd.f32 %v10092, %v10107
        %v10169 = vadd.f32 %v10093, %v10111
        %v10170 = vadd.f32 %v10094, %v10107
        %v10171 = vadd.f32 %v10095, %v10111
        %v10172 = vadd.f32 %v10096, %v10107
        %v10173 = vadd.f32 %v10097, %v10111
        %v10174 = vadd.f32 %v10098, %v10107
        %v10175 = vadd.f32 %v10099, %v10111
        %v10176 = vadd.f32 %v10100, %v10107
        %v10177 = vadd.f32 %v10101, %v10111
        %v10178 = vpack.c.bf16 %v10116, %v10114
        %v10179 = vpack.c.bf16 %v10117, %v10115
        %v10180 = vpack.c.bf16 %v10120, %v10118
        %v10181 = vpack.c.bf16 %v10121, %v10119
        %v10182 = vpack.c.bf16 %v10124, %v10122
        %v10183 = vpack.c.bf16 %v10125, %v10123
        %v10184 = vpack.c.bf16 %v10128, %v10126
        %v10185 = vpack.c.bf16 %v10129, %v10127
        %v10186 = vpack.c.bf16 %v10132, %v10130
        %v10187 = vpack.c.bf16 %v10133, %v10131
        %v10188 = vpack.c.bf16 %v10136, %v10134
        %v10189 = vpack.c.bf16 %v10137, %v10135
        %v10190 = vpack.c.bf16 %v10140, %v10138
        %v10191 = vpack.c.bf16 %v10141, %v10139
        %v10192 = vpack.c.bf16 %v10144, %v10142
        %v10193 = vpack.c.bf16 %v10145, %v10143
        %v10194 = vpack.c.bf16 %v10148, %v10146
        %v10195 = vpack.c.bf16 %v10149, %v10147
        %v10196 = vpack.c.bf16 %v10152, %v10150
        %v10197 = vpack.c.bf16 %v10153, %v10151
        %v10198 = vpack.c.bf16 %v10156, %v10154
        %v10199 = vpack.c.bf16 %v10157, %v10155
        %v10200 = vpack.c.bf16 %v10160, %v10158
        %v10201 = vpack.c.bf16 %v10161, %v10159
        %v10202 = vpack.c.bf16 %v10164, %v10162
        %v10203 = vpack.c.bf16 %v10165, %v10163
        %v10204 = vpack.c.bf16 %v10168, %v10166
        %v10205 = vpack.c.bf16 %v10169, %v10167
        %v10206 = vpack.c.bf16 %v10172, %v10170
        %v10207 = vpack.c.bf16 %v10173, %v10171
        %v10208 = vpack.c.bf16 %v10176, %v10174
        %v10209 = vpack.c.bf16 %v10177, %v10175
        %v10242 = vunpack.c.l.b16 %v10178
        %v10243 = vunpack.c.l.b16 %v10179
        %v10244 = vunpack.c.h.b16 %v10178
        %v10245 = vunpack.c.h.b16 %v10179
        %v10246 = vunpack.c.l.b16 %v10180
        %v10247 = vunpack.c.l.b16 %v10181
        %v10248 = vunpack.c.h.b16 %v10180
        %v10249 = vunpack.c.h.b16 %v10181
        %v10250 = vunpack.c.l.b16 %v10182
        %v10251 = vunpack.c.l.b16 %v10183
        %v10252 = vunpack.c.h.b16 %v10182
        %v10253 = vunpack.c.h.b16 %v10183
        %v10254 = vunpack.c.l.b16 %v10184
        %v10255 = vunpack.c.l.b16 %v10185
        %v10256 = vunpack.c.h.b16 %v10184
        %v10257 = vunpack.c.h.b16 %v10185
        %v10258 = vunpack.c.l.b16 %v10186
        %v10259 = vunpack.c.l.b16 %v10187
        %v10260 = vunpack.c.h.b16 %v10186
        %v10261 = vunpack.c.h.b16 %v10187
        %v10262 = vunpack.c.l.b16 %v10188
        %v10263 = vunpack.c.l.b16 %v10189
        %v10264 = vunpack.c.h.b16 %v10188
        %v10265 = vunpack.c.h.b16 %v10189
        %v10266 = vunpack.c.l.b16 %v10190
        %v10267 = vunpack.c.l.b16 %v10191
        %v10268 = vunpack.c.h.b16 %v10190
        %v10269 = vunpack.c.h.b16 %v10191
        %v10270 = vunpack.c.l.b16 %v10192
        %v10271 = vunpack.c.l.b16 %v10193
        %v10272 = vunpack.c.h.b16 %v10192
        %v10273 = vunpack.c.h.b16 %v10193
        %v10274 = vunpack.c.l.b16 %v10194
        %v10275 = vunpack.c.l.b16 %v10195
        %v10276 = vunpack.c.h.b16 %v10194
        %v10277 = vunpack.c.h.b16 %v10195
        %v10278 = vunpack.c.l.b16 %v10196
        %v10279 = vunpack.c.l.b16 %v10197
        %v10280 = vunpack.c.h.b16 %v10196
        %v10281 = vunpack.c.h.b16 %v10197
        %v10282 = vunpack.c.l.b16 %v10198
        %v10283 = vunpack.c.l.b16 %v10199
        %v10284 = vunpack.c.h.b16 %v10198
        %v10285 = vunpack.c.h.b16 %v10199
        %v10286 = vunpack.c.l.b16 %v10200
        %v10287 = vunpack.c.l.b16 %v10201
        %v10288 = vunpack.c.h.b16 %v10200
        %v10289 = vunpack.c.h.b16 %v10201
        %v10290 = vunpack.c.l.b16 %v10202
        %v10291 = vunpack.c.l.b16 %v10203
        %v10292 = vunpack.c.h.b16 %v10202
        %v10293 = vunpack.c.h.b16 %v10203
        %v10294 = vunpack.c.l.b16 %v10204
        %v10295 = vunpack.c.l.b16 %v10205
        %v10296 = vunpack.c.h.b16 %v10204
        %v10297 = vunpack.c.h.b16 %v10205
        %v10298 = vunpack.c.l.b16 %v10206
        %v10299 = vunpack.c.l.b16 %v10207
        %v10300 = vunpack.c.h.b16 %v10206
        %v10301 = vunpack.c.h.b16 %v10207
        %v10302 = vunpack.c.l.b16 %v10208
        %v10303 = vunpack.c.l.b16 %v10209
        %v10304 = vunpack.c.h.b16 %v10208
        %v10305 = vunpack.c.h.b16 %v10209
        %v10306 = vpack.c.b16 %v10243, %v10242
        %v10307 = vpack.c.b16 %v10245, %v10244
        %v10308 = vpack.c.b16 %v10247, %v10246
        %v10309 = vpack.c.b16 %v10249, %v10248
        %v10310 = vpack.c.b16 %v10251, %v10250
        %v10311 = vpack.c.b16 %v10253, %v10252
        %v10312 = vpack.c.b16 %v10255, %v10254
        %v10313 = vpack.c.b16 %v10257, %v10256
        %v10314 = vpack.c.b16 %v10259, %v10258
        %v10315 = vpack.c.b16 %v10261, %v10260
        %v10316 = vpack.c.b16 %v10263, %v10262
        %v10317 = vpack.c.b16 %v10265, %v10264
        %v10318 = vpack.c.b16 %v10267, %v10266
        %v10319 = vpack.c.b16 %v10269, %v10268
        %v10320 = vpack.c.b16 %v10271, %v10270
        %v10321 = vpack.c.b16 %v10273, %v10272
        %v10322 = vpack.c.b16 %v10275, %v10274
        %v10323 = vpack.c.b16 %v10277, %v10276
        %v10324 = vpack.c.b16 %v10279, %v10278
        %v10325 = vpack.c.b16 %v10281, %v10280
        %v10326 = vpack.c.b16 %v10283, %v10282
        %v10327 = vpack.c.b16 %v10285, %v10284
        %v10328 = vpack.c.b16 %v10287, %v10286
        %v10329 = vpack.c.b16 %v10289, %v10288
        %v10330 = vpack.c.b16 %v10291, %v10290
        %v10331 = vpack.c.b16 %v10293, %v10292
        %v10332 = vpack.c.b16 %v10295, %v10294
        %v10333 = vpack.c.b16 %v10297, %v10296
        %v10334 = vpack.c.b16 %v10299, %v10298
        %v10335 = vpack.c.b16 %v10301, %v10300
        %v10336 = vpack.c.b16 %v10303, %v10302
        %v10337 = vpack.c.b16 %v10305, %v10304
        %10370 = vst [vmem:[%s479] sm:$0xff] %v10306
        %10371 = vst [vmem:[%s479 + $0x8] sm:$0xff] %v10307
        %10372 = vst [vmem:[%s479 + $0x10] sm:$0xff] %v10308
        %10373 = vst [vmem:[%s479 + $0x18] sm:$0xff] %v10309
        %10374 = vst [vmem:[%s479 + $0x20] sm:$0xff] %v10310
        %10375 = vst [vmem:[%s479 + $0x28] sm:$0xff] %v10311
        %10376 = vst [vmem:[%s479 + $0x30] sm:$0xff] %v10312
        %10377 = vst [vmem:[%s479 + $0x38] sm:$0xff] %v10313
        %10378 = vst [vmem:[%s479 + $0x40] sm:$0xff] %v10314
        %10379 = vst [vmem:[%s479 + $0x48] sm:$0xff] %v10315
        %10380 = vst [vmem:[%s479 + $0x50] sm:$0xff] %v10316
        %10381 = vst [vmem:[%s479 + $0x58] sm:$0xff] %v10317
        %10382 = vst [vmem:[%s479 + $0x60] sm:$0xff] %v10318
        %10383 = vst [vmem:[%s479 + $0x68] sm:$0xff] %v10319
        %10384 = vst [vmem:[%s479 + $0x70] sm:$0xff] %v10320
        %10385 = vst [vmem:[%s479 + $0x78] sm:$0xff] %v10321
        %10386 = vst [vmem:[%s479 + $0x80] sm:$0xff] %v10322
        %10387 = vst [vmem:[%s479 + $0x88] sm:$0xff] %v10323
        %10388 = vst [vmem:[%s479 + $0x90] sm:$0xff] %v10324
        %10389 = vst [vmem:[%s479 + $0x98] sm:$0xff] %v10325
        %10390 = vst [vmem:[%s479 + $0xa0] sm:$0xff] %v10326
        %10391 = vst [vmem:[%s479 + $0xa8] sm:$0xff] %v10327
        %10392 = vst [vmem:[%s479 + $0xb0] sm:$0xff] %v10328
        %10393 = vst [vmem:[%s479 + $0xb8] sm:$0xff] %v10329
        %10394 = vst [vmem:[%s479 + $0xc0] sm:$0xff] %v10330
        %10395 = vst [vmem:[%s479 + $0xc8] sm:$0xff] %v10331
        %10396 = vst [vmem:[%s479 + $0xd0] sm:$0xff] %v10332
        %10397 = vst [vmem:[%s479 + $0xd8] sm:$0xff] %v10333
        %10398 = vst [vmem:[%s479 + $0xe0] sm:$0xff] %v10334
        %10399 = vst [vmem:[%s479 + $0xe8] sm:$0xff] %v10335
        %10400 = vst [vmem:[%s479 + $0xf0] sm:$0xff] %v10336
        %10401 = vst [vmem:[%s479 + $0xf8] sm:$0xff] %v10337
        %s10402 = sand.u32 %s275, 1
        %s10403 = scalar_lea.sflag [#allocation6], %s10402
        %s10404 = sand.u32 %s275, 1
        %s10405 = smul.addr %s10404, 256
        %s10406 = scalar_lea.vmem [#allocation13], %s10405
        // Predicated region
        $region85: #{tpu_custom_call.1} parent=59 // pred_check
          %p10407 = pneg %p285
        $region86: #{tpu_custom_call.1} parent=59 // pred_check_branch
          %10409 = sbr.rel (%p10407) target = $region88
        $region87: #{tpu_custom_call.1} parent=59 // pred_region
          %s10410 = smul.u32 32, %s36
          %s10412 = ssub.s32 4096, 4096
          %10413 = vsyncadd %s10403, %s10412
          %s10414 = smul.addr %s10410, 2
          %s10415 = smul.addr %s35, 128
          %s10416 = sadd.s32 %s10414, %s10415
          %s10417 = smul.addr %s10416, 64
          %s10418 = scalar_lea.hbm %s10, %s10417
          %s10419 = sshll.u32 %s10406, 4
          %s10420 = int_to_ptr.vmem [resolvable:$true] %s10419
          %10425 = dma.vmem_to_hbm [thread:$0]  %s10420, 4096, %s10418, %s10403, 128, 128, 8
        $region88: #{tpu_custom_call.1} parent=59 // pred_fallthru
          _
      $region60: #{tpu_custom_call.1} parent=5 // pred_fallthru
        _
      %p10426 = scmp.le.s32.totalorder 2, %s26
      // Predicated region
      $region89: #{tpu_custom_call.1} parent=5 // pred_check
        %p10427 = pneg %p10426
      $region90: #{tpu_custom_call.1} parent=5 // pred_check_branch
        %10429 = sbr.rel (%p10427) target = $region92
      $region91: #{tpu_custom_call.1} parent=5 // pred_region
        %s10430 = ssub.s32 %s26, 2
        // Predicated region
        $region93: #{tpu_custom_call.1} parent=91 // pred_check
          %p10431 = pneg %p291
        $region94: #{tpu_custom_call.1} parent=91 // pred_check_branch
          %10433 = sbr.rel (%p10431) target = $region96
        $region95: #{tpu_custom_call.1} parent=91 // pred_region
          %s10434 = sand.u32 %s276, 1
          %s10435 = scalar_lea.sflag [#allocation6], %s10434
          %s10436 = sand.u32 %s276, 1
          %s10437 = smul.addr %s10436, 256
          %s10438 = scalar_lea.vmem [#allocation13], %s10437
          %10439 = dma.done %s10435, 4096
        $region96: #{tpu_custom_call.1} parent=91 // pred_fallthru
          _
      $region92: #{tpu_custom_call.1} parent=5 // pred_fallthru
        _
    $region6: #{tpu_custom_call.1} parent=1 // loop_footer
      %s30 = sadd.s32 1, %s26
    $region7: #{tpu_custom_call.1} parent=1 // loop_footer_branch
      %25 = sbr.rel target = $region3
    $region8: #{tpu_custom_call.1} parent=1 // loop_exit
      _
    %10440 = vsyncpa [#allocation5], 1
    %s10441 = scalar_lea.sflag [#allocation5], 1
    %10442 = vsyncpa %s10441, 1
    %10443 = vsyncpa [#allocation8], 1
    %s10444 = scalar_lea.sflag [#allocation8], 1
    %10445 = vsyncpa %s10444, 1
    %10446 = vsyncpa [#allocation11], 1
    %10447 = vsyncpa [#allocation6], 1
    %s10448 = scalar_lea.sflag [#allocation6], 1
    %10449 = vsyncpa %s10448, 1

</llo_original>
